<compile_context>
chip_gen: v7x
topology: tpu7x:2x2x1
jax: 0.10.0
libtpu: 0.0.40
codegen_flags: <defaults>
</compile_context>

<pallas_src>
import functools

import numpy as np
import jax
import jax.numpy as jnp
from jax.experimental import pallas as pl
from jax.experimental.pallas import tpu as pltpu


_VMEM_LIMIT = 32 * 1024 * 1024  # well under physical VMEM on v5e/v6e/v7x


def _cparams():
    return pltpu.CompilerParams(
        dimension_semantics=("parallel",),
        vmem_limit_bytes=_VMEM_LIMIT,
    )


# --------------------------------------------------------------------------- #
# Kernel A: conv1+ReLU+pool -> conv2+ReLU+pool, fully fused per image.
# --------------------------------------------------------------------------- #

def _make_conv_stack_kernel(c1, c2):
    def kernel(pt_ref, w1_ref, b1_ref, w2_ref, b2_ref, out_ref, p1_ref):
        # pt_ref : [1, 7, 7, 36]   taps[r,j,A*6+B] = xpad[4r+A, 4j+B]
        # w1_ref : [36, 16*c1]     effective conv1 weights (16 groups of c1)
        # b1_ref : [1, c1]
        # w2_ref : [c1, 9*c2]      conv2 weights, 9 taps concatenated on lanes
        # b2_ref : [1, c2]
        # out_ref: [1, 7, 7, c2]   pooled2 (NHWC)
        # p1_ref : [4, 8, 8, c1]   VMEM scratch: parity-split padded pooled1

        # ---- stage 1: conv1 + bias + ReLU + 2x2 max-pool -------------------
        p1_ref[...] = jnp.zeros_like(p1_ref)
        pt = pt_ref[0]                                          # [7, 7, 36]
        wb1 = jnp.broadcast_to(w1_ref[...], (7, 36, 16 * c1))   # hoisted once
        # One lane-dense batched MXU matmul: all 16 (pool-offset, conv-offset)
        # variants of conv1 for every pooled pixel.
        z = jnp.einsum("rjt,rtm->rjm", pt, wb1,
                       preferred_element_type=jnp.float32)      # [7, 7, 16*c1]
        bias1 = b1_ref[...]                                     # [1, c1]
        for rp in (0, 1):
            for cp in (0, 1):
                best = None
                for dy in (0, 1):
                    for dx in (0, 1):
                        g = ((rp * 2 + cp) * 2 + dy) * 2 + dx
                        acc = jnp.maximum(
                            z[:, :, g * c1:(g + 1) * c1] + bias1, 0.0)
                        best = acc if best is None else jnp.maximum(best, acc)
                # plane (a,b)=(1-rp,1-cp): P[a,b,rh,ch]=pooled1[2rh+a-1,2ch+b-1]
                p1_ref[(1 - rp) * 2 + (1 - cp), rp:rp + 7, cp:cp + 7, :] = best

        # ---- stage 2: conv2 + bias + ReLU + 2x2 max-pool -------------------
        wb2 = jnp.broadcast_to(w2_ref[...], (7, c1, 9 * c2))    # hoisted once
        bias2 = b2_ref[...]                                     # [1, c2]
        # 16 distinct (u, v) taps of the 3x3 conv over both pool offsets; each
        # contracted against all 9 conv offsets at once (lane-dense N = 9*c2).
        qc = {}
        for u in range(4):
            for v in range(4):
                q = p1_ref[(u % 2) * 2 + (v % 2),
                           u // 2:u // 2 + 7, v // 2:v // 2 + 7, :]  # [7,7,c1]
                qc[(u, v)] = jnp.einsum(
                    "rjc,rcd->rjd", q, wb2,
                    preferred_element_type=jnp.float32)              # [7,7,9*c2]
        best2 = None
        for dy in (0, 1):
            for dx in (0, 1):
                acc = jnp.zeros((7, 7, c2), jnp.float32) + bias2
                for ky in range(3):
                    for kx in range(3):
                        k = ky * 3 + kx
                        acc = acc + qc[(dy + ky, dx + kx)][:, :,
                                                           k * c2:(k + 1) * c2]
                acc = jnp.maximum(acc, 0.0)
                best2 = acc if best2 is None else jnp.maximum(best2, acc)
        out_ref[0] = best2
    return kernel


def conv_stack(taps, w1_eff, b1, w2cat, b2, c1, c2):
    B = taps.shape[0]
    return pl.pallas_call(
        _make_conv_stack_kernel(c1, c2),
        out_shape=jax.ShapeDtypeStruct((B, 7, 7, c2), jnp.float32),
        grid=(B,),
        in_specs=[
            pl.BlockSpec((1, 7, 7, 36), lambda b: (b, 0, 0, 0)),
            pl.BlockSpec((36, 16 * c1), lambda b: (0, 0)),
            pl.BlockSpec((1, c1), lambda b: (0, 0)),
            pl.BlockSpec((c1, 9 * c2), lambda b: (0, 0)),
            pl.BlockSpec((1, c2), lambda b: (0, 0)),
        ],
        out_specs=pl.BlockSpec((1, 7, 7, c2), lambda b: (b, 0, 0, 0)),
        scratch_shapes=[pltpu.VMEM((4, 8, 8, c1), jnp.float32)],
        compiler_params=_cparams(),
    )(taps, w1_eff, b1, w2cat, b2)


# --------------------------------------------------------------------------- #
# Kernel B: fused MLP head  fc2(relu(fc1(x))).
# --------------------------------------------------------------------------- #

def _mlp_kernel(x_ref, w1_ref, b1_ref, w2_ref, b2_ref, o_ref):
    h = jnp.dot(x_ref[...], w1_ref[...], preferred_element_type=jnp.float32)
    h = jnp.maximum(h + b1_ref[...], 0.0)
    o_ref[...] = (jnp.dot(h, w2_ref[...], preferred_element_type=jnp.float32)
                  + b2_ref[...])


def mlp_head(x, w1, b1, w2, b2):
    M, K1 = x.shape
    H = w1.shape[1]
    N = w2.shape[1]
    TM = M if M <= 512 else 512      # full block at small batch, tiled if big
    return pl.pallas_call(
        _mlp_kernel,
        out_shape=jax.ShapeDtypeStruct((M, N), jnp.float32),
        grid=(pl.cdiv(M, TM),),
        in_specs=[
            pl.BlockSpec((TM, K1), lambda i: (i, 0)),
            pl.BlockSpec((K1, H), lambda i: (0, 0)),
            pl.BlockSpec((1, H), lambda i: (0, 0)),
            pl.BlockSpec((H, N), lambda i: (0, 0)),
            pl.BlockSpec((1, N), lambda i: (0, 0)),
        ],
        out_specs=pl.BlockSpec((TM, N), lambda i: (i, 0)),
        compiler_params=_cparams(),
    )(x, w1, b1.reshape(1, H), w2, b2.reshape(1, N))


# ------------------------------- trace-time prep --------------------------- #

def _conv1_taps(x):
    """[B,1,28,28] -> [B,7,7,36]; taps[b,r,j,A*6+Bc] = xpad[b, 4r+A, 4j+Bc]."""
    xp = jnp.pad(x[:, 0], ((0, 0), (1, 1), (1, 1)))          # [B, 30, 30]
    cols = [xp[:, A:A + 25:4, Bc:Bc + 25:4]
            for A in range(6) for Bc in range(6)]             # each [B, 7, 7]
    return jnp.stack(cols, axis=-1)                           # [B, 7, 7, 36]


def _conv1_effective_weight(conv1_w, c1):
    """[c1,1,3,3] -> [36, 16*c1]; group g=(rp,cp,dy,dx) places w1[ky,kx] at
    tap (A,Bc) = (2rp+dy+ky, 2cp+dx+kx)."""
    sel = np.zeros((36, 16, 9), dtype=np.float32)
    for rp in (0, 1):
        for cp in (0, 1):
            for dy in (0, 1):
                for dx in (0, 1):
                    g = ((rp * 2 + cp) * 2 + dy) * 2 + dx
                    for ky in range(3):
                        for kx in range(3):
                            A = 2 * rp + dy + ky
                            Bc = 2 * cp + dx + kx
                            sel[A * 6 + Bc, g, ky * 3 + kx] = 1.0
    w1k = conv1_w.reshape(c1, 9).T                            # [9, c1]
    w = jnp.einsum("tgk,kc->tgc", jnp.asarray(sel), w1k,
                   precision=jax.lax.Precision.HIGHEST)       # [36, 16, c1]
    return w.reshape(36, 16 * c1)


def _conv2_weight_cat(conv2_w, c1, c2):
    """[c2,c1,3,3] -> [c1, 9*c2] with w[ci, k*c2+co] = conv2_w[co,ci,ky,kx]."""
    t = jnp.transpose(conv2_w, (2, 3, 1, 0)).reshape(9, c1, c2)   # [k, ci, co]
    return jnp.transpose(t, (1, 0, 2)).reshape(c1, 9 * c2)


def _fc1_weight_nhwc(fc1_w, c2):
    """Permute fc1 rows from torch NCHW flatten order (c*49+i*7+j) to the
    NHWC flatten order (i*7*c2 + j*c2 + c) used by the Pallas pipeline."""
    ii, jj, cc = np.meshgrid(np.arange(7), np.arange(7), np.arange(c2),
                             indexing="ij")
    perm = (cc * 49 + ii * 7 + jj).reshape(-1)
    return fc1_w[jnp.asarray(perm), :]


# --------------------------------- forward --------------------------------- #

def net_dropout_forward(params, x, n_chans1=32):
    """x: [B, 1, 28, 28] (NCHW, f32) -> logits [B, 10] (eval-mode forward)."""
    B = x.shape[0]
    c1 = n_chans1
    c2 = n_chans1 // 2

    # conv1 + ReLU + pool + conv2 + ReLU + pool, single fused Pallas kernel.
    taps = _conv1_taps(x)                                       # [B,7,7,36]
    w1e = _conv1_effective_weight(params["conv1_w"], c1)        # [36, 16*c1]
    w2c = _conv2_weight_cat(params["conv2_w"], c1, c2)          # [c1, 9*c2]
    p2 = conv_stack(taps, w1e, params["conv1_b"].reshape(1, c1),
                    w2c, params["conv2_b"].reshape(1, c2), c1, c2)
    # conv1_dropout / conv2_dropout: nn.Dropout2d is identity in eval mode.
    # TODO(synk): train-mode channel dropout would use pltpu.prng_seed +
    # pltpu.stateful_bernoulli on the channel lanes inside the kernel.

    # flatten (tiny NHWC reshape; torch NCHW view order absorbed into fc1_w
    # row permutation at trace time) + fused MLP head
    flat = p2.reshape(B, 7 * 7 * c2)                            # [B, 784]
    fc1_w = _fc1_weight_nhwc(params["fc1_w"], c2)
    return mlp_head(flat, fc1_w, params["fc1_b"],
                    params["fc2_w"], params["fc2_b"])           # [B, 10]


def init_params(key, n_chans1=32):
    c2 = n_chans1 // 2
    k = jax.random.split(key, 8)

    def u(kk, shape, fan_in):
        bound = 1.0 / float(fan_in) ** 0.5
        return jax.random.uniform(kk, shape, jnp.float32, -bound, bound)

    return dict(
        conv1_w=u(k[0], (n_chans1, 1, 3, 3), 9),
        conv1_b=u(k[1], (n_chans1,), 9),
        conv2_w=u(k[2], (c2, n_chans1, 3, 3), n_chans1 * 9),
        conv2_b=u(k[3], (c2,), n_chans1 * 9),
        fc1_w=u(k[4], (7 * 7 * c2, 32), 7 * 7 * c2),   # stored (in, out)
        fc1_b=u(k[5], (32,), 7 * 7 * c2),
        fc2_w=u(k[6], (32, 10), 32),
        fc2_b=u(k[7], (10,), 32),
    )


# --------------------------- numpy reference check ------------------------- #

def _reference_forward(params, x, n_chans1):
    """Exact eval-mode NetDropout forward in float64 numpy (spec reference)."""
    xn = np.asarray(x, np.float64)
    w1 = np.asarray(params["conv1_w"], np.float64)
    b1 = np.asarray(params["conv1_b"], np.float64)
    w2 = np.asarray(params["conv2_w"], np.float64)
    b2 = np.asarray(params["conv2_b"], np.float64)
    fw1 = np.asarray(params["fc1_w"], np.float64)
    fb1 = np.asarray(params["fc1_b"], np.float64)
    fw2 = np.asarray(params["fc2_w"], np.float64)
    fb2 = np.asarray(params["fc2_b"], np.float64)

    def conv3x3(inp, w, b):
        Bb, Cin, H, W = inp.shape
        Cout = w.shape[0]
        xp = np.pad(inp, ((0, 0), (0, 0), (1, 1), (1, 1)))
        out = np.zeros((Bb, Cout, H, W))
        for ky in range(3):
            for kx in range(3):
                patch = xp[:, :, ky:ky + H, kx:kx + W]
                out += np.einsum("bchw,oc->bohw", patch, w[:, :, ky, kx])
        return out + b[None, :, None, None]

    def pool2(a):
        Bb, C, H, W = a.shape
        return a.reshape(Bb, C, H // 2, 2, W // 2, 2).max(axis=(3, 5))

    h = pool2(np.maximum(conv3x3(xn, w1, b1), 0.0))
    h = pool2(np.maximum(conv3x3(h, w2, b2), 0.0))
    h = h.reshape(xn.shape[0], -1)                     # NCHW flatten
    h = np.maximum(h @ fw1 + fb1, 0.0)
    return h @ fw2 + fb2


# ----------------------------------- main ----------------------------------- #

if __name__ == "__main__":
    n_chans1 = 32
    key = jax.random.PRNGKey(0)
    kx, kp = jax.random.split(key)
    x = jax.random.normal(kx, (2, 1, 28, 28), dtype=jnp.float32)
    params = init_params(kp, n_chans1)

    fwd = jax.jit(functools.partial(net_dropout_forward, n_chans1=n_chans1))
    out = jax.block_until_ready(fwd(params, x))

    assert out.shape == (2, 10), out.shape
    assert out.dtype == jnp.float32
    assert bool(jnp.all(jnp.isfinite(out)))

    ref = _reference_forward(params, x, n_chans1)
    np.testing.assert_allclose(np.asarray(out), ref, rtol=2e-2, atol=2e-2)

    print("KERNEL_OK")
</pallas_src>

<mosaic_0001>
module attributes {stable_mosaic.version = 11 : i64} {
  func.func @kernel(%arg0: i32, %arg1: memref<1x7x7x36xf32, #tpu.memory_space<vmem>>, %arg2: memref<36x512xf32, #tpu.memory_space<vmem>>, %arg3: memref<1x32xf32, #tpu.memory_space<vmem>>, %arg4: memref<32x144xf32, #tpu.memory_space<vmem>>, %arg5: memref<1x16xf32, #tpu.memory_space<vmem>>, %arg6: memref<1x7x7x16xf32, #tpu.memory_space<vmem>>, %arg7: memref<4x8x8x32xf32, #tpu.memory_space<vmem>>) attributes {dimension_semantics = [#tpu.dimension_semantics<parallel>], iteration_bounds = array<i64: 2>, scalar_prefetch = 0 : i64, scratch_operands = 1 : i64, tpu.core_type = #tpu.core_type<tc>, window_params = [{transform_indices = @transform_0, window_bounds = array<i64: 1, 7, 7, 36>}, {pipeline_mode = #tpu.pipeline_mode<synchronous>, transform_indices = @transform_1, window_bounds = array<i64: 36, 512>}, {pipeline_mode = #tpu.pipeline_mode<synchronous>, transform_indices = @transform_2, window_bounds = array<i64: 1, 32>}, {pipeline_mode = #tpu.pipeline_mode<synchronous>, transform_indices = @transform_3, window_bounds = array<i64: 32, 144>}, {pipeline_mode = #tpu.pipeline_mode<synchronous>, transform_indices = @transform_4, window_bounds = array<i64: 1, 16>}, {transform_indices = @transform_5, window_bounds = array<i64: 1, 7, 7, 16>}]} {
    %cst = arith.constant 0.000000e+00 : f32
    %0 = vector.broadcast %cst : f32 to vector<4x8x8x32xf32>
    %c0 = arith.constant 0 : index
    %c0_0 = arith.constant 0 : index
    %c0_1 = arith.constant 0 : index
    %c0_2 = arith.constant 0 : index
    %1 = vector.load %arg7[%c0, %c0_0, %c0_1, %c0_2] : memref<4x8x8x32xf32, #tpu.memory_space<vmem>>, vector<4x8x8x32xf32>
    tpu.vector_store %arg7[%c0, %c0_0, %c0_1, %c0_2], %0 {strides = array<i32>} : memref<4x8x8x32xf32, #tpu.memory_space<vmem>>, vector<4x8x8x32xf32>,
    %c0_3 = arith.constant 0 : index
    %c0_4 = arith.constant 0 : index
    %c0_5 = arith.constant 0 : index
    %c0_6 = arith.constant 0 : index
    %2 = vector.load %arg1[%c0_3, %c0_4, %c0_5, %c0_6] : memref<1x7x7x36xf32, #tpu.memory_space<vmem>>, vector<1x7x7x36xf32>
    %3 = vector.shape_cast %2 : vector<1x7x7x36xf32> to vector<7x7x36xf32>
    %c0_7 = arith.constant 0 : index
    %c0_8 = arith.constant 0 : index
    %4 = vector.load %arg2[%c0_7, %c0_8] : memref<36x512xf32, #tpu.memory_space<vmem>>, vector<36x512xf32>
    %5 = vector.shape_cast %4 : vector<36x512xf32> to vector<1x36x512xf32>
    %6 = vector.broadcast %5 : vector<1x36x512xf32> to vector<7x36x512xf32>
    "tpu.trace_start"() <{level = 10 : i32, message = "rjt,rtm->rjm"}> : () -> ()
    %cst_9 = arith.constant dense<0.000000e+00> : vector<7x7x512xf32>
    %7 = tpu.matmul %3, %6, %cst_9 {dimension_numbers = #tpu.dot_dimension_numbers<[2], [1], [1], [2], [0, 0, 0, 1, 1, 2], [0], [0]>} : vector<7x7x36xf32>, vector<7x36x512xf32>, vector<7x7x512xf32> -> vector<7x7x512xf32>
    "tpu.trace_stop"() : () -> ()
    %c0_10 = arith.constant 0 : index
    %c0_11 = arith.constant 0 : index
    %8 = vector.load %arg3[%c0_10, %c0_11] : memref<1x32xf32, #tpu.memory_space<vmem>>, vector<1x32xf32>
    %9 = vector.extract_strided_slice %7 {offsets = [0, 0, 0], sizes = [7, 7, 32], strides = [1, 1, 1]} : vector<7x7x512xf32> to vector<7x7x32xf32>
    %10 = vector.shape_cast %8 : vector<1x32xf32> to vector<1x1x32xf32>
    %11 = vector.broadcast %10 : vector<1x1x32xf32> to vector<7x7x32xf32>
    %12 = arith.addf %9, %11 : vector<7x7x32xf32>
    %cst_12 = arith.constant 0.000000e+00 : f32
    %13 = vector.broadcast %cst_12 : f32 to vector<7x7x32xf32>
    %14 = arith.maximumf %12, %13 : vector<7x7x32xf32>
    %15 = vector.extract_strided_slice %7 {offsets = [0, 0, 32], sizes = [7, 7, 32], strides = [1, 1, 1]} : vector<7x7x512xf32> to vector<7x7x32xf32>
    %16 = vector.shape_cast %8 : vector<1x32xf32> to vector<1x1x32xf32>
    %17 = vector.broadcast %16 : vector<1x1x32xf32> to vector<7x7x32xf32>
    %18 = arith.addf %15, %17 : vector<7x7x32xf32>
    %cst_13 = arith.constant 0.000000e+00 : f32
    %19 = vector.broadcast %cst_13 : f32 to vector<7x7x32xf32>
    %20 = arith.maximumf %18, %19 : vector<7x7x32xf32>
    %21 = arith.maximumf %14, %20 : vector<7x7x32xf32>
    %22 = vector.extract_strided_slice %7 {offsets = [0, 0, 64], sizes = [7, 7, 32], strides = [1, 1, 1]} : vector<7x7x512xf32> to vector<7x7x32xf32>
    %23 = vector.shape_cast %8 : vector<1x32xf32> to vector<1x1x32xf32>
    %24 = vector.broadcast %23 : vector<1x1x32xf32> to vector<7x7x32xf32>
    %25 = arith.addf %22, %24 : vector<7x7x32xf32>
    %cst_14 = arith.constant 0.000000e+00 : f32
    %26 = vector.broadcast %cst_14 : f32 to vector<7x7x32xf32>
    %27 = arith.maximumf %25, %26 : vector<7x7x32xf32>
    %28 = arith.maximumf %21, %27 : vector<7x7x32xf32>
    %29 = vector.extract_strided_slice %7 {offsets = [0, 0, 96], sizes = [7, 7, 32], strides = [1, 1, 1]} : vector<7x7x512xf32> to vector<7x7x32xf32>
    %30 = vector.shape_cast %8 : vector<1x32xf32> to vector<1x1x32xf32>
    %31 = vector.broadcast %30 : vector<1x1x32xf32> to vector<7x7x32xf32>
    %32 = arith.addf %29, %31 : vector<7x7x32xf32>
    %cst_15 = arith.constant 0.000000e+00 : f32
    %33 = vector.broadcast %cst_15 : f32 to vector<7x7x32xf32>
    %34 = arith.maximumf %32, %33 : vector<7x7x32xf32>
    %35 = arith.maximumf %28, %34 : vector<7x7x32xf32>
    %c3 = arith.constant 3 : index
    %c0_16 = arith.constant 0 : index
    %c0_17 = arith.constant 0 : index
    %c0_18 = arith.constant 0 : index
    %36 = vector.load %arg7[%c3, %c0_16, %c0_17, %c0_18] : memref<4x8x8x32xf32, #tpu.memory_space<vmem>>, vector<1x7x7x32xf32>
    %37 = vector.shape_cast %36 : vector<1x7x7x32xf32> to vector<7x7x32xf32>
    %38 = vector.shape_cast %35 : vector<7x7x32xf32> to vector<1x7x7x32xf32>
    tpu.vector_store %arg7[%c3, %c0_16, %c0_17, %c0_18], %38 {strides = array<i32>} : memref<4x8x8x32xf32, #tpu.memory_space<vmem>>, vector<1x7x7x32xf32>,
    %39 = vector.extract_strided_slice %7 {offsets = [0, 0, 128], sizes = [7, 7, 32], strides = [1, 1, 1]} : vector<7x7x512xf32> to vector<7x7x32xf32>
    %40 = vector.shape_cast %8 : vector<1x32xf32> to vector<1x1x32xf32>
    %41 = vector.broadcast %40 : vector<1x1x32xf32> to vector<7x7x32xf32>
    %42 = arith.addf %39, %41 : vector<7x7x32xf32>
    %cst_19 = arith.constant 0.000000e+00 : f32
    %43 = vector.broadcast %cst_19 : f32 to vector<7x7x32xf32>
    %44 = arith.maximumf %42, %43 : vector<7x7x32xf32>
    %45 = vector.extract_strided_slice %7 {offsets = [0, 0, 160], sizes = [7, 7, 32], strides = [1, 1, 1]} : vector<7x7x512xf32> to vector<7x7x32xf32>
    %46 = vector.shape_cast %8 : vector<1x32xf32> to vector<1x1x32xf32>
    %47 = vector.broadcast %46 : vector<1x1x32xf32> to vector<7x7x32xf32>
    %48 = arith.addf %45, %47 : vector<7x7x32xf32>
    %cst_20 = arith.constant 0.000000e+00 : f32
    %49 = vector.broadcast %cst_20 : f32 to vector<7x7x32xf32>
    %50 = arith.maximumf %48, %49 : vector<7x7x32xf32>
    %51 = arith.maximumf %44, %50 : vector<7x7x32xf32>
    %52 = vector.extract_strided_slice %7 {offsets = [0, 0, 192], sizes = [7, 7, 32], strides = [1, 1, 1]} : vector<7x7x512xf32> to vector<7x7x32xf32>
    %53 = vector.shape_cast %8 : vector<1x32xf32> to vector<1x1x32xf32>
    %54 = vector.broadcast %53 : vector<1x1x32xf32> to vector<7x7x32xf32>
    %55 = arith.addf %52, %54 : vector<7x7x32xf32>
    %cst_21 = arith.constant 0.000000e+00 : f32
    %56 = vector.broadcast %cst_21 : f32 to vector<7x7x32xf32>
    %57 = arith.maximumf %55, %56 : vector<7x7x32xf32>
    %58 = arith.maximumf %51, %57 : vector<7x7x32xf32>
    %59 = vector.extract_strided_slice %7 {offsets = [0, 0, 224], sizes = [7, 7, 32], strides = [1, 1, 1]} : vector<7x7x512xf32> to vector<7x7x32xf32>
    %60 = vector.shape_cast %8 : vector<1x32xf32> to vector<1x1x32xf32>
    %61 = vector.broadcast %60 : vector<1x1x32xf32> to vector<7x7x32xf32>
    %62 = arith.addf %59, %61 : vector<7x7x32xf32>
    %cst_22 = arith.constant 0.000000e+00 : f32
    %63 = vector.broadcast %cst_22 : f32 to vector<7x7x32xf32>
    %64 = arith.maximumf %62, %63 : vector<7x7x32xf32>
    %65 = arith.maximumf %58, %64 : vector<7x7x32xf32>
    %c2 = arith.constant 2 : index
    %c0_23 = arith.constant 0 : index
    %c1 = arith.constant 1 : index
    %c0_24 = arith.constant 0 : index
    %66 = vector.load %arg7[%c2, %c0_23, %c1, %c0_24] : memref<4x8x8x32xf32, #tpu.memory_space<vmem>>, vector<1x7x7x32xf32>
    %67 = vector.shape_cast %66 : vector<1x7x7x32xf32> to vector<7x7x32xf32>
    %68 = vector.shape_cast %65 : vector<7x7x32xf32> to vector<1x7x7x32xf32>
    tpu.vector_store %arg7[%c2, %c0_23, %c1, %c0_24], %68 {strides = array<i32>} : memref<4x8x8x32xf32, #tpu.memory_space<vmem>>, vector<1x7x7x32xf32>,
    %69 = vector.extract_strided_slice %7 {offsets = [0, 0, 256], sizes = [7, 7, 32], strides = [1, 1, 1]} : vector<7x7x512xf32> to vector<7x7x32xf32>
    %70 = vector.shape_cast %8 : vector<1x32xf32> to vector<1x1x32xf32>
    %71 = vector.broadcast %70 : vector<1x1x32xf32> to vector<7x7x32xf32>
    %72 = arith.addf %69, %71 : vector<7x7x32xf32>
    %cst_25 = arith.constant 0.000000e+00 : f32
    %73 = vector.broadcast %cst_25 : f32 to vector<7x7x32xf32>
    %74 = arith.maximumf %72, %73 : vector<7x7x32xf32>
    %75 = vector.extract_strided_slice %7 {offsets = [0, 0, 288], sizes = [7, 7, 32], strides = [1, 1, 1]} : vector<7x7x512xf32> to vector<7x7x32xf32>
    %76 = vector.shape_cast %8 : vector<1x32xf32> to vector<1x1x32xf32>
    %77 = vector.broadcast %76 : vector<1x1x32xf32> to vector<7x7x32xf32>
    %78 = arith.addf %75, %77 : vector<7x7x32xf32>
    %cst_26 = arith.constant 0.000000e+00 : f32
    %79 = vector.broadcast %cst_26 : f32 to vector<7x7x32xf32>
    %80 = arith.maximumf %78, %79 : vector<7x7x32xf32>
    %81 = arith.maximumf %74, %80 : vector<7x7x32xf32>
    %82 = vector.extract_strided_slice %7 {offsets = [0, 0, 320], sizes = [7, 7, 32], strides = [1, 1, 1]} : vector<7x7x512xf32> to vector<7x7x32xf32>
    %83 = vector.shape_cast %8 : vector<1x32xf32> to vector<1x1x32xf32>
    %84 = vector.broadcast %83 : vector<1x1x32xf32> to vector<7x7x32xf32>
    %85 = arith.addf %82, %84 : vector<7x7x32xf32>
    %cst_27 = arith.constant 0.000000e+00 : f32
    %86 = vector.broadcast %cst_27 : f32 to vector<7x7x32xf32>
    %87 = arith.maximumf %85, %86 : vector<7x7x32xf32>
    %88 = arith.maximumf %81, %87 : vector<7x7x32xf32>
    %89 = vector.extract_strided_slice %7 {offsets = [0, 0, 352], sizes = [7, 7, 32], strides = [1, 1, 1]} : vector<7x7x512xf32> to vector<7x7x32xf32>
    %90 = vector.shape_cast %8 : vector<1x32xf32> to vector<1x1x32xf32>
    %91 = vector.broadcast %90 : vector<1x1x32xf32> to vector<7x7x32xf32>
    %92 = arith.addf %89, %91 : vector<7x7x32xf32>
    %cst_28 = arith.constant 0.000000e+00 : f32
    %93 = vector.broadcast %cst_28 : f32 to vector<7x7x32xf32>
    %94 = arith.maximumf %92, %93 : vector<7x7x32xf32>
    %95 = arith.maximumf %88, %94 : vector<7x7x32xf32>
    %c1_29 = arith.constant 1 : index
    %c1_30 = arith.constant 1 : index
    %c0_31 = arith.constant 0 : index
    %c0_32 = arith.constant 0 : index
    %96 = vector.load %arg7[%c1_29, %c1_30, %c0_31, %c0_32] : memref<4x8x8x32xf32, #tpu.memory_space<vmem>>, vector<1x7x7x32xf32>
    %97 = vector.shape_cast %96 : vector<1x7x7x32xf32> to vector<7x7x32xf32>
    %98 = vector.shape_cast %95 : vector<7x7x32xf32> to vector<1x7x7x32xf32>
    tpu.vector_store %arg7[%c1_29, %c1_30, %c0_31, %c0_32], %98 {strides = array<i32>} : memref<4x8x8x32xf32, #tpu.memory_space<vmem>>, vector<1x7x7x32xf32>,
    %99 = vector.extract_strided_slice %7 {offsets = [0, 0, 384], sizes = [7, 7, 32], strides = [1, 1, 1]} : vector<7x7x512xf32> to vector<7x7x32xf32>
    %100 = vector.shape_cast %8 : vector<1x32xf32> to vector<1x1x32xf32>
    %101 = vector.broadcast %100 : vector<1x1x32xf32> to vector<7x7x32xf32>
    %102 = arith.addf %99, %101 : vector<7x7x32xf32>
    %cst_33 = arith.constant 0.000000e+00 : f32
    %103 = vector.broadcast %cst_33 : f32 to vector<7x7x32xf32>
    %104 = arith.maximumf %102, %103 : vector<7x7x32xf32>
    %105 = vector.extract_strided_slice %7 {offsets = [0, 0, 416], sizes = [7, 7, 32], strides = [1, 1, 1]} : vector<7x7x512xf32> to vector<7x7x32xf32>
    %106 = vector.shape_cast %8 : vector<1x32xf32> to vector<1x1x32xf32>
    %107 = vector.broadcast %106 : vector<1x1x32xf32> to vector<7x7x32xf32>
    %108 = arith.addf %105, %107 : vector<7x7x32xf32>
    %cst_34 = arith.constant 0.000000e+00 : f32
    %109 = vector.broadcast %cst_34 : f32 to vector<7x7x32xf32>
    %110 = arith.maximumf %108, %109 : vector<7x7x32xf32>
    %111 = arith.maximumf %104, %110 : vector<7x7x32xf32>
    %112 = vector.extract_strided_slice %7 {offsets = [0, 0, 448], sizes = [7, 7, 32], strides = [1, 1, 1]} : vector<7x7x512xf32> to vector<7x7x32xf32>
    %113 = vector.shape_cast %8 : vector<1x32xf32> to vector<1x1x32xf32>
    %114 = vector.broadcast %113 : vector<1x1x32xf32> to vector<7x7x32xf32>
    %115 = arith.addf %112, %114 : vector<7x7x32xf32>
    %cst_35 = arith.constant 0.000000e+00 : f32
    %116 = vector.broadcast %cst_35 : f32 to vector<7x7x32xf32>
    %117 = arith.maximumf %115, %116 : vector<7x7x32xf32>
    %118 = arith.maximumf %111, %117 : vector<7x7x32xf32>
    %119 = vector.extract_strided_slice %7 {offsets = [0, 0, 480], sizes = [7, 7, 32], strides = [1, 1, 1]} : vector<7x7x512xf32> to vector<7x7x32xf32>
    %120 = vector.shape_cast %8 : vector<1x32xf32> to vector<1x1x32xf32>
    %121 = vector.broadcast %120 : vector<1x1x32xf32> to vector<7x7x32xf32>
    %122 = arith.addf %119, %121 : vector<7x7x32xf32>
    %cst_36 = arith.constant 0.000000e+00 : f32
    %123 = vector.broadcast %cst_36 : f32 to vector<7x7x32xf32>
    %124 = arith.maximumf %122, %123 : vector<7x7x32xf32>
    %125 = arith.maximumf %118, %124 : vector<7x7x32xf32>
    %c0_37 = arith.constant 0 : index
    %c1_38 = arith.constant 1 : index
    %c1_39 = arith.constant 1 : index
    %c0_40 = arith.constant 0 : index
    %126 = vector.load %arg7[%c0_37, %c1_38, %c1_39, %c0_40] : memref<4x8x8x32xf32, #tpu.memory_space<vmem>>, vector<1x7x7x32xf32>
    %127 = vector.shape_cast %126 : vector<1x7x7x32xf32> to vector<7x7x32xf32>
    %128 = vector.shape_cast %125 : vector<7x7x32xf32> to vector<1x7x7x32xf32>
    tpu.vector_store %arg7[%c0_37, %c1_38, %c1_39, %c0_40], %128 {strides = array<i32>} : memref<4x8x8x32xf32, #tpu.memory_space<vmem>>, vector<1x7x7x32xf32>,
    %c0_41 = arith.constant 0 : index
    %c0_42 = arith.constant 0 : index
    %129 = vector.load %arg4[%c0_41, %c0_42] : memref<32x144xf32, #tpu.memory_space<vmem>>, vector<32x144xf32>
    %130 = vector.shape_cast %129 : vector<32x144xf32> to vector<1x32x144xf32>
    %131 = vector.broadcast %130 : vector<1x32x144xf32> to vector<7x32x144xf32>
    %c0_43 = arith.constant 0 : index
    %c0_44 = arith.constant 0 : index
    %132 = vector.load %arg5[%c0_43, %c0_44] : memref<1x16xf32, #tpu.memory_space<vmem>>, vector<1x16xf32>
    %c0_45 = arith.constant 0 : index
    %c0_46 = arith.constant 0 : index
    %c0_47 = arith.constant 0 : index
    %c0_48 = arith.constant 0 : index
    %133 = vector.load %arg7[%c0_45, %c0_46, %c0_47, %c0_48] : memref<4x8x8x32xf32, #tpu.memory_space<vmem>>, vector<1x7x7x32xf32>
    %134 = vector.shape_cast %133 : vector<1x7x7x32xf32> to vector<7x7x32xf32>
    "tpu.trace_start"() <{level = 10 : i32, message = "rjc,rcd->rjd"}> : () -> ()
    %cst_49 = arith.constant dense<0.000000e+00> : vector<7x7x144xf32>
    %135 = tpu.matmul %134, %131, %cst_49 {dimension_numbers = #tpu.dot_dimension_numbers<[2], [1], [1], [2], [0, 0, 0, 1, 1, 2], [0], [0]>} : vector<7x7x32xf32>, vector<7x32x144xf32>, vector<7x7x144xf32> -> vector<7x7x144xf32>
    "tpu.trace_stop"() : () -> ()
    %c1_50 = arith.constant 1 : index
    %c0_51 = arith.constant 0 : index
    %c0_52 = arith.constant 0 : index
    %c0_53 = arith.constant 0 : index
    %136 = vector.load %arg7[%c1_50, %c0_51, %c0_52, %c0_53] : memref<4x8x8x32xf32, #tpu.memory_space<vmem>>, vector<1x7x7x32xf32>
    %137 = vector.shape_cast %136 : vector<1x7x7x32xf32> to vector<7x7x32xf32>
    "tpu.trace_start"() <{level = 10 : i32, message = "rjc,rcd->rjd"}> : () -> ()
    %cst_54 = arith.constant dense<0.000000e+00> : vector<7x7x144xf32>
    %138 = tpu.matmul %137, %131, %cst_54 {dimension_numbers = #tpu.dot_dimension_numbers<[2], [1], [1], [2], [0, 0, 0, 1, 1, 2], [0], [0]>} : vector<7x7x32xf32>, vector<7x32x144xf32>, vector<7x7x144xf32> -> vector<7x7x144xf32>
    "tpu.trace_stop"() : () -> ()
    %c0_55 = arith.constant 0 : index
    %c0_56 = arith.constant 0 : index
    %c1_57 = arith.constant 1 : index
    %c0_58 = arith.constant 0 : index
    %139 = vector.load %arg7[%c0_55, %c0_56, %c1_57, %c0_58] : memref<4x8x8x32xf32, #tpu.memory_space<vmem>>, vector<1x7x7x32xf32>
    %140 = vector.shape_cast %139 : vector<1x7x7x32xf32> to vector<7x7x32xf32>
    "tpu.trace_start"() <{level = 10 : i32, message = "rjc,rcd->rjd"}> : () -> ()
    %cst_59 = arith.constant dense<0.000000e+00> : vector<7x7x144xf32>
    %141 = tpu.matmul %140, %131, %cst_59 {dimension_numbers = #tpu.dot_dimension_numbers<[2], [1], [1], [2], [0, 0, 0, 1, 1, 2], [0], [0]>} : vector<7x7x32xf32>, vector<7x32x144xf32>, vector<7x7x144xf32> -> vector<7x7x144xf32>
    "tpu.trace_stop"() : () -> ()
    %c1_60 = arith.constant 1 : index
    %c0_61 = arith.constant 0 : index
    %c1_62 = arith.constant 1 : index
    %c0_63 = arith.constant 0 : index
    %142 = vector.load %arg7[%c1_60, %c0_61, %c1_62, %c0_63] : memref<4x8x8x32xf32, #tpu.memory_space<vmem>>, vector<1x7x7x32xf32>
    %143 = vector.shape_cast %142 : vector<1x7x7x32xf32> to vector<7x7x32xf32>
    "tpu.trace_start"() <{level = 10 : i32, message = "rjc,rcd->rjd"}> : () -> ()
    %cst_64 = arith.constant dense<0.000000e+00> : vector<7x7x144xf32>
    %144 = tpu.matmul %143, %131, %cst_64 {dimension_numbers = #tpu.dot_dimension_numbers<[2], [1], [1], [2], [0, 0, 0, 1, 1, 2], [0], [0]>} : vector<7x7x32xf32>, vector<7x32x144xf32>, vector<7x7x144xf32> -> vector<7x7x144xf32>
    "tpu.trace_stop"() : () -> ()
    %c2_65 = arith.constant 2 : index
    %c0_66 = arith.constant 0 : index
    %c0_67 = arith.constant 0 : index
    %c0_68 = arith.constant 0 : index
    %145 = vector.load %arg7[%c2_65, %c0_66, %c0_67, %c0_68] : memref<4x8x8x32xf32, #tpu.memory_space<vmem>>, vector<1x7x7x32xf32>
    %146 = vector.shape_cast %145 : vector<1x7x7x32xf32> to vector<7x7x32xf32>
    "tpu.trace_start"() <{level = 10 : i32, message = "rjc,rcd->rjd"}> : () -> ()
    %cst_69 = arith.constant dense<0.000000e+00> : vector<7x7x144xf32>
    %147 = tpu.matmul %146, %131, %cst_69 {dimension_numbers = #tpu.dot_dimension_numbers<[2], [1], [1], [2], [0, 0, 0, 1, 1, 2], [0], [0]>} : vector<7x7x32xf32>, vector<7x32x144xf32>, vector<7x7x144xf32> -> vector<7x7x144xf32>
    "tpu.trace_stop"() : () -> ()
    %c3_70 = arith.constant 3 : index
    %c0_71 = arith.constant 0 : index
    %c0_72 = arith.constant 0 : index
    %c0_73 = arith.constant 0 : index
    %148 = vector.load %arg7[%c3_70, %c0_71, %c0_72, %c0_73] : memref<4x8x8x32xf32, #tpu.memory_space<vmem>>, vector<1x7x7x32xf32>
    %149 = vector.shape_cast %148 : vector<1x7x7x32xf32> to vector<7x7x32xf32>
    "tpu.trace_start"() <{level = 10 : i32, message = "rjc,rcd->rjd"}> : () -> ()
    %cst_74 = arith.constant dense<0.000000e+00> : vector<7x7x144xf32>
    %150 = tpu.matmul %149, %131, %cst_74 {dimension_numbers = #tpu.dot_dimension_numbers<[2], [1], [1], [2], [0, 0, 0, 1, 1, 2], [0], [0]>} : vector<7x7x32xf32>, vector<7x32x144xf32>, vector<7x7x144xf32> -> vector<7x7x144xf32>
    "tpu.trace_stop"() : () -> ()
    %c2_75 = arith.constant 2 : index
    %c0_76 = arith.constant 0 : index
    %c1_77 = arith.constant 1 : index
    %c0_78 = arith.constant 0 : index
    %151 = vector.load %arg7[%c2_75, %c0_76, %c1_77, %c0_78] : memref<4x8x8x32xf32, #tpu.memory_space<vmem>>, vector<1x7x7x32xf32>
    %152 = vector.shape_cast %151 : vector<1x7x7x32xf32> to vector<7x7x32xf32>
    "tpu.trace_start"() <{level = 10 : i32, message = "rjc,rcd->rjd"}> : () -> ()
    %cst_79 = arith.constant dense<0.000000e+00> : vector<7x7x144xf32>
    %153 = tpu.matmul %152, %131, %cst_79 {dimension_numbers = #tpu.dot_dimension_numbers<[2], [1], [1], [2], [0, 0, 0, 1, 1, 2], [0], [0]>} : vector<7x7x32xf32>, vector<7x32x144xf32>, vector<7x7x144xf32> -> vector<7x7x144xf32>
    "tpu.trace_stop"() : () -> ()
    %c3_80 = arith.constant 3 : index
    %c0_81 = arith.constant 0 : index
    %c1_82 = arith.constant 1 : index
    %c0_83 = arith.constant 0 : index
    %154 = vector.load %arg7[%c3_80, %c0_81, %c1_82, %c0_83] : memref<4x8x8x32xf32, #tpu.memory_space<vmem>>, vector<1x7x7x32xf32>
    %155 = vector.shape_cast %154 : vector<1x7x7x32xf32> to vector<7x7x32xf32>
    "tpu.trace_start"() <{level = 10 : i32, message = "rjc,rcd->rjd"}> : () -> ()
    %cst_84 = arith.constant dense<0.000000e+00> : vector<7x7x144xf32>
    %156 = tpu.matmul %155, %131, %cst_84 {dimension_numbers = #tpu.dot_dimension_numbers<[2], [1], [1], [2], [0, 0, 0, 1, 1, 2], [0], [0]>} : vector<7x7x32xf32>, vector<7x32x144xf32>, vector<7x7x144xf32> -> vector<7x7x144xf32>
    "tpu.trace_stop"() : () -> ()
    %c0_85 = arith.constant 0 : index
    %c1_86 = arith.constant 1 : index
    %c0_87 = arith.constant 0 : index
    %c0_88 = arith.constant 0 : index
    %157 = vector.load %arg7[%c0_85, %c1_86, %c0_87, %c0_88] : memref<4x8x8x32xf32, #tpu.memory_space<vmem>>, vector<1x7x7x32xf32>
    %158 = vector.shape_cast %157 : vector<1x7x7x32xf32> to vector<7x7x32xf32>
    "tpu.trace_start"() <{level = 10 : i32, message = "rjc,rcd->rjd"}> : () -> ()
    %cst_89 = arith.constant dense<0.000000e+00> : vector<7x7x144xf32>
    %159 = tpu.matmul %158, %131, %cst_89 {dimension_numbers = #tpu.dot_dimension_numbers<[2], [1], [1], [2], [0, 0, 0, 1, 1, 2], [0], [0]>} : vector<7x7x32xf32>, vector<7x32x144xf32>, vector<7x7x144xf32> -> vector<7x7x144xf32>
    "tpu.trace_stop"() : () -> ()
    %c1_90 = arith.constant 1 : index
    %c1_91 = arith.constant 1 : index
    %c0_92 = arith.constant 0 : index
    %c0_93 = arith.constant 0 : index
    %160 = vector.load %arg7[%c1_90, %c1_91, %c0_92, %c0_93] : memref<4x8x8x32xf32, #tpu.memory_space<vmem>>, vector<1x7x7x32xf32>
    %161 = vector.shape_cast %160 : vector<1x7x7x32xf32> to vector<7x7x32xf32>
    "tpu.trace_start"() <{level = 10 : i32, message = "rjc,rcd->rjd"}> : () -> ()
    %cst_94 = arith.constant dense<0.000000e+00> : vector<7x7x144xf32>
    %162 = tpu.matmul %161, %131, %cst_94 {dimension_numbers = #tpu.dot_dimension_numbers<[2], [1], [1], [2], [0, 0, 0, 1, 1, 2], [0], [0]>} : vector<7x7x32xf32>, vector<7x32x144xf32>, vector<7x7x144xf32> -> vector<7x7x144xf32>
    "tpu.trace_stop"() : () -> ()
    %c0_95 = arith.constant 0 : index
    %c1_96 = arith.constant 1 : index
    %c1_97 = arith.constant 1 : index
    %c0_98 = arith.constant 0 : index
    %163 = vector.load %arg7[%c0_95, %c1_96, %c1_97, %c0_98] : memref<4x8x8x32xf32, #tpu.memory_space<vmem>>, vector<1x7x7x32xf32>
    %164 = vector.shape_cast %163 : vector<1x7x7x32xf32> to vector<7x7x32xf32>
    "tpu.trace_start"() <{level = 10 : i32, message = "rjc,rcd->rjd"}> : () -> ()
    %cst_99 = arith.constant dense<0.000000e+00> : vector<7x7x144xf32>
    %165 = tpu.matmul %164, %131, %cst_99 {dimension_numbers = #tpu.dot_dimension_numbers<[2], [1], [1], [2], [0, 0, 0, 1, 1, 2], [0], [0]>} : vector<7x7x32xf32>, vector<7x32x144xf32>, vector<7x7x144xf32> -> vector<7x7x144xf32>
    "tpu.trace_stop"() : () -> ()
    %c1_100 = arith.constant 1 : index
    %c1_101 = arith.constant 1 : index
    %c1_102 = arith.constant 1 : index
    %c0_103 = arith.constant 0 : index
    %166 = vector.load %arg7[%c1_100, %c1_101, %c1_102, %c0_103] : memref<4x8x8x32xf32, #tpu.memory_space<vmem>>, vector<1x7x7x32xf32>
    %167 = vector.shape_cast %166 : vector<1x7x7x32xf32> to vector<7x7x32xf32>
    "tpu.trace_start"() <{level = 10 : i32, message = "rjc,rcd->rjd"}> : () -> ()
    %cst_104 = arith.constant dense<0.000000e+00> : vector<7x7x144xf32>
    %168 = tpu.matmul %167, %131, %cst_104 {dimension_numbers = #tpu.dot_dimension_numbers<[2], [1], [1], [2], [0, 0, 0, 1, 1, 2], [0], [0]>} : vector<7x7x32xf32>, vector<7x32x144xf32>, vector<7x7x144xf32> -> vector<7x7x144xf32>
    "tpu.trace_stop"() : () -> ()
    %c2_105 = arith.constant 2 : index
    %c1_106 = arith.constant 1 : index
    %c0_107 = arith.constant 0 : index
    %c0_108 = arith.constant 0 : index
    %169 = vector.load %arg7[%c2_105, %c1_106, %c0_107, %c0_108] : memref<4x8x8x32xf32, #tpu.memory_space<vmem>>, vector<1x7x7x32xf32>
    %170 = vector.shape_cast %169 : vector<1x7x7x32xf32> to vector<7x7x32xf32>
    "tpu.trace_start"() <{level = 10 : i32, message = "rjc,rcd->rjd"}> : () -> ()
    %cst_109 = arith.constant dense<0.000000e+00> : vector<7x7x144xf32>
    %171 = tpu.matmul %170, %131, %cst_109 {dimension_numbers = #tpu.dot_dimension_numbers<[2], [1], [1], [2], [0, 0, 0, 1, 1, 2], [0], [0]>} : vector<7x7x32xf32>, vector<7x32x144xf32>, vector<7x7x144xf32> -> vector<7x7x144xf32>
    "tpu.trace_stop"() : () -> ()
    %c3_110 = arith.constant 3 : index
    %c1_111 = arith.constant 1 : index
    %c0_112 = arith.constant 0 : index
    %c0_113 = arith.constant 0 : index
    %172 = vector.load %arg7[%c3_110, %c1_111, %c0_112, %c0_113] : memref<4x8x8x32xf32, #tpu.memory_space<vmem>>, vector<1x7x7x32xf32>
    %173 = vector.shape_cast %172 : vector<1x7x7x32xf32> to vector<7x7x32xf32>
    "tpu.trace_start"() <{level = 10 : i32, message = "rjc,rcd->rjd"}> : () -> ()
    %cst_114 = arith.constant dense<0.000000e+00> : vector<7x7x144xf32>
    %174 = tpu.matmul %173, %131, %cst_114 {dimension_numbers = #tpu.dot_dimension_numbers<[2], [1], [1], [2], [0, 0, 0, 1, 1, 2], [0], [0]>} : vector<7x7x32xf32>, vector<7x32x144xf32>, vector<7x7x144xf32> -> vector<7x7x144xf32>
    "tpu.trace_stop"() : () -> ()
    %c2_115 = arith.constant 2 : index
    %c1_116 = arith.constant 1 : index
    %c1_117 = arith.constant 1 : index
    %c0_118 = arith.constant 0 : index
    %175 = vector.load %arg7[%c2_115, %c1_116, %c1_117, %c0_118] : memref<4x8x8x32xf32, #tpu.memory_space<vmem>>, vector<1x7x7x32xf32>
    %176 = vector.shape_cast %175 : vector<1x7x7x32xf32> to vector<7x7x32xf32>
    "tpu.trace_start"() <{level = 10 : i32, message = "rjc,rcd->rjd"}> : () -> ()
    %cst_119 = arith.constant dense<0.000000e+00> : vector<7x7x144xf32>
    %177 = tpu.matmul %176, %131, %cst_119 {dimension_numbers = #tpu.dot_dimension_numbers<[2], [1], [1], [2], [0, 0, 0, 1, 1, 2], [0], [0]>} : vector<7x7x32xf32>, vector<7x32x144xf32>, vector<7x7x144xf32> -> vector<7x7x144xf32>
    "tpu.trace_stop"() : () -> ()
    %c3_120 = arith.constant 3 : index
    %c1_121 = arith.constant 1 : index
    %c1_122 = arith.constant 1 : index
    %c0_123 = arith.constant 0 : index
    %178 = vector.load %arg7[%c3_120, %c1_121, %c1_122, %c0_123] : memref<4x8x8x32xf32, #tpu.memory_space<vmem>>, vector<1x7x7x32xf32>
    %179 = vector.shape_cast %178 : vector<1x7x7x32xf32> to vector<7x7x32xf32>
    "tpu.trace_start"() <{level = 10 : i32, message = "rjc,rcd->rjd"}> : () -> ()
    %cst_124 = arith.constant dense<0.000000e+00> : vector<7x7x144xf32>
    %180 = tpu.matmul %179, %131, %cst_124 {dimension_numbers = #tpu.dot_dimension_numbers<[2], [1], [1], [2], [0, 0, 0, 1, 1, 2], [0], [0]>} : vector<7x7x32xf32>, vector<7x32x144xf32>, vector<7x7x144xf32> -> vector<7x7x144xf32>
    %cst_125 = arith.constant 0.000000e+00 : f32
    "tpu.trace_stop"() : () -> ()
    %181 = vector.broadcast %cst_125 : f32 to vector<7x7x16xf32>
    %182 = vector.shape_cast %132 : vector<1x16xf32> to vector<1x1x16xf32>
    %183 = vector.broadcast %182 : vector<1x1x16xf32> to vector<7x7x16xf32>
    %184 = arith.addf %181, %183 : vector<7x7x16xf32>
    %185 = vector.extract_strided_slice %135 {offsets = [0, 0, 0], sizes = [7, 7, 16], strides = [1, 1, 1]} : vector<7x7x144xf32> to vector<7x7x16xf32>
    %186 = arith.addf %184, %185 : vector<7x7x16xf32>
    %187 = vector.extract_strided_slice %138 {offsets = [0, 0, 16], sizes = [7, 7, 16], strides = [1, 1, 1]} : vector<7x7x144xf32> to vector<7x7x16xf32>
    %188 = arith.addf %186, %187 : vector<7x7x16xf32>
    %189 = vector.extract_strided_slice %141 {offsets = [0, 0, 32], sizes = [7, 7, 16], strides = [1, 1, 1]} : vector<7x7x144xf32> to vector<7x7x16xf32>
    %190 = arith.addf %188, %189 : vector<7x7x16xf32>
    %191 = vector.extract_strided_slice %147 {offsets = [0, 0, 48], sizes = [7, 7, 16], strides = [1, 1, 1]} : vector<7x7x144xf32> to vector<7x7x16xf32>
    %192 = arith.addf %190, %191 : vector<7x7x16xf32>
    %193 = vector.extract_strided_slice %150 {offsets = [0, 0, 64], sizes = [7, 7, 16], strides = [1, 1, 1]} : vector<7x7x144xf32> to vector<7x7x16xf32>
    %194 = arith.addf %192, %193 : vector<7x7x16xf32>
    %195 = vector.extract_strided_slice %153 {offsets = [0, 0, 80], sizes = [7, 7, 16], strides = [1, 1, 1]} : vector<7x7x144xf32> to vector<7x7x16xf32>
    %196 = arith.addf %194, %195 : vector<7x7x16xf32>
    %197 = vector.extract_strided_slice %159 {offsets = [0, 0, 96], sizes = [7, 7, 16], strides = [1, 1, 1]} : vector<7x7x144xf32> to vector<7x7x16xf32>
    %198 = arith.addf %196, %197 : vector<7x7x16xf32>
    %199 = vector.extract_strided_slice %162 {offsets = [0, 0, 112], sizes = [7, 7, 16], strides = [1, 1, 1]} : vector<7x7x144xf32> to vector<7x7x16xf32>
    %200 = arith.addf %198, %199 : vector<7x7x16xf32>
    %201 = vector.extract_strided_slice %165 {offsets = [0, 0, 128], sizes = [7, 7, 16], strides = [1, 1, 1]} : vector<7x7x144xf32> to vector<7x7x16xf32>
    %202 = arith.addf %200, %201 : vector<7x7x16xf32>
    %cst_126 = arith.constant 0.000000e+00 : f32
    %203 = vector.broadcast %cst_126 : f32 to vector<7x7x16xf32>
    %204 = arith.maximumf %202, %203 : vector<7x7x16xf32>
    %cst_127 = arith.constant 0.000000e+00 : f32
    %205 = vector.broadcast %cst_127 : f32 to vector<7x7x16xf32>
    %206 = vector.shape_cast %132 : vector<1x16xf32> to vector<1x1x16xf32>
    %207 = vector.broadcast %206 : vector<1x1x16xf32> to vector<7x7x16xf32>
    %208 = arith.addf %205, %207 : vector<7x7x16xf32>
    %209 = vector.extract_strided_slice %138 {offsets = [0, 0, 0], sizes = [7, 7, 16], strides = [1, 1, 1]} : vector<7x7x144xf32> to vector<7x7x16xf32>
    %210 = arith.addf %208, %209 : vector<7x7x16xf32>
    %211 = vector.extract_strided_slice %141 {offsets = [0, 0, 16], sizes = [7, 7, 16], strides = [1, 1, 1]} : vector<7x7x144xf32> to vector<7x7x16xf32>
    %212 = arith.addf %210, %211 : vector<7x7x16xf32>
    %213 = vector.extract_strided_slice %144 {offsets = [0, 0, 32], sizes = [7, 7, 16], strides = [1, 1, 1]} : vector<7x7x144xf32> to vector<7x7x16xf32>
    %214 = arith.addf %212, %213 : vector<7x7x16xf32>
    %215 = vector.extract_strided_slice %150 {offsets = [0, 0, 48], sizes = [7, 7, 16], strides = [1, 1, 1]} : vector<7x7x144xf32> to vector<7x7x16xf32>
    %216 = arith.addf %214, %215 : vector<7x7x16xf32>
    %217 = vector.extract_strided_slice %153 {offsets = [0, 0, 64], sizes = [7, 7, 16], strides = [1, 1, 1]} : vector<7x7x144xf32> to vector<7x7x16xf32>
    %218 = arith.addf %216, %217 : vector<7x7x16xf32>
    %219 = vector.extract_strided_slice %156 {offsets = [0, 0, 80], sizes = [7, 7, 16], strides = [1, 1, 1]} : vector<7x7x144xf32> to vector<7x7x16xf32>
    %220 = arith.addf %218, %219 : vector<7x7x16xf32>
    %221 = vector.extract_strided_slice %162 {offsets = [0, 0, 96], sizes = [7, 7, 16], strides = [1, 1, 1]} : vector<7x7x144xf32> to vector<7x7x16xf32>
    %222 = arith.addf %220, %221 : vector<7x7x16xf32>
    %223 = vector.extract_strided_slice %165 {offsets = [0, 0, 112], sizes = [7, 7, 16], strides = [1, 1, 1]} : vector<7x7x144xf32> to vector<7x7x16xf32>
    %224 = arith.addf %222, %223 : vector<7x7x16xf32>
    %225 = vector.extract_strided_slice %168 {offsets = [0, 0, 128], sizes = [7, 7, 16], strides = [1, 1, 1]} : vector<7x7x144xf32> to vector<7x7x16xf32>
    %226 = arith.addf %224, %225 : vector<7x7x16xf32>
    %cst_128 = arith.constant 0.000000e+00 : f32
    %227 = vector.broadcast %cst_128 : f32 to vector<7x7x16xf32>
    %228 = arith.maximumf %226, %227 : vector<7x7x16xf32>
    %229 = arith.maximumf %204, %228 : vector<7x7x16xf32>
    %cst_129 = arith.constant 0.000000e+00 : f32
    %230 = vector.broadcast %cst_129 : f32 to vector<7x7x16xf32>
    %231 = vector.shape_cast %132 : vector<1x16xf32> to vector<1x1x16xf32>
    %232 = vector.broadcast %231 : vector<1x1x16xf32> to vector<7x7x16xf32>
    %233 = arith.addf %230, %232 : vector<7x7x16xf32>
    %234 = vector.extract_strided_slice %147 {offsets = [0, 0, 0], sizes = [7, 7, 16], strides = [1, 1, 1]} : vector<7x7x144xf32> to vector<7x7x16xf32>
    %235 = arith.addf %233, %234 : vector<7x7x16xf32>
    %236 = vector.extract_strided_slice %150 {offsets = [0, 0, 16], sizes = [7, 7, 16], strides = [1, 1, 1]} : vector<7x7x144xf32> to vector<7x7x16xf32>
    %237 = arith.addf %235, %236 : vector<7x7x16xf32>
    %238 = vector.extract_strided_slice %153 {offsets = [0, 0, 32], sizes = [7, 7, 16], strides = [1, 1, 1]} : vector<7x7x144xf32> to vector<7x7x16xf32>
    %239 = arith.addf %237, %238 : vector<7x7x16xf32>
    %240 = vector.extract_strided_slice %159 {offsets = [0, 0, 48], sizes = [7, 7, 16], strides = [1, 1, 1]} : vector<7x7x144xf32> to vector<7x7x16xf32>
    %241 = arith.addf %239, %240 : vector<7x7x16xf32>
    %242 = vector.extract_strided_slice %162 {offsets = [0, 0, 64], sizes = [7, 7, 16], strides = [1, 1, 1]} : vector<7x7x144xf32> to vector<7x7x16xf32>
    %243 = arith.addf %241, %242 : vector<7x7x16xf32>
    %244 = vector.extract_strided_slice %165 {offsets = [0, 0, 80], sizes = [7, 7, 16], strides = [1, 1, 1]} : vector<7x7x144xf32> to vector<7x7x16xf32>
    %245 = arith.addf %243, %244 : vector<7x7x16xf32>
    %246 = vector.extract_strided_slice %171 {offsets = [0, 0, 96], sizes = [7, 7, 16], strides = [1, 1, 1]} : vector<7x7x144xf32> to vector<7x7x16xf32>
    %247 = arith.addf %245, %246 : vector<7x7x16xf32>
    %248 = vector.extract_strided_slice %174 {offsets = [0, 0, 112], sizes = [7, 7, 16], strides = [1, 1, 1]} : vector<7x7x144xf32> to vector<7x7x16xf32>
    %249 = arith.addf %247, %248 : vector<7x7x16xf32>
    %250 = vector.extract_strided_slice %177 {offsets = [0, 0, 128], sizes = [7, 7, 16], strides = [1, 1, 1]} : vector<7x7x144xf32> to vector<7x7x16xf32>
    %251 = arith.addf %249, %250 : vector<7x7x16xf32>
    %cst_130 = arith.constant 0.000000e+00 : f32
    %252 = vector.broadcast %cst_130 : f32 to vector<7x7x16xf32>
    %253 = arith.maximumf %251, %252 : vector<7x7x16xf32>
    %254 = arith.maximumf %229, %253 : vector<7x7x16xf32>
    %cst_131 = arith.constant 0.000000e+00 : f32
    %255 = vector.broadcast %cst_131 : f32 to vector<7x7x16xf32>
    %256 = vector.shape_cast %132 : vector<1x16xf32> to vector<1x1x16xf32>
    %257 = vector.broadcast %256 : vector<1x1x16xf32> to vector<7x7x16xf32>
    %258 = arith.addf %255, %257 : vector<7x7x16xf32>
    %259 = vector.extract_strided_slice %150 {offsets = [0, 0, 0], sizes = [7, 7, 16], strides = [1, 1, 1]} : vector<7x7x144xf32> to vector<7x7x16xf32>
    %260 = arith.addf %258, %259 : vector<7x7x16xf32>
    %261 = vector.extract_strided_slice %153 {offsets = [0, 0, 16], sizes = [7, 7, 16], strides = [1, 1, 1]} : vector<7x7x144xf32> to vector<7x7x16xf32>
    %262 = arith.addf %260, %261 : vector<7x7x16xf32>
    %263 = vector.extract_strided_slice %156 {offsets = [0, 0, 32], sizes = [7, 7, 16], strides = [1, 1, 1]} : vector<7x7x144xf32> to vector<7x7x16xf32>
    %264 = arith.addf %262, %263 : vector<7x7x16xf32>
    %265 = vector.extract_strided_slice %162 {offsets = [0, 0, 48], sizes = [7, 7, 16], strides = [1, 1, 1]} : vector<7x7x144xf32> to vector<7x7x16xf32>
    %266 = arith.addf %264, %265 : vector<7x7x16xf32>
    %267 = vector.extract_strided_slice %165 {offsets = [0, 0, 64], sizes = [7, 7, 16], strides = [1, 1, 1]} : vector<7x7x144xf32> to vector<7x7x16xf32>
    %268 = arith.addf %266, %267 : vector<7x7x16xf32>
    %269 = vector.extract_strided_slice %168 {offsets = [0, 0, 80], sizes = [7, 7, 16], strides = [1, 1, 1]} : vector<7x7x144xf32> to vector<7x7x16xf32>
    %270 = arith.addf %268, %269 : vector<7x7x16xf32>
    %271 = vector.extract_strided_slice %174 {offsets = [0, 0, 96], sizes = [7, 7, 16], strides = [1, 1, 1]} : vector<7x7x144xf32> to vector<7x7x16xf32>
    %272 = arith.addf %270, %271 : vector<7x7x16xf32>
    %273 = vector.extract_strided_slice %177 {offsets = [0, 0, 112], sizes = [7, 7, 16], strides = [1, 1, 1]} : vector<7x7x144xf32> to vector<7x7x16xf32>
    %274 = arith.addf %272, %273 : vector<7x7x16xf32>
    %275 = vector.extract_strided_slice %180 {offsets = [0, 0, 128], sizes = [7, 7, 16], strides = [1, 1, 1]} : vector<7x7x144xf32> to vector<7x7x16xf32>
    %276 = arith.addf %274, %275 : vector<7x7x16xf32>
    %cst_132 = arith.constant 0.000000e+00 : f32
    %277 = vector.broadcast %cst_132 : f32 to vector<7x7x16xf32>
    %278 = arith.maximumf %276, %277 : vector<7x7x16xf32>
    %279 = arith.maximumf %254, %278 : vector<7x7x16xf32>
    %c0_133 = arith.constant 0 : index
    %c0_134 = arith.constant 0 : index
    %c0_135 = arith.constant 0 : index
    %c0_136 = arith.constant 0 : index
    %280 = vector.load %arg6[%c0_133, %c0_134, %c0_135, %c0_136] : memref<1x7x7x16xf32, #tpu.memory_space<vmem>>, vector<1x7x7x16xf32>
    %281 = vector.shape_cast %280 : vector<1x7x7x16xf32> to vector<7x7x16xf32>
    %282 = vector.shape_cast %279 : vector<7x7x16xf32> to vector<1x7x7x16xf32>
    tpu.vector_store %arg6[%c0_133, %c0_134, %c0_135, %c0_136], %282 {strides = array<i32>} : memref<1x7x7x16xf32, #tpu.memory_space<vmem>>, vector<1x7x7x16xf32>,
    return
  }
  func.func @transform_0(%arg0: i32) -> (i32, i32, i32, i32) {
    %c0_i32 = arith.constant 0 : i32
    %c0_i32_0 = arith.constant 0 : i32
    %c0_i32_1 = arith.constant 0 : i32
    %c0_i32_2 = arith.constant 0 : i32
    return %arg0, %c0_i32, %c0_i32_0, %c0_i32_1 : i32, i32, i32, i32
  }
  func.func @transform_1(%arg0: i32) -> (i32, i32) {
    %c0_i32 = arith.constant 0 : i32
    %c0_i32_0 = arith.constant 0 : i32
    %c0_i32_1 = arith.constant 0 : i32
    return %c0_i32, %c0_i32_0 : i32, i32
  }
  func.func @transform_2(%arg0: i32) -> (i32, i32) {
    %c0_i32 = arith.constant 0 : i32
    %c0_i32_0 = arith.constant 0 : i32
    %c0_i32_1 = arith.constant 0 : i32
    return %c0_i32, %c0_i32_0 : i32, i32
  }
  func.func @transform_3(%arg0: i32) -> (i32, i32) {
    %c0_i32 = arith.constant 0 : i32
    %c0_i32_0 = arith.constant 0 : i32
    %c0_i32_1 = arith.constant 0 : i32
    return %c0_i32, %c0_i32_0 : i32, i32
  }
  func.func @transform_4(%arg0: i32) -> (i32, i32) {
    %c0_i32 = arith.constant 0 : i32
    %c0_i32_0 = arith.constant 0 : i32
    %c0_i32_1 = arith.constant 0 : i32
    return %c0_i32, %c0_i32_0 : i32, i32
  }
  func.func @transform_5(%arg0: i32) -> (i32, i32, i32, i32) {
    %c0_i32 = arith.constant 0 : i32
    %c0_i32_0 = arith.constant 0 : i32
    %c0_i32_1 = arith.constant 0 : i32
    %c0_i32_2 = arith.constant 0 : i32
    return %arg0, %c0_i32, %c0_i32_0, %c0_i32_1 : i32, i32, i32, i32
  }
}

module attributes {stable_mosaic.version = 11 : i64} {
  func.func @_mlp_kernel(%arg0: i32, %arg1: memref<2x784xf32, #tpu.memory_space<vmem>>, %arg2: memref<784x32xf32, #tpu.memory_space<vmem>>, %arg3: memref<1x32xf32, #tpu.memory_space<vmem>>, %arg4: memref<32x10xf32, #tpu.memory_space<vmem>>, %arg5: memref<1x10xf32, #tpu.memory_space<vmem>>, %arg6: memref<2x10xf32, #tpu.memory_space<vmem>>) attributes {dimension_semantics = [#tpu.dimension_semantics<parallel>], iteration_bounds = array<i64: 1>, scalar_prefetch = 0 : i64, scratch_operands = 0 : i64, tpu.core_type = #tpu.core_type<tc>, window_params = [{transform_indices = @transform_0, window_bounds = array<i64: 2, 784>}, {pipeline_mode = #tpu.pipeline_mode<synchronous>, transform_indices = @transform_1, window_bounds = array<i64: 784, 32>}, {pipeline_mode = #tpu.pipeline_mode<synchronous>, transform_indices = @transform_2, window_bounds = array<i64: 1, 32>}, {pipeline_mode = #tpu.pipeline_mode<synchronous>, transform_indices = @transform_3, window_bounds = array<i64: 32, 10>}, {pipeline_mode = #tpu.pipeline_mode<synchronous>, transform_indices = @transform_4, window_bounds = array<i64: 1, 10>}, {transform_indices = @transform_5, window_bounds = array<i64: 2, 10>}]} {
    %c0 = arith.constant 0 : index
    %c0_0 = arith.constant 0 : index
    %0 = vector.load %arg1[%c0, %c0_0] : memref<2x784xf32, #tpu.memory_space<vmem>>, vector<2x784xf32>
    %c0_1 = arith.constant 0 : index
    %c0_2 = arith.constant 0 : index
    %1 = vector.load %arg2[%c0_1, %c0_2] : memref<784x32xf32, #tpu.memory_space<vmem>>, vector<784x32xf32>
    %cst = arith.constant dense<0.000000e+00> : vector<2x32xf32>
    %2 = tpu.matmul %0, %1, %cst {dimension_numbers = #tpu.dot_dimension_numbers<[1], [0], [0], [1], [0, 0, 1, 1], [], []>} : vector<2x784xf32>, vector<784x32xf32>, vector<2x32xf32> -> vector<2x32xf32>
    %c0_3 = arith.constant 0 : index
    %c0_4 = arith.constant 0 : index
    %3 = vector.load %arg3[%c0_3, %c0_4] : memref<1x32xf32, #tpu.memory_space<vmem>>, vector<1x32xf32>
    %4 = vector.broadcast %3 : vector<1x32xf32> to vector<2x32xf32>
    %5 = arith.addf %2, %4 : vector<2x32xf32>
    %cst_5 = arith.constant 0.000000e+00 : f32
    %6 = vector.broadcast %cst_5 : f32 to vector<2x32xf32>
    %7 = arith.maximumf %5, %6 : vector<2x32xf32>
    %c0_6 = arith.constant 0 : index
    %c0_7 = arith.constant 0 : index
    %8 = vector.load %arg4[%c0_6, %c0_7] : memref<32x10xf32, #tpu.memory_space<vmem>>, vector<32x10xf32>
    %cst_8 = arith.constant dense<0.000000e+00> : vector<2x10xf32>
    %9 = tpu.matmul %7, %8, %cst_8 {dimension_numbers = #tpu.dot_dimension_numbers<[1], [0], [0], [1], [0, 0, 1, 1], [], []>} : vector<2x32xf32>, vector<32x10xf32>, vector<2x10xf32> -> vector<2x10xf32>
    %c0_9 = arith.constant 0 : index
    %c0_10 = arith.constant 0 : index
    %10 = vector.load %arg5[%c0_9, %c0_10] : memref<1x10xf32, #tpu.memory_space<vmem>>, vector<1x10xf32>
    %11 = vector.broadcast %10 : vector<1x10xf32> to vector<2x10xf32>
    %12 = arith.addf %9, %11 : vector<2x10xf32>
    %c0_11 = arith.constant 0 : index
    %c0_12 = arith.constant 0 : index
    %13 = vector.load %arg6[%c0_11, %c0_12] : memref<2x10xf32, #tpu.memory_space<vmem>>, vector<2x10xf32>
    tpu.vector_store %arg6[%c0_11, %c0_12], %12 {strides = array<i32>} : memref<2x10xf32, #tpu.memory_space<vmem>>, vector<2x10xf32>,
    return
  }
  func.func @transform_0(%arg0: i32) -> (i32, i32) {
    %c0_i32 = arith.constant 0 : i32
    %c0_i32_0 = arith.constant 0 : i32
    return %arg0, %c0_i32 : i32, i32
  }
  func.func @transform_1(%arg0: i32) -> (i32, i32) {
    %c0_i32 = arith.constant 0 : i32
    %c0_i32_0 = arith.constant 0 : i32
    %c0_i32_1 = arith.constant 0 : i32
    return %c0_i32, %c0_i32_0 : i32, i32
  }
  func.func @transform_2(%arg0: i32) -> (i32, i32) {
    %c0_i32 = arith.constant 0 : i32
    %c0_i32_0 = arith.constant 0 : i32
    %c0_i32_1 = arith.constant 0 : i32
    return %c0_i32, %c0_i32_0 : i32, i32
  }
  func.func @transform_3(%arg0: i32) -> (i32, i32) {
    %c0_i32 = arith.constant 0 : i32
    %c0_i32_0 = arith.constant 0 : i32
    %c0_i32_1 = arith.constant 0 : i32
    return %c0_i32, %c0_i32_0 : i32, i32
  }
  func.func @transform_4(%arg0: i32) -> (i32, i32) {
    %c0_i32 = arith.constant 0 : i32
    %c0_i32_0 = arith.constant 0 : i32
    %c0_i32_1 = arith.constant 0 : i32
    return %c0_i32, %c0_i32_0 : i32, i32
  }
  func.func @transform_5(%arg0: i32) -> (i32, i32) {
    %c0_i32 = arith.constant 0 : i32
    %c0_i32_0 = arith.constant 0 : i32
    return %arg0, %c0_i32 : i32, i32
  }
}

</mosaic_0001>

<llo_original>
// kernel: net_dropout_forward.3
$region0: #{net_dropout_forward.3}
  #allocation0 [shape = 'u32[]', space=smem, size = 0x4, offset = 0x4, fixed_abs, tag = 'smem constant byte address 0x4 - core index']
  #allocation1 [shape = 'u32[144,128]{1,0:T(1,128)}', space=vmem, size = 0x12000, scoped, tag = 'internal scratch']
  %s0 = inlined_call_operand.vmem [shape: f32[2,784], index: 0, kind: input, shape index: {}]
  %s1 = inlined_call_operand.vmem [shape: f32[784,32], index: 1, kind: input, shape index: {}]
  %s2 = inlined_call_operand.vmem [shape: f32[1,32], index: 2, kind: input, shape index: {}]
  %s3 = inlined_call_operand.vmem [shape: f32[32,10], index: 3, kind: input, shape index: {}]
  %s4 = inlined_call_operand.vmem [shape: f32[1,10], index: 4, kind: input, shape index: {}]
  %s5 = inlined_call_operand.hbm [shape: f32[2,10], index: 5, kind: output, shape index: {}]
  %s6 = sld [smem:[#allocation0]]
  $region30: #{net_dropout_forward.3} parent=0
    _
  %s8 = ssub.s32 1, %s6
  %s9 = scalar_select 0, %s8, %s6
  $region1: #{net_dropout_forward.3} parent=0
    #allocation2 [shape = 'u8[1024]{0}', space=vmem, size = 0x400, scoped, tag = 'output window, operand 0, single buffered']
    #allocation3 [shape = 's32[1]{0}', space=sflag, size = 0x4, scoped, tag = 'scoped memory for net_dropout_forward.3']
    %10 = vsyncpa [#allocation3], 0
    // Predicated region
    $region2: #{net_dropout_forward.3} parent=1 // pred_check
      _
    $region3: #{net_dropout_forward.3} parent=1 // pred_check_branch
      %12 = sbr.rel (0) target = $region5
    $region4: #{net_dropout_forward.3} parent=1 // pred_region
      _
    $region5: #{net_dropout_forward.3} parent=1 // pred_fallthru
      _
    // Predicated region
    $region6: #{net_dropout_forward.3} parent=1 // pred_check
      _
    $region7: #{net_dropout_forward.3} parent=1 // pred_check_branch
      %14 = sbr.rel (0) target = $region9
    $region8: #{net_dropout_forward.3} parent=1 // pred_region
      _
    $region9: #{net_dropout_forward.3} parent=1 // pred_fallthru
      _
    // Predicated region
    $region10: #{net_dropout_forward.3} parent=1 // pred_check
      _
    $region11: #{net_dropout_forward.3} parent=1 // pred_check_branch
      %16 = sbr.rel (0) target = $region13
    $region12: #{net_dropout_forward.3} parent=1 // pred_region
      _
    $region13: #{net_dropout_forward.3} parent=1 // pred_fallthru
      _
    // Predicated region
    $region14: #{net_dropout_forward.3} parent=1 // pred_check
      _
    $region15: #{net_dropout_forward.3} parent=1 // pred_check_branch
      %18 = sbr.rel (0) target = $region17
    $region16: #{net_dropout_forward.3} parent=1 // pred_region
      _
    $region17: #{net_dropout_forward.3} parent=1 // pred_fallthru
      _
    // Predicated region
    $region18: #{net_dropout_forward.3} parent=1 // pred_check
      _
    $region19: #{net_dropout_forward.3} parent=1 // pred_check_branch
      %20 = sbr.rel (0) target = $region21
    $region20: #{net_dropout_forward.3} parent=1 // pred_region
      _
    $region21: #{net_dropout_forward.3} parent=1 // pred_fallthru
      _
    %v21 = vld [vmem:[%s0] sm:$0xff]
    %v22 = vld [vmem:[%s0 + $0x8] sm:$0x3f]
    %v23 = vld [vmem:[%s1] sm:$0xff]
    %v24 = vld [vmem:[%s1 + $0x8] sm:$0xff]
    %v25 = vld [vmem:[%s1 + $0x10] sm:$0xff]
    %v26 = vld [vmem:[%s1 + $0x18] sm:$0xff]
    %v27 = vld [vmem:[%s1 + $0x20] sm:$0xff]
    %v28 = vld [vmem:[%s1 + $0x28] sm:$0xff]
    %v29 = vld [vmem:[%s1 + $0x30] sm:$0xff]
    %v30 = vld [vmem:[%s1 + $0x38] sm:$0xff]
    %v31 = vld [vmem:[%s1 + $0x40] sm:$0xff]
    %v32 = vld [vmem:[%s1 + $0x48] sm:$0xff]
    %v33 = vld [vmem:[%s1 + $0x50] sm:$0xff]
    %v34 = vld [vmem:[%s1 + $0x58] sm:$0xff]
    %v35 = vld [vmem:[%s1 + $0x60] sm:$0xff]
    %v36 = vld [vmem:[%s1 + $0x68] sm:$0xff]
    %v37 = vld [vmem:[%s1 + $0x70] sm:$0xff]
    %v38 = vld [vmem:[%s1 + $0x78] sm:$0xff]
    %v39 = vld [vmem:[%s1 + $0x80] sm:$0xff]
    %v40 = vld [vmem:[%s1 + $0x88] sm:$0xff]
    %v41 = vld [vmem:[%s1 + $0x90] sm:$0xff]
    %v42 = vld [vmem:[%s1 + $0x98] sm:$0xff]
    %v43 = vld [vmem:[%s1 + $0xa0] sm:$0xff]
    %v44 = vld [vmem:[%s1 + $0xa8] sm:$0xff]
    %v45 = vld [vmem:[%s1 + $0xb0] sm:$0xff]
    %v46 = vld [vmem:[%s1 + $0xb8] sm:$0xff]
    %v47 = vld [vmem:[%s1 + $0xc0] sm:$0xff]
    %v48 = vld [vmem:[%s1 + $0xc8] sm:$0xff]
    %v49 = vld [vmem:[%s1 + $0xd0] sm:$0xff]
    %v50 = vld [vmem:[%s1 + $0xd8] sm:$0xff]
    %v51 = vld [vmem:[%s1 + $0xe0] sm:$0xff]
    %v52 = vld [vmem:[%s1 + $0xe8] sm:$0xff]
    %v53 = vld [vmem:[%s1 + $0xf0] sm:$0xff]
    %v54 = vld [vmem:[%s1 + $0xf8] sm:$0xff]
    %v55 = vld [vmem:[%s1 + $0x100] sm:$0xff]
    %v56 = vld [vmem:[%s1 + $0x108] sm:$0xff]
    %v57 = vld [vmem:[%s1 + $0x110] sm:$0xff]
    %v58 = vld [vmem:[%s1 + $0x118] sm:$0xff]
    %v59 = vld [vmem:[%s1 + $0x120] sm:$0xff]
    %v60 = vld [vmem:[%s1 + $0x128] sm:$0xff]
    %v61 = vld [vmem:[%s1 + $0x130] sm:$0xff]
    %v62 = vld [vmem:[%s1 + $0x138] sm:$0xff]
    %v63 = vld [vmem:[%s1 + $0x140] sm:$0xff]
    %v64 = vld [vmem:[%s1 + $0x148] sm:$0xff]
    %v65 = vld [vmem:[%s1 + $0x150] sm:$0xff]
    %v66 = vld [vmem:[%s1 + $0x158] sm:$0xff]
    %v67 = vld [vmem:[%s1 + $0x160] sm:$0xff]
    %v68 = vld [vmem:[%s1 + $0x168] sm:$0xff]
    %v69 = vld [vmem:[%s1 + $0x170] sm:$0xff]
    %v70 = vld [vmem:[%s1 + $0x178] sm:$0xff]
    %v71 = vld [vmem:[%s1 + $0x180] sm:$0xff]
    %v72 = vld [vmem:[%s1 + $0x188] sm:$0xff]
    %v73 = vld [vmem:[%s1 + $0x190] sm:$0xff]
    %v74 = vld [vmem:[%s1 + $0x198] sm:$0xff]
    %v75 = vld [vmem:[%s1 + $0x1a0] sm:$0xff]
    %v76 = vld [vmem:[%s1 + $0x1a8] sm:$0xff]
    %v77 = vld [vmem:[%s1 + $0x1b0] sm:$0xff]
    %v78 = vld [vmem:[%s1 + $0x1b8] sm:$0xff]
    %v79 = vld [vmem:[%s1 + $0x1c0] sm:$0xff]
    %v80 = vld [vmem:[%s1 + $0x1c8] sm:$0xff]
    %v81 = vld [vmem:[%s1 + $0x1d0] sm:$0xff]
    %v82 = vld [vmem:[%s1 + $0x1d8] sm:$0xff]
    %v83 = vld [vmem:[%s1 + $0x1e0] sm:$0xff]
    %v84 = vld [vmem:[%s1 + $0x1e8] sm:$0xff]
    %v85 = vld [vmem:[%s1 + $0x1f0] sm:$0xff]
    %v86 = vld [vmem:[%s1 + $0x1f8] sm:$0xff]
    %v87 = vld [vmem:[%s1 + $0x200] sm:$0xff]
    %v88 = vld [vmem:[%s1 + $0x208] sm:$0xff]
    %v89 = vld [vmem:[%s1 + $0x210] sm:$0xff]
    %v90 = vld [vmem:[%s1 + $0x218] sm:$0xff]
    %v91 = vld [vmem:[%s1 + $0x220] sm:$0xff]
    %v92 = vld [vmem:[%s1 + $0x228] sm:$0xff]
    %v93 = vld [vmem:[%s1 + $0x230] sm:$0xff]
    %v94 = vld [vmem:[%s1 + $0x238] sm:$0xff]
    %v95 = vld [vmem:[%s1 + $0x240] sm:$0xff]
    %v96 = vld [vmem:[%s1 + $0x248] sm:$0xff]
    %v97 = vld [vmem:[%s1 + $0x250] sm:$0xff]
    %v98 = vld [vmem:[%s1 + $0x258] sm:$0xff]
    %v99 = vld [vmem:[%s1 + $0x260] sm:$0xff]
    %v100 = vld [vmem:[%s1 + $0x268] sm:$0xff]
    %v101 = vld [vmem:[%s1 + $0x270] sm:$0xff]
    %v102 = vld [vmem:[%s1 + $0x278] sm:$0xff]
    %v103 = vld [vmem:[%s1 + $0x280] sm:$0xff]
    %v104 = vld [vmem:[%s1 + $0x288] sm:$0xff]
    %v105 = vld [vmem:[%s1 + $0x290] sm:$0xff]
    %v106 = vld [vmem:[%s1 + $0x298] sm:$0xff]
    %v107 = vld [vmem:[%s1 + $0x2a0] sm:$0xff]
    %v108 = vld [vmem:[%s1 + $0x2a8] sm:$0xff]
    %v109 = vld [vmem:[%s1 + $0x2b0] sm:$0xff]
    %v110 = vld [vmem:[%s1 + $0x2b8] sm:$0xff]
    %v111 = vld [vmem:[%s1 + $0x2c0] sm:$0xff]
    %v112 = vld [vmem:[%s1 + $0x2c8] sm:$0xff]
    %v113 = vld [vmem:[%s1 + $0x2d0] sm:$0xff]
    %v114 = vld [vmem:[%s1 + $0x2d8] sm:$0xff]
    %v115 = vld [vmem:[%s1 + $0x2e0] sm:$0xff]
    %v116 = vld [vmem:[%s1 + $0x2e8] sm:$0xff]
    %v117 = vld [vmem:[%s1 + $0x2f0] sm:$0xff]
    %v118 = vld [vmem:[%s1 + $0x2f8] sm:$0xff]
    %v119 = vld [vmem:[%s1 + $0x300] sm:$0xff]
    %v120 = vld [vmem:[%s1 + $0x308] sm:$0xff]
    %v121 = vld [vmem:[%s2] sm:$0x1]
    %v123 = vlaneseq
    %v124 = vshrl.u32 %v123, 7
    %v125 = vsub.s32 0, %v124
    %v126 = vrot.slane %v121, %v125
    %v130 = vcombine.high %v21, %v21
    %v132 = vunpack.c.l.s4 1983009808
    %v133 = vunpack.c.0.s8 %v132
    %v134 = vlaneseq
    %v135 = vshrl.u32 %v134, 7
    %v136 = vsub.s32 %v133, %v135
    %v137 = vrot.slane %v21, %v136
    %v139 = vunpack.c.l.s4 1983009808
    %v140 = vunpack.c.0.s8 %v139
    %v141 = vlaneseq
    %v142 = vshrl.u32 %v141, 7
    %v143 = vsub.s32 %v140, %v142
    %v144 = vrot.slane %v130, %v143
    %v145 = vcombine.high %v137, %v137
    %v146 = vcombine.high %v144, %v144
    %v147 = vcombine.high %v22, %v22
    %v149 = vunpack.c.l.s4 1983009808
    %v150 = vunpack.c.0.s8 %v149
    %v151 = vlaneseq
    %v152 = vshrl.u32 %v151, 7
    %v153 = vsub.s32 %v150, %v152
    %v154 = vrot.slane %v22, %v153
    %v156 = vunpack.c.l.s4 1983009808
    %v157 = vunpack.c.0.s8 %v156
    %v158 = vlaneseq
    %v159 = vshrl.u32 %v158, 7
    %v160 = vsub.s32 %v157, %v159
    %v161 = vrot.slane %v147, %v160
    %v162 = vcombine.high %v154, %v154
    %vm169 = vcmask 130048
    %v170 = vsel %vm169, %v161, 0
    %172 = vmatprep.subr.mxu0 0.0
    %173 = vmatpush1.msra.mxu0 %v23
    %174 = vmatprep.subr.mxu0 0.0
    %175 = vmatpush1.msra.mxu0 %v24
    %176 = vmatprep.subr.mxu0 0.0
    %177 = vmatpush1.msra.mxu0 %v25
    %178 = vmatprep.subr.mxu0 0.0
    %179 = vmatpush1.msra.mxu0 %v26
    %180 = vmatprep.subr.mxu0 0.0
    %181 = vmatpush1.msra.mxu0 %v27
    %182 = vmatprep.subr.mxu0 0.0
    %183 = vmatpush1.msra.mxu0 %v28
    %184 = vmatprep.subr.mxu0 0.0
    %185 = vmatpush1.msra.mxu0 %v29
    %186 = vmatprep.subr.mxu0 0.0
    %187 = vmatpush1.msra.mxu0 %v30
    %188 = vmatprep.subr.mxu0 0.0
    %189 = vmatpush1.msra.mxu0 %v31
    %190 = vmatprep.subr.mxu0 0.0
    %191 = vmatpush1.msra.mxu0 %v32
    %192 = vmatprep.subr.mxu0 0.0
    %193 = vmatpush1.msra.mxu0 %v33
    %194 = vmatprep.subr.mxu0 0.0
    %195 = vmatpush1.msra.mxu0 %v34
    %196 = vmatprep.subr.mxu0 0.0
    %197 = vmatpush1.msra.mxu0 %v35
    %198 = vmatprep.subr.mxu0 0.0
    %199 = vmatpush1.msra.mxu0 %v36
    %200 = vmatprep.subr.mxu0 0.0
    %201 = vmatpush1.msra.mxu0 %v37
    %202 = vmatprep.subr.mxu0 0.0
    %203 = vmatpush1.msra.mxu0 %v38
    %204 = vmatprep.subr.mxu0 0.0
    %205 = vmatpush1.msra.mxu0 %v39
    %206 = vmatprep.subr.mxu0 0.0
    %207 = vmatpush1.msra.mxu0 %v40
    %208 = vmatprep.subr.mxu0 0.0
    %209 = vmatpush1.msra.mxu0 %v41
    %210 = vmatprep.subr.mxu0 0.0
    %211 = vmatpush1.msra.mxu0 %v42
    %212 = vmatprep.subr.mxu0 0.0
    %213 = vmatpush1.msra.mxu0 %v43
    %214 = vmatprep.subr.mxu0 0.0
    %215 = vmatpush1.msra.mxu0 %v44
    %216 = vmatprep.subr.mxu0 0.0
    %217 = vmatpush1.msra.mxu0 %v45
    %218 = vmatprep.subr.mxu0 0.0
    %219 = vmatpush1.msra.mxu0 %v46
    %220 = vmatprep.subr.mxu0 0.0
    %221 = vmatpush1.msra.mxu0 %v47
    %222 = vmatprep.subr.mxu0 0.0
    %223 = vmatpush1.msra.mxu0 %v48
    %224 = vmatprep.subr.mxu0 0.0
    %225 = vmatpush1.msra.mxu0 %v49
    %226 = vmatprep.subr.mxu0 0.0
    %227 = vmatpush1.msra.mxu0 %v50
    %228 = vmatprep.subr.mxu0 0.0
    %229 = vmatpush1.msra.mxu0 %v51
    %230 = vmatprep.subr.mxu0 0.0
    %231 = vmatpush1.msra.mxu0 %v52
    %232 = vmatprep.subr.mxu0 0.0
    %233 = vmatpush1.msra.mxu0 %v53
    %234 = vmatprep.subr.mxu0 0.0
    %235 = vmatpush1.msra.mxu0 %v54
    %236 = vmatprep.mubr.f32.mxu0 %v145
    %237 = vmatmul.mubr.f32.gmra.mrb[0].mxu0 %v137
    %v238 = vpop.f32.mrb[0].mxu0
    %v239 = vadd.f32 %v126, %v238
    %v240 = vpop.f32.mrb[0].mxu0
    %241 = vdwg.mxu0
    %242 = vmatprep.subr.mxu0 0.0
    %243 = vmatpush1.msra.mxu0 %v55
    %244 = vmatprep.subr.mxu0 0.0
    %245 = vmatpush1.msra.mxu0 %v56
    %246 = vmatprep.subr.mxu0 0.0
    %247 = vmatpush1.msra.mxu0 %v57
    %248 = vmatprep.subr.mxu0 0.0
    %249 = vmatpush1.msra.mxu0 %v58
    %250 = vmatprep.subr.mxu0 0.0
    %251 = vmatpush1.msra.mxu0 %v59
    %252 = vmatprep.subr.mxu0 0.0
    %253 = vmatpush1.msra.mxu0 %v60
    %254 = vmatprep.subr.mxu0 0.0
    %255 = vmatpush1.msra.mxu0 %v61
    %256 = vmatprep.subr.mxu0 0.0
    %257 = vmatpush1.msra.mxu0 %v62
    %258 = vmatprep.subr.mxu0 0.0
    %259 = vmatpush1.msra.mxu0 %v63
    %260 = vmatprep.subr.mxu0 0.0
    %261 = vmatpush1.msra.mxu0 %v64
    %262 = vmatprep.subr.mxu0 0.0
    %263 = vmatpush1.msra.mxu0 %v65
    %264 = vmatprep.subr.mxu0 0.0
    %265 = vmatpush1.msra.mxu0 %v66
    %266 = vmatprep.subr.mxu0 0.0
    %267 = vmatpush1.msra.mxu0 %v67
    %268 = vmatprep.subr.mxu0 0.0
    %269 = vmatpush1.msra.mxu0 %v68
    %270 = vmatprep.subr.mxu0 0.0
    %271 = vmatpush1.msra.mxu0 %v69
    %272 = vmatprep.subr.mxu0 0.0
    %273 = vmatpush1.msra.mxu0 %v70
    %274 = vmatprep.subr.mxu0 0.0
    %275 = vmatpush1.msra.mxu0 %v71
    %276 = vmatprep.subr.mxu0 0.0
    %277 = vmatpush1.msra.mxu0 %v72
    %278 = vmatprep.subr.mxu0 0.0
    %279 = vmatpush1.msra.mxu0 %v73
    %280 = vmatprep.subr.mxu0 0.0
    %281 = vmatpush1.msra.mxu0 %v74
    %282 = vmatprep.subr.mxu0 0.0
    %283 = vmatpush1.msra.mxu0 %v75
    %284 = vmatprep.subr.mxu0 0.0
    %285 = vmatpush1.msra.mxu0 %v76
    %286 = vmatprep.subr.mxu0 0.0
    %287 = vmatpush1.msra.mxu0 %v77
    %288 = vmatprep.subr.mxu0 0.0
    %289 = vmatpush1.msra.mxu0 %v78
    %290 = vmatprep.subr.mxu0 0.0
    %291 = vmatpush1.msra.mxu0 %v79
    %292 = vmatprep.subr.mxu0 0.0
    %293 = vmatpush1.msra.mxu0 %v80
    %294 = vmatprep.subr.mxu0 0.0
    %295 = vmatpush1.msra.mxu0 %v81
    %296 = vmatprep.subr.mxu0 0.0
    %297 = vmatpush1.msra.mxu0 %v82
    %298 = vmatprep.subr.mxu0 0.0
    %299 = vmatpush1.msra.mxu0 %v83
    %300 = vmatprep.subr.mxu0 0.0
    %301 = vmatpush1.msra.mxu0 %v84
    %302 = vmatprep.subr.mxu0 0.0
    %303 = vmatpush1.msra.mxu0 %v85
    %304 = vmatprep.subr.mxu0 0.0
    %305 = vmatpush1.msra.mxu0 %v86
    %306 = vmatprep.mubr.f32.mxu0 %v146
    %307 = vmatmul.mubr.f32.gmra.mrb[0].mxu0 %v144
    %v308 = vpop.f32.mrb[0].mxu0
    %v309 = vadd.f32 %v239, %v308
    %v310 = vpop.f32.mrb[0].mxu0
    %311 = vdwg.mxu0
    %312 = vmatprep.subr.mxu0 0.0
    %313 = vmatpush1.msra.mxu0 %v87
    %314 = vmatprep.subr.mxu0 0.0
    %315 = vmatpush1.msra.mxu0 %v88
    %316 = vmatprep.subr.mxu0 0.0
    %317 = vmatpush1.msra.mxu0 %v89
    %318 = vmatprep.subr.mxu0 0.0
    %319 = vmatpush1.msra.mxu0 %v90
    %320 = vmatprep.subr.mxu0 0.0
    %321 = vmatpush1.msra.mxu0 %v91
    %322 = vmatprep.subr.mxu0 0.0
    %323 = vmatpush1.msra.mxu0 %v92
    %324 = vmatprep.subr.mxu0 0.0
    %325 = vmatpush1.msra.mxu0 %v93
    %326 = vmatprep.subr.mxu0 0.0
    %327 = vmatpush1.msra.mxu0 %v94
    %328 = vmatprep.subr.mxu0 0.0
    %329 = vmatpush1.msra.mxu0 %v95
    %330 = vmatprep.subr.mxu0 0.0
    %331 = vmatpush1.msra.mxu0 %v96
    %332 = vmatprep.subr.mxu0 0.0
    %333 = vmatpush1.msra.mxu0 %v97
    %334 = vmatprep.subr.mxu0 0.0
    %335 = vmatpush1.msra.mxu0 %v98
    %336 = vmatprep.subr.mxu0 0.0
    %337 = vmatpush1.msra.mxu0 %v99
    %338 = vmatprep.subr.mxu0 0.0
    %339 = vmatpush1.msra.mxu0 %v100
    %340 = vmatprep.subr.mxu0 0.0
    %341 = vmatpush1.msra.mxu0 %v101
    %342 = vmatprep.subr.mxu0 0.0
    %343 = vmatpush1.msra.mxu0 %v102
    %344 = vmatprep.subr.mxu0 0.0
    %345 = vmatpush1.msra.mxu0 %v103
    %346 = vmatprep.subr.mxu0 0.0
    %347 = vmatpush1.msra.mxu0 %v104
    %348 = vmatprep.subr.mxu0 0.0
    %349 = vmatpush1.msra.mxu0 %v105
    %350 = vmatprep.subr.mxu0 0.0
    %351 = vmatpush1.msra.mxu0 %v106
    %352 = vmatprep.subr.mxu0 0.0
    %353 = vmatpush1.msra.mxu0 %v107
    %354 = vmatprep.subr.mxu0 0.0
    %355 = vmatpush1.msra.mxu0 %v108
    %356 = vmatprep.subr.mxu0 0.0
    %357 = vmatpush1.msra.mxu0 %v109
    %358 = vmatprep.subr.mxu0 0.0
    %359 = vmatpush1.msra.mxu0 %v110
    %360 = vmatprep.subr.mxu0 0.0
    %361 = vmatpush1.msra.mxu0 %v111
    %362 = vmatprep.subr.mxu0 0.0
    %363 = vmatpush1.msra.mxu0 %v112
    %364 = vmatprep.subr.mxu0 0.0
    %365 = vmatpush1.msra.mxu0 %v113
    %366 = vmatprep.subr.mxu0 0.0
    %367 = vmatpush1.msra.mxu0 %v114
    %368 = vmatprep.subr.mxu0 0.0
    %369 = vmatpush1.msra.mxu0 %v115
    %370 = vmatprep.subr.mxu0 0.0
    %371 = vmatpush1.msra.mxu0 %v116
    %372 = vmatprep.subr.mxu0 0.0
    %373 = vmatpush1.msra.mxu0 %v117
    %374 = vmatprep.subr.mxu0 0.0
    %375 = vmatpush1.msra.mxu0 %v118
    %376 = vmatprep.mubr.f32.mxu0 %v162
    %377 = vmatmul.mubr.f32.gmra.mrb[0].mxu0 %v154
    %v378 = vpop.f32.mrb[0].mxu0
    %v379 = vadd.f32 %v309, %v378
    %v380 = vpop.f32.mrb[0].mxu0
    %381 = vdwg.mxu0
    %382 = vmatprep.subr.mxu0 0.0
    %383 = vmatpush1.msra.mxu0 %v119
    %384 = vmatprep.subr.mxu0 0.0
    %385 = vmatpush1.msra.mxu0 %v120
    %386 = vmatprep.subr.mxu0 0.0
    %387 = vmatpush1.msra.mxu0 0.0
    %388 = vmatprep.subr.mxu0 0.0
    %389 = vmatpush1.msra.mxu0 0.0
    %390 = vmatprep.subr.mxu0 0.0
    %391 = vmatpush1.msra.mxu0 0.0
    %392 = vmatprep.subr.mxu0 0.0
    %393 = vmatpush1.msra.mxu0 0.0
    %394 = vmatprep.subr.mxu0 0.0
    %395 = vmatpush1.msra.mxu0 0.0
    %396 = vmatprep.subr.mxu0 0.0
    %397 = vmatpush1.msra.mxu0 0.0
    %398 = vmatprep.subr.mxu0 0.0
    %399 = vmatpush1.msra.mxu0 0.0
    %400 = vmatprep.subr.mxu0 0.0
    %401 = vmatpush1.msra.mxu0 0.0
    %402 = vmatprep.subr.mxu0 0.0
    %403 = vmatpush1.msra.mxu0 0.0
    %404 = vmatprep.subr.mxu0 0.0
    %405 = vmatpush1.msra.mxu0 0.0
    %406 = vmatprep.subr.mxu0 0.0
    %407 = vmatpush1.msra.mxu0 0.0
    %408 = vmatprep.subr.mxu0 0.0
    %409 = vmatpush1.msra.mxu0 0.0
    %410 = vmatprep.subr.mxu0 0.0
    %411 = vmatpush1.msra.mxu0 0.0
    %412 = vmatprep.subr.mxu0 0.0
    %413 = vmatpush1.msra.mxu0 0.0
    %414 = vmatprep.subr.mxu0 0.0
    %415 = vmatpush1.msra.mxu0 0.0
    %416 = vmatprep.subr.mxu0 0.0
    %417 = vmatpush1.msra.mxu0 0.0
    %418 = vmatprep.subr.mxu0 0.0
    %419 = vmatpush1.msra.mxu0 0.0
    %420 = vmatprep.subr.mxu0 0.0
    %421 = vmatpush1.msra.mxu0 0.0
    %422 = vmatprep.subr.mxu0 0.0
    %423 = vmatpush1.msra.mxu0 0.0
    %424 = vmatprep.subr.mxu0 0.0
    %425 = vmatpush1.msra.mxu0 0.0
    %426 = vmatprep.subr.mxu0 0.0
    %427 = vmatpush1.msra.mxu0 0.0
    %428 = vmatprep.subr.mxu0 0.0
    %429 = vmatpush1.msra.mxu0 0.0
    %430 = vmatprep.subr.mxu0 0.0
    %431 = vmatpush1.msra.mxu0 0.0
    %432 = vmatprep.subr.mxu0 0.0
    %433 = vmatpush1.msra.mxu0 0.0
    %434 = vmatprep.subr.mxu0 0.0
    %435 = vmatpush1.msra.mxu0 0.0
    %436 = vmatprep.subr.mxu0 0.0
    %437 = vmatpush1.msra.mxu0 0.0
    %438 = vmatprep.subr.mxu0 0.0
    %439 = vmatpush1.msra.mxu0 0.0
    %440 = vmatprep.subr.mxu0 0.0
    %441 = vmatpush1.msra.mxu0 0.0
    %442 = vmatprep.subr.mxu0 0.0
    %443 = vmatpush1.msra.mxu0 0.0
    %444 = vmatprep.subr.mxu0 0.0
    %445 = vmatpush1.msra.mxu0 0.0
    %446 = vmatprep.mubr.f32.mxu0 0.0
    %447 = vmatmul.mubr.f32.gmra.mrb[0].mxu0 %v170
    %v448 = vpop.f32.mrb[0].mxu0
    %v449 = vadd.f32 %v379, %v448
    %v450 = vpop.f32.mrb[0].mxu0
    %451 = vdwg.mxu0
    %v452 = vmax.f32 %v449, 0.0
    %v453 = vld [vmem:[%s3] sm:$0xff]
    %v454 = vld [vmem:[%s3 + $0x8] sm:$0xff]
    %v455 = vld [vmem:[%s3 + $0x10] sm:$0xff]
    %v456 = vld [vmem:[%s3 + $0x18] sm:$0xff]
    %v457 = vld [vmem:[%s4] sm:$0x1]
    %v459 = vlaneseq
    %v460 = vshrl.u32 %v459, 7
    %v461 = vsub.s32 0, %v460
    %v462 = vrot.slane %v457, %v461
    %vm464 = vcmask 261120
    %v466 = vsel %vm464, %v452, 0
    %468 = vmatprep.subr.mxu0 0.0
    %469 = vmatpush1.msra.mxu0 %v453
    %470 = vmatprep.subr.mxu0 0.0
    %471 = vmatpush1.msra.mxu0 %v454
    %472 = vmatprep.subr.mxu0 0.0
    %473 = vmatpush1.msra.mxu0 %v455
    %474 = vmatprep.subr.mxu0 0.0
    %475 = vmatpush1.msra.mxu0 %v456
    %476 = vmatprep.subr.mxu0 0.0
    %477 = vmatpush1.msra.mxu0 0.0
    %478 = vmatprep.subr.mxu0 0.0
    %479 = vmatpush1.msra.mxu0 0.0
    %480 = vmatprep.subr.mxu0 0.0
    %481 = vmatpush1.msra.mxu0 0.0
    %482 = vmatprep.subr.mxu0 0.0
    %483 = vmatpush1.msra.mxu0 0.0
    %484 = vmatprep.subr.mxu0 0.0
    %485 = vmatpush1.msra.mxu0 0.0
    %486 = vmatprep.subr.mxu0 0.0
    %487 = vmatpush1.msra.mxu0 0.0
    %488 = vmatprep.subr.mxu0 0.0
    %489 = vmatpush1.msra.mxu0 0.0
    %490 = vmatprep.subr.mxu0 0.0
    %491 = vmatpush1.msra.mxu0 0.0
    %492 = vmatprep.subr.mxu0 0.0
    %493 = vmatpush1.msra.mxu0 0.0
    %494 = vmatprep.subr.mxu0 0.0
    %495 = vmatpush1.msra.mxu0 0.0
    %496 = vmatprep.subr.mxu0 0.0
    %497 = vmatpush1.msra.mxu0 0.0
    %498 = vmatprep.subr.mxu0 0.0
    %499 = vmatpush1.msra.mxu0 0.0
    %500 = vmatprep.subr.mxu0 0.0
    %501 = vmatpush1.msra.mxu0 0.0
    %502 = vmatprep.subr.mxu0 0.0
    %503 = vmatpush1.msra.mxu0 0.0
    %504 = vmatprep.subr.mxu0 0.0
    %505 = vmatpush1.msra.mxu0 0.0
    %506 = vmatprep.subr.mxu0 0.0
    %507 = vmatpush1.msra.mxu0 0.0
    %508 = vmatprep.subr.mxu0 0.0
    %509 = vmatpush1.msra.mxu0 0.0
    %510 = vmatprep.subr.mxu0 0.0
    %511 = vmatpush1.msra.mxu0 0.0
    %512 = vmatprep.subr.mxu0 0.0
    %513 = vmatpush1.msra.mxu0 0.0
    %514 = vmatprep.subr.mxu0 0.0
    %515 = vmatpush1.msra.mxu0 0.0
    %516 = vmatprep.subr.mxu0 0.0
    %517 = vmatpush1.msra.mxu0 0.0
    %518 = vmatprep.subr.mxu0 0.0
    %519 = vmatpush1.msra.mxu0 0.0
    %520 = vmatprep.subr.mxu0 0.0
    %521 = vmatpush1.msra.mxu0 0.0
    %522 = vmatprep.subr.mxu0 0.0
    %523 = vmatpush1.msra.mxu0 0.0
    %524 = vmatprep.subr.mxu0 0.0
    %525 = vmatpush1.msra.mxu0 0.0
    %526 = vmatprep.subr.mxu0 0.0
    %527 = vmatpush1.msra.mxu0 0.0
    %528 = vmatprep.subr.mxu0 0.0
    %529 = vmatpush1.msra.mxu0 0.0
    %530 = vmatprep.subr.mxu0 0.0
    %531 = vmatpush1.msra.mxu0 0.0
    %532 = vmatprep.mubr.f32.mxu0 0.0
    %533 = vmatmul.mubr.f32.gmra.mrb[0].mxu0 %v466
    %v534 = vpop.f32.mrb[0].mxu0
    %v535 = vadd.f32 %v462, %v534
    %v536 = vpop.f32.mrb[0].mxu0
    %537 = vdwg.mxu0
    %vm538 = vcmask 74752
    %539 = vst.msk [vmem:[#allocation2] sm:$0x3] %vm538, %v535
    // Predicated region
    $region22: #{net_dropout_forward.3} parent=1 // pred_check
      _
    $region23: #{net_dropout_forward.3} parent=1 // pred_check_branch
      %541 = sbr.rel (0) target = $region25
    $region24: #{net_dropout_forward.3} parent=1 // pred_region
      %s543 = ssub.s32 32, 32
      %544 = vsyncadd [#allocation3], %s543
      %s546 = sshll.u32 [#allocation2], 4
      %s547 = int_to_ptr.vmem [resolvable:$true] %s546
      %549 = dma.vmem_to_hbm [thread:$0]  %s547, 32, %s5, [#allocation3]
    $region25: #{net_dropout_forward.3} parent=1 // pred_fallthru
      _
    // Predicated region
    $region26: #{net_dropout_forward.3} parent=1 // pred_check
      _
    $region27: #{net_dropout_forward.3} parent=1 // pred_check_branch
      %551 = sbr.rel (0) target = $region29
    $region28: #{net_dropout_forward.3} parent=1 // pred_region
      %552 = dma.done [#allocation3], 32
    $region29: #{net_dropout_forward.3} parent=1 // pred_fallthru
      _
    %553 = vsyncpa [#allocation3], 1

// kernel: net_dropout_forward.2
$region0: #{net_dropout_forward.2}
  #allocation0 [shape = 'u32[]', space=smem, size = 0x4, offset = 0x4, fixed_abs, tag = 'smem constant byte address 0x4 - core index']
  #allocation1 [shape = 'u32[144,128]{1,0:T(1,128)}', space=vmem, size = 0x12000, scoped, tag = 'internal scratch']
  #allocation2 [shape = 'f32[4,8,8,32]{3,2,1,0:T(8,128)}', space=vmem, size = 0x20000, scoped, tag = 'scratch operand']
  %s0 = inlined_call_operand.vmem [shape: f32[2,7,7,36], index: 0, kind: input, shape index: {}]
  %s1 = inlined_call_operand.vmem [shape: f32[36,512], index: 1, kind: input, shape index: {}]
  %s2 = inlined_call_operand.vmem [shape: f32[1,32], index: 2, kind: input, shape index: {}]
  %s3 = inlined_call_operand.vmem [shape: f32[32,144], index: 3, kind: input, shape index: {}]
  %s4 = inlined_call_operand.vmem [shape: f32[1,16], index: 4, kind: input, shape index: {}]
  %s5 = inlined_call_operand.vmem [shape: f32[2,7,7,16], index: 5, kind: output, shape index: {}]
  %s6 = sld [smem:[#allocation0]]
  $region53: #{net_dropout_forward.2} parent=0
    _
  %s8 = ssub.s32 1, %s6
  %s9 = scalar_select 0, %s8, %s6
  loop: start=0, step=1, limit=4
  $region2: #{net_dropout_forward.2} parent=0 // loop_pre_header
    _
  $region3: #{net_dropout_forward.2} parent=0 // loop_header
    %s11 = sphi 0, %s15
    %p12 = scmp.ge.s32.totalorder %s11, 4
    %s21 = sphi 0, %s23
    %s24 = sphi 0, %s21
    %s25 = sphi 0, %s24
    %s41 = sphi 0, %s25
    %s45 = sphi 0, %s45
    %s47 = sphi 0, %s45
    %s48 = sphi 0, %s47
    %s62 = sphi 0, %s48
    %s66 = sphi 0, %s66
    %s68 = sphi 0, %s66
    %s69 = sphi 0, %s68
    %s83 = sphi 0, %s69
    %s87 = sphi 0, %s87
    %s89 = sphi 0, %s87
    %s90 = sphi 0, %s89
    %s104 = sphi 0, %s90
    %s108 = sphi 0, %s108
    %s110 = sphi 0, %s108
    %s111 = sphi 0, %s110
    %s125 = sphi 0, %s111
    %s131 = sphi 0, %s133
    %s134 = sphi 0, %s131
    %s135 = sphi 0, %s134
    %s151 = sphi 0, %s135
  $region4: #{net_dropout_forward.2} parent=0 // loop_header_branch
    %14 = sbr.rel (%p12) target = $region8
  $region5: #{net_dropout_forward.2} parent=0 // loop_body
    %s16 = ssub.s32 %s11, 1
    %s17 = ssub.s32 %s11, 2
    %s18 = sadd.s32 %s11, 1
    %s19 = ssub.s32 %s11, %s18
    %p20 = scmp.eq.s32.totalorder %s19, 0
    %s22 = sadd.s32 %s21, 1
    %s23 = scalar_select %p20, %s21, %s22
    %p26 = pneg %p20
    %p27 = scmp.eq.s32.totalorder %s11, 1
    %p28 = por %p26, %p27
    %p29 = scmp.ne.s32.totalorder %s21, %s24
    %p30 = scmp.eq.s32.totalorder %s11, 0
    %p31 = por %p29, %p30
    %p32 = scmp.ne.s32.totalorder %s21, %s24
    %p33 = scmp.eq.s32.totalorder %s16, 1
    %p34 = por %p32, %p33
    %p35 = scmp.ne.s32.totalorder %s24, %s25
    %p36 = scmp.eq.s32.totalorder %s16, 0
    %p37 = por %p35, %p36
    %p38 = scmp.ne.s32.totalorder %s24, %s25
    %p39 = scmp.eq.s32.totalorder %s17, 1
    %p40 = por %p38, %p39
    %p42 = scmp.ne.s32.totalorder %s25, %s41
    %p43 = scmp.eq.s32.totalorder %s17, 0
    %p44 = por %p42, %p43
    %s46 = sadd.s32 %s45, 1
    %p49 = scmp.eq.s32.totalorder %s11, 1
    %p50 = scmp.ne.s32.totalorder %s45, %s47
    %p51 = scmp.eq.s32.totalorder %s11, 0
    %p52 = por %p50, %p51
    %p53 = scmp.ne.s32.totalorder %s45, %s47
    %p54 = scmp.eq.s32.totalorder %s16, 1
    %p55 = por %p53, %p54
    %p56 = scmp.ne.s32.totalorder %s47, %s48
    %p57 = scmp.eq.s32.totalorder %s16, 0
    %p58 = por %p56, %p57
    %p59 = scmp.ne.s32.totalorder %s47, %s48
    %p60 = scmp.eq.s32.totalorder %s17, 1
    %p61 = por %p59, %p60
    %p63 = scmp.ne.s32.totalorder %s48, %s62
    %p64 = scmp.eq.s32.totalorder %s17, 0
    %p65 = por %p63, %p64
    %s67 = sadd.s32 %s66, 1
    %p70 = scmp.eq.s32.totalorder %s11, 1
    %p71 = scmp.ne.s32.totalorder %s66, %s68
    %p72 = scmp.eq.s32.totalorder %s11, 0
    %p73 = por %p71, %p72
    %p74 = scmp.ne.s32.totalorder %s66, %s68
    %p75 = scmp.eq.s32.totalorder %s16, 1
    %p76 = por %p74, %p75
    %p77 = scmp.ne.s32.totalorder %s68, %s69
    %p78 = scmp.eq.s32.totalorder %s16, 0
    %p79 = por %p77, %p78
    %p80 = scmp.ne.s32.totalorder %s68, %s69
    %p81 = scmp.eq.s32.totalorder %s17, 1
    %p82 = por %p80, %p81
    %p84 = scmp.ne.s32.totalorder %s69, %s83
    %p85 = scmp.eq.s32.totalorder %s17, 0
    %p86 = por %p84, %p85
    %s88 = sadd.s32 %s87, 1
    %p91 = scmp.eq.s32.totalorder %s11, 1
    %p92 = scmp.ne.s32.totalorder %s87, %s89
    %p93 = scmp.eq.s32.totalorder %s11, 0
    %p94 = por %p92, %p93
    %p95 = scmp.ne.s32.totalorder %s87, %s89
    %p96 = scmp.eq.s32.totalorder %s16, 1
    %p97 = por %p95, %p96
    %p98 = scmp.ne.s32.totalorder %s89, %s90
    %p99 = scmp.eq.s32.totalorder %s16, 0
    %p100 = por %p98, %p99
    %p101 = scmp.ne.s32.totalorder %s89, %s90
    %p102 = scmp.eq.s32.totalorder %s17, 1
    %p103 = por %p101, %p102
    %p105 = scmp.ne.s32.totalorder %s90, %s104
    %p106 = scmp.eq.s32.totalorder %s17, 0
    %p107 = por %p105, %p106
    %s109 = sadd.s32 %s108, 1
    %p112 = scmp.eq.s32.totalorder %s11, 1
    %p113 = scmp.ne.s32.totalorder %s108, %s110
    %p114 = scmp.eq.s32.totalorder %s11, 0
    %p115 = por %p113, %p114
    %p116 = scmp.ne.s32.totalorder %s108, %s110
    %p117 = scmp.eq.s32.totalorder %s16, 1
    %p118 = por %p116, %p117
    %p119 = scmp.ne.s32.totalorder %s110, %s111
    %p120 = scmp.eq.s32.totalorder %s16, 0
    %p121 = por %p119, %p120
    %p122 = scmp.ne.s32.totalorder %s110, %s111
    %p123 = scmp.eq.s32.totalorder %s17, 1
    %p124 = por %p122, %p123
    %p126 = scmp.ne.s32.totalorder %s111, %s125
    %p127 = scmp.eq.s32.totalorder %s17, 0
    %p128 = por %p126, %p127
    %s129 = ssub.s32 %s11, %s18
    %p130 = scmp.eq.s32.totalorder %s129, 0
    %s132 = sadd.s32 %s131, 1
    %s133 = scalar_select %p130, %s131, %s132
    %p136 = pneg %p130
    %p137 = scmp.eq.s32.totalorder %s11, 1
    %p138 = por %p136, %p137
    %p139 = scmp.ne.s32.totalorder %s131, %s134
    %p140 = scmp.eq.s32.totalorder %s11, 0
    %p141 = por %p139, %p140
    %p142 = scmp.ne.s32.totalorder %s131, %s134
    %p143 = scmp.eq.s32.totalorder %s16, 1
    %p144 = por %p142, %p143
    %p145 = scmp.ne.s32.totalorder %s134, %s135
    %p146 = scmp.eq.s32.totalorder %s16, 0
    %p147 = por %p145, %p146
    %p148 = scmp.ne.s32.totalorder %s134, %s135
    %p149 = scmp.eq.s32.totalorder %s17, 1
    %p150 = por %p148, %p149
    %p152 = scmp.ne.s32.totalorder %s135, %s151
    %p153 = scmp.eq.s32.totalorder %s17, 0
    %p154 = por %p152, %p153
    %p155 = scmp.le.s32.totalorder 1, %s11
    %p156 = scmp.lt.s32.totalorder %s11, 3
    %p157 = pnand %p155, %p156
    %p158 = pneg %p157
    // Predicated region
    $region9: #{net_dropout_forward.2} parent=5 // pred_check
      _
    $region10: #{net_dropout_forward.2} parent=5 // pred_check_branch
      %160 = sbr.rel (%p157) target = $region12
    $region11: #{net_dropout_forward.2} parent=5 // pred_region
      %s161 = ssub.s32 %s11, 1
      // Predicated region
      $region13: #{net_dropout_forward.2} parent=11 // pred_check
        %p162 = pneg %p58
      $region14: #{net_dropout_forward.2} parent=11 // pred_check_branch
        %164 = sbr.rel (%p162) target = $region16
      $region15: #{net_dropout_forward.2} parent=11 // pred_region
        _
      $region16: #{net_dropout_forward.2} parent=11 // pred_fallthru
        _
      // Predicated region
      $region17: #{net_dropout_forward.2} parent=11 // pred_check
        %p165 = pneg %p79
      $region18: #{net_dropout_forward.2} parent=11 // pred_check_branch
        %167 = sbr.rel (%p165) target = $region20
      $region19: #{net_dropout_forward.2} parent=11 // pred_region
        _
      $region20: #{net_dropout_forward.2} parent=11 // pred_fallthru
        _
      // Predicated region
      $region21: #{net_dropout_forward.2} parent=11 // pred_check
        %p168 = pneg %p100
      $region22: #{net_dropout_forward.2} parent=11 // pred_check_branch
        %170 = sbr.rel (%p168) target = $region24
      $region23: #{net_dropout_forward.2} parent=11 // pred_region
        _
      $region24: #{net_dropout_forward.2} parent=11 // pred_fallthru
        _
      // Predicated region
      $region25: #{net_dropout_forward.2} parent=11 // pred_check
        %p171 = pneg %p121
      $region26: #{net_dropout_forward.2} parent=11 // pred_check_branch
        %173 = sbr.rel (%p171) target = $region28
      $region27: #{net_dropout_forward.2} parent=11 // pred_region
        _
      $region28: #{net_dropout_forward.2} parent=11 // pred_fallthru
        _
    $region12: #{net_dropout_forward.2} parent=5 // pred_fallthru
      _
    %p174 = scmp.lt.s32.totalorder %s11, 2
    // Predicated region
    $region29: #{net_dropout_forward.2} parent=5 // pred_check
      %p175 = pneg %p174
    $region30: #{net_dropout_forward.2} parent=5 // pred_check_branch
      %177 = sbr.rel (%p175) target = $region32
    $region31: #{net_dropout_forward.2} parent=5 // pred_region
      // Predicated region
      $region33: #{net_dropout_forward.2} parent=31 // pred_check
        %p178 = pneg %p31
      $region34: #{net_dropout_forward.2} parent=31 // pred_check_branch
        %180 = sbr.rel (%p178) target = $region36
      $region35: #{net_dropout_forward.2} parent=31 // pred_region
        %p181 = scmp.lt.s32.totalorder %s11, 1
        %s182 = scalar_select %p181, %s11, 1
        %s183 = smul.addr %s182, 7
        %s184 = smul.addr %s183, 8
        %s185 = scalar_lea.vmem %s0, %s184
      $region36: #{net_dropout_forward.2} parent=31 // pred_fallthru
        _
    $region32: #{net_dropout_forward.2} parent=5 // pred_fallthru
      _
    %p186 = scmp.le.s32.totalorder 1, %s11
    %p187 = scmp.lt.s32.totalorder %s11, 3
    %p188 = pnand %p186, %p187
    %p189 = pneg %p188
    // Predicated region
    $region37: #{net_dropout_forward.2} parent=5 // pred_check
      _
    $region38: #{net_dropout_forward.2} parent=5 // pred_check_branch
      %191 = sbr.rel (%p188) target = $region40
    $region39: #{net_dropout_forward.2} parent=5 // pred_region
      %s192 = ssub.s32 %s11, 1
      %p193 = scmp.lt.s32.totalorder %s16, 1
      %s194 = scalar_select %p193, %s16, 1
      %s195 = smul.addr %s194, 7
      %s196 = smul.addr %s195, 8
      %s197 = scalar_lea.vmem %s0, %s196
      %p198 = pneg %p37
      %p199 = pneg %p34
      %p200 = pneg %p58
      %p201 = pneg %p55
      %p202 = pneg %p79
      %p203 = pneg %p76
      %p204 = pneg %p100
      %p205 = pneg %p97
      %p206 = pneg %p121
      %p207 = pneg %p118
      %p208 = pneg %p147
      %p209 = pneg %p144
      %p210 = scmp.lt.s32.totalorder %s16, 1
      %s211 = scalar_select %p210, %s16, 1
      %s212 = smul.addr %s211, 7
      %s213 = smul.addr %s212, 8
      %s214 = scalar_lea.vmem %s5, %s213
      %p215 = scmp.lt.s32.totalorder %s16, 1
      %s216 = scalar_select %p215, %s16, 1
      %s217 = smul.addr %s216, 7
      %s218 = smul.addr %s217, 8
      %s219 = scalar_lea.vmem %s0, %s218
      %p220 = scmp.lt.s32.totalorder %s16, 1
      %s221 = scalar_select %p220, %s16, 1
      %s222 = smul.addr %s221, 7
      %s223 = smul.addr %s222, 8
      %s224 = scalar_lea.vmem %s5, %s223
      %vm225 = vcmask 261120
      %226 = vst.msk [vmem:[#allocation2] sm:$0xff] %vm225, 0.0
      %227 = vst.msk [vmem:[#allocation2 + $0x8] sm:$0xff] %vm225, 0.0
      %228 = vst.msk [vmem:[#allocation2 + $0x10] sm:$0xff] %vm225, 0.0
      %229 = vst.msk [vmem:[#allocation2 + $0x18] sm:$0xff] %vm225, 0.0
      %230 = vst.msk [vmem:[#allocation2 + $0x20] sm:$0xff] %vm225, 0.0
      %231 = vst.msk [vmem:[#allocation2 + $0x28] sm:$0xff] %vm225, 0.0
      %232 = vst.msk [vmem:[#allocation2 + $0x30] sm:$0xff] %vm225, 0.0
      %233 = vst.msk [vmem:[#allocation2 + $0x38] sm:$0xff] %vm225, 0.0
      %234 = vst.msk [vmem:[#allocation2 + $0x40] sm:$0xff] %vm225, 0.0
      %235 = vst.msk [vmem:[#allocation2 + $0x48] sm:$0xff] %vm225, 0.0
      %236 = vst.msk [vmem:[#allocation2 + $0x50] sm:$0xff] %vm225, 0.0
      %237 = vst.msk [vmem:[#allocation2 + $0x58] sm:$0xff] %vm225, 0.0
      %238 = vst.msk [vmem:[#allocation2 + $0x60] sm:$0xff] %vm225, 0.0
      %239 = vst.msk [vmem:[#allocation2 + $0x68] sm:$0xff] %vm225, 0.0
      %240 = vst.msk [vmem:[#allocation2 + $0x70] sm:$0xff] %vm225, 0.0
      %241 = vst.msk [vmem:[#allocation2 + $0x78] sm:$0xff] %vm225, 0.0
      %242 = vst.msk [vmem:[#allocation2 + $0x80] sm:$0xff] %vm225, 0.0
      %243 = vst.msk [vmem:[#allocation2 + $0x88] sm:$0xff] %vm225, 0.0
      %244 = vst.msk [vmem:[#allocation2 + $0x90] sm:$0xff] %vm225, 0.0
      %245 = vst.msk [vmem:[#allocation2 + $0x98] sm:$0xff] %vm225, 0.0
      %246 = vst.msk [vmem:[#allocation2 + $0xa0] sm:$0xff] %vm225, 0.0
      %247 = vst.msk [vmem:[#allocation2 + $0xa8] sm:$0xff] %vm225, 0.0
      %248 = vst.msk [vmem:[#allocation2 + $0xb0] sm:$0xff] %vm225, 0.0
      %249 = vst.msk [vmem:[#allocation2 + $0xb8] sm:$0xff] %vm225, 0.0
      %250 = vst.msk [vmem:[#allocation2 + $0xc0] sm:$0xff] %vm225, 0.0
      %251 = vst.msk [vmem:[#allocation2 + $0xc8] sm:$0xff] %vm225, 0.0
      %252 = vst.msk [vmem:[#allocation2 + $0xd0] sm:$0xff] %vm225, 0.0
      %253 = vst.msk [vmem:[#allocation2 + $0xd8] sm:$0xff] %vm225, 0.0
      %254 = vst.msk [vmem:[#allocation2 + $0xe0] sm:$0xff] %vm225, 0.0
      %255 = vst.msk [vmem:[#allocation2 + $0xe8] sm:$0xff] %vm225, 0.0
      %256 = vst.msk [vmem:[#allocation2 + $0xf0] sm:$0xff] %vm225, 0.0
      %257 = vst.msk [vmem:[#allocation2 + $0xf8] sm:$0xff] %vm225, 0.0
      %v258 = vld [vmem:[%s219] sm:$0x7f]
      %v259 = vld [vmem:[%s219 + $0x8] sm:$0x7f]
      %v260 = vld [vmem:[%s219 + $0x10] sm:$0x7f]
      %v261 = vld [vmem:[%s219 + $0x18] sm:$0x7f]
      %v262 = vld [vmem:[%s219 + $0x20] sm:$0x7f]
      %v263 = vld [vmem:[%s219 + $0x28] sm:$0x7f]
      %v264 = vld [vmem:[%s219 + $0x30] sm:$0x7f]
      %v265 = vld [vmem:[%s1] sm:$0xff]
      %v266 = vld [vmem:[%s1 + $0x8] sm:$0xff]
      %v267 = vld [vmem:[%s1 + $0x10] sm:$0xff]
      %v268 = vld [vmem:[%s1 + $0x18] sm:$0xff]
      %v269 = vld [vmem:[%s1 + $0x20] sm:$0xff]
      %v270 = vld [vmem:[%s1 + $0x28] sm:$0xff]
      %v271 = vld [vmem:[%s1 + $0x30] sm:$0xff]
      %v272 = vld [vmem:[%s1 + $0x38] sm:$0xff]
      %v273 = vld [vmem:[%s1 + $0x40] sm:$0xff]
      %v274 = vld [vmem:[%s1 + $0x48] sm:$0xff]
      %v275 = vld [vmem:[%s1 + $0x50] sm:$0xff]
      %v276 = vld [vmem:[%s1 + $0x58] sm:$0xff]
      %v277 = vld [vmem:[%s1 + $0x60] sm:$0xff]
      %v278 = vld [vmem:[%s1 + $0x68] sm:$0xff]
      %v279 = vld [vmem:[%s1 + $0x70] sm:$0xff]
      %v280 = vld [vmem:[%s1 + $0x78] sm:$0xff]
      %v281 = vld [vmem:[%s1 + $0x80] sm:$0xf]
      %v282 = vld [vmem:[%s1 + $0x88] sm:$0xf]
      %v283 = vld [vmem:[%s1 + $0x90] sm:$0xf]
      %v284 = vld [vmem:[%s1 + $0x98] sm:$0xf]
      %vm285 = vcmask 293888
      %v287 = vsel %vm285, %v258, 0
      %vm289 = vcmask 1043456
      %v291 = vsel %vm289, %v281, 0
      %v294 = vsel %vm289, %v282, 0
      %v297 = vsel %vm289, %v283, 0
      %v300 = vsel %vm289, %v284, 0
      %302 = vmatprep.subr.mxu0 %v266
      %303 = vmatpush1.msra.mxu0 %v265
      %304 = vmatprep.subr.mxu0 %v270
      %305 = vmatpush1.msra.mxu0 %v269
      %306 = vmatprep.subr.mxu0 %v274
      %307 = vmatpush1.msra.mxu0 %v273
      %308 = vmatprep.subr.mxu0 %v278
      %309 = vmatpush1.msra.mxu0 %v277
      %310 = vmatprep.subr.mxu0 %v294
      %311 = vmatpush1.msra.mxu0 %v291
      %312 = vmatprep.subr.mxu0 0.0
      %313 = vmatpush1.msra.mxu0 0.0
      %314 = vmatprep.subr.mxu0 0.0
      %315 = vmatpush1.msra.mxu0 0.0
      %316 = vmatprep.subr.mxu0 0.0
      %317 = vmatpush1.msra.mxu0 0.0
      %318 = vmatprep.subr.mxu0 0.0
      %319 = vmatpush1.msra.mxu0 0.0
      %320 = vmatprep.subr.mxu0 0.0
      %321 = vmatpush1.msra.mxu0 0.0
      %322 = vmatprep.subr.mxu0 0.0
      %323 = vmatpush1.msra.mxu0 0.0
      %324 = vmatprep.subr.mxu0 0.0
      %325 = vmatpush1.msra.mxu0 0.0
      %326 = vmatprep.subr.mxu0 0.0
      %327 = vmatpush1.msra.mxu0 0.0
      %328 = vmatprep.subr.mxu0 0.0
      %329 = vmatpush1.msra.mxu0 0.0
      %330 = vmatprep.subr.mxu0 0.0
      %331 = vmatpush1.msra.mxu0 0.0
      %332 = vmatprep.subr.mxu0 0.0
      %333 = vmatpush1.msra.mxu0 0.0
      %334 = vmatprep.subr.mxu0 0.0
      %335 = vmatpush1.msra.mxu0 0.0
      %336 = vmatprep.subr.mxu0 0.0
      %337 = vmatpush1.msra.mxu0 0.0
      %338 = vmatprep.subr.mxu0 0.0
      %339 = vmatpush1.msra.mxu0 0.0
      %340 = vmatprep.subr.mxu0 0.0
      %341 = vmatpush1.msra.mxu0 0.0
      %342 = vmatprep.subr.mxu0 0.0
      %343 = vmatpush1.msra.mxu0 0.0
      %344 = vmatprep.subr.mxu0 0.0
      %345 = vmatpush1.msra.mxu0 0.0
      %346 = vmatprep.subr.mxu0 0.0
      %347 = vmatpush1.msra.mxu0 0.0
      %348 = vmatprep.subr.mxu0 0.0
      %349 = vmatpush1.msra.mxu0 0.0
      %350 = vmatprep.subr.mxu0 0.0
      %351 = vmatpush1.msra.mxu0 0.0
      %352 = vmatprep.subr.mxu0 0.0
      %353 = vmatpush1.msra.mxu0 0.0
      %354 = vmatprep.subr.mxu0 0.0
      %355 = vmatpush1.msra.mxu0 0.0
      %356 = vmatprep.subr.mxu0 0.0
      %357 = vmatpush1.msra.mxu0 0.0
      %358 = vmatprep.subr.mxu0 0.0
      %359 = vmatpush1.msra.mxu0 0.0
      %360 = vmatprep.subr.mxu0 0.0
      %361 = vmatpush1.msra.mxu0 0.0
      %362 = vmatprep.subr.mxu0 0.0
      %363 = vmatpush1.msra.mxu0 0.0
      %364 = vmatprep.subr.mxu0 0.0
      %365 = vmatpush1.msra.mxu0 0.0
      %366 = vmatprep.mubr.f32.mxu0 0.0
      %367 = vmatmul.mubr.f32.gmra.mrb[0].mxu0 %v287
      %v368 = vpop.f32.mrb[0].mxu0
      %v369 = vadd.f32 0.0, %v368
      %v370 = vpop.f32.mrb[0].mxu0
      %v371 = vadd.f32 0.0, %v370
      %372 = vdwg.mxu0
      %373 = vmatprep.subr.mxu0 %v268
      %374 = vmatpush1.msra.mxu0 %v267
      %375 = vmatprep.subr.mxu0 %v272
      %376 = vmatpush1.msra.mxu0 %v271
      %377 = vmatprep.subr.mxu0 %v276
      %378 = vmatpush1.msra.mxu0 %v275
      %379 = vmatprep.subr.mxu0 %v280
      %380 = vmatpush1.msra.mxu0 %v279
      %381 = vmatprep.subr.mxu0 %v300
      %382 = vmatpush1.msra.mxu0 %v297
      %383 = vmatprep.subr.mxu0 0.0
      %384 = vmatpush1.msra.mxu0 0.0
      %385 = vmatprep.subr.mxu0 0.0
      %386 = vmatpush1.msra.mxu0 0.0
      %387 = vmatprep.subr.mxu0 0.0
      %388 = vmatpush1.msra.mxu0 0.0
      %389 = vmatprep.subr.mxu0 0.0
      %390 = vmatpush1.msra.mxu0 0.0
      %391 = vmatprep.subr.mxu0 0.0
      %392 = vmatpush1.msra.mxu0 0.0
      %393 = vmatprep.subr.mxu0 0.0
      %394 = vmatpush1.msra.mxu0 0.0
      %395 = vmatprep.subr.mxu0 0.0
      %396 = vmatpush1.msra.mxu0 0.0
      %397 = vmatprep.subr.mxu0 0.0
      %398 = vmatpush1.msra.mxu0 0.0
      %399 = vmatprep.subr.mxu0 0.0
      %400 = vmatpush1.msra.mxu0 0.0
      %401 = vmatprep.subr.mxu0 0.0
      %402 = vmatpush1.msra.mxu0 0.0
      %403 = vmatprep.subr.mxu0 0.0
      %404 = vmatpush1.msra.mxu0 0.0
      %405 = vmatprep.subr.mxu0 0.0
      %406 = vmatpush1.msra.mxu0 0.0
      %407 = vmatprep.subr.mxu0 0.0
      %408 = vmatpush1.msra.mxu0 0.0
      %409 = vmatprep.subr.mxu0 0.0
      %410 = vmatpush1.msra.mxu0 0.0
      %411 = vmatprep.subr.mxu0 0.0
      %412 = vmatpush1.msra.mxu0 0.0
      %413 = vmatprep.subr.mxu0 0.0
      %414 = vmatpush1.msra.mxu0 0.0
      %415 = vmatprep.subr.mxu0 0.0
      %416 = vmatpush1.msra.mxu0 0.0
      %417 = vmatprep.subr.mxu0 0.0
      %418 = vmatpush1.msra.mxu0 0.0
      %419 = vmatprep.subr.mxu0 0.0
      %420 = vmatpush1.msra.mxu0 0.0
      %421 = vmatprep.subr.mxu0 0.0
      %422 = vmatpush1.msra.mxu0 0.0
      %423 = vmatprep.subr.mxu0 0.0
      %424 = vmatpush1.msra.mxu0 0.0
      %425 = vmatprep.subr.mxu0 0.0
      %426 = vmatpush1.msra.mxu0 0.0
      %427 = vmatprep.subr.mxu0 0.0
      %428 = vmatpush1.msra.mxu0 0.0
      %429 = vmatprep.subr.mxu0 0.0
      %430 = vmatpush1.msra.mxu0 0.0
      %431 = vmatprep.subr.mxu0 0.0
      %432 = vmatpush1.msra.mxu0 0.0
      %433 = vmatprep.subr.mxu0 0.0
      %434 = vmatpush1.msra.mxu0 0.0
      %435 = vmatprep.subr.mxu0 0.0
      %436 = vmatpush1.msra.mxu0 0.0
      %437 = vmatprep.mubr.f32.mxu0 0.0
      %438 = vmatmul.mubr.f32.gmra.mrb[0].mxu0 %v287
      %v439 = vpop.f32.mrb[0].mxu0
      %v440 = vadd.f32 0.0, %v439
      %v441 = vpop.f32.mrb[0].mxu0
      %v442 = vadd.f32 0.0, %v441
      %443 = vdwg.mxu0
      %v445 = vsel %vm285, %v259, 0
      %447 = vmatprep.subr.mxu0 %v266
      %448 = vmatpush1.msra.mxu0 %v265
      %449 = vmatprep.subr.mxu0 %v270
      %450 = vmatpush1.msra.mxu0 %v269
      %451 = vmatprep.subr.mxu0 %v274
      %452 = vmatpush1.msra.mxu0 %v273
      %453 = vmatprep.subr.mxu0 %v278
      %454 = vmatpush1.msra.mxu0 %v277
      %455 = vmatprep.subr.mxu0 %v294
      %456 = vmatpush1.msra.mxu0 %v291
      %457 = vmatprep.subr.mxu0 0.0
      %458 = vmatpush1.msra.mxu0 0.0
      %459 = vmatprep.subr.mxu0 0.0
      %460 = vmatpush1.msra.mxu0 0.0
      %461 = vmatprep.subr.mxu0 0.0
      %462 = vmatpush1.msra.mxu0 0.0
      %463 = vmatprep.subr.mxu0 0.0
      %464 = vmatpush1.msra.mxu0 0.0
      %465 = vmatprep.subr.mxu0 0.0
      %466 = vmatpush1.msra.mxu0 0.0
      %467 = vmatprep.subr.mxu0 0.0
      %468 = vmatpush1.msra.mxu0 0.0
      %469 = vmatprep.subr.mxu0 0.0
      %470 = vmatpush1.msra.mxu0 0.0
      %471 = vmatprep.subr.mxu0 0.0
      %472 = vmatpush1.msra.mxu0 0.0
      %473 = vmatprep.subr.mxu0 0.0
      %474 = vmatpush1.msra.mxu0 0.0
      %475 = vmatprep.subr.mxu0 0.0
      %476 = vmatpush1.msra.mxu0 0.0
      %477 = vmatprep.subr.mxu0 0.0
      %478 = vmatpush1.msra.mxu0 0.0
      %479 = vmatprep.subr.mxu0 0.0
      %480 = vmatpush1.msra.mxu0 0.0
      %481 = vmatprep.subr.mxu0 0.0
      %482 = vmatpush1.msra.mxu0 0.0
      %483 = vmatprep.subr.mxu0 0.0
      %484 = vmatpush1.msra.mxu0 0.0
      %485 = vmatprep.subr.mxu0 0.0
      %486 = vmatpush1.msra.mxu0 0.0
      %487 = vmatprep.subr.mxu0 0.0
      %488 = vmatpush1.msra.mxu0 0.0
      %489 = vmatprep.subr.mxu0 0.0
      %490 = vmatpush1.msra.mxu0 0.0
      %491 = vmatprep.subr.mxu0 0.0
      %492 = vmatpush1.msra.mxu0 0.0
      %493 = vmatprep.subr.mxu0 0.0
      %494 = vmatpush1.msra.mxu0 0.0
      %495 = vmatprep.subr.mxu0 0.0
      %496 = vmatpush1.msra.mxu0 0.0
      %497 = vmatprep.subr.mxu0 0.0
      %498 = vmatpush1.msra.mxu0 0.0
      %499 = vmatprep.subr.mxu0 0.0
      %500 = vmatpush1.msra.mxu0 0.0
      %501 = vmatprep.subr.mxu0 0.0
      %502 = vmatpush1.msra.mxu0 0.0
      %503 = vmatprep.subr.mxu0 0.0
      %504 = vmatpush1.msra.mxu0 0.0
      %505 = vmatprep.subr.mxu0 0.0
      %506 = vmatpush1.msra.mxu0 0.0
      %507 = vmatprep.subr.mxu0 0.0
      %508 = vmatpush1.msra.mxu0 0.0
      %509 = vmatprep.subr.mxu0 0.0
      %510 = vmatpush1.msra.mxu0 0.0
      %511 = vmatprep.mubr.f32.mxu0 0.0
      %512 = vmatmul.mubr.f32.gmra.mrb[0].mxu0 %v445
      %v513 = vpop.f32.mrb[0].mxu0
      %v514 = vadd.f32 0.0, %v513
      %v515 = vpop.f32.mrb[0].mxu0
      %v516 = vadd.f32 0.0, %v515
      %517 = vdwg.mxu0
      %518 = vmatprep.subr.mxu0 %v268
      %519 = vmatpush1.msra.mxu0 %v267
      %520 = vmatprep.subr.mxu0 %v272
      %521 = vmatpush1.msra.mxu0 %v271
      %522 = vmatprep.subr.mxu0 %v276
      %523 = vmatpush1.msra.mxu0 %v275
      %524 = vmatprep.subr.mxu0 %v280
      %525 = vmatpush1.msra.mxu0 %v279
      %526 = vmatprep.subr.mxu0 %v300
      %527 = vmatpush1.msra.mxu0 %v297
      %528 = vmatprep.subr.mxu0 0.0
      %529 = vmatpush1.msra.mxu0 0.0
      %530 = vmatprep.subr.mxu0 0.0
      %531 = vmatpush1.msra.mxu0 0.0
      %532 = vmatprep.subr.mxu0 0.0
      %533 = vmatpush1.msra.mxu0 0.0
      %534 = vmatprep.subr.mxu0 0.0
      %535 = vmatpush1.msra.mxu0 0.0
      %536 = vmatprep.subr.mxu0 0.0
      %537 = vmatpush1.msra.mxu0 0.0
      %538 = vmatprep.subr.mxu0 0.0
      %539 = vmatpush1.msra.mxu0 0.0
      %540 = vmatprep.subr.mxu0 0.0
      %541 = vmatpush1.msra.mxu0 0.0
      %542 = vmatprep.subr.mxu0 0.0
      %543 = vmatpush1.msra.mxu0 0.0
      %544 = vmatprep.subr.mxu0 0.0
      %545 = vmatpush1.msra.mxu0 0.0
      %546 = vmatprep.subr.mxu0 0.0
      %547 = vmatpush1.msra.mxu0 0.0
      %548 = vmatprep.subr.mxu0 0.0
      %549 = vmatpush1.msra.mxu0 0.0
      %550 = vmatprep.subr.mxu0 0.0
      %551 = vmatpush1.msra.mxu0 0.0
      %552 = vmatprep.subr.mxu0 0.0
      %553 = vmatpush1.msra.mxu0 0.0
      %554 = vmatprep.subr.mxu0 0.0
      %555 = vmatpush1.msra.mxu0 0.0
      %556 = vmatprep.subr.mxu0 0.0
      %557 = vmatpush1.msra.mxu0 0.0
      %558 = vmatprep.subr.mxu0 0.0
      %559 = vmatpush1.msra.mxu0 0.0
      %560 = vmatprep.subr.mxu0 0.0
      %561 = vmatpush1.msra.mxu0 0.0
      %562 = vmatprep.subr.mxu0 0.0
      %563 = vmatpush1.msra.mxu0 0.0
      %564 = vmatprep.subr.mxu0 0.0
      %565 = vmatpush1.msra.mxu0 0.0
      %566 = vmatprep.subr.mxu0 0.0
      %567 = vmatpush1.msra.mxu0 0.0
      %568 = vmatprep.subr.mxu0 0.0
      %569 = vmatpush1.msra.mxu0 0.0
      %570 = vmatprep.subr.mxu0 0.0
      %571 = vmatpush1.msra.mxu0 0.0
      %572 = vmatprep.subr.mxu0 0.0
      %573 = vmatpush1.msra.mxu0 0.0
      %574 = vmatprep.subr.mxu0 0.0
      %575 = vmatpush1.msra.mxu0 0.0
      %576 = vmatprep.subr.mxu0 0.0
      %577 = vmatpush1.msra.mxu0 0.0
      %578 = vmatprep.subr.mxu0 0.0
      %579 = vmatpush1.msra.mxu0 0.0
      %580 = vmatprep.subr.mxu0 0.0
      %581 = vmatpush1.msra.mxu0 0.0
      %582 = vmatprep.mubr.f32.mxu0 0.0
      %583 = vmatmul.mubr.f32.gmra.mrb[0].mxu0 %v445
      %v584 = vpop.f32.mrb[0].mxu0
      %v585 = vadd.f32 0.0, %v584
      %v586 = vpop.f32.mrb[0].mxu0
      %v587 = vadd.f32 0.0, %v586
      %588 = vdwg.mxu0
      %v590 = vsel %vm285, %v260, 0
      %592 = vmatprep.subr.mxu0 %v266
      %593 = vmatpush1.msra.mxu0 %v265
      %594 = vmatprep.subr.mxu0 %v270
      %595 = vmatpush1.msra.mxu0 %v269
      %596 = vmatprep.subr.mxu0 %v274
      %597 = vmatpush1.msra.mxu0 %v273
      %598 = vmatprep.subr.mxu0 %v278
      %599 = vmatpush1.msra.mxu0 %v277
      %600 = vmatprep.subr.mxu0 %v294
      %601 = vmatpush1.msra.mxu0 %v291
      %602 = vmatprep.subr.mxu0 0.0
      %603 = vmatpush1.msra.mxu0 0.0
      %604 = vmatprep.subr.mxu0 0.0
      %605 = vmatpush1.msra.mxu0 0.0
      %606 = vmatprep.subr.mxu0 0.0
      %607 = vmatpush1.msra.mxu0 0.0
      %608 = vmatprep.subr.mxu0 0.0
      %609 = vmatpush1.msra.mxu0 0.0
      %610 = vmatprep.subr.mxu0 0.0
      %611 = vmatpush1.msra.mxu0 0.0
      %612 = vmatprep.subr.mxu0 0.0
      %613 = vmatpush1.msra.mxu0 0.0
      %614 = vmatprep.subr.mxu0 0.0
      %615 = vmatpush1.msra.mxu0 0.0
      %616 = vmatprep.subr.mxu0 0.0
      %617 = vmatpush1.msra.mxu0 0.0
      %618 = vmatprep.subr.mxu0 0.0
      %619 = vmatpush1.msra.mxu0 0.0
      %620 = vmatprep.subr.mxu0 0.0
      %621 = vmatpush1.msra.mxu0 0.0
      %622 = vmatprep.subr.mxu0 0.0
      %623 = vmatpush1.msra.mxu0 0.0
      %624 = vmatprep.subr.mxu0 0.0
      %625 = vmatpush1.msra.mxu0 0.0
      %626 = vmatprep.subr.mxu0 0.0
      %627 = vmatpush1.msra.mxu0 0.0
      %628 = vmatprep.subr.mxu0 0.0
      %629 = vmatpush1.msra.mxu0 0.0
      %630 = vmatprep.subr.mxu0 0.0
      %631 = vmatpush1.msra.mxu0 0.0
      %632 = vmatprep.subr.mxu0 0.0
      %633 = vmatpush1.msra.mxu0 0.0
      %634 = vmatprep.subr.mxu0 0.0
      %635 = vmatpush1.msra.mxu0 0.0
      %636 = vmatprep.subr.mxu0 0.0
      %637 = vmatpush1.msra.mxu0 0.0
      %638 = vmatprep.subr.mxu0 0.0
      %639 = vmatpush1.msra.mxu0 0.0
      %640 = vmatprep.subr.mxu0 0.0
      %641 = vmatpush1.msra.mxu0 0.0
      %642 = vmatprep.subr.mxu0 0.0
      %643 = vmatpush1.msra.mxu0 0.0
      %644 = vmatprep.subr.mxu0 0.0
      %645 = vmatpush1.msra.mxu0 0.0
      %646 = vmatprep.subr.mxu0 0.0
      %647 = vmatpush1.msra.mxu0 0.0
      %648 = vmatprep.subr.mxu0 0.0
      %649 = vmatpush1.msra.mxu0 0.0
      %650 = vmatprep.subr.mxu0 0.0
      %651 = vmatpush1.msra.mxu0 0.0
      %652 = vmatprep.subr.mxu0 0.0
      %653 = vmatpush1.msra.mxu0 0.0
      %654 = vmatprep.subr.mxu0 0.0
      %655 = vmatpush1.msra.mxu0 0.0
      %656 = vmatprep.mubr.f32.mxu0 0.0
      %657 = vmatmul.mubr.f32.gmra.mrb[0].mxu0 %v590
      %v658 = vpop.f32.mrb[0].mxu0
      %v659 = vadd.f32 0.0, %v658
      %v660 = vpop.f32.mrb[0].mxu0
      %v661 = vadd.f32 0.0, %v660
      %662 = vdwg.mxu0
      %663 = vmatprep.subr.mxu0 %v268
      %664 = vmatpush1.msra.mxu0 %v267
      %665 = vmatprep.subr.mxu0 %v272
      %666 = vmatpush1.msra.mxu0 %v271
      %667 = vmatprep.subr.mxu0 %v276
      %668 = vmatpush1.msra.mxu0 %v275
      %669 = vmatprep.subr.mxu0 %v280
      %670 = vmatpush1.msra.mxu0 %v279
      %671 = vmatprep.subr.mxu0 %v300
      %672 = vmatpush1.msra.mxu0 %v297
      %673 = vmatprep.subr.mxu0 0.0
      %674 = vmatpush1.msra.mxu0 0.0
      %675 = vmatprep.subr.mxu0 0.0
      %676 = vmatpush1.msra.mxu0 0.0
      %677 = vmatprep.subr.mxu0 0.0
      %678 = vmatpush1.msra.mxu0 0.0
      %679 = vmatprep.subr.mxu0 0.0
      %680 = vmatpush1.msra.mxu0 0.0
      %681 = vmatprep.subr.mxu0 0.0
      %682 = vmatpush1.msra.mxu0 0.0
      %683 = vmatprep.subr.mxu0 0.0
      %684 = vmatpush1.msra.mxu0 0.0
      %685 = vmatprep.subr.mxu0 0.0
      %686 = vmatpush1.msra.mxu0 0.0
      %687 = vmatprep.subr.mxu0 0.0
      %688 = vmatpush1.msra.mxu0 0.0
      %689 = vmatprep.subr.mxu0 0.0
      %690 = vmatpush1.msra.mxu0 0.0
      %691 = vmatprep.subr.mxu0 0.0
      %692 = vmatpush1.msra.mxu0 0.0
      %693 = vmatprep.subr.mxu0 0.0
      %694 = vmatpush1.msra.mxu0 0.0
      %695 = vmatprep.subr.mxu0 0.0
      %696 = vmatpush1.msra.mxu0 0.0
      %697 = vmatprep.subr.mxu0 0.0
      %698 = vmatpush1.msra.mxu0 0.0
      %699 = vmatprep.subr.mxu0 0.0
      %700 = vmatpush1.msra.mxu0 0.0
      %701 = vmatprep.subr.mxu0 0.0
      %702 = vmatpush1.msra.mxu0 0.0
      %703 = vmatprep.subr.mxu0 0.0
      %704 = vmatpush1.msra.mxu0 0.0
      %705 = vmatprep.subr.mxu0 0.0
      %706 = vmatpush1.msra.mxu0 0.0
      %707 = vmatprep.subr.mxu0 0.0
      %708 = vmatpush1.msra.mxu0 0.0
      %709 = vmatprep.subr.mxu0 0.0
      %710 = vmatpush1.msra.mxu0 0.0
      %711 = vmatprep.subr.mxu0 0.0
      %712 = vmatpush1.msra.mxu0 0.0
      %713 = vmatprep.subr.mxu0 0.0
      %714 = vmatpush1.msra.mxu0 0.0
      %715 = vmatprep.subr.mxu0 0.0
      %716 = vmatpush1.msra.mxu0 0.0
      %717 = vmatprep.subr.mxu0 0.0
      %718 = vmatpush1.msra.mxu0 0.0
      %719 = vmatprep.subr.mxu0 0.0
      %720 = vmatpush1.msra.mxu0 0.0
      %721 = vmatprep.subr.mxu0 0.0
      %722 = vmatpush1.msra.mxu0 0.0
      %723 = vmatprep.subr.mxu0 0.0
      %724 = vmatpush1.msra.mxu0 0.0
      %725 = vmatprep.subr.mxu0 0.0
      %726 = vmatpush1.msra.mxu0 0.0
      %727 = vmatprep.mubr.f32.mxu0 0.0
      %728 = vmatmul.mubr.f32.gmra.mrb[0].mxu0 %v590
      %v729 = vpop.f32.mrb[0].mxu0
      %v730 = vadd.f32 0.0, %v729
      %v731 = vpop.f32.mrb[0].mxu0
      %v732 = vadd.f32 0.0, %v731
      %733 = vdwg.mxu0
      %v735 = vsel %vm285, %v261, 0
      %737 = vmatprep.subr.mxu0 %v266
      %738 = vmatpush1.msra.mxu0 %v265
      %739 = vmatprep.subr.mxu0 %v270
      %740 = vmatpush1.msra.mxu0 %v269
      %741 = vmatprep.subr.mxu0 %v274
      %742 = vmatpush1.msra.mxu0 %v273
      %743 = vmatprep.subr.mxu0 %v278
      %744 = vmatpush1.msra.mxu0 %v277
      %745 = vmatprep.subr.mxu0 %v294
      %746 = vmatpush1.msra.mxu0 %v291
      %747 = vmatprep.subr.mxu0 0.0
      %748 = vmatpush1.msra.mxu0 0.0
      %749 = vmatprep.subr.mxu0 0.0
      %750 = vmatpush1.msra.mxu0 0.0
      %751 = vmatprep.subr.mxu0 0.0
      %752 = vmatpush1.msra.mxu0 0.0
      %753 = vmatprep.subr.mxu0 0.0
      %754 = vmatpush1.msra.mxu0 0.0
      %755 = vmatprep.subr.mxu0 0.0
      %756 = vmatpush1.msra.mxu0 0.0
      %757 = vmatprep.subr.mxu0 0.0
      %758 = vmatpush1.msra.mxu0 0.0
      %759 = vmatprep.subr.mxu0 0.0
      %760 = vmatpush1.msra.mxu0 0.0
      %761 = vmatprep.subr.mxu0 0.0
      %762 = vmatpush1.msra.mxu0 0.0
      %763 = vmatprep.subr.mxu0 0.0
      %764 = vmatpush1.msra.mxu0 0.0
      %765 = vmatprep.subr.mxu0 0.0
      %766 = vmatpush1.msra.mxu0 0.0
      %767 = vmatprep.subr.mxu0 0.0
      %768 = vmatpush1.msra.mxu0 0.0
      %769 = vmatprep.subr.mxu0 0.0
      %770 = vmatpush1.msra.mxu0 0.0
      %771 = vmatprep.subr.mxu0 0.0
      %772 = vmatpush1.msra.mxu0 0.0
      %773 = vmatprep.subr.mxu0 0.0
      %774 = vmatpush1.msra.mxu0 0.0
      %775 = vmatprep.subr.mxu0 0.0
      %776 = vmatpush1.msra.mxu0 0.0
      %777 = vmatprep.subr.mxu0 0.0
      %778 = vmatpush1.msra.mxu0 0.0
      %779 = vmatprep.subr.mxu0 0.0
      %780 = vmatpush1.msra.mxu0 0.0
      %781 = vmatprep.subr.mxu0 0.0
      %782 = vmatpush1.msra.mxu0 0.0
      %783 = vmatprep.subr.mxu0 0.0
      %784 = vmatpush1.msra.mxu0 0.0
      %785 = vmatprep.subr.mxu0 0.0
      %786 = vmatpush1.msra.mxu0 0.0
      %787 = vmatprep.subr.mxu0 0.0
      %788 = vmatpush1.msra.mxu0 0.0
      %789 = vmatprep.subr.mxu0 0.0
      %790 = vmatpush1.msra.mxu0 0.0
      %791 = vmatprep.subr.mxu0 0.0
      %792 = vmatpush1.msra.mxu0 0.0
      %793 = vmatprep.subr.mxu0 0.0
      %794 = vmatpush1.msra.mxu0 0.0
      %795 = vmatprep.subr.mxu0 0.0
      %796 = vmatpush1.msra.mxu0 0.0
      %797 = vmatprep.subr.mxu0 0.0
      %798 = vmatpush1.msra.mxu0 0.0
      %799 = vmatprep.subr.mxu0 0.0
      %800 = vmatpush1.msra.mxu0 0.0
      %801 = vmatprep.mubr.f32.mxu0 0.0
      %802 = vmatmul.mubr.f32.gmra.mrb[0].mxu0 %v735
      %v803 = vpop.f32.mrb[0].mxu0
      %v804 = vadd.f32 0.0, %v803
      %v805 = vpop.f32.mrb[0].mxu0
      %v806 = vadd.f32 0.0, %v805
      %807 = vdwg.mxu0
      %808 = vmatprep.subr.mxu0 %v268
      %809 = vmatpush1.msra.mxu0 %v267
      %810 = vmatprep.subr.mxu0 %v272
      %811 = vmatpush1.msra.mxu0 %v271
      %812 = vmatprep.subr.mxu0 %v276
      %813 = vmatpush1.msra.mxu0 %v275
      %814 = vmatprep.subr.mxu0 %v280
      %815 = vmatpush1.msra.mxu0 %v279
      %816 = vmatprep.subr.mxu0 %v300
      %817 = vmatpush1.msra.mxu0 %v297
      %818 = vmatprep.subr.mxu0 0.0
      %819 = vmatpush1.msra.mxu0 0.0
      %820 = vmatprep.subr.mxu0 0.0
      %821 = vmatpush1.msra.mxu0 0.0
      %822 = vmatprep.subr.mxu0 0.0
      %823 = vmatpush1.msra.mxu0 0.0
      %824 = vmatprep.subr.mxu0 0.0
      %825 = vmatpush1.msra.mxu0 0.0
      %826 = vmatprep.subr.mxu0 0.0
      %827 = vmatpush1.msra.mxu0 0.0
      %828 = vmatprep.subr.mxu0 0.0
      %829 = vmatpush1.msra.mxu0 0.0
      %830 = vmatprep.subr.mxu0 0.0
      %831 = vmatpush1.msra.mxu0 0.0
      %832 = vmatprep.subr.mxu0 0.0
      %833 = vmatpush1.msra.mxu0 0.0
      %834 = vmatprep.subr.mxu0 0.0
      %835 = vmatpush1.msra.mxu0 0.0
      %836 = vmatprep.subr.mxu0 0.0
      %837 = vmatpush1.msra.mxu0 0.0
      %838 = vmatprep.subr.mxu0 0.0
      %839 = vmatpush1.msra.mxu0 0.0
      %840 = vmatprep.subr.mxu0 0.0
      %841 = vmatpush1.msra.mxu0 0.0
      %842 = vmatprep.subr.mxu0 0.0
      %843 = vmatpush1.msra.mxu0 0.0
      %844 = vmatprep.subr.mxu0 0.0
      %845 = vmatpush1.msra.mxu0 0.0
      %846 = vmatprep.subr.mxu0 0.0
      %847 = vmatpush1.msra.mxu0 0.0
      %848 = vmatprep.subr.mxu0 0.0
      %849 = vmatpush1.msra.mxu0 0.0
      %850 = vmatprep.subr.mxu0 0.0
      %851 = vmatpush1.msra.mxu0 0.0
      %852 = vmatprep.subr.mxu0 0.0
      %853 = vmatpush1.msra.mxu0 0.0
      %854 = vmatprep.subr.mxu0 0.0
      %855 = vmatpush1.msra.mxu0 0.0
      %856 = vmatprep.subr.mxu0 0.0
      %857 = vmatpush1.msra.mxu0 0.0
      %858 = vmatprep.subr.mxu0 0.0
      %859 = vmatpush1.msra.mxu0 0.0
      %860 = vmatprep.subr.mxu0 0.0
      %861 = vmatpush1.msra.mxu0 0.0
      %862 = vmatprep.subr.mxu0 0.0
      %863 = vmatpush1.msra.mxu0 0.0
      %864 = vmatprep.subr.mxu0 0.0
      %865 = vmatpush1.msra.mxu0 0.0
      %866 = vmatprep.subr.mxu0 0.0
      %867 = vmatpush1.msra.mxu0 0.0
      %868 = vmatprep.subr.mxu0 0.0
      %869 = vmatpush1.msra.mxu0 0.0
      %870 = vmatprep.subr.mxu0 0.0
      %871 = vmatpush1.msra.mxu0 0.0
      %872 = vmatprep.mubr.f32.mxu0 0.0
      %873 = vmatmul.mubr.f32.gmra.mrb[0].mxu0 %v735
      %v874 = vpop.f32.mrb[0].mxu0
      %v875 = vadd.f32 0.0, %v874
      %v876 = vpop.f32.mrb[0].mxu0
      %v877 = vadd.f32 0.0, %v876
      %878 = vdwg.mxu0
      %v880 = vsel %vm285, %v262, 0
      %882 = vmatprep.subr.mxu0 %v266
      %883 = vmatpush1.msra.mxu0 %v265
      %884 = vmatprep.subr.mxu0 %v270
      %885 = vmatpush1.msra.mxu0 %v269
      %886 = vmatprep.subr.mxu0 %v274
      %887 = vmatpush1.msra.mxu0 %v273
      %888 = vmatprep.subr.mxu0 %v278
      %889 = vmatpush1.msra.mxu0 %v277
      %890 = vmatprep.subr.mxu0 %v294
      %891 = vmatpush1.msra.mxu0 %v291
      %892 = vmatprep.subr.mxu0 0.0
      %893 = vmatpush1.msra.mxu0 0.0
      %894 = vmatprep.subr.mxu0 0.0
      %895 = vmatpush1.msra.mxu0 0.0
      %896 = vmatprep.subr.mxu0 0.0
      %897 = vmatpush1.msra.mxu0 0.0
      %898 = vmatprep.subr.mxu0 0.0
      %899 = vmatpush1.msra.mxu0 0.0
      %900 = vmatprep.subr.mxu0 0.0
      %901 = vmatpush1.msra.mxu0 0.0
      %902 = vmatprep.subr.mxu0 0.0
      %903 = vmatpush1.msra.mxu0 0.0
      %904 = vmatprep.subr.mxu0 0.0
      %905 = vmatpush1.msra.mxu0 0.0
      %906 = vmatprep.subr.mxu0 0.0
      %907 = vmatpush1.msra.mxu0 0.0
      %908 = vmatprep.subr.mxu0 0.0
      %909 = vmatpush1.msra.mxu0 0.0
      %910 = vmatprep.subr.mxu0 0.0
      %911 = vmatpush1.msra.mxu0 0.0
      %912 = vmatprep.subr.mxu0 0.0
      %913 = vmatpush1.msra.mxu0 0.0
      %914 = vmatprep.subr.mxu0 0.0
      %915 = vmatpush1.msra.mxu0 0.0
      %916 = vmatprep.subr.mxu0 0.0
      %917 = vmatpush1.msra.mxu0 0.0
      %918 = vmatprep.subr.mxu0 0.0
      %919 = vmatpush1.msra.mxu0 0.0
      %920 = vmatprep.subr.mxu0 0.0
      %921 = vmatpush1.msra.mxu0 0.0
      %922 = vmatprep.subr.mxu0 0.0
      %923 = vmatpush1.msra.mxu0 0.0
      %924 = vmatprep.subr.mxu0 0.0
      %925 = vmatpush1.msra.mxu0 0.0
      %926 = vmatprep.subr.mxu0 0.0
      %927 = vmatpush1.msra.mxu0 0.0
      %928 = vmatprep.subr.mxu0 0.0
      %929 = vmatpush1.msra.mxu0 0.0
      %930 = vmatprep.subr.mxu0 0.0
      %931 = vmatpush1.msra.mxu0 0.0
      %932 = vmatprep.subr.mxu0 0.0
      %933 = vmatpush1.msra.mxu0 0.0
      %934 = vmatprep.subr.mxu0 0.0
      %935 = vmatpush1.msra.mxu0 0.0
      %936 = vmatprep.subr.mxu0 0.0
      %937 = vmatpush1.msra.mxu0 0.0
      %938 = vmatprep.subr.mxu0 0.0
      %939 = vmatpush1.msra.mxu0 0.0
      %940 = vmatprep.subr.mxu0 0.0
      %941 = vmatpush1.msra.mxu0 0.0
      %942 = vmatprep.subr.mxu0 0.0
      %943 = vmatpush1.msra.mxu0 0.0
      %944 = vmatprep.subr.mxu0 0.0
      %945 = vmatpush1.msra.mxu0 0.0
      %946 = vmatprep.mubr.f32.mxu0 0.0
      %947 = vmatmul.mubr.f32.gmra.mrb[0].mxu0 %v880
      %v948 = vpop.f32.mrb[0].mxu0
      %v949 = vadd.f32 0.0, %v948
      %v950 = vpop.f32.mrb[0].mxu0
      %v951 = vadd.f32 0.0, %v950
      %952 = vdwg.mxu0
      %953 = vmatprep.subr.mxu0 %v268
      %954 = vmatpush1.msra.mxu0 %v267
      %955 = vmatprep.subr.mxu0 %v272
      %956 = vmatpush1.msra.mxu0 %v271
      %957 = vmatprep.subr.mxu0 %v276
      %958 = vmatpush1.msra.mxu0 %v275
      %959 = vmatprep.subr.mxu0 %v280
      %960 = vmatpush1.msra.mxu0 %v279
      %961 = vmatprep.subr.mxu0 %v300
      %962 = vmatpush1.msra.mxu0 %v297
      %963 = vmatprep.subr.mxu0 0.0
      %964 = vmatpush1.msra.mxu0 0.0
      %965 = vmatprep.subr.mxu0 0.0
      %966 = vmatpush1.msra.mxu0 0.0
      %967 = vmatprep.subr.mxu0 0.0
      %968 = vmatpush1.msra.mxu0 0.0
      %969 = vmatprep.subr.mxu0 0.0
      %970 = vmatpush1.msra.mxu0 0.0
      %971 = vmatprep.subr.mxu0 0.0
      %972 = vmatpush1.msra.mxu0 0.0
      %973 = vmatprep.subr.mxu0 0.0
      %974 = vmatpush1.msra.mxu0 0.0
      %975 = vmatprep.subr.mxu0 0.0
      %976 = vmatpush1.msra.mxu0 0.0
      %977 = vmatprep.subr.mxu0 0.0
      %978 = vmatpush1.msra.mxu0 0.0
      %979 = vmatprep.subr.mxu0 0.0
      %980 = vmatpush1.msra.mxu0 0.0
      %981 = vmatprep.subr.mxu0 0.0
      %982 = vmatpush1.msra.mxu0 0.0
      %983 = vmatprep.subr.mxu0 0.0
      %984 = vmatpush1.msra.mxu0 0.0
      %985 = vmatprep.subr.mxu0 0.0
      %986 = vmatpush1.msra.mxu0 0.0
      %987 = vmatprep.subr.mxu0 0.0
      %988 = vmatpush1.msra.mxu0 0.0
      %989 = vmatprep.subr.mxu0 0.0
      %990 = vmatpush1.msra.mxu0 0.0
      %991 = vmatprep.subr.mxu0 0.0
      %992 = vmatpush1.msra.mxu0 0.0
      %993 = vmatprep.subr.mxu0 0.0
      %994 = vmatpush1.msra.mxu0 0.0
      %995 = vmatprep.subr.mxu0 0.0
      %996 = vmatpush1.msra.mxu0 0.0
      %997 = vmatprep.subr.mxu0 0.0
      %998 = vmatpush1.msra.mxu0 0.0
      %999 = vmatprep.subr.mxu0 0.0
      %1000 = vmatpush1.msra.mxu0 0.0
      %1001 = vmatprep.subr.mxu0 0.0
      %1002 = vmatpush1.msra.mxu0 0.0
      %1003 = vmatprep.subr.mxu0 0.0
      %1004 = vmatpush1.msra.mxu0 0.0
      %1005 = vmatprep.subr.mxu0 0.0
      %1006 = vmatpush1.msra.mxu0 0.0
      %1007 = vmatprep.subr.mxu0 0.0
      %1008 = vmatpush1.msra.mxu0 0.0
      %1009 = vmatprep.subr.mxu0 0.0
      %1010 = vmatpush1.msra.mxu0 0.0
      %1011 = vmatprep.subr.mxu0 0.0
      %1012 = vmatpush1.msra.mxu0 0.0
      %1013 = vmatprep.subr.mxu0 0.0
      %1014 = vmatpush1.msra.mxu0 0.0
      %1015 = vmatprep.subr.mxu0 0.0
      %1016 = vmatpush1.msra.mxu0 0.0
      %1017 = vmatprep.mubr.f32.mxu0 0.0
      %1018 = vmatmul.mubr.f32.gmra.mrb[0].mxu0 %v880
      %v1019 = vpop.f32.mrb[0].mxu0
      %v1020 = vadd.f32 0.0, %v1019
      %v1021 = vpop.f32.mrb[0].mxu0
      %v1022 = vadd.f32 0.0, %v1021
      %1023 = vdwg.mxu0
      %v1025 = vsel %vm285, %v263, 0
      %1027 = vmatprep.subr.mxu0 %v266
      %1028 = vmatpush1.msra.mxu0 %v265
      %1029 = vmatprep.subr.mxu0 %v270
      %1030 = vmatpush1.msra.mxu0 %v269
      %1031 = vmatprep.subr.mxu0 %v274
      %1032 = vmatpush1.msra.mxu0 %v273
      %1033 = vmatprep.subr.mxu0 %v278
      %1034 = vmatpush1.msra.mxu0 %v277
      %1035 = vmatprep.subr.mxu0 %v294
      %1036 = vmatpush1.msra.mxu0 %v291
      %1037 = vmatprep.subr.mxu0 0.0
      %1038 = vmatpush1.msra.mxu0 0.0
      %1039 = vmatprep.subr.mxu0 0.0
      %1040 = vmatpush1.msra.mxu0 0.0
      %1041 = vmatprep.subr.mxu0 0.0
      %1042 = vmatpush1.msra.mxu0 0.0
      %1043 = vmatprep.subr.mxu0 0.0
      %1044 = vmatpush1.msra.mxu0 0.0
      %1045 = vmatprep.subr.mxu0 0.0
      %1046 = vmatpush1.msra.mxu0 0.0
      %1047 = vmatprep.subr.mxu0 0.0
      %1048 = vmatpush1.msra.mxu0 0.0
      %1049 = vmatprep.subr.mxu0 0.0
      %1050 = vmatpush1.msra.mxu0 0.0
      %1051 = vmatprep.subr.mxu0 0.0
      %1052 = vmatpush1.msra.mxu0 0.0
      %1053 = vmatprep.subr.mxu0 0.0
      %1054 = vmatpush1.msra.mxu0 0.0
      %1055 = vmatprep.subr.mxu0 0.0
      %1056 = vmatpush1.msra.mxu0 0.0
      %1057 = vmatprep.subr.mxu0 0.0
      %1058 = vmatpush1.msra.mxu0 0.0
      %1059 = vmatprep.subr.mxu0 0.0
      %1060 = vmatpush1.msra.mxu0 0.0
      %1061 = vmatprep.subr.mxu0 0.0
      %1062 = vmatpush1.msra.mxu0 0.0
      %1063 = vmatprep.subr.mxu0 0.0
      %1064 = vmatpush1.msra.mxu0 0.0
      %1065 = vmatprep.subr.mxu0 0.0
      %1066 = vmatpush1.msra.mxu0 0.0
      %1067 = vmatprep.subr.mxu0 0.0
      %1068 = vmatpush1.msra.mxu0 0.0
      %1069 = vmatprep.subr.mxu0 0.0
      %1070 = vmatpush1.msra.mxu0 0.0
      %1071 = vmatprep.subr.mxu0 0.0
      %1072 = vmatpush1.msra.mxu0 0.0
      %1073 = vmatprep.subr.mxu0 0.0
      %1074 = vmatpush1.msra.mxu0 0.0
      %1075 = vmatprep.subr.mxu0 0.0
      %1076 = vmatpush1.msra.mxu0 0.0
      %1077 = vmatprep.subr.mxu0 0.0
      %1078 = vmatpush1.msra.mxu0 0.0
      %1079 = vmatprep.subr.mxu0 0.0
      %1080 = vmatpush1.msra.mxu0 0.0
      %1081 = vmatprep.subr.mxu0 0.0
      %1082 = vmatpush1.msra.mxu0 0.0
      %1083 = vmatprep.subr.mxu0 0.0
      %1084 = vmatpush1.msra.mxu0 0.0
      %1085 = vmatprep.subr.mxu0 0.0
      %1086 = vmatpush1.msra.mxu0 0.0
      %1087 = vmatprep.subr.mxu0 0.0
      %1088 = vmatpush1.msra.mxu0 0.0
      %1089 = vmatprep.subr.mxu0 0.0
      %1090 = vmatpush1.msra.mxu0 0.0
      %1091 = vmatprep.mubr.f32.mxu0 0.0
      %1092 = vmatmul.mubr.f32.gmra.mrb[0].mxu0 %v1025
      %v1093 = vpop.f32.mrb[0].mxu0
      %v1094 = vadd.f32 0.0, %v1093
      %v1095 = vpop.f32.mrb[0].mxu0
      %v1096 = vadd.f32 0.0, %v1095
      %1097 = vdwg.mxu0
      %1098 = vmatprep.subr.mxu0 %v268
      %1099 = vmatpush1.msra.mxu0 %v267
      %1100 = vmatprep.subr.mxu0 %v272
      %1101 = vmatpush1.msra.mxu0 %v271
      %1102 = vmatprep.subr.mxu0 %v276
      %1103 = vmatpush1.msra.mxu0 %v275
      %1104 = vmatprep.subr.mxu0 %v280
      %1105 = vmatpush1.msra.mxu0 %v279
      %1106 = vmatprep.subr.mxu0 %v300
      %1107 = vmatpush1.msra.mxu0 %v297
      %1108 = vmatprep.subr.mxu0 0.0
      %1109 = vmatpush1.msra.mxu0 0.0
      %1110 = vmatprep.subr.mxu0 0.0
      %1111 = vmatpush1.msra.mxu0 0.0
      %1112 = vmatprep.subr.mxu0 0.0
      %1113 = vmatpush1.msra.mxu0 0.0
      %1114 = vmatprep.subr.mxu0 0.0
      %1115 = vmatpush1.msra.mxu0 0.0
      %1116 = vmatprep.subr.mxu0 0.0
      %1117 = vmatpush1.msra.mxu0 0.0
      %1118 = vmatprep.subr.mxu0 0.0
      %1119 = vmatpush1.msra.mxu0 0.0
      %1120 = vmatprep.subr.mxu0 0.0
      %1121 = vmatpush1.msra.mxu0 0.0
      %1122 = vmatprep.subr.mxu0 0.0
      %1123 = vmatpush1.msra.mxu0 0.0
      %1124 = vmatprep.subr.mxu0 0.0
      %1125 = vmatpush1.msra.mxu0 0.0
      %1126 = vmatprep.subr.mxu0 0.0
      %1127 = vmatpush1.msra.mxu0 0.0
      %1128 = vmatprep.subr.mxu0 0.0
      %1129 = vmatpush1.msra.mxu0 0.0
      %1130 = vmatprep.subr.mxu0 0.0
      %1131 = vmatpush1.msra.mxu0 0.0
      %1132 = vmatprep.subr.mxu0 0.0
      %1133 = vmatpush1.msra.mxu0 0.0
      %1134 = vmatprep.subr.mxu0 0.0
      %1135 = vmatpush1.msra.mxu0 0.0
      %1136 = vmatprep.subr.mxu0 0.0
      %1137 = vmatpush1.msra.mxu0 0.0
      %1138 = vmatprep.subr.mxu0 0.0
      %1139 = vmatpush1.msra.mxu0 0.0
      %1140 = vmatprep.subr.mxu0 0.0
      %1141 = vmatpush1.msra.mxu0 0.0
      %1142 = vmatprep.subr.mxu0 0.0
      %1143 = vmatpush1.msra.mxu0 0.0
      %1144 = vmatprep.subr.mxu0 0.0
      %1145 = vmatpush1.msra.mxu0 0.0
      %1146 = vmatprep.subr.mxu0 0.0
      %1147 = vmatpush1.msra.mxu0 0.0
      %1148 = vmatprep.subr.mxu0 0.0
      %1149 = vmatpush1.msra.mxu0 0.0
      %1150 = vmatprep.subr.mxu0 0.0
      %1151 = vmatpush1.msra.mxu0 0.0
      %1152 = vmatprep.subr.mxu0 0.0
      %1153 = vmatpush1.msra.mxu0 0.0
      %1154 = vmatprep.subr.mxu0 0.0
      %1155 = vmatpush1.msra.mxu0 0.0
      %1156 = vmatprep.subr.mxu0 0.0
      %1157 = vmatpush1.msra.mxu0 0.0
      %1158 = vmatprep.subr.mxu0 0.0
      %1159 = vmatpush1.msra.mxu0 0.0
      %1160 = vmatprep.subr.mxu0 0.0
      %1161 = vmatpush1.msra.mxu0 0.0
      %1162 = vmatprep.mubr.f32.mxu0 0.0
      %1163 = vmatmul.mubr.f32.gmra.mrb[0].mxu0 %v1025
      %v1164 = vpop.f32.mrb[0].mxu0
      %v1165 = vadd.f32 0.0, %v1164
      %v1166 = vpop.f32.mrb[0].mxu0
      %v1167 = vadd.f32 0.0, %v1166
      %1168 = vdwg.mxu0
      %v1170 = vsel %vm285, %v264, 0
      %1172 = vmatprep.subr.mxu0 %v266
      %1173 = vmatpush1.msra.mxu0 %v265
      %1174 = vmatprep.subr.mxu0 %v270
      %1175 = vmatpush1.msra.mxu0 %v269
      %1176 = vmatprep.subr.mxu0 %v274
      %1177 = vmatpush1.msra.mxu0 %v273
      %1178 = vmatprep.subr.mxu0 %v278
      %1179 = vmatpush1.msra.mxu0 %v277
      %1180 = vmatprep.subr.mxu0 %v294
      %1181 = vmatpush1.msra.mxu0 %v291
      %1182 = vmatprep.subr.mxu0 0.0
      %1183 = vmatpush1.msra.mxu0 0.0
      %1184 = vmatprep.subr.mxu0 0.0
      %1185 = vmatpush1.msra.mxu0 0.0
      %1186 = vmatprep.subr.mxu0 0.0
      %1187 = vmatpush1.msra.mxu0 0.0
      %1188 = vmatprep.subr.mxu0 0.0
      %1189 = vmatpush1.msra.mxu0 0.0
      %1190 = vmatprep.subr.mxu0 0.0
      %1191 = vmatpush1.msra.mxu0 0.0
      %1192 = vmatprep.subr.mxu0 0.0
      %1193 = vmatpush1.msra.mxu0 0.0
      %1194 = vmatprep.subr.mxu0 0.0
      %1195 = vmatpush1.msra.mxu0 0.0
      %1196 = vmatprep.subr.mxu0 0.0
      %1197 = vmatpush1.msra.mxu0 0.0
      %1198 = vmatprep.subr.mxu0 0.0
      %1199 = vmatpush1.msra.mxu0 0.0
      %1200 = vmatprep.subr.mxu0 0.0
      %1201 = vmatpush1.msra.mxu0 0.0
      %1202 = vmatprep.subr.mxu0 0.0
      %1203 = vmatpush1.msra.mxu0 0.0
      %1204 = vmatprep.subr.mxu0 0.0
      %1205 = vmatpush1.msra.mxu0 0.0
      %1206 = vmatprep.subr.mxu0 0.0
      %1207 = vmatpush1.msra.mxu0 0.0
      %1208 = vmatprep.subr.mxu0 0.0
      %1209 = vmatpush1.msra.mxu0 0.0
      %1210 = vmatprep.subr.mxu0 0.0
      %1211 = vmatpush1.msra.mxu0 0.0
      %1212 = vmatprep.subr.mxu0 0.0
      %1213 = vmatpush1.msra.mxu0 0.0
      %1214 = vmatprep.subr.mxu0 0.0
      %1215 = vmatpush1.msra.mxu0 0.0
      %1216 = vmatprep.subr.mxu0 0.0
      %1217 = vmatpush1.msra.mxu0 0.0
      %1218 = vmatprep.subr.mxu0 0.0
      %1219 = vmatpush1.msra.mxu0 0.0
      %1220 = vmatprep.subr.mxu0 0.0
      %1221 = vmatpush1.msra.mxu0 0.0
      %1222 = vmatprep.subr.mxu0 0.0
      %1223 = vmatpush1.msra.mxu0 0.0
      %1224 = vmatprep.subr.mxu0 0.0
      %1225 = vmatpush1.msra.mxu0 0.0
      %1226 = vmatprep.subr.mxu0 0.0
      %1227 = vmatpush1.msra.mxu0 0.0
      %1228 = vmatprep.subr.mxu0 0.0
      %1229 = vmatpush1.msra.mxu0 0.0
      %1230 = vmatprep.subr.mxu0 0.0
      %1231 = vmatpush1.msra.mxu0 0.0
      %1232 = vmatprep.subr.mxu0 0.0
      %1233 = vmatpush1.msra.mxu0 0.0
      %1234 = vmatprep.subr.mxu0 0.0
      %1235 = vmatpush1.msra.mxu0 0.0
      %1236 = vmatprep.mubr.f32.mxu0 0.0
      %1237 = vmatmul.mubr.f32.gmra.mrb[0].mxu0 %v1170
      %v1238 = vpop.f32.mrb[0].mxu0
      %v1239 = vadd.f32 0.0, %v1238
      %v1240 = vpop.f32.mrb[0].mxu0
      %v1241 = vadd.f32 0.0, %v1240
      %1242 = vdwg.mxu0
      %1243 = vmatprep.subr.mxu0 %v268
      %1244 = vmatpush1.msra.mxu0 %v267
      %1245 = vmatprep.subr.mxu0 %v272
      %1246 = vmatpush1.msra.mxu0 %v271
      %1247 = vmatprep.subr.mxu0 %v276
      %1248 = vmatpush1.msra.mxu0 %v275
      %1249 = vmatprep.subr.mxu0 %v280
      %1250 = vmatpush1.msra.mxu0 %v279
      %1251 = vmatprep.subr.mxu0 %v300
      %1252 = vmatpush1.msra.mxu0 %v297
      %1253 = vmatprep.subr.mxu0 0.0
      %1254 = vmatpush1.msra.mxu0 0.0
      %1255 = vmatprep.subr.mxu0 0.0
      %1256 = vmatpush1.msra.mxu0 0.0
      %1257 = vmatprep.subr.mxu0 0.0
      %1258 = vmatpush1.msra.mxu0 0.0
      %1259 = vmatprep.subr.mxu0 0.0
      %1260 = vmatpush1.msra.mxu0 0.0
      %1261 = vmatprep.subr.mxu0 0.0
      %1262 = vmatpush1.msra.mxu0 0.0
      %1263 = vmatprep.subr.mxu0 0.0
      %1264 = vmatpush1.msra.mxu0 0.0
      %1265 = vmatprep.subr.mxu0 0.0
      %1266 = vmatpush1.msra.mxu0 0.0
      %1267 = vmatprep.subr.mxu0 0.0
      %1268 = vmatpush1.msra.mxu0 0.0
      %1269 = vmatprep.subr.mxu0 0.0
      %1270 = vmatpush1.msra.mxu0 0.0
      %1271 = vmatprep.subr.mxu0 0.0
      %1272 = vmatpush1.msra.mxu0 0.0
      %1273 = vmatprep.subr.mxu0 0.0
      %1274 = vmatpush1.msra.mxu0 0.0
      %1275 = vmatprep.subr.mxu0 0.0
      %1276 = vmatpush1.msra.mxu0 0.0
      %1277 = vmatprep.subr.mxu0 0.0
      %1278 = vmatpush1.msra.mxu0 0.0
      %1279 = vmatprep.subr.mxu0 0.0
      %1280 = vmatpush1.msra.mxu0 0.0
      %1281 = vmatprep.subr.mxu0 0.0
      %1282 = vmatpush1.msra.mxu0 0.0
      %1283 = vmatprep.subr.mxu0 0.0
      %1284 = vmatpush1.msra.mxu0 0.0
      %1285 = vmatprep.subr.mxu0 0.0
      %1286 = vmatpush1.msra.mxu0 0.0
      %1287 = vmatprep.subr.mxu0 0.0
      %1288 = vmatpush1.msra.mxu0 0.0
      %1289 = vmatprep.subr.mxu0 0.0
      %1290 = vmatpush1.msra.mxu0 0.0
      %1291 = vmatprep.subr.mxu0 0.0
      %1292 = vmatpush1.msra.mxu0 0.0
      %1293 = vmatprep.subr.mxu0 0.0
      %1294 = vmatpush1.msra.mxu0 0.0
      %1295 = vmatprep.subr.mxu0 0.0
      %1296 = vmatpush1.msra.mxu0 0.0
      %1297 = vmatprep.subr.mxu0 0.0
      %1298 = vmatpush1.msra.mxu0 0.0
      %1299 = vmatprep.subr.mxu0 0.0
      %1300 = vmatpush1.msra.mxu0 0.0
      %1301 = vmatprep.subr.mxu0 0.0
      %1302 = vmatpush1.msra.mxu0 0.0
      %1303 = vmatprep.subr.mxu0 0.0
      %1304 = vmatpush1.msra.mxu0 0.0
      %1305 = vmatprep.subr.mxu0 0.0
      %1306 = vmatpush1.msra.mxu0 0.0
      %1307 = vmatprep.mubr.f32.mxu0 0.0
      %1308 = vmatmul.mubr.f32.gmra.mrb[0].mxu0 %v1170
      %v1309 = vpop.f32.mrb[0].mxu0
      %v1310 = vadd.f32 0.0, %v1309
      %v1311 = vpop.f32.mrb[0].mxu0
      %v1312 = vadd.f32 0.0, %v1311
      %1313 = vdwg.mxu0
      %v1314 = vld [vmem:[%s2] sm:$0x1]
      %v1316 = vlaneseq
      %v1317 = vshrl.u32 %v1316, 7
      %v1318 = vsub.s32 0, %v1317
      %v1319 = vrot.slane %v1314, %v1318
      %v1321 = vadd.f32 %v369, %v1319
      %v1322 = vadd.f32 %v514, %v1319
      %v1323 = vadd.f32 %v659, %v1319
      %v1324 = vadd.f32 %v804, %v1319
      %v1325 = vadd.f32 %v949, %v1319
      %v1326 = vadd.f32 %v1094, %v1319
      %v1327 = vadd.f32 %v1239, %v1319
      %v1328 = vmax.f32 %v1321, 0.0
      %v1329 = vmax.f32 %v1322, 0.0
      %v1330 = vmax.f32 %v1323, 0.0
      %v1331 = vmax.f32 %v1324, 0.0
      %v1332 = vmax.f32 %v1325, 0.0
      %v1333 = vmax.f32 %v1326, 0.0
      %v1334 = vmax.f32 %v1327, 0.0
      %1335 = vrot.lane.b32.xlu0 %v1319, 32
      %v1336 = vpop.permute.xlu0 %1335
      %v1338 = vadd.f32 %v369, %v1336
      %v1339 = vadd.f32 %v514, %v1336
      %v1340 = vadd.f32 %v659, %v1336
      %v1341 = vadd.f32 %v804, %v1336
      %v1342 = vadd.f32 %v949, %v1336
      %v1343 = vadd.f32 %v1094, %v1336
      %v1344 = vadd.f32 %v1239, %v1336
      %v1345 = vmax.f32 %v1338, 0.0
      %v1346 = vmax.f32 %v1339, 0.0
      %v1347 = vmax.f32 %v1340, 0.0
      %v1348 = vmax.f32 %v1341, 0.0
      %v1349 = vmax.f32 %v1342, 0.0
      %v1350 = vmax.f32 %v1343, 0.0
      %v1351 = vmax.f32 %v1344, 0.0
      %1359 = vrot.lane.b32.xlu0 %v1345, 96
      %v1360 = vpop.permute.xlu0 %1359
      %1361 = vrot.lane.b32.xlu0 %v1346, 96
      %v1362 = vpop.permute.xlu0 %1361
      %1363 = vrot.lane.b32.xlu0 %v1347, 96
      %v1364 = vpop.permute.xlu0 %1363
      %1365 = vrot.lane.b32.xlu0 %v1348, 96
      %v1366 = vpop.permute.xlu0 %1365
      %1367 = vrot.lane.b32.xlu0 %v1349, 96
      %v1368 = vpop.permute.xlu0 %1367
      %1369 = vrot.lane.b32.xlu0 %v1350, 96
      %v1370 = vpop.permute.xlu0 %1369
      %1371 = vrot.lane.b32.xlu0 %v1351, 96
      %v1372 = vpop.permute.xlu0 %1371
      %v1380 = vmax.f32 %v1328, %v1360
      %v1381 = vmax.f32 %v1329, %v1362
      %v1382 = vmax.f32 %v1330, %v1364
      %v1383 = vmax.f32 %v1331, %v1366
      %v1384 = vmax.f32 %v1332, %v1368
      %v1385 = vmax.f32 %v1333, %v1370
      %v1386 = vmax.f32 %v1334, %v1372
      %1387 = vrot.lane.b32.xlu0 %v1319, 64
      %v1388 = vpop.permute.xlu0 %1387
      %v1390 = vadd.f32 %v369, %v1388
      %v1391 = vadd.f32 %v514, %v1388
      %v1392 = vadd.f32 %v659, %v1388
      %v1393 = vadd.f32 %v804, %v1388
      %v1394 = vadd.f32 %v949, %v1388
      %v1395 = vadd.f32 %v1094, %v1388
      %v1396 = vadd.f32 %v1239, %v1388
      %v1397 = vmax.f32 %v1390, 0.0
      %v1398 = vmax.f32 %v1391, 0.0
      %v1399 = vmax.f32 %v1392, 0.0
      %v1400 = vmax.f32 %v1393, 0.0
      %v1401 = vmax.f32 %v1394, 0.0
      %v1402 = vmax.f32 %v1395, 0.0
      %v1403 = vmax.f32 %v1396, 0.0
      %1411 = vrot.lane.b32.xlu0 %v1397, 64
      %v1412 = vpop.permute.xlu0 %1411
      %1413 = vrot.lane.b32.xlu0 %v1398, 64
      %v1414 = vpop.permute.xlu0 %1413
      %1415 = vrot.lane.b32.xlu0 %v1399, 64
      %v1416 = vpop.permute.xlu0 %1415
      %1417 = vrot.lane.b32.xlu0 %v1400, 64
      %v1418 = vpop.permute.xlu0 %1417
      %1419 = vrot.lane.b32.xlu0 %v1401, 64
      %v1420 = vpop.permute.xlu0 %1419
      %1421 = vrot.lane.b32.xlu0 %v1402, 64
      %v1422 = vpop.permute.xlu0 %1421
      %1423 = vrot.lane.b32.xlu0 %v1403, 64
      %v1424 = vpop.permute.xlu0 %1423
      %v1432 = vmax.f32 %v1380, %v1412
      %v1433 = vmax.f32 %v1381, %v1414
      %v1434 = vmax.f32 %v1382, %v1416
      %v1435 = vmax.f32 %v1383, %v1418
      %v1436 = vmax.f32 %v1384, %v1420
      %v1437 = vmax.f32 %v1385, %v1422
      %v1438 = vmax.f32 %v1386, %v1424
      %1439 = vrot.lane.b32.xlu0 %v1319, 96
      %v1440 = vpop.permute.xlu0 %1439
      %v1442 = vadd.f32 %v369, %v1440
      %v1443 = vadd.f32 %v514, %v1440
      %v1444 = vadd.f32 %v659, %v1440
      %v1445 = vadd.f32 %v804, %v1440
      %v1446 = vadd.f32 %v949, %v1440
      %v1447 = vadd.f32 %v1094, %v1440
      %v1448 = vadd.f32 %v1239, %v1440
      %v1449 = vmax.f32 %v1442, 0.0
      %v1450 = vmax.f32 %v1443, 0.0
      %v1451 = vmax.f32 %v1444, 0.0
      %v1452 = vmax.f32 %v1445, 0.0
      %v1453 = vmax.f32 %v1446, 0.0
      %v1454 = vmax.f32 %v1447, 0.0
      %v1455 = vmax.f32 %v1448, 0.0
      %1463 = vrot.lane.b32.xlu0 %v1449, 32
      %v1464 = vpop.permute.xlu0 %1463
      %1465 = vrot.lane.b32.xlu0 %v1450, 32
      %v1466 = vpop.permute.xlu0 %1465
      %1467 = vrot.lane.b32.xlu0 %v1451, 32
      %v1468 = vpop.permute.xlu0 %1467
      %1469 = vrot.lane.b32.xlu0 %v1452, 32
      %v1470 = vpop.permute.xlu0 %1469
      %1471 = vrot.lane.b32.xlu0 %v1453, 32
      %v1472 = vpop.permute.xlu0 %1471
      %1473 = vrot.lane.b32.xlu0 %v1454, 32
      %v1474 = vpop.permute.xlu0 %1473
      %1475 = vrot.lane.b32.xlu0 %v1455, 32
      %v1476 = vpop.permute.xlu0 %1475
      %v1484 = vmax.f32 %v1432, %v1464
      %v1485 = vmax.f32 %v1433, %v1466
      %v1486 = vmax.f32 %v1434, %v1468
      %v1487 = vmax.f32 %v1435, %v1470
      %v1488 = vmax.f32 %v1436, %v1472
      %v1489 = vmax.f32 %v1437, %v1474
      %v1490 = vmax.f32 %v1438, %v1476
      %s1491 = scalar_lea.vmem [#allocation2], 192
      %vm1492 = vcmask 260096
      %1493 = vst.msk [vmem:[%s1491] sm:$0x7f] %vm1492, %v1484
      %1494 = vst.msk [vmem:[%s1491 + $0x8] sm:$0x7f] %vm1492, %v1485
      %1495 = vst.msk [vmem:[%s1491 + $0x10] sm:$0x7f] %vm1492, %v1486
      %1496 = vst.msk [vmem:[%s1491 + $0x18] sm:$0x7f] %vm1492, %v1487
      %1497 = vst.msk [vmem:[%s1491 + $0x20] sm:$0x7f] %vm1492, %v1488
      %1498 = vst.msk [vmem:[%s1491 + $0x28] sm:$0x7f] %vm1492, %v1489
      %1499 = vst.msk [vmem:[%s1491 + $0x30] sm:$0x7f] %vm1492, %v1490
      %v1500 = vadd.f32 %v371, %v1319
      %v1501 = vadd.f32 %v516, %v1319
      %v1502 = vadd.f32 %v661, %v1319
      %v1503 = vadd.f32 %v806, %v1319
      %v1504 = vadd.f32 %v951, %v1319
      %v1505 = vadd.f32 %v1096, %v1319
      %v1506 = vadd.f32 %v1241, %v1319
      %v1507 = vmax.f32 %v1500, 0.0
      %v1508 = vmax.f32 %v1501, 0.0
      %v1509 = vmax.f32 %v1502, 0.0
      %v1510 = vmax.f32 %v1503, 0.0
      %v1511 = vmax.f32 %v1504, 0.0
      %v1512 = vmax.f32 %v1505, 0.0
      %v1513 = vmax.f32 %v1506, 0.0
      %v1514 = vadd.f32 %v371, %v1336
      %v1515 = vadd.f32 %v516, %v1336
      %v1516 = vadd.f32 %v661, %v1336
      %v1517 = vadd.f32 %v806, %v1336
      %v1518 = vadd.f32 %v951, %v1336
      %v1519 = vadd.f32 %v1096, %v1336
      %v1520 = vadd.f32 %v1241, %v1336
      %v1521 = vmax.f32 %v1514, 0.0
      %v1522 = vmax.f32 %v1515, 0.0
      %v1523 = vmax.f32 %v1516, 0.0
      %v1524 = vmax.f32 %v1517, 0.0
      %v1525 = vmax.f32 %v1518, 0.0
      %v1526 = vmax.f32 %v1519, 0.0
      %v1527 = vmax.f32 %v1520, 0.0
      %1535 = vrot.lane.b32.xlu0 %v1521, 96
      %v1536 = vpop.permute.xlu0 %1535
      %1537 = vrot.lane.b32.xlu0 %v1522, 96
      %v1538 = vpop.permute.xlu0 %1537
      %1539 = vrot.lane.b32.xlu0 %v1523, 96
      %v1540 = vpop.permute.xlu0 %1539
      %1541 = vrot.lane.b32.xlu0 %v1524, 96
      %v1542 = vpop.permute.xlu0 %1541
      %1543 = vrot.lane.b32.xlu0 %v1525, 96
      %v1544 = vpop.permute.xlu0 %1543
      %1545 = vrot.lane.b32.xlu0 %v1526, 96
      %v1546 = vpop.permute.xlu0 %1545
      %1547 = vrot.lane.b32.xlu0 %v1527, 96
      %v1548 = vpop.permute.xlu0 %1547
      %v1556 = vmax.f32 %v1507, %v1536
      %v1557 = vmax.f32 %v1508, %v1538
      %v1558 = vmax.f32 %v1509, %v1540
      %v1559 = vmax.f32 %v1510, %v1542
      %v1560 = vmax.f32 %v1511, %v1544
      %v1561 = vmax.f32 %v1512, %v1546
      %v1562 = vmax.f32 %v1513, %v1548
      %v1563 = vadd.f32 %v371, %v1388
      %v1564 = vadd.f32 %v516, %v1388
      %v1565 = vadd.f32 %v661, %v1388
      %v1566 = vadd.f32 %v806, %v1388
      %v1567 = vadd.f32 %v951, %v1388
      %v1568 = vadd.f32 %v1096, %v1388
      %v1569 = vadd.f32 %v1241, %v1388
      %v1570 = vmax.f32 %v1563, 0.0
      %v1571 = vmax.f32 %v1564, 0.0
      %v1572 = vmax.f32 %v1565, 0.0
      %v1573 = vmax.f32 %v1566, 0.0
      %v1574 = vmax.f32 %v1567, 0.0
      %v1575 = vmax.f32 %v1568, 0.0
      %v1576 = vmax.f32 %v1569, 0.0
      %1584 = vrot.lane.b32.xlu0 %v1570, 64
      %v1585 = vpop.permute.xlu0 %1584
      %1586 = vrot.lane.b32.xlu0 %v1571, 64
      %v1587 = vpop.permute.xlu0 %1586
      %1588 = vrot.lane.b32.xlu0 %v1572, 64
      %v1589 = vpop.permute.xlu0 %1588
      %1590 = vrot.lane.b32.xlu0 %v1573, 64
      %v1591 = vpop.permute.xlu0 %1590
      %1592 = vrot.lane.b32.xlu0 %v1574, 64
      %v1593 = vpop.permute.xlu0 %1592
      %1594 = vrot.lane.b32.xlu0 %v1575, 64
      %v1595 = vpop.permute.xlu0 %1594
      %1596 = vrot.lane.b32.xlu0 %v1576, 64
      %v1597 = vpop.permute.xlu0 %1596
      %v1605 = vmax.f32 %v1556, %v1585
      %v1606 = vmax.f32 %v1557, %v1587
      %v1607 = vmax.f32 %v1558, %v1589
      %v1608 = vmax.f32 %v1559, %v1591
      %v1609 = vmax.f32 %v1560, %v1593
      %v1610 = vmax.f32 %v1561, %v1595
      %v1611 = vmax.f32 %v1562, %v1597
      %v1612 = vadd.f32 %v371, %v1440
      %v1613 = vadd.f32 %v516, %v1440
      %v1614 = vadd.f32 %v661, %v1440
      %v1615 = vadd.f32 %v806, %v1440
      %v1616 = vadd.f32 %v951, %v1440
      %v1617 = vadd.f32 %v1096, %v1440
      %v1618 = vadd.f32 %v1241, %v1440
      %v1619 = vmax.f32 %v1612, 0.0
      %v1620 = vmax.f32 %v1613, 0.0
      %v1621 = vmax.f32 %v1614, 0.0
      %v1622 = vmax.f32 %v1615, 0.0
      %v1623 = vmax.f32 %v1616, 0.0
      %v1624 = vmax.f32 %v1617, 0.0
      %v1625 = vmax.f32 %v1618, 0.0
      %1633 = vrot.lane.b32.xlu0 %v1619, 32
      %v1634 = vpop.permute.xlu0 %1633
      %1635 = vrot.lane.b32.xlu0 %v1620, 32
      %v1636 = vpop.permute.xlu0 %1635
      %1637 = vrot.lane.b32.xlu0 %v1621, 32
      %v1638 = vpop.permute.xlu0 %1637
      %1639 = vrot.lane.b32.xlu0 %v1622, 32
      %v1640 = vpop.permute.xlu0 %1639
      %1641 = vrot.lane.b32.xlu0 %v1623, 32
      %v1642 = vpop.permute.xlu0 %1641
      %1643 = vrot.lane.b32.xlu0 %v1624, 32
      %v1644 = vpop.permute.xlu0 %1643
      %1645 = vrot.lane.b32.xlu0 %v1625, 32
      %v1646 = vpop.permute.xlu0 %1645
      %v1654 = vmax.f32 %v1605, %v1634
      %v1655 = vmax.f32 %v1606, %v1636
      %v1656 = vmax.f32 %v1607, %v1638
      %v1657 = vmax.f32 %v1608, %v1640
      %v1658 = vmax.f32 %v1609, %v1642
      %v1659 = vmax.f32 %v1610, %v1644
      %v1660 = vmax.f32 %v1611, %v1646
      %s1661 = scalar_lea.vmem [#allocation2], 128
      %1662 = vst.msk [vmem:[%s1661 + $0x1] sm:$0x7f] %vm1492, %v1654
      %1663 = vst.msk [vmem:[%s1661 + $0x9] sm:$0x7f] %vm1492, %v1655
      %1664 = vst.msk [vmem:[%s1661 + $0x11] sm:$0x7f] %vm1492, %v1656
      %1665 = vst.msk [vmem:[%s1661 + $0x19] sm:$0x7f] %vm1492, %v1657
      %1666 = vst.msk [vmem:[%s1661 + $0x21] sm:$0x7f] %vm1492, %v1658
      %1667 = vst.msk [vmem:[%s1661 + $0x29] sm:$0x7f] %vm1492, %v1659
      %1668 = vst.msk [vmem:[%s1661 + $0x31] sm:$0x7f] %vm1492, %v1660
      %v1669 = vadd.f32 %v440, %v1319
      %v1670 = vadd.f32 %v585, %v1319
      %v1671 = vadd.f32 %v730, %v1319
      %v1672 = vadd.f32 %v875, %v1319
      %v1673 = vadd.f32 %v1020, %v1319
      %v1674 = vadd.f32 %v1165, %v1319
      %v1675 = vadd.f32 %v1310, %v1319
      %v1676 = vmax.f32 %v1669, 0.0
      %v1677 = vmax.f32 %v1670, 0.0
      %v1678 = vmax.f32 %v1671, 0.0
      %v1679 = vmax.f32 %v1672, 0.0
      %v1680 = vmax.f32 %v1673, 0.0
      %v1681 = vmax.f32 %v1674, 0.0
      %v1682 = vmax.f32 %v1675, 0.0
      %v1683 = vadd.f32 %v440, %v1336
      %v1684 = vadd.f32 %v585, %v1336
      %v1685 = vadd.f32 %v730, %v1336
      %v1686 = vadd.f32 %v875, %v1336
      %v1687 = vadd.f32 %v1020, %v1336
      %v1688 = vadd.f32 %v1165, %v1336
      %v1689 = vadd.f32 %v1310, %v1336
      %v1690 = vmax.f32 %v1683, 0.0
      %v1691 = vmax.f32 %v1684, 0.0
      %v1692 = vmax.f32 %v1685, 0.0
      %v1693 = vmax.f32 %v1686, 0.0
      %v1694 = vmax.f32 %v1687, 0.0
      %v1695 = vmax.f32 %v1688, 0.0
      %v1696 = vmax.f32 %v1689, 0.0
      %1704 = vrot.lane.b32.xlu0 %v1690, 96
      %v1705 = vpop.permute.xlu0 %1704
      %1706 = vrot.lane.b32.xlu0 %v1691, 96
      %v1707 = vpop.permute.xlu0 %1706
      %1708 = vrot.lane.b32.xlu0 %v1692, 96
      %v1709 = vpop.permute.xlu0 %1708
      %1710 = vrot.lane.b32.xlu0 %v1693, 96
      %v1711 = vpop.permute.xlu0 %1710
      %1712 = vrot.lane.b32.xlu0 %v1694, 96
      %v1713 = vpop.permute.xlu0 %1712
      %1714 = vrot.lane.b32.xlu0 %v1695, 96
      %v1715 = vpop.permute.xlu0 %1714
      %1716 = vrot.lane.b32.xlu0 %v1696, 96
      %v1717 = vpop.permute.xlu0 %1716
      %v1725 = vmax.f32 %v1676, %v1705
      %v1726 = vmax.f32 %v1677, %v1707
      %v1727 = vmax.f32 %v1678, %v1709
      %v1728 = vmax.f32 %v1679, %v1711
      %v1729 = vmax.f32 %v1680, %v1713
      %v1730 = vmax.f32 %v1681, %v1715
      %v1731 = vmax.f32 %v1682, %v1717
      %v1732 = vadd.f32 %v440, %v1388
      %v1733 = vadd.f32 %v585, %v1388
      %v1734 = vadd.f32 %v730, %v1388
      %v1735 = vadd.f32 %v875, %v1388
      %v1736 = vadd.f32 %v1020, %v1388
      %v1737 = vadd.f32 %v1165, %v1388
      %v1738 = vadd.f32 %v1310, %v1388
      %v1739 = vmax.f32 %v1732, 0.0
      %v1740 = vmax.f32 %v1733, 0.0
      %v1741 = vmax.f32 %v1734, 0.0
      %v1742 = vmax.f32 %v1735, 0.0
      %v1743 = vmax.f32 %v1736, 0.0
      %v1744 = vmax.f32 %v1737, 0.0
      %v1745 = vmax.f32 %v1738, 0.0
      %1753 = vrot.lane.b32.xlu0 %v1739, 64
      %v1754 = vpop.permute.xlu0 %1753
      %1755 = vrot.lane.b32.xlu0 %v1740, 64
      %v1756 = vpop.permute.xlu0 %1755
      %1757 = vrot.lane.b32.xlu0 %v1741, 64
      %v1758 = vpop.permute.xlu0 %1757
      %1759 = vrot.lane.b32.xlu0 %v1742, 64
      %v1760 = vpop.permute.xlu0 %1759
      %1761 = vrot.lane.b32.xlu0 %v1743, 64
      %v1762 = vpop.permute.xlu0 %1761
      %1763 = vrot.lane.b32.xlu0 %v1744, 64
      %v1764 = vpop.permute.xlu0 %1763
      %1765 = vrot.lane.b32.xlu0 %v1745, 64
      %v1766 = vpop.permute.xlu0 %1765
      %v1774 = vmax.f32 %v1725, %v1754
      %v1775 = vmax.f32 %v1726, %v1756
      %v1776 = vmax.f32 %v1727, %v1758
      %v1777 = vmax.f32 %v1728, %v1760
      %v1778 = vmax.f32 %v1729, %v1762
      %v1779 = vmax.f32 %v1730, %v1764
      %v1780 = vmax.f32 %v1731, %v1766
      %v1781 = vadd.f32 %v440, %v1440
      %v1782 = vadd.f32 %v585, %v1440
      %v1783 = vadd.f32 %v730, %v1440
      %v1784 = vadd.f32 %v875, %v1440
      %v1785 = vadd.f32 %v1020, %v1440
      %v1786 = vadd.f32 %v1165, %v1440
      %v1787 = vadd.f32 %v1310, %v1440
      %v1788 = vmax.f32 %v1781, 0.0
      %v1789 = vmax.f32 %v1782, 0.0
      %v1790 = vmax.f32 %v1783, 0.0
      %v1791 = vmax.f32 %v1784, 0.0
      %v1792 = vmax.f32 %v1785, 0.0
      %v1793 = vmax.f32 %v1786, 0.0
      %v1794 = vmax.f32 %v1787, 0.0
      %1802 = vrot.lane.b32.xlu0 %v1788, 32
      %v1803 = vpop.permute.xlu0 %1802
      %1804 = vrot.lane.b32.xlu0 %v1789, 32
      %v1805 = vpop.permute.xlu0 %1804
      %1806 = vrot.lane.b32.xlu0 %v1790, 32
      %v1807 = vpop.permute.xlu0 %1806
      %1808 = vrot.lane.b32.xlu0 %v1791, 32
      %v1809 = vpop.permute.xlu0 %1808
      %1810 = vrot.lane.b32.xlu0 %v1792, 32
      %v1811 = vpop.permute.xlu0 %1810
      %1812 = vrot.lane.b32.xlu0 %v1793, 32
      %v1813 = vpop.permute.xlu0 %1812
      %1814 = vrot.lane.b32.xlu0 %v1794, 32
      %v1815 = vpop.permute.xlu0 %1814
      %v1823 = vmax.f32 %v1774, %v1803
      %v1824 = vmax.f32 %v1775, %v1805
      %v1825 = vmax.f32 %v1776, %v1807
      %v1826 = vmax.f32 %v1777, %v1809
      %v1827 = vmax.f32 %v1778, %v1811
      %v1828 = vmax.f32 %v1779, %v1813
      %v1829 = vmax.f32 %v1780, %v1815
      %s1830 = scalar_lea.vmem [#allocation2], 72
      %1831 = vst.msk [vmem:[%s1830] sm:$0x7f] %vm1492, %v1823
      %1832 = vst.msk [vmem:[%s1830 + $0x8] sm:$0x7f] %vm1492, %v1824
      %1833 = vst.msk [vmem:[%s1830 + $0x10] sm:$0x7f] %vm1492, %v1825
      %1834 = vst.msk [vmem:[%s1830 + $0x18] sm:$0x7f] %vm1492, %v1826
      %1835 = vst.msk [vmem:[%s1830 + $0x20] sm:$0x7f] %vm1492, %v1827
      %1836 = vst.msk [vmem:[%s1830 + $0x28] sm:$0x7f] %vm1492, %v1828
      %1837 = vst.msk [vmem:[%s1830 + $0x30] sm:$0x7f] %vm1492, %v1829
      %v1838 = vadd.f32 %v442, %v1319
      %v1839 = vadd.f32 %v587, %v1319
      %v1840 = vadd.f32 %v732, %v1319
      %v1841 = vadd.f32 %v877, %v1319
      %v1842 = vadd.f32 %v1022, %v1319
      %v1843 = vadd.f32 %v1167, %v1319
      %v1844 = vadd.f32 %v1312, %v1319
      %v1845 = vmax.f32 %v1838, 0.0
      %v1846 = vmax.f32 %v1839, 0.0
      %v1847 = vmax.f32 %v1840, 0.0
      %v1848 = vmax.f32 %v1841, 0.0
      %v1849 = vmax.f32 %v1842, 0.0
      %v1850 = vmax.f32 %v1843, 0.0
      %v1851 = vmax.f32 %v1844, 0.0
      %v1852 = vadd.f32 %v442, %v1336
      %v1853 = vadd.f32 %v587, %v1336
      %v1854 = vadd.f32 %v732, %v1336
      %v1855 = vadd.f32 %v877, %v1336
      %v1856 = vadd.f32 %v1022, %v1336
      %v1857 = vadd.f32 %v1167, %v1336
      %v1858 = vadd.f32 %v1312, %v1336
      %v1859 = vmax.f32 %v1852, 0.0
      %v1860 = vmax.f32 %v1853, 0.0
      %v1861 = vmax.f32 %v1854, 0.0
      %v1862 = vmax.f32 %v1855, 0.0
      %v1863 = vmax.f32 %v1856, 0.0
      %v1864 = vmax.f32 %v1857, 0.0
      %v1865 = vmax.f32 %v1858, 0.0
      %1873 = vrot.lane.b32.xlu0 %v1859, 96
      %v1874 = vpop.permute.xlu0 %1873
      %1875 = vrot.lane.b32.xlu0 %v1860, 96
      %v1876 = vpop.permute.xlu0 %1875
      %1877 = vrot.lane.b32.xlu0 %v1861, 96
      %v1878 = vpop.permute.xlu0 %1877
      %1879 = vrot.lane.b32.xlu0 %v1862, 96
      %v1880 = vpop.permute.xlu0 %1879
      %1881 = vrot.lane.b32.xlu0 %v1863, 96
      %v1882 = vpop.permute.xlu0 %1881
      %1883 = vrot.lane.b32.xlu0 %v1864, 96
      %v1884 = vpop.permute.xlu0 %1883
      %1885 = vrot.lane.b32.xlu0 %v1865, 96
      %v1886 = vpop.permute.xlu0 %1885
      %v1894 = vmax.f32 %v1845, %v1874
      %v1895 = vmax.f32 %v1846, %v1876
      %v1896 = vmax.f32 %v1847, %v1878
      %v1897 = vmax.f32 %v1848, %v1880
      %v1898 = vmax.f32 %v1849, %v1882
      %v1899 = vmax.f32 %v1850, %v1884
      %v1900 = vmax.f32 %v1851, %v1886
      %v1901 = vadd.f32 %v442, %v1388
      %v1902 = vadd.f32 %v587, %v1388
      %v1903 = vadd.f32 %v732, %v1388
      %v1904 = vadd.f32 %v877, %v1388
      %v1905 = vadd.f32 %v1022, %v1388
      %v1906 = vadd.f32 %v1167, %v1388
      %v1907 = vadd.f32 %v1312, %v1388
      %v1908 = vmax.f32 %v1901, 0.0
      %v1909 = vmax.f32 %v1902, 0.0
      %v1910 = vmax.f32 %v1903, 0.0
      %v1911 = vmax.f32 %v1904, 0.0
      %v1912 = vmax.f32 %v1905, 0.0
      %v1913 = vmax.f32 %v1906, 0.0
      %v1914 = vmax.f32 %v1907, 0.0
      %1922 = vrot.lane.b32.xlu0 %v1908, 64
      %v1923 = vpop.permute.xlu0 %1922
      %1924 = vrot.lane.b32.xlu0 %v1909, 64
      %v1925 = vpop.permute.xlu0 %1924
      %1926 = vrot.lane.b32.xlu0 %v1910, 64
      %v1927 = vpop.permute.xlu0 %1926
      %1928 = vrot.lane.b32.xlu0 %v1911, 64
      %v1929 = vpop.permute.xlu0 %1928
      %1930 = vrot.lane.b32.xlu0 %v1912, 64
      %v1931 = vpop.permute.xlu0 %1930
      %1932 = vrot.lane.b32.xlu0 %v1913, 64
      %v1933 = vpop.permute.xlu0 %1932
      %1934 = vrot.lane.b32.xlu0 %v1914, 64
      %v1935 = vpop.permute.xlu0 %1934
      %v1943 = vmax.f32 %v1894, %v1923
      %v1944 = vmax.f32 %v1895, %v1925
      %v1945 = vmax.f32 %v1896, %v1927
      %v1946 = vmax.f32 %v1897, %v1929
      %v1947 = vmax.f32 %v1898, %v1931
      %v1948 = vmax.f32 %v1899, %v1933
      %v1949 = vmax.f32 %v1900, %v1935
      %v1950 = vadd.f32 %v442, %v1440
      %v1951 = vadd.f32 %v587, %v1440
      %v1952 = vadd.f32 %v732, %v1440
      %v1953 = vadd.f32 %v877, %v1440
      %v1954 = vadd.f32 %v1022, %v1440
      %v1955 = vadd.f32 %v1167, %v1440
      %v1956 = vadd.f32 %v1312, %v1440
      %v1957 = vmax.f32 %v1950, 0.0
      %v1958 = vmax.f32 %v1951, 0.0
      %v1959 = vmax.f32 %v1952, 0.0
      %v1960 = vmax.f32 %v1953, 0.0
      %v1961 = vmax.f32 %v1954, 0.0
      %v1962 = vmax.f32 %v1955, 0.0
      %v1963 = vmax.f32 %v1956, 0.0
      %1971 = vrot.lane.b32.xlu0 %v1957, 32
      %v1972 = vpop.permute.xlu0 %1971
      %1973 = vrot.lane.b32.xlu0 %v1958, 32
      %v1974 = vpop.permute.xlu0 %1973
      %1975 = vrot.lane.b32.xlu0 %v1959, 32
      %v1976 = vpop.permute.xlu0 %1975
      %1977 = vrot.lane.b32.xlu0 %v1960, 32
      %v1978 = vpop.permute.xlu0 %1977
      %1979 = vrot.lane.b32.xlu0 %v1961, 32
      %v1980 = vpop.permute.xlu0 %1979
      %1981 = vrot.lane.b32.xlu0 %v1962, 32
      %v1982 = vpop.permute.xlu0 %1981
      %1983 = vrot.lane.b32.xlu0 %v1963, 32
      %v1984 = vpop.permute.xlu0 %1983
      %v1992 = vmax.f32 %v1943, %v1972
      %v1993 = vmax.f32 %v1944, %v1974
      %v1994 = vmax.f32 %v1945, %v1976
      %v1995 = vmax.f32 %v1946, %v1978
      %v1996 = vmax.f32 %v1947, %v1980
      %v1997 = vmax.f32 %v1948, %v1982
      %v1998 = vmax.f32 %v1949, %v1984
      %s1999 = scalar_lea.vmem [#allocation2], 8
      %2000 = vst.msk [vmem:[%s1999 + $0x1] sm:$0x7f] %vm1492, %v1992
      %2001 = vst.msk [vmem:[%s1999 + $0x9] sm:$0x7f] %vm1492, %v1993
      %2002 = vst.msk [vmem:[%s1999 + $0x11] sm:$0x7f] %vm1492, %v1994
      %2003 = vst.msk [vmem:[%s1999 + $0x19] sm:$0x7f] %vm1492, %v1995
      %2004 = vst.msk [vmem:[%s1999 + $0x21] sm:$0x7f] %vm1492, %v1996
      %2005 = vst.msk [vmem:[%s1999 + $0x29] sm:$0x7f] %vm1492, %v1997
      %2006 = vst.msk [vmem:[%s1999 + $0x31] sm:$0x7f] %vm1492, %v1998
      %v2007 = vld [vmem:[%s3] sm:$0xff]
      %v2008 = vld [vmem:[%s3 + $0x8] sm:$0xff]
      %v2009 = vld [vmem:[%s3 + $0x10] sm:$0xff]
      %v2010 = vld [vmem:[%s3 + $0x18] sm:$0xff]
      %v2011 = vld [vmem:[%s3 + $0x20] sm:$0xff]
      %v2012 = vld [vmem:[%s3 + $0x28] sm:$0xff]
      %v2013 = vld [vmem:[%s3 + $0x30] sm:$0xff]
      %v2014 = vld [vmem:[%s3 + $0x38] sm:$0xff]
      %v2015 = vld [vmem:[%s4] sm:$0x1]
      %v2016 = vld [vmem:[#allocation2] sm:$0x7f]
      %v2017 = vld [vmem:[#allocation2 + $0x8] sm:$0x7f]
      %v2018 = vld [vmem:[#allocation2 + $0x10] sm:$0x7f]
      %v2019 = vld [vmem:[#allocation2 + $0x18] sm:$0x7f]
      %v2020 = vld [vmem:[#allocation2 + $0x20] sm:$0x7f]
      %v2021 = vld [vmem:[#allocation2 + $0x28] sm:$0x7f]
      %v2022 = vld [vmem:[#allocation2 + $0x30] sm:$0x7f]
      %v2024 = vsel %vm225, %v2016, 0
      %2026 = vmatprep.subr.mxu0 %v2008
      %2027 = vmatpush1.msra.mxu0 %v2007
      %2028 = vmatprep.subr.mxu0 %v2010
      %2029 = vmatpush1.msra.mxu0 %v2009
      %2030 = vmatprep.subr.mxu0 %v2012
      %2031 = vmatpush1.msra.mxu0 %v2011
      %2032 = vmatprep.subr.mxu0 %v2014
      %2033 = vmatpush1.msra.mxu0 %v2013
      %2034 = vmatprep.subr.mxu0 0.0
      %2035 = vmatpush1.msra.mxu0 0.0
      %2036 = vmatprep.subr.mxu0 0.0
      %2037 = vmatpush1.msra.mxu0 0.0
      %2038 = vmatprep.subr.mxu0 0.0
      %2039 = vmatpush1.msra.mxu0 0.0
      %2040 = vmatprep.subr.mxu0 0.0
      %2041 = vmatpush1.msra.mxu0 0.0
      %2042 = vmatprep.subr.mxu0 0.0
      %2043 = vmatpush1.msra.mxu0 0.0
      %2044 = vmatprep.subr.mxu0 0.0
      %2045 = vmatpush1.msra.mxu0 0.0
      %2046 = vmatprep.subr.mxu0 0.0
      %2047 = vmatpush1.msra.mxu0 0.0
      %2048 = vmatprep.subr.mxu0 0.0
      %2049 = vmatpush1.msra.mxu0 0.0
      %2050 = vmatprep.subr.mxu0 0.0
      %2051 = vmatpush1.msra.mxu0 0.0
      %2052 = vmatprep.subr.mxu0 0.0
      %2053 = vmatpush1.msra.mxu0 0.0
      %2054 = vmatprep.subr.mxu0 0.0
      %2055 = vmatpush1.msra.mxu0 0.0
      %2056 = vmatprep.subr.mxu0 0.0
      %2057 = vmatpush1.msra.mxu0 0.0
      %2058 = vmatprep.subr.mxu0 0.0
      %2059 = vmatpush1.msra.mxu0 0.0
      %2060 = vmatprep.subr.mxu0 0.0
      %2061 = vmatpush1.msra.mxu0 0.0
      %2062 = vmatprep.subr.mxu0 0.0
      %2063 = vmatpush1.msra.mxu0 0.0
      %2064 = vmatprep.subr.mxu0 0.0
      %2065 = vmatpush1.msra.mxu0 0.0
      %2066 = vmatprep.subr.mxu0 0.0
      %2067 = vmatpush1.msra.mxu0 0.0
      %2068 = vmatprep.subr.mxu0 0.0
      %2069 = vmatpush1.msra.mxu0 0.0
      %2070 = vmatprep.subr.mxu0 0.0
      %2071 = vmatpush1.msra.mxu0 0.0
      %2072 = vmatprep.subr.mxu0 0.0
      %2073 = vmatpush1.msra.mxu0 0.0
      %2074 = vmatprep.subr.mxu0 0.0
      %2075 = vmatpush1.msra.mxu0 0.0
      %2076 = vmatprep.subr.mxu0 0.0
      %2077 = vmatpush1.msra.mxu0 0.0
      %2078 = vmatprep.subr.mxu0 0.0
      %2079 = vmatpush1.msra.mxu0 0.0
      %2080 = vmatprep.subr.mxu0 0.0
      %2081 = vmatpush1.msra.mxu0 0.0
      %2082 = vmatprep.subr.mxu0 0.0
      %2083 = vmatpush1.msra.mxu0 0.0
      %2084 = vmatprep.subr.mxu0 0.0
      %2085 = vmatpush1.msra.mxu0 0.0
      %2086 = vmatprep.subr.mxu0 0.0
      %2087 = vmatpush1.msra.mxu0 0.0
      %2088 = vmatprep.subr.mxu0 0.0
      %2089 = vmatpush1.msra.mxu0 0.0
      %2090 = vmatprep.mubr.f32.mxu0 0.0
      %2091 = vmatmul.mubr.f32.gmra.mrb[0].mxu0 %v2024
      %v2092 = vpop.f32.mrb[0].mxu0
      %v2093 = vadd.f32 0.0, %v2092
      %v2094 = vpop.f32.mrb[0].mxu0
      %2095 = vdwg.mxu0
      %v2097 = vsel %vm225, %v2017, 0
      %2099 = vmatprep.subr.mxu0 %v2008
      %2100 = vmatpush1.msra.mxu0 %v2007
      %2101 = vmatprep.subr.mxu0 %v2010
      %2102 = vmatpush1.msra.mxu0 %v2009
      %2103 = vmatprep.subr.mxu0 %v2012
      %2104 = vmatpush1.msra.mxu0 %v2011
      %2105 = vmatprep.subr.mxu0 %v2014
      %2106 = vmatpush1.msra.mxu0 %v2013
      %2107 = vmatprep.subr.mxu0 0.0
      %2108 = vmatpush1.msra.mxu0 0.0
      %2109 = vmatprep.subr.mxu0 0.0
      %2110 = vmatpush1.msra.mxu0 0.0
      %2111 = vmatprep.subr.mxu0 0.0
      %2112 = vmatpush1.msra.mxu0 0.0
      %2113 = vmatprep.subr.mxu0 0.0
      %2114 = vmatpush1.msra.mxu0 0.0
      %2115 = vmatprep.subr.mxu0 0.0
      %2116 = vmatpush1.msra.mxu0 0.0
      %2117 = vmatprep.subr.mxu0 0.0
      %2118 = vmatpush1.msra.mxu0 0.0
      %2119 = vmatprep.subr.mxu0 0.0
      %2120 = vmatpush1.msra.mxu0 0.0
      %2121 = vmatprep.subr.mxu0 0.0
      %2122 = vmatpush1.msra.mxu0 0.0
      %2123 = vmatprep.subr.mxu0 0.0
      %2124 = vmatpush1.msra.mxu0 0.0
      %2125 = vmatprep.subr.mxu0 0.0
      %2126 = vmatpush1.msra.mxu0 0.0
      %2127 = vmatprep.subr.mxu0 0.0
      %2128 = vmatpush1.msra.mxu0 0.0
      %2129 = vmatprep.subr.mxu0 0.0
      %2130 = vmatpush1.msra.mxu0 0.0
      %2131 = vmatprep.subr.mxu0 0.0
      %2132 = vmatpush1.msra.mxu0 0.0
      %2133 = vmatprep.subr.mxu0 0.0
      %2134 = vmatpush1.msra.mxu0 0.0
      %2135 = vmatprep.subr.mxu0 0.0
      %2136 = vmatpush1.msra.mxu0 0.0
      %2137 = vmatprep.subr.mxu0 0.0
      %2138 = vmatpush1.msra.mxu0 0.0
      %2139 = vmatprep.subr.mxu0 0.0
      %2140 = vmatpush1.msra.mxu0 0.0
      %2141 = vmatprep.subr.mxu0 0.0
      %2142 = vmatpush1.msra.mxu0 0.0
      %2143 = vmatprep.subr.mxu0 0.0
      %2144 = vmatpush1.msra.mxu0 0.0
      %2145 = vmatprep.subr.mxu0 0.0
      %2146 = vmatpush1.msra.mxu0 0.0
      %2147 = vmatprep.subr.mxu0 0.0
      %2148 = vmatpush1.msra.mxu0 0.0
      %2149 = vmatprep.subr.mxu0 0.0
      %2150 = vmatpush1.msra.mxu0 0.0
      %2151 = vmatprep.subr.mxu0 0.0
      %2152 = vmatpush1.msra.mxu0 0.0
      %2153 = vmatprep.subr.mxu0 0.0
      %2154 = vmatpush1.msra.mxu0 0.0
      %2155 = vmatprep.subr.mxu0 0.0
      %2156 = vmatpush1.msra.mxu0 0.0
      %2157 = vmatprep.subr.mxu0 0.0
      %2158 = vmatpush1.msra.mxu0 0.0
      %2159 = vmatprep.subr.mxu0 0.0
      %2160 = vmatpush1.msra.mxu0 0.0
      %2161 = vmatprep.subr.mxu0 0.0
      %2162 = vmatpush1.msra.mxu0 0.0
      %2163 = vmatprep.mubr.f32.mxu0 0.0
      %2164 = vmatmul.mubr.f32.gmra.mrb[0].mxu0 %v2097
      %v2165 = vpop.f32.mrb[0].mxu0
      %v2166 = vadd.f32 0.0, %v2165
      %v2167 = vpop.f32.mrb[0].mxu0
      %2168 = vdwg.mxu0
      %v2170 = vsel %vm225, %v2018, 0
      %2172 = vmatprep.subr.mxu0 %v2008
      %2173 = vmatpush1.msra.mxu0 %v2007
      %2174 = vmatprep.subr.mxu0 %v2010
      %2175 = vmatpush1.msra.mxu0 %v2009
      %2176 = vmatprep.subr.mxu0 %v2012
      %2177 = vmatpush1.msra.mxu0 %v2011
      %2178 = vmatprep.subr.mxu0 %v2014
      %2179 = vmatpush1.msra.mxu0 %v2013
      %2180 = vmatprep.subr.mxu0 0.0
      %2181 = vmatpush1.msra.mxu0 0.0
      %2182 = vmatprep.subr.mxu0 0.0
      %2183 = vmatpush1.msra.mxu0 0.0
      %2184 = vmatprep.subr.mxu0 0.0
      %2185 = vmatpush1.msra.mxu0 0.0
      %2186 = vmatprep.subr.mxu0 0.0
      %2187 = vmatpush1.msra.mxu0 0.0
      %2188 = vmatprep.subr.mxu0 0.0
      %2189 = vmatpush1.msra.mxu0 0.0
      %2190 = vmatprep.subr.mxu0 0.0
      %2191 = vmatpush1.msra.mxu0 0.0
      %2192 = vmatprep.subr.mxu0 0.0
      %2193 = vmatpush1.msra.mxu0 0.0
      %2194 = vmatprep.subr.mxu0 0.0
      %2195 = vmatpush1.msra.mxu0 0.0
      %2196 = vmatprep.subr.mxu0 0.0
      %2197 = vmatpush1.msra.mxu0 0.0
      %2198 = vmatprep.subr.mxu0 0.0
      %2199 = vmatpush1.msra.mxu0 0.0
      %2200 = vmatprep.subr.mxu0 0.0
      %2201 = vmatpush1.msra.mxu0 0.0
      %2202 = vmatprep.subr.mxu0 0.0
      %2203 = vmatpush1.msra.mxu0 0.0
      %2204 = vmatprep.subr.mxu0 0.0
      %2205 = vmatpush1.msra.mxu0 0.0
      %2206 = vmatprep.subr.mxu0 0.0
      %2207 = vmatpush1.msra.mxu0 0.0
      %2208 = vmatprep.subr.mxu0 0.0
      %2209 = vmatpush1.msra.mxu0 0.0
      %2210 = vmatprep.subr.mxu0 0.0
      %2211 = vmatpush1.msra.mxu0 0.0
      %2212 = vmatprep.subr.mxu0 0.0
      %2213 = vmatpush1.msra.mxu0 0.0
      %2214 = vmatprep.subr.mxu0 0.0
      %2215 = vmatpush1.msra.mxu0 0.0
      %2216 = vmatprep.subr.mxu0 0.0
      %2217 = vmatpush1.msra.mxu0 0.0
      %2218 = vmatprep.subr.mxu0 0.0
      %2219 = vmatpush1.msra.mxu0 0.0
      %2220 = vmatprep.subr.mxu0 0.0
      %2221 = vmatpush1.msra.mxu0 0.0
      %2222 = vmatprep.subr.mxu0 0.0
      %2223 = vmatpush1.msra.mxu0 0.0
      %2224 = vmatprep.subr.mxu0 0.0
      %2225 = vmatpush1.msra.mxu0 0.0
      %2226 = vmatprep.subr.mxu0 0.0
      %2227 = vmatpush1.msra.mxu0 0.0
      %2228 = vmatprep.subr.mxu0 0.0
      %2229 = vmatpush1.msra.mxu0 0.0
      %2230 = vmatprep.subr.mxu0 0.0
      %2231 = vmatpush1.msra.mxu0 0.0
      %2232 = vmatprep.subr.mxu0 0.0
      %2233 = vmatpush1.msra.mxu0 0.0
      %2234 = vmatprep.subr.mxu0 0.0
      %2235 = vmatpush1.msra.mxu0 0.0
      %2236 = vmatprep.mubr.f32.mxu0 0.0
      %2237 = vmatmul.mubr.f32.gmra.mrb[0].mxu0 %v2170
      %v2238 = vpop.f32.mrb[0].mxu0
      %v2239 = vadd.f32 0.0, %v2238
      %v2240 = vpop.f32.mrb[0].mxu0
      %2241 = vdwg.mxu0
      %v2243 = vsel %vm225, %v2019, 0
      %2245 = vmatprep.subr.mxu0 %v2008
      %2246 = vmatpush1.msra.mxu0 %v2007
      %2247 = vmatprep.subr.mxu0 %v2010
      %2248 = vmatpush1.msra.mxu0 %v2009
      %2249 = vmatprep.subr.mxu0 %v2012
      %2250 = vmatpush1.msra.mxu0 %v2011
      %2251 = vmatprep.subr.mxu0 %v2014
      %2252 = vmatpush1.msra.mxu0 %v2013
      %2253 = vmatprep.subr.mxu0 0.0
      %2254 = vmatpush1.msra.mxu0 0.0
      %2255 = vmatprep.subr.mxu0 0.0
      %2256 = vmatpush1.msra.mxu0 0.0
      %2257 = vmatprep.subr.mxu0 0.0
      %2258 = vmatpush1.msra.mxu0 0.0
      %2259 = vmatprep.subr.mxu0 0.0
      %2260 = vmatpush1.msra.mxu0 0.0
      %2261 = vmatprep.subr.mxu0 0.0
      %2262 = vmatpush1.msra.mxu0 0.0
      %2263 = vmatprep.subr.mxu0 0.0
      %2264 = vmatpush1.msra.mxu0 0.0
      %2265 = vmatprep.subr.mxu0 0.0
      %2266 = vmatpush1.msra.mxu0 0.0
      %2267 = vmatprep.subr.mxu0 0.0
      %2268 = vmatpush1.msra.mxu0 0.0
      %2269 = vmatprep.subr.mxu0 0.0
      %2270 = vmatpush1.msra.mxu0 0.0
      %2271 = vmatprep.subr.mxu0 0.0
      %2272 = vmatpush1.msra.mxu0 0.0
      %2273 = vmatprep.subr.mxu0 0.0
      %2274 = vmatpush1.msra.mxu0 0.0
      %2275 = vmatprep.subr.mxu0 0.0
      %2276 = vmatpush1.msra.mxu0 0.0
      %2277 = vmatprep.subr.mxu0 0.0
      %2278 = vmatpush1.msra.mxu0 0.0
      %2279 = vmatprep.subr.mxu0 0.0
      %2280 = vmatpush1.msra.mxu0 0.0
      %2281 = vmatprep.subr.mxu0 0.0
      %2282 = vmatpush1.msra.mxu0 0.0
      %2283 = vmatprep.subr.mxu0 0.0
      %2284 = vmatpush1.msra.mxu0 0.0
      %2285 = vmatprep.subr.mxu0 0.0
      %2286 = vmatpush1.msra.mxu0 0.0
      %2287 = vmatprep.subr.mxu0 0.0
      %2288 = vmatpush1.msra.mxu0 0.0
      %2289 = vmatprep.subr.mxu0 0.0
      %2290 = vmatpush1.msra.mxu0 0.0
      %2291 = vmatprep.subr.mxu0 0.0
      %2292 = vmatpush1.msra.mxu0 0.0
      %2293 = vmatprep.subr.mxu0 0.0
      %2294 = vmatpush1.msra.mxu0 0.0
      %2295 = vmatprep.subr.mxu0 0.0
      %2296 = vmatpush1.msra.mxu0 0.0
      %2297 = vmatprep.subr.mxu0 0.0
      %2298 = vmatpush1.msra.mxu0 0.0
      %2299 = vmatprep.subr.mxu0 0.0
      %2300 = vmatpush1.msra.mxu0 0.0
      %2301 = vmatprep.subr.mxu0 0.0
      %2302 = vmatpush1.msra.mxu0 0.0
      %2303 = vmatprep.subr.mxu0 0.0
      %2304 = vmatpush1.msra.mxu0 0.0
      %2305 = vmatprep.subr.mxu0 0.0
      %2306 = vmatpush1.msra.mxu0 0.0
      %2307 = vmatprep.subr.mxu0 0.0
      %2308 = vmatpush1.msra.mxu0 0.0
      %2309 = vmatprep.mubr.f32.mxu0 0.0
      %2310 = vmatmul.mubr.f32.gmra.mrb[0].mxu0 %v2243
      %v2311 = vpop.f32.mrb[0].mxu0
      %v2312 = vadd.f32 0.0, %v2311
      %v2313 = vpop.f32.mrb[0].mxu0
      %2314 = vdwg.mxu0
      %v2316 = vsel %vm225, %v2020, 0
      %2318 = vmatprep.subr.mxu0 %v2008
      %2319 = vmatpush1.msra.mxu0 %v2007
      %2320 = vmatprep.subr.mxu0 %v2010
      %2321 = vmatpush1.msra.mxu0 %v2009
      %2322 = vmatprep.subr.mxu0 %v2012
      %2323 = vmatpush1.msra.mxu0 %v2011
      %2324 = vmatprep.subr.mxu0 %v2014
      %2325 = vmatpush1.msra.mxu0 %v2013
      %2326 = vmatprep.subr.mxu0 0.0
      %2327 = vmatpush1.msra.mxu0 0.0
      %2328 = vmatprep.subr.mxu0 0.0
      %2329 = vmatpush1.msra.mxu0 0.0
      %2330 = vmatprep.subr.mxu0 0.0
      %2331 = vmatpush1.msra.mxu0 0.0
      %2332 = vmatprep.subr.mxu0 0.0
      %2333 = vmatpush1.msra.mxu0 0.0
      %2334 = vmatprep.subr.mxu0 0.0
      %2335 = vmatpush1.msra.mxu0 0.0
      %2336 = vmatprep.subr.mxu0 0.0
      %2337 = vmatpush1.msra.mxu0 0.0
      %2338 = vmatprep.subr.mxu0 0.0
      %2339 = vmatpush1.msra.mxu0 0.0
      %2340 = vmatprep.subr.mxu0 0.0
      %2341 = vmatpush1.msra.mxu0 0.0
      %2342 = vmatprep.subr.mxu0 0.0
      %2343 = vmatpush1.msra.mxu0 0.0
      %2344 = vmatprep.subr.mxu0 0.0
      %2345 = vmatpush1.msra.mxu0 0.0
      %2346 = vmatprep.subr.mxu0 0.0
      %2347 = vmatpush1.msra.mxu0 0.0
      %2348 = vmatprep.subr.mxu0 0.0
      %2349 = vmatpush1.msra.mxu0 0.0
      %2350 = vmatprep.subr.mxu0 0.0
      %2351 = vmatpush1.msra.mxu0 0.0
      %2352 = vmatprep.subr.mxu0 0.0
      %2353 = vmatpush1.msra.mxu0 0.0
      %2354 = vmatprep.subr.mxu0 0.0
      %2355 = vmatpush1.msra.mxu0 0.0
      %2356 = vmatprep.subr.mxu0 0.0
      %2357 = vmatpush1.msra.mxu0 0.0
      %2358 = vmatprep.subr.mxu0 0.0
      %2359 = vmatpush1.msra.mxu0 0.0
      %2360 = vmatprep.subr.mxu0 0.0
      %2361 = vmatpush1.msra.mxu0 0.0
      %2362 = vmatprep.subr.mxu0 0.0
      %2363 = vmatpush1.msra.mxu0 0.0
      %2364 = vmatprep.subr.mxu0 0.0
      %2365 = vmatpush1.msra.mxu0 0.0
      %2366 = vmatprep.subr.mxu0 0.0
      %2367 = vmatpush1.msra.mxu0 0.0
      %2368 = vmatprep.subr.mxu0 0.0
      %2369 = vmatpush1.msra.mxu0 0.0
      %2370 = vmatprep.subr.mxu0 0.0
      %2371 = vmatpush1.msra.mxu0 0.0
      %2372 = vmatprep.subr.mxu0 0.0
      %2373 = vmatpush1.msra.mxu0 0.0
      %2374 = vmatprep.subr.mxu0 0.0
      %2375 = vmatpush1.msra.mxu0 0.0
      %2376 = vmatprep.subr.mxu0 0.0
      %2377 = vmatpush1.msra.mxu0 0.0
      %2378 = vmatprep.subr.mxu0 0.0
      %2379 = vmatpush1.msra.mxu0 0.0
      %2380 = vmatprep.subr.mxu0 0.0
      %2381 = vmatpush1.msra.mxu0 0.0
      %2382 = vmatprep.mubr.f32.mxu0 0.0
      %2383 = vmatmul.mubr.f32.gmra.mrb[0].mxu0 %v2316
      %v2384 = vpop.f32.mrb[0].mxu0
      %v2385 = vadd.f32 0.0, %v2384
      %v2386 = vpop.f32.mrb[0].mxu0
      %2387 = vdwg.mxu0
      %v2389 = vsel %vm225, %v2021, 0
      %2391 = vmatprep.subr.mxu0 %v2008
      %2392 = vmatpush1.msra.mxu0 %v2007
      %2393 = vmatprep.subr.mxu0 %v2010
      %2394 = vmatpush1.msra.mxu0 %v2009
      %2395 = vmatprep.subr.mxu0 %v2012
      %2396 = vmatpush1.msra.mxu0 %v2011
      %2397 = vmatprep.subr.mxu0 %v2014
      %2398 = vmatpush1.msra.mxu0 %v2013
      %2399 = vmatprep.subr.mxu0 0.0
      %2400 = vmatpush1.msra.mxu0 0.0
      %2401 = vmatprep.subr.mxu0 0.0
      %2402 = vmatpush1.msra.mxu0 0.0
      %2403 = vmatprep.subr.mxu0 0.0
      %2404 = vmatpush1.msra.mxu0 0.0
      %2405 = vmatprep.subr.mxu0 0.0
      %2406 = vmatpush1.msra.mxu0 0.0
      %2407 = vmatprep.subr.mxu0 0.0
      %2408 = vmatpush1.msra.mxu0 0.0
      %2409 = vmatprep.subr.mxu0 0.0
      %2410 = vmatpush1.msra.mxu0 0.0
      %2411 = vmatprep.subr.mxu0 0.0
      %2412 = vmatpush1.msra.mxu0 0.0
      %2413 = vmatprep.subr.mxu0 0.0
      %2414 = vmatpush1.msra.mxu0 0.0
      %2415 = vmatprep.subr.mxu0 0.0
      %2416 = vmatpush1.msra.mxu0 0.0
      %2417 = vmatprep.subr.mxu0 0.0
      %2418 = vmatpush1.msra.mxu0 0.0
      %2419 = vmatprep.subr.mxu0 0.0
      %2420 = vmatpush1.msra.mxu0 0.0
      %2421 = vmatprep.subr.mxu0 0.0
      %2422 = vmatpush1.msra.mxu0 0.0
      %2423 = vmatprep.subr.mxu0 0.0
      %2424 = vmatpush1.msra.mxu0 0.0
      %2425 = vmatprep.subr.mxu0 0.0
      %2426 = vmatpush1.msra.mxu0 0.0
      %2427 = vmatprep.subr.mxu0 0.0
      %2428 = vmatpush1.msra.mxu0 0.0
      %2429 = vmatprep.subr.mxu0 0.0
      %2430 = vmatpush1.msra.mxu0 0.0
      %2431 = vmatprep.subr.mxu0 0.0
      %2432 = vmatpush1.msra.mxu0 0.0
      %2433 = vmatprep.subr.mxu0 0.0
      %2434 = vmatpush1.msra.mxu0 0.0
      %2435 = vmatprep.subr.mxu0 0.0
      %2436 = vmatpush1.msra.mxu0 0.0
      %2437 = vmatprep.subr.mxu0 0.0
      %2438 = vmatpush1.msra.mxu0 0.0
      %2439 = vmatprep.subr.mxu0 0.0
      %2440 = vmatpush1.msra.mxu0 0.0
      %2441 = vmatprep.subr.mxu0 0.0
      %2442 = vmatpush1.msra.mxu0 0.0
      %2443 = vmatprep.subr.mxu0 0.0
      %2444 = vmatpush1.msra.mxu0 0.0
      %2445 = vmatprep.subr.mxu0 0.0
      %2446 = vmatpush1.msra.mxu0 0.0
      %2447 = vmatprep.subr.mxu0 0.0
      %2448 = vmatpush1.msra.mxu0 0.0
      %2449 = vmatprep.subr.mxu0 0.0
      %2450 = vmatpush1.msra.mxu0 0.0
      %2451 = vmatprep.subr.mxu0 0.0
      %2452 = vmatpush1.msra.mxu0 0.0
      %2453 = vmatprep.subr.mxu0 0.0
      %2454 = vmatpush1.msra.mxu0 0.0
      %2455 = vmatprep.mubr.f32.mxu0 0.0
      %2456 = vmatmul.mubr.f32.gmra.mrb[0].mxu0 %v2389
      %v2457 = vpop.f32.mrb[0].mxu0
      %v2458 = vadd.f32 0.0, %v2457
      %v2459 = vpop.f32.mrb[0].mxu0
      %2460 = vdwg.mxu0
      %v2462 = vsel %vm225, %v2022, 0
      %2464 = vmatprep.subr.mxu0 %v2008
      %2465 = vmatpush1.msra.mxu0 %v2007
      %2466 = vmatprep.subr.mxu0 %v2010
      %2467 = vmatpush1.msra.mxu0 %v2009
      %2468 = vmatprep.subr.mxu0 %v2012
      %2469 = vmatpush1.msra.mxu0 %v2011
      %2470 = vmatprep.subr.mxu0 %v2014
      %2471 = vmatpush1.msra.mxu0 %v2013
      %2472 = vmatprep.subr.mxu0 0.0
      %2473 = vmatpush1.msra.mxu0 0.0
      %2474 = vmatprep.subr.mxu0 0.0
      %2475 = vmatpush1.msra.mxu0 0.0
      %2476 = vmatprep.subr.mxu0 0.0
      %2477 = vmatpush1.msra.mxu0 0.0
      %2478 = vmatprep.subr.mxu0 0.0
      %2479 = vmatpush1.msra.mxu0 0.0
      %2480 = vmatprep.subr.mxu0 0.0
      %2481 = vmatpush1.msra.mxu0 0.0
      %2482 = vmatprep.subr.mxu0 0.0
      %2483 = vmatpush1.msra.mxu0 0.0
      %2484 = vmatprep.subr.mxu0 0.0
      %2485 = vmatpush1.msra.mxu0 0.0
      %2486 = vmatprep.subr.mxu0 0.0
      %2487 = vmatpush1.msra.mxu0 0.0
      %2488 = vmatprep.subr.mxu0 0.0
      %2489 = vmatpush1.msra.mxu0 0.0
      %2490 = vmatprep.subr.mxu0 0.0
      %2491 = vmatpush1.msra.mxu0 0.0
      %2492 = vmatprep.subr.mxu0 0.0
      %2493 = vmatpush1.msra.mxu0 0.0
      %2494 = vmatprep.subr.mxu0 0.0
      %2495 = vmatpush1.msra.mxu0 0.0
      %2496 = vmatprep.subr.mxu0 0.0
      %2497 = vmatpush1.msra.mxu0 0.0
      %2498 = vmatprep.subr.mxu0 0.0
      %2499 = vmatpush1.msra.mxu0 0.0
      %2500 = vmatprep.subr.mxu0 0.0
      %2501 = vmatpush1.msra.mxu0 0.0
      %2502 = vmatprep.subr.mxu0 0.0
      %2503 = vmatpush1.msra.mxu0 0.0
      %2504 = vmatprep.subr.mxu0 0.0
      %2505 = vmatpush1.msra.mxu0 0.0
      %2506 = vmatprep.subr.mxu0 0.0
      %2507 = vmatpush1.msra.mxu0 0.0
      %2508 = vmatprep.subr.mxu0 0.0
      %2509 = vmatpush1.msra.mxu0 0.0
      %2510 = vmatprep.subr.mxu0 0.0
      %2511 = vmatpush1.msra.mxu0 0.0
      %2512 = vmatprep.subr.mxu0 0.0
      %2513 = vmatpush1.msra.mxu0 0.0
      %2514 = vmatprep.subr.mxu0 0.0
      %2515 = vmatpush1.msra.mxu0 0.0
      %2516 = vmatprep.subr.mxu0 0.0
      %2517 = vmatpush1.msra.mxu0 0.0
      %2518 = vmatprep.subr.mxu0 0.0
      %2519 = vmatpush1.msra.mxu0 0.0
      %2520 = vmatprep.subr.mxu0 0.0
      %2521 = vmatpush1.msra.mxu0 0.0
      %2522 = vmatprep.subr.mxu0 0.0
      %2523 = vmatpush1.msra.mxu0 0.0
      %2524 = vmatprep.subr.mxu0 0.0
      %2525 = vmatpush1.msra.mxu0 0.0
      %2526 = vmatprep.subr.mxu0 0.0
      %2527 = vmatpush1.msra.mxu0 0.0
      %2528 = vmatprep.mubr.f32.mxu0 0.0
      %2529 = vmatmul.mubr.f32.gmra.mrb[0].mxu0 %v2462
      %v2530 = vpop.f32.mrb[0].mxu0
      %v2531 = vadd.f32 0.0, %v2530
      %v2532 = vpop.f32.mrb[0].mxu0
      %2533 = vdwg.mxu0
      %s2534 = scalar_lea.vmem [#allocation2], 64
      %v2535 = vld [vmem:[%s2534] sm:$0x7f]
      %v2536 = vld [vmem:[%s2534 + $0x8] sm:$0x7f]
      %v2537 = vld [vmem:[%s2534 + $0x10] sm:$0x7f]
      %v2538 = vld [vmem:[%s2534 + $0x18] sm:$0x7f]
      %v2539 = vld [vmem:[%s2534 + $0x20] sm:$0x7f]
      %v2540 = vld [vmem:[%s2534 + $0x28] sm:$0x7f]
      %v2541 = vld [vmem:[%s2534 + $0x30] sm:$0x7f]
      %v2543 = vsel %vm225, %v2535, 0
      %2545 = vmatprep.subr.mxu0 %v2008
      %2546 = vmatpush1.msra.mxu0 %v2007
      %2547 = vmatprep.subr.mxu0 %v2010
      %2548 = vmatpush1.msra.mxu0 %v2009
      %2549 = vmatprep.subr.mxu0 %v2012
      %2550 = vmatpush1.msra.mxu0 %v2011
      %2551 = vmatprep.subr.mxu0 %v2014
      %2552 = vmatpush1.msra.mxu0 %v2013
      %2553 = vmatprep.subr.mxu0 0.0
      %2554 = vmatpush1.msra.mxu0 0.0
      %2555 = vmatprep.subr.mxu0 0.0
      %2556 = vmatpush1.msra.mxu0 0.0
      %2557 = vmatprep.subr.mxu0 0.0
      %2558 = vmatpush1.msra.mxu0 0.0
      %2559 = vmatprep.subr.mxu0 0.0
      %2560 = vmatpush1.msra.mxu0 0.0
      %2561 = vmatprep.subr.mxu0 0.0
      %2562 = vmatpush1.msra.mxu0 0.0
      %2563 = vmatprep.subr.mxu0 0.0
      %2564 = vmatpush1.msra.mxu0 0.0
      %2565 = vmatprep.subr.mxu0 0.0
      %2566 = vmatpush1.msra.mxu0 0.0
      %2567 = vmatprep.subr.mxu0 0.0
      %2568 = vmatpush1.msra.mxu0 0.0
      %2569 = vmatprep.subr.mxu0 0.0
      %2570 = vmatpush1.msra.mxu0 0.0
      %2571 = vmatprep.subr.mxu0 0.0
      %2572 = vmatpush1.msra.mxu0 0.0
      %2573 = vmatprep.subr.mxu0 0.0
      %2574 = vmatpush1.msra.mxu0 0.0
      %2575 = vmatprep.subr.mxu0 0.0
      %2576 = vmatpush1.msra.mxu0 0.0
      %2577 = vmatprep.subr.mxu0 0.0
      %2578 = vmatpush1.msra.mxu0 0.0
      %2579 = vmatprep.subr.mxu0 0.0
      %2580 = vmatpush1.msra.mxu0 0.0
      %2581 = vmatprep.subr.mxu0 0.0
      %2582 = vmatpush1.msra.mxu0 0.0
      %2583 = vmatprep.subr.mxu0 0.0
      %2584 = vmatpush1.msra.mxu0 0.0
      %2585 = vmatprep.subr.mxu0 0.0
      %2586 = vmatpush1.msra.mxu0 0.0
      %2587 = vmatprep.subr.mxu0 0.0
      %2588 = vmatpush1.msra.mxu0 0.0
      %2589 = vmatprep.subr.mxu0 0.0
      %2590 = vmatpush1.msra.mxu0 0.0
      %2591 = vmatprep.subr.mxu0 0.0
      %2592 = vmatpush1.msra.mxu0 0.0
      %2593 = vmatprep.subr.mxu0 0.0
      %2594 = vmatpush1.msra.mxu0 0.0
      %2595 = vmatprep.subr.mxu0 0.0
      %2596 = vmatpush1.msra.mxu0 0.0
      %2597 = vmatprep.subr.mxu0 0.0
      %2598 = vmatpush1.msra.mxu0 0.0
      %2599 = vmatprep.subr.mxu0 0.0
      %2600 = vmatpush1.msra.mxu0 0.0
      %2601 = vmatprep.subr.mxu0 0.0
      %2602 = vmatpush1.msra.mxu0 0.0
      %2603 = vmatprep.subr.mxu0 0.0
      %2604 = vmatpush1.msra.mxu0 0.0
      %2605 = vmatprep.subr.mxu0 0.0
      %2606 = vmatpush1.msra.mxu0 0.0
      %2607 = vmatprep.subr.mxu0 0.0
      %2608 = vmatpush1.msra.mxu0 0.0
      %2609 = vmatprep.mubr.f32.mxu0 0.0
      %2610 = vmatmul.mubr.f32.gmra.mrb[0].mxu0 %v2543
      %v2611 = vpop.f32.mrb[0].mxu0
      %v2612 = vadd.f32 0.0, %v2611
      %v2613 = vpop.f32.mrb[0].mxu0
      %2614 = vdwg.mxu0
      %v2616 = vsel %vm225, %v2536, 0
      %2618 = vmatprep.subr.mxu0 %v2008
      %2619 = vmatpush1.msra.mxu0 %v2007
      %2620 = vmatprep.subr.mxu0 %v2010
      %2621 = vmatpush1.msra.mxu0 %v2009
      %2622 = vmatprep.subr.mxu0 %v2012
      %2623 = vmatpush1.msra.mxu0 %v2011
      %2624 = vmatprep.subr.mxu0 %v2014
      %2625 = vmatpush1.msra.mxu0 %v2013
      %2626 = vmatprep.subr.mxu0 0.0
      %2627 = vmatpush1.msra.mxu0 0.0
      %2628 = vmatprep.subr.mxu0 0.0
      %2629 = vmatpush1.msra.mxu0 0.0
      %2630 = vmatprep.subr.mxu0 0.0
      %2631 = vmatpush1.msra.mxu0 0.0
      %2632 = vmatprep.subr.mxu0 0.0
      %2633 = vmatpush1.msra.mxu0 0.0
      %2634 = vmatprep.subr.mxu0 0.0
      %2635 = vmatpush1.msra.mxu0 0.0
      %2636 = vmatprep.subr.mxu0 0.0
      %2637 = vmatpush1.msra.mxu0 0.0
      %2638 = vmatprep.subr.mxu0 0.0
      %2639 = vmatpush1.msra.mxu0 0.0
      %2640 = vmatprep.subr.mxu0 0.0
      %2641 = vmatpush1.msra.mxu0 0.0
      %2642 = vmatprep.subr.mxu0 0.0
      %2643 = vmatpush1.msra.mxu0 0.0
      %2644 = vmatprep.subr.mxu0 0.0
      %2645 = vmatpush1.msra.mxu0 0.0
      %2646 = vmatprep.subr.mxu0 0.0
      %2647 = vmatpush1.msra.mxu0 0.0
      %2648 = vmatprep.subr.mxu0 0.0
      %2649 = vmatpush1.msra.mxu0 0.0
      %2650 = vmatprep.subr.mxu0 0.0
      %2651 = vmatpush1.msra.mxu0 0.0
      %2652 = vmatprep.subr.mxu0 0.0
      %2653 = vmatpush1.msra.mxu0 0.0
      %2654 = vmatprep.subr.mxu0 0.0
      %2655 = vmatpush1.msra.mxu0 0.0
      %2656 = vmatprep.subr.mxu0 0.0
      %2657 = vmatpush1.msra.mxu0 0.0
      %2658 = vmatprep.subr.mxu0 0.0
      %2659 = vmatpush1.msra.mxu0 0.0
      %2660 = vmatprep.subr.mxu0 0.0
      %2661 = vmatpush1.msra.mxu0 0.0
      %2662 = vmatprep.subr.mxu0 0.0
      %2663 = vmatpush1.msra.mxu0 0.0
      %2664 = vmatprep.subr.mxu0 0.0
      %2665 = vmatpush1.msra.mxu0 0.0
      %2666 = vmatprep.subr.mxu0 0.0
      %2667 = vmatpush1.msra.mxu0 0.0
      %2668 = vmatprep.subr.mxu0 0.0
      %2669 = vmatpush1.msra.mxu0 0.0
      %2670 = vmatprep.subr.mxu0 0.0
      %2671 = vmatpush1.msra.mxu0 0.0
      %2672 = vmatprep.subr.mxu0 0.0
      %2673 = vmatpush1.msra.mxu0 0.0
      %2674 = vmatprep.subr.mxu0 0.0
      %2675 = vmatpush1.msra.mxu0 0.0
      %2676 = vmatprep.subr.mxu0 0.0
      %2677 = vmatpush1.msra.mxu0 0.0
      %2678 = vmatprep.subr.mxu0 0.0
      %2679 = vmatpush1.msra.mxu0 0.0
      %2680 = vmatprep.subr.mxu0 0.0
      %2681 = vmatpush1.msra.mxu0 0.0
      %2682 = vmatprep.mubr.f32.mxu0 0.0
      %2683 = vmatmul.mubr.f32.gmra.mrb[0].mxu0 %v2616
      %v2684 = vpop.f32.mrb[0].mxu0
      %v2685 = vadd.f32 0.0, %v2684
      %v2686 = vpop.f32.mrb[0].mxu0
      %2687 = vdwg.mxu0
      %v2689 = vsel %vm225, %v2537, 0
      %2691 = vmatprep.subr.mxu0 %v2008
      %2692 = vmatpush1.msra.mxu0 %v2007
      %2693 = vmatprep.subr.mxu0 %v2010
      %2694 = vmatpush1.msra.mxu0 %v2009
      %2695 = vmatprep.subr.mxu0 %v2012
      %2696 = vmatpush1.msra.mxu0 %v2011
      %2697 = vmatprep.subr.mxu0 %v2014
      %2698 = vmatpush1.msra.mxu0 %v2013
      %2699 = vmatprep.subr.mxu0 0.0
      %2700 = vmatpush1.msra.mxu0 0.0
      %2701 = vmatprep.subr.mxu0 0.0
      %2702 = vmatpush1.msra.mxu0 0.0
      %2703 = vmatprep.subr.mxu0 0.0
      %2704 = vmatpush1.msra.mxu0 0.0
      %2705 = vmatprep.subr.mxu0 0.0
      %2706 = vmatpush1.msra.mxu0 0.0
      %2707 = vmatprep.subr.mxu0 0.0
      %2708 = vmatpush1.msra.mxu0 0.0
      %2709 = vmatprep.subr.mxu0 0.0
      %2710 = vmatpush1.msra.mxu0 0.0
      %2711 = vmatprep.subr.mxu0 0.0
      %2712 = vmatpush1.msra.mxu0 0.0
      %2713 = vmatprep.subr.mxu0 0.0
      %2714 = vmatpush1.msra.mxu0 0.0
      %2715 = vmatprep.subr.mxu0 0.0
      %2716 = vmatpush1.msra.mxu0 0.0
      %2717 = vmatprep.subr.mxu0 0.0
      %2718 = vmatpush1.msra.mxu0 0.0
      %2719 = vmatprep.subr.mxu0 0.0
      %2720 = vmatpush1.msra.mxu0 0.0
      %2721 = vmatprep.subr.mxu0 0.0
      %2722 = vmatpush1.msra.mxu0 0.0
      %2723 = vmatprep.subr.mxu0 0.0
      %2724 = vmatpush1.msra.mxu0 0.0
      %2725 = vmatprep.subr.mxu0 0.0
      %2726 = vmatpush1.msra.mxu0 0.0
      %2727 = vmatprep.subr.mxu0 0.0
      %2728 = vmatpush1.msra.mxu0 0.0
      %2729 = vmatprep.subr.mxu0 0.0
      %2730 = vmatpush1.msra.mxu0 0.0
      %2731 = vmatprep.subr.mxu0 0.0
      %2732 = vmatpush1.msra.mxu0 0.0
      %2733 = vmatprep.subr.mxu0 0.0
      %2734 = vmatpush1.msra.mxu0 0.0
      %2735 = vmatprep.subr.mxu0 0.0
      %2736 = vmatpush1.msra.mxu0 0.0
      %2737 = vmatprep.subr.mxu0 0.0
      %2738 = vmatpush1.msra.mxu0 0.0
      %2739 = vmatprep.subr.mxu0 0.0
      %2740 = vmatpush1.msra.mxu0 0.0
      %2741 = vmatprep.subr.mxu0 0.0
      %2742 = vmatpush1.msra.mxu0 0.0
      %2743 = vmatprep.subr.mxu0 0.0
      %2744 = vmatpush1.msra.mxu0 0.0
      %2745 = vmatprep.subr.mxu0 0.0
      %2746 = vmatpush1.msra.mxu0 0.0
      %2747 = vmatprep.subr.mxu0 0.0
      %2748 = vmatpush1.msra.mxu0 0.0
      %2749 = vmatprep.subr.mxu0 0.0
      %2750 = vmatpush1.msra.mxu0 0.0
      %2751 = vmatprep.subr.mxu0 0.0
      %2752 = vmatpush1.msra.mxu0 0.0
      %2753 = vmatprep.subr.mxu0 0.0
      %2754 = vmatpush1.msra.mxu0 0.0
      %2755 = vmatprep.mubr.f32.mxu0 0.0
      %2756 = vmatmul.mubr.f32.gmra.mrb[0].mxu0 %v2689
      %v2757 = vpop.f32.mrb[0].mxu0
      %v2758 = vadd.f32 0.0, %v2757
      %v2759 = vpop.f32.mrb[0].mxu0
      %2760 = vdwg.mxu0
      %v2762 = vsel %vm225, %v2538, 0
      %2764 = vmatprep.subr.mxu0 %v2008
      %2765 = vmatpush1.msra.mxu0 %v2007
      %2766 = vmatprep.subr.mxu0 %v2010
      %2767 = vmatpush1.msra.mxu0 %v2009
      %2768 = vmatprep.subr.mxu0 %v2012
      %2769 = vmatpush1.msra.mxu0 %v2011
      %2770 = vmatprep.subr.mxu0 %v2014
      %2771 = vmatpush1.msra.mxu0 %v2013
      %2772 = vmatprep.subr.mxu0 0.0
      %2773 = vmatpush1.msra.mxu0 0.0
      %2774 = vmatprep.subr.mxu0 0.0
      %2775 = vmatpush1.msra.mxu0 0.0
      %2776 = vmatprep.subr.mxu0 0.0
      %2777 = vmatpush1.msra.mxu0 0.0
      %2778 = vmatprep.subr.mxu0 0.0
      %2779 = vmatpush1.msra.mxu0 0.0
      %2780 = vmatprep.subr.mxu0 0.0
      %2781 = vmatpush1.msra.mxu0 0.0
      %2782 = vmatprep.subr.mxu0 0.0
      %2783 = vmatpush1.msra.mxu0 0.0
      %2784 = vmatprep.subr.mxu0 0.0
      %2785 = vmatpush1.msra.mxu0 0.0
      %2786 = vmatprep.subr.mxu0 0.0
      %2787 = vmatpush1.msra.mxu0 0.0
      %2788 = vmatprep.subr.mxu0 0.0
      %2789 = vmatpush1.msra.mxu0 0.0
      %2790 = vmatprep.subr.mxu0 0.0
      %2791 = vmatpush1.msra.mxu0 0.0
      %2792 = vmatprep.subr.mxu0 0.0
      %2793 = vmatpush1.msra.mxu0 0.0
      %2794 = vmatprep.subr.mxu0 0.0
      %2795 = vmatpush1.msra.mxu0 0.0
      %2796 = vmatprep.subr.mxu0 0.0
      %2797 = vmatpush1.msra.mxu0 0.0
      %2798 = vmatprep.subr.mxu0 0.0
      %2799 = vmatpush1.msra.mxu0 0.0
      %2800 = vmatprep.subr.mxu0 0.0
      %2801 = vmatpush1.msra.mxu0 0.0
      %2802 = vmatprep.subr.mxu0 0.0
      %2803 = vmatpush1.msra.mxu0 0.0
      %2804 = vmatprep.subr.mxu0 0.0
      %2805 = vmatpush1.msra.mxu0 0.0
      %2806 = vmatprep.subr.mxu0 0.0
      %2807 = vmatpush1.msra.mxu0 0.0
      %2808 = vmatprep.subr.mxu0 0.0
      %2809 = vmatpush1.msra.mxu0 0.0
      %2810 = vmatprep.subr.mxu0 0.0
      %2811 = vmatpush1.msra.mxu0 0.0
      %2812 = vmatprep.subr.mxu0 0.0
      %2813 = vmatpush1.msra.mxu0 0.0
      %2814 = vmatprep.subr.mxu0 0.0
      %2815 = vmatpush1.msra.mxu0 0.0
      %2816 = vmatprep.subr.mxu0 0.0
      %2817 = vmatpush1.msra.mxu0 0.0
      %2818 = vmatprep.subr.mxu0 0.0
      %2819 = vmatpush1.msra.mxu0 0.0
      %2820 = vmatprep.subr.mxu0 0.0
      %2821 = vmatpush1.msra.mxu0 0.0
      %2822 = vmatprep.subr.mxu0 0.0
      %2823 = vmatpush1.msra.mxu0 0.0
      %2824 = vmatprep.subr.mxu0 0.0
      %2825 = vmatpush1.msra.mxu0 0.0
      %2826 = vmatprep.subr.mxu0 0.0
      %2827 = vmatpush1.msra.mxu0 0.0
      %2828 = vmatprep.mubr.f32.mxu0 0.0
      %2829 = vmatmul.mubr.f32.gmra.mrb[0].mxu0 %v2762
      %v2830 = vpop.f32.mrb[0].mxu0
      %v2831 = vadd.f32 0.0, %v2830
      %v2832 = vpop.f32.mrb[0].mxu0
      %2833 = vdwg.mxu0
      %v2835 = vsel %vm225, %v2539, 0
      %2837 = vmatprep.subr.mxu0 %v2008
      %2838 = vmatpush1.msra.mxu0 %v2007
      %2839 = vmatprep.subr.mxu0 %v2010
      %2840 = vmatpush1.msra.mxu0 %v2009
      %2841 = vmatprep.subr.mxu0 %v2012
      %2842 = vmatpush1.msra.mxu0 %v2011
      %2843 = vmatprep.subr.mxu0 %v2014
      %2844 = vmatpush1.msra.mxu0 %v2013
      %2845 = vmatprep.subr.mxu0 0.0
      %2846 = vmatpush1.msra.mxu0 0.0
      %2847 = vmatprep.subr.mxu0 0.0
      %2848 = vmatpush1.msra.mxu0 0.0
      %2849 = vmatprep.subr.mxu0 0.0
      %2850 = vmatpush1.msra.mxu0 0.0
      %2851 = vmatprep.subr.mxu0 0.0
      %2852 = vmatpush1.msra.mxu0 0.0
      %2853 = vmatprep.subr.mxu0 0.0
      %2854 = vmatpush1.msra.mxu0 0.0
      %2855 = vmatprep.subr.mxu0 0.0
      %2856 = vmatpush1.msra.mxu0 0.0
      %2857 = vmatprep.subr.mxu0 0.0
      %2858 = vmatpush1.msra.mxu0 0.0
      %2859 = vmatprep.subr.mxu0 0.0
      %2860 = vmatpush1.msra.mxu0 0.0
      %2861 = vmatprep.subr.mxu0 0.0
      %2862 = vmatpush1.msra.mxu0 0.0
      %2863 = vmatprep.subr.mxu0 0.0
      %2864 = vmatpush1.msra.mxu0 0.0
      %2865 = vmatprep.subr.mxu0 0.0
      %2866 = vmatpush1.msra.mxu0 0.0
      %2867 = vmatprep.subr.mxu0 0.0
      %2868 = vmatpush1.msra.mxu0 0.0
      %2869 = vmatprep.subr.mxu0 0.0
      %2870 = vmatpush1.msra.mxu0 0.0
      %2871 = vmatprep.subr.mxu0 0.0
      %2872 = vmatpush1.msra.mxu0 0.0
      %2873 = vmatprep.subr.mxu0 0.0
      %2874 = vmatpush1.msra.mxu0 0.0
      %2875 = vmatprep.subr.mxu0 0.0
      %2876 = vmatpush1.msra.mxu0 0.0
      %2877 = vmatprep.subr.mxu0 0.0
      %2878 = vmatpush1.msra.mxu0 0.0
      %2879 = vmatprep.subr.mxu0 0.0
      %2880 = vmatpush1.msra.mxu0 0.0
      %2881 = vmatprep.subr.mxu0 0.0
      %2882 = vmatpush1.msra.mxu0 0.0
      %2883 = vmatprep.subr.mxu0 0.0
      %2884 = vmatpush1.msra.mxu0 0.0
      %2885 = vmatprep.subr.mxu0 0.0
      %2886 = vmatpush1.msra.mxu0 0.0
      %2887 = vmatprep.subr.mxu0 0.0
      %2888 = vmatpush1.msra.mxu0 0.0
      %2889 = vmatprep.subr.mxu0 0.0
      %2890 = vmatpush1.msra.mxu0 0.0
      %2891 = vmatprep.subr.mxu0 0.0
      %2892 = vmatpush1.msra.mxu0 0.0
      %2893 = vmatprep.subr.mxu0 0.0
      %2894 = vmatpush1.msra.mxu0 0.0
      %2895 = vmatprep.subr.mxu0 0.0
      %2896 = vmatpush1.msra.mxu0 0.0
      %2897 = vmatprep.subr.mxu0 0.0
      %2898 = vmatpush1.msra.mxu0 0.0
      %2899 = vmatprep.subr.mxu0 0.0
      %2900 = vmatpush1.msra.mxu0 0.0
      %2901 = vmatprep.mubr.f32.mxu0 0.0
      %2902 = vmatmul.mubr.f32.gmra.mrb[0].mxu0 %v2835
      %v2903 = vpop.f32.mrb[0].mxu0
      %v2904 = vadd.f32 0.0, %v2903
      %v2905 = vpop.f32.mrb[0].mxu0
      %2906 = vdwg.mxu0
      %v2908 = vsel %vm225, %v2540, 0
      %2910 = vmatprep.subr.mxu0 %v2008
      %2911 = vmatpush1.msra.mxu0 %v2007
      %2912 = vmatprep.subr.mxu0 %v2010
      %2913 = vmatpush1.msra.mxu0 %v2009
      %2914 = vmatprep.subr.mxu0 %v2012
      %2915 = vmatpush1.msra.mxu0 %v2011
      %2916 = vmatprep.subr.mxu0 %v2014
      %2917 = vmatpush1.msra.mxu0 %v2013
      %2918 = vmatprep.subr.mxu0 0.0
      %2919 = vmatpush1.msra.mxu0 0.0
      %2920 = vmatprep.subr.mxu0 0.0
      %2921 = vmatpush1.msra.mxu0 0.0
      %2922 = vmatprep.subr.mxu0 0.0
      %2923 = vmatpush1.msra.mxu0 0.0
      %2924 = vmatprep.subr.mxu0 0.0
      %2925 = vmatpush1.msra.mxu0 0.0
      %2926 = vmatprep.subr.mxu0 0.0
      %2927 = vmatpush1.msra.mxu0 0.0
      %2928 = vmatprep.subr.mxu0 0.0
      %2929 = vmatpush1.msra.mxu0 0.0
      %2930 = vmatprep.subr.mxu0 0.0
      %2931 = vmatpush1.msra.mxu0 0.0
      %2932 = vmatprep.subr.mxu0 0.0
      %2933 = vmatpush1.msra.mxu0 0.0
      %2934 = vmatprep.subr.mxu0 0.0
      %2935 = vmatpush1.msra.mxu0 0.0
      %2936 = vmatprep.subr.mxu0 0.0
      %2937 = vmatpush1.msra.mxu0 0.0
      %2938 = vmatprep.subr.mxu0 0.0
      %2939 = vmatpush1.msra.mxu0 0.0
      %2940 = vmatprep.subr.mxu0 0.0
      %2941 = vmatpush1.msra.mxu0 0.0
      %2942 = vmatprep.subr.mxu0 0.0
      %2943 = vmatpush1.msra.mxu0 0.0
      %2944 = vmatprep.subr.mxu0 0.0
      %2945 = vmatpush1.msra.mxu0 0.0
      %2946 = vmatprep.subr.mxu0 0.0
      %2947 = vmatpush1.msra.mxu0 0.0
      %2948 = vmatprep.subr.mxu0 0.0
      %2949 = vmatpush1.msra.mxu0 0.0
      %2950 = vmatprep.subr.mxu0 0.0
      %2951 = vmatpush1.msra.mxu0 0.0
      %2952 = vmatprep.subr.mxu0 0.0
      %2953 = vmatpush1.msra.mxu0 0.0
      %2954 = vmatprep.subr.mxu0 0.0
      %2955 = vmatpush1.msra.mxu0 0.0
      %2956 = vmatprep.subr.mxu0 0.0
      %2957 = vmatpush1.msra.mxu0 0.0
      %2958 = vmatprep.subr.mxu0 0.0
      %2959 = vmatpush1.msra.mxu0 0.0
      %2960 = vmatprep.subr.mxu0 0.0
      %2961 = vmatpush1.msra.mxu0 0.0
      %2962 = vmatprep.subr.mxu0 0.0
      %2963 = vmatpush1.msra.mxu0 0.0
      %2964 = vmatprep.subr.mxu0 0.0
      %2965 = vmatpush1.msra.mxu0 0.0
      %2966 = vmatprep.subr.mxu0 0.0
      %2967 = vmatpush1.msra.mxu0 0.0
      %2968 = vmatprep.subr.mxu0 0.0
      %2969 = vmatpush1.msra.mxu0 0.0
      %2970 = vmatprep.subr.mxu0 0.0
      %2971 = vmatpush1.msra.mxu0 0.0
      %2972 = vmatprep.subr.mxu0 0.0
      %2973 = vmatpush1.msra.mxu0 0.0
      %2974 = vmatprep.mubr.f32.mxu0 0.0
      %2975 = vmatmul.mubr.f32.gmra.mrb[0].mxu0 %v2908
      %v2976 = vpop.f32.mrb[0].mxu0
      %v2977 = vadd.f32 0.0, %v2976
      %v2978 = vpop.f32.mrb[0].mxu0
      %2979 = vdwg.mxu0
      %v2981 = vsel %vm225, %v2541, 0
      %2983 = vmatprep.subr.mxu0 %v2008
      %2984 = vmatpush1.msra.mxu0 %v2007
      %2985 = vmatprep.subr.mxu0 %v2010
      %2986 = vmatpush1.msra.mxu0 %v2009
      %2987 = vmatprep.subr.mxu0 %v2012
      %2988 = vmatpush1.msra.mxu0 %v2011
      %2989 = vmatprep.subr.mxu0 %v2014
      %2990 = vmatpush1.msra.mxu0 %v2013
      %2991 = vmatprep.subr.mxu0 0.0
      %2992 = vmatpush1.msra.mxu0 0.0
      %2993 = vmatprep.subr.mxu0 0.0
      %2994 = vmatpush1.msra.mxu0 0.0
      %2995 = vmatprep.subr.mxu0 0.0
      %2996 = vmatpush1.msra.mxu0 0.0
      %2997 = vmatprep.subr.mxu0 0.0
      %2998 = vmatpush1.msra.mxu0 0.0
      %2999 = vmatprep.subr.mxu0 0.0
      %3000 = vmatpush1.msra.mxu0 0.0
      %3001 = vmatprep.subr.mxu0 0.0
      %3002 = vmatpush1.msra.mxu0 0.0
      %3003 = vmatprep.subr.mxu0 0.0
      %3004 = vmatpush1.msra.mxu0 0.0
      %3005 = vmatprep.subr.mxu0 0.0
      %3006 = vmatpush1.msra.mxu0 0.0
      %3007 = vmatprep.subr.mxu0 0.0
      %3008 = vmatpush1.msra.mxu0 0.0
      %3009 = vmatprep.subr.mxu0 0.0
      %3010 = vmatpush1.msra.mxu0 0.0
      %3011 = vmatprep.subr.mxu0 0.0
      %3012 = vmatpush1.msra.mxu0 0.0
      %3013 = vmatprep.subr.mxu0 0.0
      %3014 = vmatpush1.msra.mxu0 0.0
      %3015 = vmatprep.subr.mxu0 0.0
      %3016 = vmatpush1.msra.mxu0 0.0
      %3017 = vmatprep.subr.mxu0 0.0
      %3018 = vmatpush1.msra.mxu0 0.0
      %3019 = vmatprep.subr.mxu0 0.0
      %3020 = vmatpush1.msra.mxu0 0.0
      %3021 = vmatprep.subr.mxu0 0.0
      %3022 = vmatpush1.msra.mxu0 0.0
      %3023 = vmatprep.subr.mxu0 0.0
      %3024 = vmatpush1.msra.mxu0 0.0
      %3025 = vmatprep.subr.mxu0 0.0
      %3026 = vmatpush1.msra.mxu0 0.0
      %3027 = vmatprep.subr.mxu0 0.0
      %3028 = vmatpush1.msra.mxu0 0.0
      %3029 = vmatprep.subr.mxu0 0.0
      %3030 = vmatpush1.msra.mxu0 0.0
      %3031 = vmatprep.subr.mxu0 0.0
      %3032 = vmatpush1.msra.mxu0 0.0
      %3033 = vmatprep.subr.mxu0 0.0
      %3034 = vmatpush1.msra.mxu0 0.0
      %3035 = vmatprep.subr.mxu0 0.0
      %3036 = vmatpush1.msra.mxu0 0.0
      %3037 = vmatprep.subr.mxu0 0.0
      %3038 = vmatpush1.msra.mxu0 0.0
      %3039 = vmatprep.subr.mxu0 0.0
      %3040 = vmatpush1.msra.mxu0 0.0
      %3041 = vmatprep.subr.mxu0 0.0
      %3042 = vmatpush1.msra.mxu0 0.0
      %3043 = vmatprep.subr.mxu0 0.0
      %3044 = vmatpush1.msra.mxu0 0.0
      %3045 = vmatprep.subr.mxu0 0.0
      %3046 = vmatpush1.msra.mxu0 0.0
      %3047 = vmatprep.mubr.f32.mxu0 0.0
      %3048 = vmatmul.mubr.f32.gmra.mrb[0].mxu0 %v2981
      %v3049 = vpop.f32.mrb[0].mxu0
      %v3050 = vadd.f32 0.0, %v3049
      %v3051 = vpop.f32.mrb[0].mxu0
      %3052 = vdwg.mxu0
      %v3053 = vld [vmem:[#allocation2 + $0x1] sm:$0x7f]
      %v3054 = vld [vmem:[#allocation2 + $0x9] sm:$0x7f]
      %v3055 = vld [vmem:[#allocation2 + $0x11] sm:$0x7f]
      %v3056 = vld [vmem:[#allocation2 + $0x19] sm:$0x7f]
      %v3057 = vld [vmem:[#allocation2 + $0x21] sm:$0x7f]
      %v3058 = vld [vmem:[#allocation2 + $0x29] sm:$0x7f]
      %v3059 = vld [vmem:[#allocation2 + $0x31] sm:$0x7f]
      %v3061 = vsel %vm225, %v3053, 0
      %3063 = vmatprep.subr.mxu0 %v2008
      %3064 = vmatpush1.msra.mxu0 %v2007
      %3065 = vmatprep.subr.mxu0 %v2010
      %3066 = vmatpush1.msra.mxu0 %v2009
      %3067 = vmatprep.subr.mxu0 %v2012
      %3068 = vmatpush1.msra.mxu0 %v2011
      %3069 = vmatprep.subr.mxu0 %v2014
      %3070 = vmatpush1.msra.mxu0 %v2013
      %3071 = vmatprep.subr.mxu0 0.0
      %3072 = vmatpush1.msra.mxu0 0.0
      %3073 = vmatprep.subr.mxu0 0.0
      %3074 = vmatpush1.msra.mxu0 0.0
      %3075 = vmatprep.subr.mxu0 0.0
      %3076 = vmatpush1.msra.mxu0 0.0
      %3077 = vmatprep.subr.mxu0 0.0
      %3078 = vmatpush1.msra.mxu0 0.0
      %3079 = vmatprep.subr.mxu0 0.0
      %3080 = vmatpush1.msra.mxu0 0.0
      %3081 = vmatprep.subr.mxu0 0.0
      %3082 = vmatpush1.msra.mxu0 0.0
      %3083 = vmatprep.subr.mxu0 0.0
      %3084 = vmatpush1.msra.mxu0 0.0
      %3085 = vmatprep.subr.mxu0 0.0
      %3086 = vmatpush1.msra.mxu0 0.0
      %3087 = vmatprep.subr.mxu0 0.0
      %3088 = vmatpush1.msra.mxu0 0.0
      %3089 = vmatprep.subr.mxu0 0.0
      %3090 = vmatpush1.msra.mxu0 0.0
      %3091 = vmatprep.subr.mxu0 0.0
      %3092 = vmatpush1.msra.mxu0 0.0
      %3093 = vmatprep.subr.mxu0 0.0
      %3094 = vmatpush1.msra.mxu0 0.0
      %3095 = vmatprep.subr.mxu0 0.0
      %3096 = vmatpush1.msra.mxu0 0.0
      %3097 = vmatprep.subr.mxu0 0.0
      %3098 = vmatpush1.msra.mxu0 0.0
      %3099 = vmatprep.subr.mxu0 0.0
      %3100 = vmatpush1.msra.mxu0 0.0
      %3101 = vmatprep.subr.mxu0 0.0
      %3102 = vmatpush1.msra.mxu0 0.0
      %3103 = vmatprep.subr.mxu0 0.0
      %3104 = vmatpush1.msra.mxu0 0.0
      %3105 = vmatprep.subr.mxu0 0.0
      %3106 = vmatpush1.msra.mxu0 0.0
      %3107 = vmatprep.subr.mxu0 0.0
      %3108 = vmatpush1.msra.mxu0 0.0
      %3109 = vmatprep.subr.mxu0 0.0
      %3110 = vmatpush1.msra.mxu0 0.0
      %3111 = vmatprep.subr.mxu0 0.0
      %3112 = vmatpush1.msra.mxu0 0.0
      %3113 = vmatprep.subr.mxu0 0.0
      %3114 = vmatpush1.msra.mxu0 0.0
      %3115 = vmatprep.subr.mxu0 0.0
      %3116 = vmatpush1.msra.mxu0 0.0
      %3117 = vmatprep.subr.mxu0 0.0
      %3118 = vmatpush1.msra.mxu0 0.0
      %3119 = vmatprep.subr.mxu0 0.0
      %3120 = vmatpush1.msra.mxu0 0.0
      %3121 = vmatprep.subr.mxu0 0.0
      %3122 = vmatpush1.msra.mxu0 0.0
      %3123 = vmatprep.subr.mxu0 0.0
      %3124 = vmatpush1.msra.mxu0 0.0
      %3125 = vmatprep.subr.mxu0 0.0
      %3126 = vmatpush1.msra.mxu0 0.0
      %3127 = vmatprep.mubr.f32.mxu0 0.0
      %3128 = vmatmul.mubr.f32.gmra.mrb[0].mxu0 %v3061
      %v3129 = vpop.f32.mrb[0].mxu0
      %v3130 = vadd.f32 0.0, %v3129
      %v3131 = vpop.f32.mrb[0].mxu0
      %3132 = vdwg.mxu0
      %v3134 = vsel %vm225, %v3054, 0
      %3136 = vmatprep.subr.mxu0 %v2008
      %3137 = vmatpush1.msra.mxu0 %v2007
      %3138 = vmatprep.subr.mxu0 %v2010
      %3139 = vmatpush1.msra.mxu0 %v2009
      %3140 = vmatprep.subr.mxu0 %v2012
      %3141 = vmatpush1.msra.mxu0 %v2011
      %3142 = vmatprep.subr.mxu0 %v2014
      %3143 = vmatpush1.msra.mxu0 %v2013
      %3144 = vmatprep.subr.mxu0 0.0
      %3145 = vmatpush1.msra.mxu0 0.0
      %3146 = vmatprep.subr.mxu0 0.0
      %3147 = vmatpush1.msra.mxu0 0.0
      %3148 = vmatprep.subr.mxu0 0.0
      %3149 = vmatpush1.msra.mxu0 0.0
      %3150 = vmatprep.subr.mxu0 0.0
      %3151 = vmatpush1.msra.mxu0 0.0
      %3152 = vmatprep.subr.mxu0 0.0
      %3153 = vmatpush1.msra.mxu0 0.0
      %3154 = vmatprep.subr.mxu0 0.0
      %3155 = vmatpush1.msra.mxu0 0.0
      %3156 = vmatprep.subr.mxu0 0.0
      %3157 = vmatpush1.msra.mxu0 0.0
      %3158 = vmatprep.subr.mxu0 0.0
      %3159 = vmatpush1.msra.mxu0 0.0
      %3160 = vmatprep.subr.mxu0 0.0
      %3161 = vmatpush1.msra.mxu0 0.0
      %3162 = vmatprep.subr.mxu0 0.0
      %3163 = vmatpush1.msra.mxu0 0.0
      %3164 = vmatprep.subr.mxu0 0.0
      %3165 = vmatpush1.msra.mxu0 0.0
      %3166 = vmatprep.subr.mxu0 0.0
      %3167 = vmatpush1.msra.mxu0 0.0
      %3168 = vmatprep.subr.mxu0 0.0
      %3169 = vmatpush1.msra.mxu0 0.0
      %3170 = vmatprep.subr.mxu0 0.0
      %3171 = vmatpush1.msra.mxu0 0.0
      %3172 = vmatprep.subr.mxu0 0.0
      %3173 = vmatpush1.msra.mxu0 0.0
      %3174 = vmatprep.subr.mxu0 0.0
      %3175 = vmatpush1.msra.mxu0 0.0
      %3176 = vmatprep.subr.mxu0 0.0
      %3177 = vmatpush1.msra.mxu0 0.0
      %3178 = vmatprep.subr.mxu0 0.0
      %3179 = vmatpush1.msra.mxu0 0.0
      %3180 = vmatprep.subr.mxu0 0.0
      %3181 = vmatpush1.msra.mxu0 0.0
      %3182 = vmatprep.subr.mxu0 0.0
      %3183 = vmatpush1.msra.mxu0 0.0
      %3184 = vmatprep.subr.mxu0 0.0
      %3185 = vmatpush1.msra.mxu0 0.0
      %3186 = vmatprep.subr.mxu0 0.0
      %3187 = vmatpush1.msra.mxu0 0.0
      %3188 = vmatprep.subr.mxu0 0.0
      %3189 = vmatpush1.msra.mxu0 0.0
      %3190 = vmatprep.subr.mxu0 0.0
      %3191 = vmatpush1.msra.mxu0 0.0
      %3192 = vmatprep.subr.mxu0 0.0
      %3193 = vmatpush1.msra.mxu0 0.0
      %3194 = vmatprep.subr.mxu0 0.0
      %3195 = vmatpush1.msra.mxu0 0.0
      %3196 = vmatprep.subr.mxu0 0.0
      %3197 = vmatpush1.msra.mxu0 0.0
      %3198 = vmatprep.subr.mxu0 0.0
      %3199 = vmatpush1.msra.mxu0 0.0
      %3200 = vmatprep.mubr.f32.mxu0 0.0
      %3201 = vmatmul.mubr.f32.gmra.mrb[0].mxu0 %v3134
      %v3202 = vpop.f32.mrb[0].mxu0
      %v3203 = vadd.f32 0.0, %v3202
      %v3204 = vpop.f32.mrb[0].mxu0
      %3205 = vdwg.mxu0
      %v3207 = vsel %vm225, %v3055, 0
      %3209 = vmatprep.subr.mxu0 %v2008
      %3210 = vmatpush1.msra.mxu0 %v2007
      %3211 = vmatprep.subr.mxu0 %v2010
      %3212 = vmatpush1.msra.mxu0 %v2009
      %3213 = vmatprep.subr.mxu0 %v2012
      %3214 = vmatpush1.msra.mxu0 %v2011
      %3215 = vmatprep.subr.mxu0 %v2014
      %3216 = vmatpush1.msra.mxu0 %v2013
      %3217 = vmatprep.subr.mxu0 0.0
      %3218 = vmatpush1.msra.mxu0 0.0
      %3219 = vmatprep.subr.mxu0 0.0
      %3220 = vmatpush1.msra.mxu0 0.0
      %3221 = vmatprep.subr.mxu0 0.0
      %3222 = vmatpush1.msra.mxu0 0.0
      %3223 = vmatprep.subr.mxu0 0.0
      %3224 = vmatpush1.msra.mxu0 0.0
      %3225 = vmatprep.subr.mxu0 0.0
      %3226 = vmatpush1.msra.mxu0 0.0
      %3227 = vmatprep.subr.mxu0 0.0
      %3228 = vmatpush1.msra.mxu0 0.0
      %3229 = vmatprep.subr.mxu0 0.0
      %3230 = vmatpush1.msra.mxu0 0.0
      %3231 = vmatprep.subr.mxu0 0.0
      %3232 = vmatpush1.msra.mxu0 0.0
      %3233 = vmatprep.subr.mxu0 0.0
      %3234 = vmatpush1.msra.mxu0 0.0
      %3235 = vmatprep.subr.mxu0 0.0
      %3236 = vmatpush1.msra.mxu0 0.0
      %3237 = vmatprep.subr.mxu0 0.0
      %3238 = vmatpush1.msra.mxu0 0.0
      %3239 = vmatprep.subr.mxu0 0.0
      %3240 = vmatpush1.msra.mxu0 0.0
      %3241 = vmatprep.subr.mxu0 0.0
      %3242 = vmatpush1.msra.mxu0 0.0
      %3243 = vmatprep.subr.mxu0 0.0
      %3244 = vmatpush1.msra.mxu0 0.0
      %3245 = vmatprep.subr.mxu0 0.0
      %3246 = vmatpush1.msra.mxu0 0.0
      %3247 = vmatprep.subr.mxu0 0.0
      %3248 = vmatpush1.msra.mxu0 0.0
      %3249 = vmatprep.subr.mxu0 0.0
      %3250 = vmatpush1.msra.mxu0 0.0
      %3251 = vmatprep.subr.mxu0 0.0
      %3252 = vmatpush1.msra.mxu0 0.0
      %3253 = vmatprep.subr.mxu0 0.0
      %3254 = vmatpush1.msra.mxu0 0.0
      %3255 = vmatprep.subr.mxu0 0.0
      %3256 = vmatpush1.msra.mxu0 0.0
      %3257 = vmatprep.subr.mxu0 0.0
      %3258 = vmatpush1.msra.mxu0 0.0
      %3259 = vmatprep.subr.mxu0 0.0
      %3260 = vmatpush1.msra.mxu0 0.0
      %3261 = vmatprep.subr.mxu0 0.0
      %3262 = vmatpush1.msra.mxu0 0.0
      %3263 = vmatprep.subr.mxu0 0.0
      %3264 = vmatpush1.msra.mxu0 0.0
      %3265 = vmatprep.subr.mxu0 0.0
      %3266 = vmatpush1.msra.mxu0 0.0
      %3267 = vmatprep.subr.mxu0 0.0
      %3268 = vmatpush1.msra.mxu0 0.0
      %3269 = vmatprep.subr.mxu0 0.0
      %3270 = vmatpush1.msra.mxu0 0.0
      %3271 = vmatprep.subr.mxu0 0.0
      %3272 = vmatpush1.msra.mxu0 0.0
      %3273 = vmatprep.mubr.f32.mxu0 0.0
      %3274 = vmatmul.mubr.f32.gmra.mrb[0].mxu0 %v3207
      %v3275 = vpop.f32.mrb[0].mxu0
      %v3276 = vadd.f32 0.0, %v3275
      %v3277 = vpop.f32.mrb[0].mxu0
      %3278 = vdwg.mxu0
      %v3280 = vsel %vm225, %v3056, 0
      %3282 = vmatprep.subr.mxu0 %v2008
      %3283 = vmatpush1.msra.mxu0 %v2007
      %3284 = vmatprep.subr.mxu0 %v2010
      %3285 = vmatpush1.msra.mxu0 %v2009
      %3286 = vmatprep.subr.mxu0 %v2012
      %3287 = vmatpush1.msra.mxu0 %v2011
      %3288 = vmatprep.subr.mxu0 %v2014
      %3289 = vmatpush1.msra.mxu0 %v2013
      %3290 = vmatprep.subr.mxu0 0.0
      %3291 = vmatpush1.msra.mxu0 0.0
      %3292 = vmatprep.subr.mxu0 0.0
      %3293 = vmatpush1.msra.mxu0 0.0
      %3294 = vmatprep.subr.mxu0 0.0
      %3295 = vmatpush1.msra.mxu0 0.0
      %3296 = vmatprep.subr.mxu0 0.0
      %3297 = vmatpush1.msra.mxu0 0.0
      %3298 = vmatprep.subr.mxu0 0.0
      %3299 = vmatpush1.msra.mxu0 0.0
      %3300 = vmatprep.subr.mxu0 0.0
      %3301 = vmatpush1.msra.mxu0 0.0
      %3302 = vmatprep.subr.mxu0 0.0
      %3303 = vmatpush1.msra.mxu0 0.0
      %3304 = vmatprep.subr.mxu0 0.0
      %3305 = vmatpush1.msra.mxu0 0.0
      %3306 = vmatprep.subr.mxu0 0.0
      %3307 = vmatpush1.msra.mxu0 0.0
      %3308 = vmatprep.subr.mxu0 0.0
      %3309 = vmatpush1.msra.mxu0 0.0
      %3310 = vmatprep.subr.mxu0 0.0
      %3311 = vmatpush1.msra.mxu0 0.0
      %3312 = vmatprep.subr.mxu0 0.0
      %3313 = vmatpush1.msra.mxu0 0.0
      %3314 = vmatprep.subr.mxu0 0.0
      %3315 = vmatpush1.msra.mxu0 0.0
      %3316 = vmatprep.subr.mxu0 0.0
      %3317 = vmatpush1.msra.mxu0 0.0
      %3318 = vmatprep.subr.mxu0 0.0
      %3319 = vmatpush1.msra.mxu0 0.0
      %3320 = vmatprep.subr.mxu0 0.0
      %3321 = vmatpush1.msra.mxu0 0.0
      %3322 = vmatprep.subr.mxu0 0.0
      %3323 = vmatpush1.msra.mxu0 0.0
      %3324 = vmatprep.subr.mxu0 0.0
      %3325 = vmatpush1.msra.mxu0 0.0
      %3326 = vmatprep.subr.mxu0 0.0
      %3327 = vmatpush1.msra.mxu0 0.0
      %3328 = vmatprep.subr.mxu0 0.0
      %3329 = vmatpush1.msra.mxu0 0.0
      %3330 = vmatprep.subr.mxu0 0.0
      %3331 = vmatpush1.msra.mxu0 0.0
      %3332 = vmatprep.subr.mxu0 0.0
      %3333 = vmatpush1.msra.mxu0 0.0
      %3334 = vmatprep.subr.mxu0 0.0
      %3335 = vmatpush1.msra.mxu0 0.0
      %3336 = vmatprep.subr.mxu0 0.0
      %3337 = vmatpush1.msra.mxu0 0.0
      %3338 = vmatprep.subr.mxu0 0.0
      %3339 = vmatpush1.msra.mxu0 0.0
      %3340 = vmatprep.subr.mxu0 0.0
      %3341 = vmatpush1.msra.mxu0 0.0
      %3342 = vmatprep.subr.mxu0 0.0
      %3343 = vmatpush1.msra.mxu0 0.0
      %3344 = vmatprep.subr.mxu0 0.0
      %3345 = vmatpush1.msra.mxu0 0.0
      %3346 = vmatprep.mubr.f32.mxu0 0.0
      %3347 = vmatmul.mubr.f32.gmra.mrb[0].mxu0 %v3280
      %v3348 = vpop.f32.mrb[0].mxu0
      %v3349 = vadd.f32 0.0, %v3348
      %v3350 = vpop.f32.mrb[0].mxu0
      %3351 = vdwg.mxu0
      %v3353 = vsel %vm225, %v3057, 0
      %3355 = vmatprep.subr.mxu0 %v2008
      %3356 = vmatpush1.msra.mxu0 %v2007
      %3357 = vmatprep.subr.mxu0 %v2010
      %3358 = vmatpush1.msra.mxu0 %v2009
      %3359 = vmatprep.subr.mxu0 %v2012
      %3360 = vmatpush1.msra.mxu0 %v2011
      %3361 = vmatprep.subr.mxu0 %v2014
      %3362 = vmatpush1.msra.mxu0 %v2013
      %3363 = vmatprep.subr.mxu0 0.0
      %3364 = vmatpush1.msra.mxu0 0.0
      %3365 = vmatprep.subr.mxu0 0.0
      %3366 = vmatpush1.msra.mxu0 0.0
      %3367 = vmatprep.subr.mxu0 0.0
      %3368 = vmatpush1.msra.mxu0 0.0
      %3369 = vmatprep.subr.mxu0 0.0
      %3370 = vmatpush1.msra.mxu0 0.0
      %3371 = vmatprep.subr.mxu0 0.0
      %3372 = vmatpush1.msra.mxu0 0.0
      %3373 = vmatprep.subr.mxu0 0.0
      %3374 = vmatpush1.msra.mxu0 0.0
      %3375 = vmatprep.subr.mxu0 0.0
      %3376 = vmatpush1.msra.mxu0 0.0
      %3377 = vmatprep.subr.mxu0 0.0
      %3378 = vmatpush1.msra.mxu0 0.0
      %3379 = vmatprep.subr.mxu0 0.0
      %3380 = vmatpush1.msra.mxu0 0.0
      %3381 = vmatprep.subr.mxu0 0.0
      %3382 = vmatpush1.msra.mxu0 0.0
      %3383 = vmatprep.subr.mxu0 0.0
      %3384 = vmatpush1.msra.mxu0 0.0
      %3385 = vmatprep.subr.mxu0 0.0
      %3386 = vmatpush1.msra.mxu0 0.0
      %3387 = vmatprep.subr.mxu0 0.0
      %3388 = vmatpush1.msra.mxu0 0.0
      %3389 = vmatprep.subr.mxu0 0.0
      %3390 = vmatpush1.msra.mxu0 0.0
      %3391 = vmatprep.subr.mxu0 0.0
      %3392 = vmatpush1.msra.mxu0 0.0
      %3393 = vmatprep.subr.mxu0 0.0
      %3394 = vmatpush1.msra.mxu0 0.0
      %3395 = vmatprep.subr.mxu0 0.0
      %3396 = vmatpush1.msra.mxu0 0.0
      %3397 = vmatprep.subr.mxu0 0.0
      %3398 = vmatpush1.msra.mxu0 0.0
      %3399 = vmatprep.subr.mxu0 0.0
      %3400 = vmatpush1.msra.mxu0 0.0
      %3401 = vmatprep.subr.mxu0 0.0
      %3402 = vmatpush1.msra.mxu0 0.0
      %3403 = vmatprep.subr.mxu0 0.0
      %3404 = vmatpush1.msra.mxu0 0.0
      %3405 = vmatprep.subr.mxu0 0.0
      %3406 = vmatpush1.msra.mxu0 0.0
      %3407 = vmatprep.subr.mxu0 0.0
      %3408 = vmatpush1.msra.mxu0 0.0
      %3409 = vmatprep.subr.mxu0 0.0
      %3410 = vmatpush1.msra.mxu0 0.0
      %3411 = vmatprep.subr.mxu0 0.0
      %3412 = vmatpush1.msra.mxu0 0.0
      %3413 = vmatprep.subr.mxu0 0.0
      %3414 = vmatpush1.msra.mxu0 0.0
      %3415 = vmatprep.subr.mxu0 0.0
      %3416 = vmatpush1.msra.mxu0 0.0
      %3417 = vmatprep.subr.mxu0 0.0
      %3418 = vmatpush1.msra.mxu0 0.0
      %3419 = vmatprep.mubr.f32.mxu0 0.0
      %3420 = vmatmul.mubr.f32.gmra.mrb[0].mxu0 %v3353
      %v3421 = vpop.f32.mrb[0].mxu0
      %v3422 = vadd.f32 0.0, %v3421
      %v3423 = vpop.f32.mrb[0].mxu0
      %3424 = vdwg.mxu0
      %v3426 = vsel %vm225, %v3058, 0
      %3428 = vmatprep.subr.mxu0 %v2008
      %3429 = vmatpush1.msra.mxu0 %v2007
      %3430 = vmatprep.subr.mxu0 %v2010
      %3431 = vmatpush1.msra.mxu0 %v2009
      %3432 = vmatprep.subr.mxu0 %v2012
      %3433 = vmatpush1.msra.mxu0 %v2011
      %3434 = vmatprep.subr.mxu0 %v2014
      %3435 = vmatpush1.msra.mxu0 %v2013
      %3436 = vmatprep.subr.mxu0 0.0
      %3437 = vmatpush1.msra.mxu0 0.0
      %3438 = vmatprep.subr.mxu0 0.0
      %3439 = vmatpush1.msra.mxu0 0.0
      %3440 = vmatprep.subr.mxu0 0.0
      %3441 = vmatpush1.msra.mxu0 0.0
      %3442 = vmatprep.subr.mxu0 0.0
      %3443 = vmatpush1.msra.mxu0 0.0
      %3444 = vmatprep.subr.mxu0 0.0
      %3445 = vmatpush1.msra.mxu0 0.0
      %3446 = vmatprep.subr.mxu0 0.0
      %3447 = vmatpush1.msra.mxu0 0.0
      %3448 = vmatprep.subr.mxu0 0.0
      %3449 = vmatpush1.msra.mxu0 0.0
      %3450 = vmatprep.subr.mxu0 0.0
      %3451 = vmatpush1.msra.mxu0 0.0
      %3452 = vmatprep.subr.mxu0 0.0
      %3453 = vmatpush1.msra.mxu0 0.0
      %3454 = vmatprep.subr.mxu0 0.0
      %3455 = vmatpush1.msra.mxu0 0.0
      %3456 = vmatprep.subr.mxu0 0.0
      %3457 = vmatpush1.msra.mxu0 0.0
      %3458 = vmatprep.subr.mxu0 0.0
      %3459 = vmatpush1.msra.mxu0 0.0
      %3460 = vmatprep.subr.mxu0 0.0
      %3461 = vmatpush1.msra.mxu0 0.0
      %3462 = vmatprep.subr.mxu0 0.0
      %3463 = vmatpush1.msra.mxu0 0.0
      %3464 = vmatprep.subr.mxu0 0.0
      %3465 = vmatpush1.msra.mxu0 0.0
      %3466 = vmatprep.subr.mxu0 0.0
      %3467 = vmatpush1.msra.mxu0 0.0
      %3468 = vmatprep.subr.mxu0 0.0
      %3469 = vmatpush1.msra.mxu0 0.0
      %3470 = vmatprep.subr.mxu0 0.0
      %3471 = vmatpush1.msra.mxu0 0.0
      %3472 = vmatprep.subr.mxu0 0.0
      %3473 = vmatpush1.msra.mxu0 0.0
      %3474 = vmatprep.subr.mxu0 0.0
      %3475 = vmatpush1.msra.mxu0 0.0
      %3476 = vmatprep.subr.mxu0 0.0
      %3477 = vmatpush1.msra.mxu0 0.0
      %3478 = vmatprep.subr.mxu0 0.0
      %3479 = vmatpush1.msra.mxu0 0.0
      %3480 = vmatprep.subr.mxu0 0.0
      %3481 = vmatpush1.msra.mxu0 0.0
      %3482 = vmatprep.subr.mxu0 0.0
      %3483 = vmatpush1.msra.mxu0 0.0
      %3484 = vmatprep.subr.mxu0 0.0
      %3485 = vmatpush1.msra.mxu0 0.0
      %3486 = vmatprep.subr.mxu0 0.0
      %3487 = vmatpush1.msra.mxu0 0.0
      %3488 = vmatprep.subr.mxu0 0.0
      %3489 = vmatpush1.msra.mxu0 0.0
      %3490 = vmatprep.subr.mxu0 0.0
      %3491 = vmatpush1.msra.mxu0 0.0
      %3492 = vmatprep.mubr.f32.mxu0 0.0
      %3493 = vmatmul.mubr.f32.gmra.mrb[0].mxu0 %v3426
      %v3494 = vpop.f32.mrb[0].mxu0
      %v3495 = vadd.f32 0.0, %v3494
      %v3496 = vpop.f32.mrb[0].mxu0
      %3497 = vdwg.mxu0
      %v3499 = vsel %vm225, %v3059, 0
      %3501 = vmatprep.subr.mxu0 %v2008
      %3502 = vmatpush1.msra.mxu0 %v2007
      %3503 = vmatprep.subr.mxu0 %v2010
      %3504 = vmatpush1.msra.mxu0 %v2009
      %3505 = vmatprep.subr.mxu0 %v2012
      %3506 = vmatpush1.msra.mxu0 %v2011
      %3507 = vmatprep.subr.mxu0 %v2014
      %3508 = vmatpush1.msra.mxu0 %v2013
      %3509 = vmatprep.subr.mxu0 0.0
      %3510 = vmatpush1.msra.mxu0 0.0
      %3511 = vmatprep.subr.mxu0 0.0
      %3512 = vmatpush1.msra.mxu0 0.0
      %3513 = vmatprep.subr.mxu0 0.0
      %3514 = vmatpush1.msra.mxu0 0.0
      %3515 = vmatprep.subr.mxu0 0.0
      %3516 = vmatpush1.msra.mxu0 0.0
      %3517 = vmatprep.subr.mxu0 0.0
      %3518 = vmatpush1.msra.mxu0 0.0
      %3519 = vmatprep.subr.mxu0 0.0
      %3520 = vmatpush1.msra.mxu0 0.0
      %3521 = vmatprep.subr.mxu0 0.0
      %3522 = vmatpush1.msra.mxu0 0.0
      %3523 = vmatprep.subr.mxu0 0.0
      %3524 = vmatpush1.msra.mxu0 0.0
      %3525 = vmatprep.subr.mxu0 0.0
      %3526 = vmatpush1.msra.mxu0 0.0
      %3527 = vmatprep.subr.mxu0 0.0
      %3528 = vmatpush1.msra.mxu0 0.0
      %3529 = vmatprep.subr.mxu0 0.0
      %3530 = vmatpush1.msra.mxu0 0.0
      %3531 = vmatprep.subr.mxu0 0.0
      %3532 = vmatpush1.msra.mxu0 0.0
      %3533 = vmatprep.subr.mxu0 0.0
      %3534 = vmatpush1.msra.mxu0 0.0
      %3535 = vmatprep.subr.mxu0 0.0
      %3536 = vmatpush1.msra.mxu0 0.0
      %3537 = vmatprep.subr.mxu0 0.0
      %3538 = vmatpush1.msra.mxu0 0.0
      %3539 = vmatprep.subr.mxu0 0.0
      %3540 = vmatpush1.msra.mxu0 0.0
      %3541 = vmatprep.subr.mxu0 0.0
      %3542 = vmatpush1.msra.mxu0 0.0
      %3543 = vmatprep.subr.mxu0 0.0
      %3544 = vmatpush1.msra.mxu0 0.0
      %3545 = vmatprep.subr.mxu0 0.0
      %3546 = vmatpush1.msra.mxu0 0.0
      %3547 = vmatprep.subr.mxu0 0.0
      %3548 = vmatpush1.msra.mxu0 0.0
      %3549 = vmatprep.subr.mxu0 0.0
      %3550 = vmatpush1.msra.mxu0 0.0
      %3551 = vmatprep.subr.mxu0 0.0
      %3552 = vmatpush1.msra.mxu0 0.0
      %3553 = vmatprep.subr.mxu0 0.0
      %3554 = vmatpush1.msra.mxu0 0.0
      %3555 = vmatprep.subr.mxu0 0.0
      %3556 = vmatpush1.msra.mxu0 0.0
      %3557 = vmatprep.subr.mxu0 0.0
      %3558 = vmatpush1.msra.mxu0 0.0
      %3559 = vmatprep.subr.mxu0 0.0
      %3560 = vmatpush1.msra.mxu0 0.0
      %3561 = vmatprep.subr.mxu0 0.0
      %3562 = vmatpush1.msra.mxu0 0.0
      %3563 = vmatprep.subr.mxu0 0.0
      %3564 = vmatpush1.msra.mxu0 0.0
      %3565 = vmatprep.mubr.f32.mxu0 0.0
      %3566 = vmatmul.mubr.f32.gmra.mrb[0].mxu0 %v3499
      %v3567 = vpop.f32.mrb[0].mxu0
      %v3568 = vadd.f32 0.0, %v3567
      %v3569 = vpop.f32.mrb[0].mxu0
      %3570 = vdwg.mxu0
      %v3571 = vld [vmem:[%s2534 + $0x1] sm:$0x7f]
      %v3572 = vld [vmem:[%s2534 + $0x9] sm:$0x7f]
      %v3573 = vld [vmem:[%s2534 + $0x11] sm:$0x7f]
      %v3574 = vld [vmem:[%s2534 + $0x19] sm:$0x7f]
      %v3575 = vld [vmem:[%s2534 + $0x21] sm:$0x7f]
      %v3576 = vld [vmem:[%s2534 + $0x29] sm:$0x7f]
      %v3577 = vld [vmem:[%s2534 + $0x31] sm:$0x7f]
      %v3579 = vsel %vm225, %v3571, 0
      %3581 = vmatprep.subr.mxu0 %v2008
      %3582 = vmatpush1.msra.mxu0 %v2007
      %3583 = vmatprep.subr.mxu0 %v2010
      %3584 = vmatpush1.msra.mxu0 %v2009
      %3585 = vmatprep.subr.mxu0 %v2012
      %3586 = vmatpush1.msra.mxu0 %v2011
      %3587 = vmatprep.subr.mxu0 %v2014
      %3588 = vmatpush1.msra.mxu0 %v2013
      %3589 = vmatprep.subr.mxu0 0.0
      %3590 = vmatpush1.msra.mxu0 0.0
      %3591 = vmatprep.subr.mxu0 0.0
      %3592 = vmatpush1.msra.mxu0 0.0
      %3593 = vmatprep.subr.mxu0 0.0
      %3594 = vmatpush1.msra.mxu0 0.0
      %3595 = vmatprep.subr.mxu0 0.0
      %3596 = vmatpush1.msra.mxu0 0.0
      %3597 = vmatprep.subr.mxu0 0.0
      %3598 = vmatpush1.msra.mxu0 0.0
      %3599 = vmatprep.subr.mxu0 0.0
      %3600 = vmatpush1.msra.mxu0 0.0
      %3601 = vmatprep.subr.mxu0 0.0
      %3602 = vmatpush1.msra.mxu0 0.0
      %3603 = vmatprep.subr.mxu0 0.0
      %3604 = vmatpush1.msra.mxu0 0.0
      %3605 = vmatprep.subr.mxu0 0.0
      %3606 = vmatpush1.msra.mxu0 0.0
      %3607 = vmatprep.subr.mxu0 0.0
      %3608 = vmatpush1.msra.mxu0 0.0
      %3609 = vmatprep.subr.mxu0 0.0
      %3610 = vmatpush1.msra.mxu0 0.0
      %3611 = vmatprep.subr.mxu0 0.0
      %3612 = vmatpush1.msra.mxu0 0.0
      %3613 = vmatprep.subr.mxu0 0.0
      %3614 = vmatpush1.msra.mxu0 0.0
      %3615 = vmatprep.subr.mxu0 0.0
      %3616 = vmatpush1.msra.mxu0 0.0
      %3617 = vmatprep.subr.mxu0 0.0
      %3618 = vmatpush1.msra.mxu0 0.0
      %3619 = vmatprep.subr.mxu0 0.0
      %3620 = vmatpush1.msra.mxu0 0.0
      %3621 = vmatprep.subr.mxu0 0.0
      %3622 = vmatpush1.msra.mxu0 0.0
      %3623 = vmatprep.subr.mxu0 0.0
      %3624 = vmatpush1.msra.mxu0 0.0
      %3625 = vmatprep.subr.mxu0 0.0
      %3626 = vmatpush1.msra.mxu0 0.0
      %3627 = vmatprep.subr.mxu0 0.0
      %3628 = vmatpush1.msra.mxu0 0.0
      %3629 = vmatprep.subr.mxu0 0.0
      %3630 = vmatpush1.msra.mxu0 0.0
      %3631 = vmatprep.subr.mxu0 0.0
      %3632 = vmatpush1.msra.mxu0 0.0
      %3633 = vmatprep.subr.mxu0 0.0
      %3634 = vmatpush1.msra.mxu0 0.0
      %3635 = vmatprep.subr.mxu0 0.0
      %3636 = vmatpush1.msra.mxu0 0.0
      %3637 = vmatprep.subr.mxu0 0.0
      %3638 = vmatpush1.msra.mxu0 0.0
      %3639 = vmatprep.subr.mxu0 0.0
      %3640 = vmatpush1.msra.mxu0 0.0
      %3641 = vmatprep.subr.mxu0 0.0
      %3642 = vmatpush1.msra.mxu0 0.0
      %3643 = vmatprep.subr.mxu0 0.0
      %3644 = vmatpush1.msra.mxu0 0.0
      %3645 = vmatprep.mubr.f32.mxu0 0.0
      %3646 = vmatmul.mubr.f32.gmra.mrb[0].mxu0 %v3579
      %v3647 = vpop.f32.mrb[0].mxu0
      %v3648 = vadd.f32 0.0, %v3647
      %v3649 = vpop.f32.mrb[0].mxu0
      %3650 = vdwg.mxu0
      %v3652 = vsel %vm225, %v3572, 0
      %3654 = vmatprep.subr.mxu0 %v2008
      %3655 = vmatpush1.msra.mxu0 %v2007
      %3656 = vmatprep.subr.mxu0 %v2010
      %3657 = vmatpush1.msra.mxu0 %v2009
      %3658 = vmatprep.subr.mxu0 %v2012
      %3659 = vmatpush1.msra.mxu0 %v2011
      %3660 = vmatprep.subr.mxu0 %v2014
      %3661 = vmatpush1.msra.mxu0 %v2013
      %3662 = vmatprep.subr.mxu0 0.0
      %3663 = vmatpush1.msra.mxu0 0.0
      %3664 = vmatprep.subr.mxu0 0.0
      %3665 = vmatpush1.msra.mxu0 0.0
      %3666 = vmatprep.subr.mxu0 0.0
      %3667 = vmatpush1.msra.mxu0 0.0
      %3668 = vmatprep.subr.mxu0 0.0
      %3669 = vmatpush1.msra.mxu0 0.0
      %3670 = vmatprep.subr.mxu0 0.0
      %3671 = vmatpush1.msra.mxu0 0.0
      %3672 = vmatprep.subr.mxu0 0.0
      %3673 = vmatpush1.msra.mxu0 0.0
      %3674 = vmatprep.subr.mxu0 0.0
      %3675 = vmatpush1.msra.mxu0 0.0
      %3676 = vmatprep.subr.mxu0 0.0
      %3677 = vmatpush1.msra.mxu0 0.0
      %3678 = vmatprep.subr.mxu0 0.0
      %3679 = vmatpush1.msra.mxu0 0.0
      %3680 = vmatprep.subr.mxu0 0.0
      %3681 = vmatpush1.msra.mxu0 0.0
      %3682 = vmatprep.subr.mxu0 0.0
      %3683 = vmatpush1.msra.mxu0 0.0
      %3684 = vmatprep.subr.mxu0 0.0
      %3685 = vmatpush1.msra.mxu0 0.0
      %3686 = vmatprep.subr.mxu0 0.0
      %3687 = vmatpush1.msra.mxu0 0.0
      %3688 = vmatprep.subr.mxu0 0.0
      %3689 = vmatpush1.msra.mxu0 0.0
      %3690 = vmatprep.subr.mxu0 0.0
      %3691 = vmatpush1.msra.mxu0 0.0
      %3692 = vmatprep.subr.mxu0 0.0
      %3693 = vmatpush1.msra.mxu0 0.0
      %3694 = vmatprep.subr.mxu0 0.0
      %3695 = vmatpush1.msra.mxu0 0.0
      %3696 = vmatprep.subr.mxu0 0.0
      %3697 = vmatpush1.msra.mxu0 0.0
      %3698 = vmatprep.subr.mxu0 0.0
      %3699 = vmatpush1.msra.mxu0 0.0
      %3700 = vmatprep.subr.mxu0 0.0
      %3701 = vmatpush1.msra.mxu0 0.0
      %3702 = vmatprep.subr.mxu0 0.0
      %3703 = vmatpush1.msra.mxu0 0.0
      %3704 = vmatprep.subr.mxu0 0.0
      %3705 = vmatpush1.msra.mxu0 0.0
      %3706 = vmatprep.subr.mxu0 0.0
      %3707 = vmatpush1.msra.mxu0 0.0
      %3708 = vmatprep.subr.mxu0 0.0
      %3709 = vmatpush1.msra.mxu0 0.0
      %3710 = vmatprep.subr.mxu0 0.0
      %3711 = vmatpush1.msra.mxu0 0.0
      %3712 = vmatprep.subr.mxu0 0.0
      %3713 = vmatpush1.msra.mxu0 0.0
      %3714 = vmatprep.subr.mxu0 0.0
      %3715 = vmatpush1.msra.mxu0 0.0
      %3716 = vmatprep.subr.mxu0 0.0
      %3717 = vmatpush1.msra.mxu0 0.0
      %3718 = vmatprep.mubr.f32.mxu0 0.0
      %3719 = vmatmul.mubr.f32.gmra.mrb[0].mxu0 %v3652
      %v3720 = vpop.f32.mrb[0].mxu0
      %v3721 = vadd.f32 0.0, %v3720
      %v3722 = vpop.f32.mrb[0].mxu0
      %3723 = vdwg.mxu0
      %v3725 = vsel %vm225, %v3573, 0
      %3727 = vmatprep.subr.mxu0 %v2008
      %3728 = vmatpush1.msra.mxu0 %v2007
      %3729 = vmatprep.subr.mxu0 %v2010
      %3730 = vmatpush1.msra.mxu0 %v2009
      %3731 = vmatprep.subr.mxu0 %v2012
      %3732 = vmatpush1.msra.mxu0 %v2011
      %3733 = vmatprep.subr.mxu0 %v2014
      %3734 = vmatpush1.msra.mxu0 %v2013
      %3735 = vmatprep.subr.mxu0 0.0
      %3736 = vmatpush1.msra.mxu0 0.0
      %3737 = vmatprep.subr.mxu0 0.0
      %3738 = vmatpush1.msra.mxu0 0.0
      %3739 = vmatprep.subr.mxu0 0.0
      %3740 = vmatpush1.msra.mxu0 0.0
      %3741 = vmatprep.subr.mxu0 0.0
      %3742 = vmatpush1.msra.mxu0 0.0
      %3743 = vmatprep.subr.mxu0 0.0
      %3744 = vmatpush1.msra.mxu0 0.0
      %3745 = vmatprep.subr.mxu0 0.0
      %3746 = vmatpush1.msra.mxu0 0.0
      %3747 = vmatprep.subr.mxu0 0.0
      %3748 = vmatpush1.msra.mxu0 0.0
      %3749 = vmatprep.subr.mxu0 0.0
      %3750 = vmatpush1.msra.mxu0 0.0
      %3751 = vmatprep.subr.mxu0 0.0
      %3752 = vmatpush1.msra.mxu0 0.0
      %3753 = vmatprep.subr.mxu0 0.0
      %3754 = vmatpush1.msra.mxu0 0.0
      %3755 = vmatprep.subr.mxu0 0.0
      %3756 = vmatpush1.msra.mxu0 0.0
      %3757 = vmatprep.subr.mxu0 0.0
      %3758 = vmatpush1.msra.mxu0 0.0
      %3759 = vmatprep.subr.mxu0 0.0
      %3760 = vmatpush1.msra.mxu0 0.0
      %3761 = vmatprep.subr.mxu0 0.0
      %3762 = vmatpush1.msra.mxu0 0.0
      %3763 = vmatprep.subr.mxu0 0.0
      %3764 = vmatpush1.msra.mxu0 0.0
      %3765 = vmatprep.subr.mxu0 0.0
      %3766 = vmatpush1.msra.mxu0 0.0
      %3767 = vmatprep.subr.mxu0 0.0
      %3768 = vmatpush1.msra.mxu0 0.0
      %3769 = vmatprep.subr.mxu0 0.0
      %3770 = vmatpush1.msra.mxu0 0.0
      %3771 = vmatprep.subr.mxu0 0.0
      %3772 = vmatpush1.msra.mxu0 0.0
      %3773 = vmatprep.subr.mxu0 0.0
      %3774 = vmatpush1.msra.mxu0 0.0
      %3775 = vmatprep.subr.mxu0 0.0
      %3776 = vmatpush1.msra.mxu0 0.0
      %3777 = vmatprep.subr.mxu0 0.0
      %3778 = vmatpush1.msra.mxu0 0.0
      %3779 = vmatprep.subr.mxu0 0.0
      %3780 = vmatpush1.msra.mxu0 0.0
      %3781 = vmatprep.subr.mxu0 0.0
      %3782 = vmatpush1.msra.mxu0 0.0
      %3783 = vmatprep.subr.mxu0 0.0
      %3784 = vmatpush1.msra.mxu0 0.0
      %3785 = vmatprep.subr.mxu0 0.0
      %3786 = vmatpush1.msra.mxu0 0.0
      %3787 = vmatprep.subr.mxu0 0.0
      %3788 = vmatpush1.msra.mxu0 0.0
      %3789 = vmatprep.subr.mxu0 0.0
      %3790 = vmatpush1.msra.mxu0 0.0
      %3791 = vmatprep.mubr.f32.mxu0 0.0
      %3792 = vmatmul.mubr.f32.gmra.mrb[0].mxu0 %v3725
      %v3793 = vpop.f32.mrb[0].mxu0
      %v3794 = vadd.f32 0.0, %v3793
      %v3795 = vpop.f32.mrb[0].mxu0
      %3796 = vdwg.mxu0
      %v3798 = vsel %vm225, %v3574, 0
      %3800 = vmatprep.subr.mxu0 %v2008
      %3801 = vmatpush1.msra.mxu0 %v2007
      %3802 = vmatprep.subr.mxu0 %v2010
      %3803 = vmatpush1.msra.mxu0 %v2009
      %3804 = vmatprep.subr.mxu0 %v2012
      %3805 = vmatpush1.msra.mxu0 %v2011
      %3806 = vmatprep.subr.mxu0 %v2014
      %3807 = vmatpush1.msra.mxu0 %v2013
      %3808 = vmatprep.subr.mxu0 0.0
      %3809 = vmatpush1.msra.mxu0 0.0
      %3810 = vmatprep.subr.mxu0 0.0
      %3811 = vmatpush1.msra.mxu0 0.0
      %3812 = vmatprep.subr.mxu0 0.0
      %3813 = vmatpush1.msra.mxu0 0.0
      %3814 = vmatprep.subr.mxu0 0.0
      %3815 = vmatpush1.msra.mxu0 0.0
      %3816 = vmatprep.subr.mxu0 0.0
      %3817 = vmatpush1.msra.mxu0 0.0
      %3818 = vmatprep.subr.mxu0 0.0
      %3819 = vmatpush1.msra.mxu0 0.0
      %3820 = vmatprep.subr.mxu0 0.0
      %3821 = vmatpush1.msra.mxu0 0.0
      %3822 = vmatprep.subr.mxu0 0.0
      %3823 = vmatpush1.msra.mxu0 0.0
      %3824 = vmatprep.subr.mxu0 0.0
      %3825 = vmatpush1.msra.mxu0 0.0
      %3826 = vmatprep.subr.mxu0 0.0
      %3827 = vmatpush1.msra.mxu0 0.0
      %3828 = vmatprep.subr.mxu0 0.0
      %3829 = vmatpush1.msra.mxu0 0.0
      %3830 = vmatprep.subr.mxu0 0.0
      %3831 = vmatpush1.msra.mxu0 0.0
      %3832 = vmatprep.subr.mxu0 0.0
      %3833 = vmatpush1.msra.mxu0 0.0
      %3834 = vmatprep.subr.mxu0 0.0
      %3835 = vmatpush1.msra.mxu0 0.0
      %3836 = vmatprep.subr.mxu0 0.0
      %3837 = vmatpush1.msra.mxu0 0.0
      %3838 = vmatprep.subr.mxu0 0.0
      %3839 = vmatpush1.msra.mxu0 0.0
      %3840 = vmatprep.subr.mxu0 0.0
      %3841 = vmatpush1.msra.mxu0 0.0
      %3842 = vmatprep.subr.mxu0 0.0
      %3843 = vmatpush1.msra.mxu0 0.0
      %3844 = vmatprep.subr.mxu0 0.0
      %3845 = vmatpush1.msra.mxu0 0.0
      %3846 = vmatprep.subr.mxu0 0.0
      %3847 = vmatpush1.msra.mxu0 0.0
      %3848 = vmatprep.subr.mxu0 0.0
      %3849 = vmatpush1.msra.mxu0 0.0
      %3850 = vmatprep.subr.mxu0 0.0
      %3851 = vmatpush1.msra.mxu0 0.0
      %3852 = vmatprep.subr.mxu0 0.0
      %3853 = vmatpush1.msra.mxu0 0.0
      %3854 = vmatprep.subr.mxu0 0.0
      %3855 = vmatpush1.msra.mxu0 0.0
      %3856 = vmatprep.subr.mxu0 0.0
      %3857 = vmatpush1.msra.mxu0 0.0
      %3858 = vmatprep.subr.mxu0 0.0
      %3859 = vmatpush1.msra.mxu0 0.0
      %3860 = vmatprep.subr.mxu0 0.0
      %3861 = vmatpush1.msra.mxu0 0.0
      %3862 = vmatprep.subr.mxu0 0.0
      %3863 = vmatpush1.msra.mxu0 0.0
      %3864 = vmatprep.mubr.f32.mxu0 0.0
      %3865 = vmatmul.mubr.f32.gmra.mrb[0].mxu0 %v3798
      %v3866 = vpop.f32.mrb[0].mxu0
      %v3867 = vadd.f32 0.0, %v3866
      %v3868 = vpop.f32.mrb[0].mxu0
      %3869 = vdwg.mxu0
      %v3871 = vsel %vm225, %v3575, 0
      %3873 = vmatprep.subr.mxu0 %v2008
      %3874 = vmatpush1.msra.mxu0 %v2007
      %3875 = vmatprep.subr.mxu0 %v2010
      %3876 = vmatpush1.msra.mxu0 %v2009
      %3877 = vmatprep.subr.mxu0 %v2012
      %3878 = vmatpush1.msra.mxu0 %v2011
      %3879 = vmatprep.subr.mxu0 %v2014
      %3880 = vmatpush1.msra.mxu0 %v2013
      %3881 = vmatprep.subr.mxu0 0.0
      %3882 = vmatpush1.msra.mxu0 0.0
      %3883 = vmatprep.subr.mxu0 0.0
      %3884 = vmatpush1.msra.mxu0 0.0
      %3885 = vmatprep.subr.mxu0 0.0
      %3886 = vmatpush1.msra.mxu0 0.0
      %3887 = vmatprep.subr.mxu0 0.0
      %3888 = vmatpush1.msra.mxu0 0.0
      %3889 = vmatprep.subr.mxu0 0.0
      %3890 = vmatpush1.msra.mxu0 0.0
      %3891 = vmatprep.subr.mxu0 0.0
      %3892 = vmatpush1.msra.mxu0 0.0
      %3893 = vmatprep.subr.mxu0 0.0
      %3894 = vmatpush1.msra.mxu0 0.0
      %3895 = vmatprep.subr.mxu0 0.0
      %3896 = vmatpush1.msra.mxu0 0.0
      %3897 = vmatprep.subr.mxu0 0.0
      %3898 = vmatpush1.msra.mxu0 0.0
      %3899 = vmatprep.subr.mxu0 0.0
      %3900 = vmatpush1.msra.mxu0 0.0
      %3901 = vmatprep.subr.mxu0 0.0
      %3902 = vmatpush1.msra.mxu0 0.0
      %3903 = vmatprep.subr.mxu0 0.0
      %3904 = vmatpush1.msra.mxu0 0.0
      %3905 = vmatprep.subr.mxu0 0.0
      %3906 = vmatpush1.msra.mxu0 0.0
      %3907 = vmatprep.subr.mxu0 0.0
      %3908 = vmatpush1.msra.mxu0 0.0
      %3909 = vmatprep.subr.mxu0 0.0
      %3910 = vmatpush1.msra.mxu0 0.0
      %3911 = vmatprep.subr.mxu0 0.0
      %3912 = vmatpush1.msra.mxu0 0.0
      %3913 = vmatprep.subr.mxu0 0.0
      %3914 = vmatpush1.msra.mxu0 0.0
      %3915 = vmatprep.subr.mxu0 0.0
      %3916 = vmatpush1.msra.mxu0 0.0
      %3917 = vmatprep.subr.mxu0 0.0
      %3918 = vmatpush1.msra.mxu0 0.0
      %3919 = vmatprep.subr.mxu0 0.0
      %3920 = vmatpush1.msra.mxu0 0.0
      %3921 = vmatprep.subr.mxu0 0.0
      %3922 = vmatpush1.msra.mxu0 0.0
      %3923 = vmatprep.subr.mxu0 0.0
      %3924 = vmatpush1.msra.mxu0 0.0
      %3925 = vmatprep.subr.mxu0 0.0
      %3926 = vmatpush1.msra.mxu0 0.0
      %3927 = vmatprep.subr.mxu0 0.0
      %3928 = vmatpush1.msra.mxu0 0.0
      %3929 = vmatprep.subr.mxu0 0.0
      %3930 = vmatpush1.msra.mxu0 0.0
      %3931 = vmatprep.subr.mxu0 0.0
      %3932 = vmatpush1.msra.mxu0 0.0
      %3933 = vmatprep.subr.mxu0 0.0
      %3934 = vmatpush1.msra.mxu0 0.0
      %3935 = vmatprep.subr.mxu0 0.0
      %3936 = vmatpush1.msra.mxu0 0.0
      %3937 = vmatprep.mubr.f32.mxu0 0.0
      %3938 = vmatmul.mubr.f32.gmra.mrb[0].mxu0 %v3871
      %v3939 = vpop.f32.mrb[0].mxu0
      %v3940 = vadd.f32 0.0, %v3939
      %v3941 = vpop.f32.mrb[0].mxu0
      %3942 = vdwg.mxu0
      %v3944 = vsel %vm225, %v3576, 0
      %3946 = vmatprep.subr.mxu0 %v2008
      %3947 = vmatpush1.msra.mxu0 %v2007
      %3948 = vmatprep.subr.mxu0 %v2010
      %3949 = vmatpush1.msra.mxu0 %v2009
      %3950 = vmatprep.subr.mxu0 %v2012
      %3951 = vmatpush1.msra.mxu0 %v2011
      %3952 = vmatprep.subr.mxu0 %v2014
      %3953 = vmatpush1.msra.mxu0 %v2013
      %3954 = vmatprep.subr.mxu0 0.0
      %3955 = vmatpush1.msra.mxu0 0.0
      %3956 = vmatprep.subr.mxu0 0.0
      %3957 = vmatpush1.msra.mxu0 0.0
      %3958 = vmatprep.subr.mxu0 0.0
      %3959 = vmatpush1.msra.mxu0 0.0
      %3960 = vmatprep.subr.mxu0 0.0
      %3961 = vmatpush1.msra.mxu0 0.0
      %3962 = vmatprep.subr.mxu0 0.0
      %3963 = vmatpush1.msra.mxu0 0.0
      %3964 = vmatprep.subr.mxu0 0.0
      %3965 = vmatpush1.msra.mxu0 0.0
      %3966 = vmatprep.subr.mxu0 0.0
      %3967 = vmatpush1.msra.mxu0 0.0
      %3968 = vmatprep.subr.mxu0 0.0
      %3969 = vmatpush1.msra.mxu0 0.0
      %3970 = vmatprep.subr.mxu0 0.0
      %3971 = vmatpush1.msra.mxu0 0.0
      %3972 = vmatprep.subr.mxu0 0.0
      %3973 = vmatpush1.msra.mxu0 0.0
      %3974 = vmatprep.subr.mxu0 0.0
      %3975 = vmatpush1.msra.mxu0 0.0
      %3976 = vmatprep.subr.mxu0 0.0
      %3977 = vmatpush1.msra.mxu0 0.0
      %3978 = vmatprep.subr.mxu0 0.0
      %3979 = vmatpush1.msra.mxu0 0.0
      %3980 = vmatprep.subr.mxu0 0.0
      %3981 = vmatpush1.msra.mxu0 0.0
      %3982 = vmatprep.subr.mxu0 0.0
      %3983 = vmatpush1.msra.mxu0 0.0
      %3984 = vmatprep.subr.mxu0 0.0
      %3985 = vmatpush1.msra.mxu0 0.0
      %3986 = vmatprep.subr.mxu0 0.0
      %3987 = vmatpush1.msra.mxu0 0.0
      %3988 = vmatprep.subr.mxu0 0.0
      %3989 = vmatpush1.msra.mxu0 0.0
      %3990 = vmatprep.subr.mxu0 0.0
      %3991 = vmatpush1.msra.mxu0 0.0
      %3992 = vmatprep.subr.mxu0 0.0
      %3993 = vmatpush1.msra.mxu0 0.0
      %3994 = vmatprep.subr.mxu0 0.0
      %3995 = vmatpush1.msra.mxu0 0.0
      %3996 = vmatprep.subr.mxu0 0.0
      %3997 = vmatpush1.msra.mxu0 0.0
      %3998 = vmatprep.subr.mxu0 0.0
      %3999 = vmatpush1.msra.mxu0 0.0
      %4000 = vmatprep.subr.mxu0 0.0
      %4001 = vmatpush1.msra.mxu0 0.0
      %4002 = vmatprep.subr.mxu0 0.0
      %4003 = vmatpush1.msra.mxu0 0.0
      %4004 = vmatprep.subr.mxu0 0.0
      %4005 = vmatpush1.msra.mxu0 0.0
      %4006 = vmatprep.subr.mxu0 0.0
      %4007 = vmatpush1.msra.mxu0 0.0
      %4008 = vmatprep.subr.mxu0 0.0
      %4009 = vmatpush1.msra.mxu0 0.0
      %4010 = vmatprep.mubr.f32.mxu0 0.0
      %4011 = vmatmul.mubr.f32.gmra.mrb[0].mxu0 %v3944
      %v4012 = vpop.f32.mrb[0].mxu0
      %v4013 = vadd.f32 0.0, %v4012
      %v4014 = vpop.f32.mrb[0].mxu0
      %4015 = vdwg.mxu0
      %v4017 = vsel %vm225, %v3577, 0
      %4019 = vmatprep.subr.mxu0 %v2008
      %4020 = vmatpush1.msra.mxu0 %v2007
      %4021 = vmatprep.subr.mxu0 %v2010
      %4022 = vmatpush1.msra.mxu0 %v2009
      %4023 = vmatprep.subr.mxu0 %v2012
      %4024 = vmatpush1.msra.mxu0 %v2011
      %4025 = vmatprep.subr.mxu0 %v2014
      %4026 = vmatpush1.msra.mxu0 %v2013
      %4027 = vmatprep.subr.mxu0 0.0
      %4028 = vmatpush1.msra.mxu0 0.0
      %4029 = vmatprep.subr.mxu0 0.0
      %4030 = vmatpush1.msra.mxu0 0.0
      %4031 = vmatprep.subr.mxu0 0.0
      %4032 = vmatpush1.msra.mxu0 0.0
      %4033 = vmatprep.subr.mxu0 0.0
      %4034 = vmatpush1.msra.mxu0 0.0
      %4035 = vmatprep.subr.mxu0 0.0
      %4036 = vmatpush1.msra.mxu0 0.0
      %4037 = vmatprep.subr.mxu0 0.0
      %4038 = vmatpush1.msra.mxu0 0.0
      %4039 = vmatprep.subr.mxu0 0.0
      %4040 = vmatpush1.msra.mxu0 0.0
      %4041 = vmatprep.subr.mxu0 0.0
      %4042 = vmatpush1.msra.mxu0 0.0
      %4043 = vmatprep.subr.mxu0 0.0
      %4044 = vmatpush1.msra.mxu0 0.0
      %4045 = vmatprep.subr.mxu0 0.0
      %4046 = vmatpush1.msra.mxu0 0.0
      %4047 = vmatprep.subr.mxu0 0.0
      %4048 = vmatpush1.msra.mxu0 0.0
      %4049 = vmatprep.subr.mxu0 0.0
      %4050 = vmatpush1.msra.mxu0 0.0
      %4051 = vmatprep.subr.mxu0 0.0
      %4052 = vmatpush1.msra.mxu0 0.0
      %4053 = vmatprep.subr.mxu0 0.0
      %4054 = vmatpush1.msra.mxu0 0.0
      %4055 = vmatprep.subr.mxu0 0.0
      %4056 = vmatpush1.msra.mxu0 0.0
      %4057 = vmatprep.subr.mxu0 0.0
      %4058 = vmatpush1.msra.mxu0 0.0
      %4059 = vmatprep.subr.mxu0 0.0
      %4060 = vmatpush1.msra.mxu0 0.0
      %4061 = vmatprep.subr.mxu0 0.0
      %4062 = vmatpush1.msra.mxu0 0.0
      %4063 = vmatprep.subr.mxu0 0.0
      %4064 = vmatpush1.msra.mxu0 0.0
      %4065 = vmatprep.subr.mxu0 0.0
      %4066 = vmatpush1.msra.mxu0 0.0
      %4067 = vmatprep.subr.mxu0 0.0
      %4068 = vmatpush1.msra.mxu0 0.0
      %4069 = vmatprep.subr.mxu0 0.0
      %4070 = vmatpush1.msra.mxu0 0.0
      %4071 = vmatprep.subr.mxu0 0.0
      %4072 = vmatpush1.msra.mxu0 0.0
      %4073 = vmatprep.subr.mxu0 0.0
      %4074 = vmatpush1.msra.mxu0 0.0
      %4075 = vmatprep.subr.mxu0 0.0
      %4076 = vmatpush1.msra.mxu0 0.0
      %4077 = vmatprep.subr.mxu0 0.0
      %4078 = vmatpush1.msra.mxu0 0.0
      %4079 = vmatprep.subr.mxu0 0.0
      %4080 = vmatpush1.msra.mxu0 0.0
      %4081 = vmatprep.subr.mxu0 0.0
      %4082 = vmatpush1.msra.mxu0 0.0
      %4083 = vmatprep.mubr.f32.mxu0 0.0
      %4084 = vmatmul.mubr.f32.gmra.mrb[0].mxu0 %v4017
      %v4085 = vpop.f32.mrb[0].mxu0
      %v4086 = vadd.f32 0.0, %v4085
      %v4087 = vpop.f32.mrb[0].mxu0
      %4088 = vdwg.mxu0
      %v4089 = vld [vmem:[%s1661] sm:$0x7f]
      %v4090 = vld [vmem:[%s1661 + $0x8] sm:$0x7f]
      %v4091 = vld [vmem:[%s1661 + $0x10] sm:$0x7f]
      %v4092 = vld [vmem:[%s1661 + $0x18] sm:$0x7f]
      %v4093 = vld [vmem:[%s1661 + $0x20] sm:$0x7f]
      %v4094 = vld [vmem:[%s1661 + $0x28] sm:$0x7f]
      %v4095 = vld [vmem:[%s1661 + $0x30] sm:$0x7f]
      %v4097 = vsel %vm225, %v4089, 0
      %4099 = vmatprep.subr.mxu0 %v2008
      %4100 = vmatpush1.msra.mxu0 %v2007
      %4101 = vmatprep.subr.mxu0 %v2010
      %4102 = vmatpush1.msra.mxu0 %v2009
      %4103 = vmatprep.subr.mxu0 %v2012
      %4104 = vmatpush1.msra.mxu0 %v2011
      %4105 = vmatprep.subr.mxu0 %v2014
      %4106 = vmatpush1.msra.mxu0 %v2013
      %4107 = vmatprep.subr.mxu0 0.0
      %4108 = vmatpush1.msra.mxu0 0.0
      %4109 = vmatprep.subr.mxu0 0.0
      %4110 = vmatpush1.msra.mxu0 0.0
      %4111 = vmatprep.subr.mxu0 0.0
      %4112 = vmatpush1.msra.mxu0 0.0
      %4113 = vmatprep.subr.mxu0 0.0
      %4114 = vmatpush1.msra.mxu0 0.0
      %4115 = vmatprep.subr.mxu0 0.0
      %4116 = vmatpush1.msra.mxu0 0.0
      %4117 = vmatprep.subr.mxu0 0.0
      %4118 = vmatpush1.msra.mxu0 0.0
      %4119 = vmatprep.subr.mxu0 0.0
      %4120 = vmatpush1.msra.mxu0 0.0
      %4121 = vmatprep.subr.mxu0 0.0
      %4122 = vmatpush1.msra.mxu0 0.0
      %4123 = vmatprep.subr.mxu0 0.0
      %4124 = vmatpush1.msra.mxu0 0.0
      %4125 = vmatprep.subr.mxu0 0.0
      %4126 = vmatpush1.msra.mxu0 0.0
      %4127 = vmatprep.subr.mxu0 0.0
      %4128 = vmatpush1.msra.mxu0 0.0
      %4129 = vmatprep.subr.mxu0 0.0
      %4130 = vmatpush1.msra.mxu0 0.0
      %4131 = vmatprep.subr.mxu0 0.0
      %4132 = vmatpush1.msra.mxu0 0.0
      %4133 = vmatprep.subr.mxu0 0.0
      %4134 = vmatpush1.msra.mxu0 0.0
      %4135 = vmatprep.subr.mxu0 0.0
      %4136 = vmatpush1.msra.mxu0 0.0
      %4137 = vmatprep.subr.mxu0 0.0
      %4138 = vmatpush1.msra.mxu0 0.0
      %4139 = vmatprep.subr.mxu0 0.0
      %4140 = vmatpush1.msra.mxu0 0.0
      %4141 = vmatprep.subr.mxu0 0.0
      %4142 = vmatpush1.msra.mxu0 0.0
      %4143 = vmatprep.subr.mxu0 0.0
      %4144 = vmatpush1.msra.mxu0 0.0
      %4145 = vmatprep.subr.mxu0 0.0
      %4146 = vmatpush1.msra.mxu0 0.0
      %4147 = vmatprep.subr.mxu0 0.0
      %4148 = vmatpush1.msra.mxu0 0.0
      %4149 = vmatprep.subr.mxu0 0.0
      %4150 = vmatpush1.msra.mxu0 0.0
      %4151 = vmatprep.subr.mxu0 0.0
      %4152 = vmatpush1.msra.mxu0 0.0
      %4153 = vmatprep.subr.mxu0 0.0
      %4154 = vmatpush1.msra.mxu0 0.0
      %4155 = vmatprep.subr.mxu0 0.0
      %4156 = vmatpush1.msra.mxu0 0.0
      %4157 = vmatprep.subr.mxu0 0.0
      %4158 = vmatpush1.msra.mxu0 0.0
      %4159 = vmatprep.subr.mxu0 0.0
      %4160 = vmatpush1.msra.mxu0 0.0
      %4161 = vmatprep.subr.mxu0 0.0
      %4162 = vmatpush1.msra.mxu0 0.0
      %4163 = vmatprep.mubr.f32.mxu0 0.0
      %4164 = vmatmul.mubr.f32.gmra.mrb[0].mxu0 %v4097
      %v4165 = vpop.f32.mrb[0].mxu0
      %v4166 = vadd.f32 0.0, %v4165
      %v4167 = vpop.f32.mrb[0].mxu0
      %4168 = vdwg.mxu0
      %v4170 = vsel %vm225, %v4090, 0
      %4172 = vmatprep.subr.mxu0 %v2008
      %4173 = vmatpush1.msra.mxu0 %v2007
      %4174 = vmatprep.subr.mxu0 %v2010
      %4175 = vmatpush1.msra.mxu0 %v2009
      %4176 = vmatprep.subr.mxu0 %v2012
      %4177 = vmatpush1.msra.mxu0 %v2011
      %4178 = vmatprep.subr.mxu0 %v2014
      %4179 = vmatpush1.msra.mxu0 %v2013
      %4180 = vmatprep.subr.mxu0 0.0
      %4181 = vmatpush1.msra.mxu0 0.0
      %4182 = vmatprep.subr.mxu0 0.0
      %4183 = vmatpush1.msra.mxu0 0.0
      %4184 = vmatprep.subr.mxu0 0.0
      %4185 = vmatpush1.msra.mxu0 0.0
      %4186 = vmatprep.subr.mxu0 0.0
      %4187 = vmatpush1.msra.mxu0 0.0
      %4188 = vmatprep.subr.mxu0 0.0
      %4189 = vmatpush1.msra.mxu0 0.0
      %4190 = vmatprep.subr.mxu0 0.0
      %4191 = vmatpush1.msra.mxu0 0.0
      %4192 = vmatprep.subr.mxu0 0.0
      %4193 = vmatpush1.msra.mxu0 0.0
      %4194 = vmatprep.subr.mxu0 0.0
      %4195 = vmatpush1.msra.mxu0 0.0
      %4196 = vmatprep.subr.mxu0 0.0
      %4197 = vmatpush1.msra.mxu0 0.0
      %4198 = vmatprep.subr.mxu0 0.0
      %4199 = vmatpush1.msra.mxu0 0.0
      %4200 = vmatprep.subr.mxu0 0.0
      %4201 = vmatpush1.msra.mxu0 0.0
      %4202 = vmatprep.subr.mxu0 0.0
      %4203 = vmatpush1.msra.mxu0 0.0
      %4204 = vmatprep.subr.mxu0 0.0
      %4205 = vmatpush1.msra.mxu0 0.0
      %4206 = vmatprep.subr.mxu0 0.0
      %4207 = vmatpush1.msra.mxu0 0.0
      %4208 = vmatprep.subr.mxu0 0.0
      %4209 = vmatpush1.msra.mxu0 0.0
      %4210 = vmatprep.subr.mxu0 0.0
      %4211 = vmatpush1.msra.mxu0 0.0
      %4212 = vmatprep.subr.mxu0 0.0
      %4213 = vmatpush1.msra.mxu0 0.0
      %4214 = vmatprep.subr.mxu0 0.0
      %4215 = vmatpush1.msra.mxu0 0.0
      %4216 = vmatprep.subr.mxu0 0.0
      %4217 = vmatpush1.msra.mxu0 0.0
      %4218 = vmatprep.subr.mxu0 0.0
      %4219 = vmatpush1.msra.mxu0 0.0
      %4220 = vmatprep.subr.mxu0 0.0
      %4221 = vmatpush1.msra.mxu0 0.0
      %4222 = vmatprep.subr.mxu0 0.0
      %4223 = vmatpush1.msra.mxu0 0.0
      %4224 = vmatprep.subr.mxu0 0.0
      %4225 = vmatpush1.msra.mxu0 0.0
      %4226 = vmatprep.subr.mxu0 0.0
      %4227 = vmatpush1.msra.mxu0 0.0
      %4228 = vmatprep.subr.mxu0 0.0
      %4229 = vmatpush1.msra.mxu0 0.0
      %4230 = vmatprep.subr.mxu0 0.0
      %4231 = vmatpush1.msra.mxu0 0.0
      %4232 = vmatprep.subr.mxu0 0.0
      %4233 = vmatpush1.msra.mxu0 0.0
      %4234 = vmatprep.subr.mxu0 0.0
      %4235 = vmatpush1.msra.mxu0 0.0
      %4236 = vmatprep.mubr.f32.mxu0 0.0
      %4237 = vmatmul.mubr.f32.gmra.mrb[0].mxu0 %v4170
      %v4238 = vpop.f32.mrb[0].mxu0
      %v4239 = vadd.f32 0.0, %v4238
      %v4240 = vpop.f32.mrb[0].mxu0
      %4241 = vdwg.mxu0
      %v4243 = vsel %vm225, %v4091, 0
      %4245 = vmatprep.subr.mxu0 %v2008
      %4246 = vmatpush1.msra.mxu0 %v2007
      %4247 = vmatprep.subr.mxu0 %v2010
      %4248 = vmatpush1.msra.mxu0 %v2009
      %4249 = vmatprep.subr.mxu0 %v2012
      %4250 = vmatpush1.msra.mxu0 %v2011
      %4251 = vmatprep.subr.mxu0 %v2014
      %4252 = vmatpush1.msra.mxu0 %v2013
      %4253 = vmatprep.subr.mxu0 0.0
      %4254 = vmatpush1.msra.mxu0 0.0
      %4255 = vmatprep.subr.mxu0 0.0
      %4256 = vmatpush1.msra.mxu0 0.0
      %4257 = vmatprep.subr.mxu0 0.0
      %4258 = vmatpush1.msra.mxu0 0.0
      %4259 = vmatprep.subr.mxu0 0.0
      %4260 = vmatpush1.msra.mxu0 0.0
      %4261 = vmatprep.subr.mxu0 0.0
      %4262 = vmatpush1.msra.mxu0 0.0
      %4263 = vmatprep.subr.mxu0 0.0
      %4264 = vmatpush1.msra.mxu0 0.0
      %4265 = vmatprep.subr.mxu0 0.0
      %4266 = vmatpush1.msra.mxu0 0.0
      %4267 = vmatprep.subr.mxu0 0.0
      %4268 = vmatpush1.msra.mxu0 0.0
      %4269 = vmatprep.subr.mxu0 0.0
      %4270 = vmatpush1.msra.mxu0 0.0
      %4271 = vmatprep.subr.mxu0 0.0
      %4272 = vmatpush1.msra.mxu0 0.0
      %4273 = vmatprep.subr.mxu0 0.0
      %4274 = vmatpush1.msra.mxu0 0.0
      %4275 = vmatprep.subr.mxu0 0.0
      %4276 = vmatpush1.msra.mxu0 0.0
      %4277 = vmatprep.subr.mxu0 0.0
      %4278 = vmatpush1.msra.mxu0 0.0
      %4279 = vmatprep.subr.mxu0 0.0
      %4280 = vmatpush1.msra.mxu0 0.0
      %4281 = vmatprep.subr.mxu0 0.0
      %4282 = vmatpush1.msra.mxu0 0.0
      %4283 = vmatprep.subr.mxu0 0.0
      %4284 = vmatpush1.msra.mxu0 0.0
      %4285 = vmatprep.subr.mxu0 0.0
      %4286 = vmatpush1.msra.mxu0 0.0
      %4287 = vmatprep.subr.mxu0 0.0
      %4288 = vmatpush1.msra.mxu0 0.0
      %4289 = vmatprep.subr.mxu0 0.0
      %4290 = vmatpush1.msra.mxu0 0.0
      %4291 = vmatprep.subr.mxu0 0.0
      %4292 = vmatpush1.msra.mxu0 0.0
      %4293 = vmatprep.subr.mxu0 0.0
      %4294 = vmatpush1.msra.mxu0 0.0
      %4295 = vmatprep.subr.mxu0 0.0
      %4296 = vmatpush1.msra.mxu0 0.0
      %4297 = vmatprep.subr.mxu0 0.0
      %4298 = vmatpush1.msra.mxu0 0.0
      %4299 = vmatprep.subr.mxu0 0.0
      %4300 = vmatpush1.msra.mxu0 0.0
      %4301 = vmatprep.subr.mxu0 0.0
      %4302 = vmatpush1.msra.mxu0 0.0
      %4303 = vmatprep.subr.mxu0 0.0
      %4304 = vmatpush1.msra.mxu0 0.0
      %4305 = vmatprep.subr.mxu0 0.0
      %4306 = vmatpush1.msra.mxu0 0.0
      %4307 = vmatprep.subr.mxu0 0.0
      %4308 = vmatpush1.msra.mxu0 0.0
      %4309 = vmatprep.mubr.f32.mxu0 0.0
      %4310 = vmatmul.mubr.f32.gmra.mrb[0].mxu0 %v4243
      %v4311 = vpop.f32.mrb[0].mxu0
      %v4312 = vadd.f32 0.0, %v4311
      %v4313 = vpop.f32.mrb[0].mxu0
      %4314 = vdwg.mxu0
      %v4316 = vsel %vm225, %v4092, 0
      %4318 = vmatprep.subr.mxu0 %v2008
      %4319 = vmatpush1.msra.mxu0 %v2007
      %4320 = vmatprep.subr.mxu0 %v2010
      %4321 = vmatpush1.msra.mxu0 %v2009
      %4322 = vmatprep.subr.mxu0 %v2012
      %4323 = vmatpush1.msra.mxu0 %v2011
      %4324 = vmatprep.subr.mxu0 %v2014
      %4325 = vmatpush1.msra.mxu0 %v2013
      %4326 = vmatprep.subr.mxu0 0.0
      %4327 = vmatpush1.msra.mxu0 0.0
      %4328 = vmatprep.subr.mxu0 0.0
      %4329 = vmatpush1.msra.mxu0 0.0
      %4330 = vmatprep.subr.mxu0 0.0
      %4331 = vmatpush1.msra.mxu0 0.0
      %4332 = vmatprep.subr.mxu0 0.0
      %4333 = vmatpush1.msra.mxu0 0.0
      %4334 = vmatprep.subr.mxu0 0.0
      %4335 = vmatpush1.msra.mxu0 0.0
      %4336 = vmatprep.subr.mxu0 0.0
      %4337 = vmatpush1.msra.mxu0 0.0
      %4338 = vmatprep.subr.mxu0 0.0
      %4339 = vmatpush1.msra.mxu0 0.0
      %4340 = vmatprep.subr.mxu0 0.0
      %4341 = vmatpush1.msra.mxu0 0.0
      %4342 = vmatprep.subr.mxu0 0.0
      %4343 = vmatpush1.msra.mxu0 0.0
      %4344 = vmatprep.subr.mxu0 0.0
      %4345 = vmatpush1.msra.mxu0 0.0
      %4346 = vmatprep.subr.mxu0 0.0
      %4347 = vmatpush1.msra.mxu0 0.0
      %4348 = vmatprep.subr.mxu0 0.0
      %4349 = vmatpush1.msra.mxu0 0.0
      %4350 = vmatprep.subr.mxu0 0.0
      %4351 = vmatpush1.msra.mxu0 0.0
      %4352 = vmatprep.subr.mxu0 0.0
      %4353 = vmatpush1.msra.mxu0 0.0
      %4354 = vmatprep.subr.mxu0 0.0
      %4355 = vmatpush1.msra.mxu0 0.0
      %4356 = vmatprep.subr.mxu0 0.0
      %4357 = vmatpush1.msra.mxu0 0.0
      %4358 = vmatprep.subr.mxu0 0.0
      %4359 = vmatpush1.msra.mxu0 0.0
      %4360 = vmatprep.subr.mxu0 0.0
      %4361 = vmatpush1.msra.mxu0 0.0
      %4362 = vmatprep.subr.mxu0 0.0
      %4363 = vmatpush1.msra.mxu0 0.0
      %4364 = vmatprep.subr.mxu0 0.0
      %4365 = vmatpush1.msra.mxu0 0.0
      %4366 = vmatprep.subr.mxu0 0.0
      %4367 = vmatpush1.msra.mxu0 0.0
      %4368 = vmatprep.subr.mxu0 0.0
      %4369 = vmatpush1.msra.mxu0 0.0
      %4370 = vmatprep.subr.mxu0 0.0
      %4371 = vmatpush1.msra.mxu0 0.0
      %4372 = vmatprep.subr.mxu0 0.0
      %4373 = vmatpush1.msra.mxu0 0.0
      %4374 = vmatprep.subr.mxu0 0.0
      %4375 = vmatpush1.msra.mxu0 0.0
      %4376 = vmatprep.subr.mxu0 0.0
      %4377 = vmatpush1.msra.mxu0 0.0
      %4378 = vmatprep.subr.mxu0 0.0
      %4379 = vmatpush1.msra.mxu0 0.0
      %4380 = vmatprep.subr.mxu0 0.0
      %4381 = vmatpush1.msra.mxu0 0.0
      %4382 = vmatprep.mubr.f32.mxu0 0.0
      %4383 = vmatmul.mubr.f32.gmra.mrb[0].mxu0 %v4316
      %v4384 = vpop.f32.mrb[0].mxu0
      %v4385 = vadd.f32 0.0, %v4384
      %v4386 = vpop.f32.mrb[0].mxu0
      %4387 = vdwg.mxu0
      %v4389 = vsel %vm225, %v4093, 0
      %4391 = vmatprep.subr.mxu0 %v2008
      %4392 = vmatpush1.msra.mxu0 %v2007
      %4393 = vmatprep.subr.mxu0 %v2010
      %4394 = vmatpush1.msra.mxu0 %v2009
      %4395 = vmatprep.subr.mxu0 %v2012
      %4396 = vmatpush1.msra.mxu0 %v2011
      %4397 = vmatprep.subr.mxu0 %v2014
      %4398 = vmatpush1.msra.mxu0 %v2013
      %4399 = vmatprep.subr.mxu0 0.0
      %4400 = vmatpush1.msra.mxu0 0.0
      %4401 = vmatprep.subr.mxu0 0.0
      %4402 = vmatpush1.msra.mxu0 0.0
      %4403 = vmatprep.subr.mxu0 0.0
      %4404 = vmatpush1.msra.mxu0 0.0
      %4405 = vmatprep.subr.mxu0 0.0
      %4406 = vmatpush1.msra.mxu0 0.0
      %4407 = vmatprep.subr.mxu0 0.0
      %4408 = vmatpush1.msra.mxu0 0.0
      %4409 = vmatprep.subr.mxu0 0.0
      %4410 = vmatpush1.msra.mxu0 0.0
      %4411 = vmatprep.subr.mxu0 0.0
      %4412 = vmatpush1.msra.mxu0 0.0
      %4413 = vmatprep.subr.mxu0 0.0
      %4414 = vmatpush1.msra.mxu0 0.0
      %4415 = vmatprep.subr.mxu0 0.0
      %4416 = vmatpush1.msra.mxu0 0.0
      %4417 = vmatprep.subr.mxu0 0.0
      %4418 = vmatpush1.msra.mxu0 0.0
      %4419 = vmatprep.subr.mxu0 0.0
      %4420 = vmatpush1.msra.mxu0 0.0
      %4421 = vmatprep.subr.mxu0 0.0
      %4422 = vmatpush1.msra.mxu0 0.0
      %4423 = vmatprep.subr.mxu0 0.0
      %4424 = vmatpush1.msra.mxu0 0.0
      %4425 = vmatprep.subr.mxu0 0.0
      %4426 = vmatpush1.msra.mxu0 0.0
      %4427 = vmatprep.subr.mxu0 0.0
      %4428 = vmatpush1.msra.mxu0 0.0
      %4429 = vmatprep.subr.mxu0 0.0
      %4430 = vmatpush1.msra.mxu0 0.0
      %4431 = vmatprep.subr.mxu0 0.0
      %4432 = vmatpush1.msra.mxu0 0.0
      %4433 = vmatprep.subr.mxu0 0.0
      %4434 = vmatpush1.msra.mxu0 0.0
      %4435 = vmatprep.subr.mxu0 0.0
      %4436 = vmatpush1.msra.mxu0 0.0
      %4437 = vmatprep.subr.mxu0 0.0
      %4438 = vmatpush1.msra.mxu0 0.0
      %4439 = vmatprep.subr.mxu0 0.0
      %4440 = vmatpush1.msra.mxu0 0.0
      %4441 = vmatprep.subr.mxu0 0.0
      %4442 = vmatpush1.msra.mxu0 0.0
      %4443 = vmatprep.subr.mxu0 0.0
      %4444 = vmatpush1.msra.mxu0 0.0
      %4445 = vmatprep.subr.mxu0 0.0
      %4446 = vmatpush1.msra.mxu0 0.0
      %4447 = vmatprep.subr.mxu0 0.0
      %4448 = vmatpush1.msra.mxu0 0.0
      %4449 = vmatprep.subr.mxu0 0.0
      %4450 = vmatpush1.msra.mxu0 0.0
      %4451 = vmatprep.subr.mxu0 0.0
      %4452 = vmatpush1.msra.mxu0 0.0
      %4453 = vmatprep.subr.mxu0 0.0
      %4454 = vmatpush1.msra.mxu0 0.0
      %4455 = vmatprep.mubr.f32.mxu0 0.0
      %4456 = vmatmul.mubr.f32.gmra.mrb[0].mxu0 %v4389
      %v4457 = vpop.f32.mrb[0].mxu0
      %v4458 = vadd.f32 0.0, %v4457
      %v4459 = vpop.f32.mrb[0].mxu0
      %4460 = vdwg.mxu0
      %v4462 = vsel %vm225, %v4094, 0
      %4464 = vmatprep.subr.mxu0 %v2008
      %4465 = vmatpush1.msra.mxu0 %v2007
      %4466 = vmatprep.subr.mxu0 %v2010
      %4467 = vmatpush1.msra.mxu0 %v2009
      %4468 = vmatprep.subr.mxu0 %v2012
      %4469 = vmatpush1.msra.mxu0 %v2011
      %4470 = vmatprep.subr.mxu0 %v2014
      %4471 = vmatpush1.msra.mxu0 %v2013
      %4472 = vmatprep.subr.mxu0 0.0
      %4473 = vmatpush1.msra.mxu0 0.0
      %4474 = vmatprep.subr.mxu0 0.0
      %4475 = vmatpush1.msra.mxu0 0.0
      %4476 = vmatprep.subr.mxu0 0.0
      %4477 = vmatpush1.msra.mxu0 0.0
      %4478 = vmatprep.subr.mxu0 0.0
      %4479 = vmatpush1.msra.mxu0 0.0
      %4480 = vmatprep.subr.mxu0 0.0
      %4481 = vmatpush1.msra.mxu0 0.0
      %4482 = vmatprep.subr.mxu0 0.0
      %4483 = vmatpush1.msra.mxu0 0.0
      %4484 = vmatprep.subr.mxu0 0.0
      %4485 = vmatpush1.msra.mxu0 0.0
      %4486 = vmatprep.subr.mxu0 0.0
      %4487 = vmatpush1.msra.mxu0 0.0
      %4488 = vmatprep.subr.mxu0 0.0
      %4489 = vmatpush1.msra.mxu0 0.0
      %4490 = vmatprep.subr.mxu0 0.0
      %4491 = vmatpush1.msra.mxu0 0.0
      %4492 = vmatprep.subr.mxu0 0.0
      %4493 = vmatpush1.msra.mxu0 0.0
      %4494 = vmatprep.subr.mxu0 0.0
      %4495 = vmatpush1.msra.mxu0 0.0
      %4496 = vmatprep.subr.mxu0 0.0
      %4497 = vmatpush1.msra.mxu0 0.0
      %4498 = vmatprep.subr.mxu0 0.0
      %4499 = vmatpush1.msra.mxu0 0.0
      %4500 = vmatprep.subr.mxu0 0.0
      %4501 = vmatpush1.msra.mxu0 0.0
      %4502 = vmatprep.subr.mxu0 0.0
      %4503 = vmatpush1.msra.mxu0 0.0
      %4504 = vmatprep.subr.mxu0 0.0
      %4505 = vmatpush1.msra.mxu0 0.0
      %4506 = vmatprep.subr.mxu0 0.0
      %4507 = vmatpush1.msra.mxu0 0.0
      %4508 = vmatprep.subr.mxu0 0.0
      %4509 = vmatpush1.msra.mxu0 0.0
      %4510 = vmatprep.subr.mxu0 0.0
      %4511 = vmatpush1.msra.mxu0 0.0
      %4512 = vmatprep.subr.mxu0 0.0
      %4513 = vmatpush1.msra.mxu0 0.0
      %4514 = vmatprep.subr.mxu0 0.0
      %4515 = vmatpush1.msra.mxu0 0.0
      %4516 = vmatprep.subr.mxu0 0.0
      %4517 = vmatpush1.msra.mxu0 0.0
      %4518 = vmatprep.subr.mxu0 0.0
      %4519 = vmatpush1.msra.mxu0 0.0
      %4520 = vmatprep.subr.mxu0 0.0
      %4521 = vmatpush1.msra.mxu0 0.0
      %4522 = vmatprep.subr.mxu0 0.0
      %4523 = vmatpush1.msra.mxu0 0.0
      %4524 = vmatprep.subr.mxu0 0.0
      %4525 = vmatpush1.msra.mxu0 0.0
      %4526 = vmatprep.subr.mxu0 0.0
      %4527 = vmatpush1.msra.mxu0 0.0
      %4528 = vmatprep.mubr.f32.mxu0 0.0
      %4529 = vmatmul.mubr.f32.gmra.mrb[0].mxu0 %v4462
      %v4530 = vpop.f32.mrb[0].mxu0
      %v4531 = vadd.f32 0.0, %v4530
      %v4532 = vpop.f32.mrb[0].mxu0
      %4533 = vdwg.mxu0
      %v4535 = vsel %vm225, %v4095, 0
      %4537 = vmatprep.subr.mxu0 %v2008
      %4538 = vmatpush1.msra.mxu0 %v2007
      %4539 = vmatprep.subr.mxu0 %v2010
      %4540 = vmatpush1.msra.mxu0 %v2009
      %4541 = vmatprep.subr.mxu0 %v2012
      %4542 = vmatpush1.msra.mxu0 %v2011
      %4543 = vmatprep.subr.mxu0 %v2014
      %4544 = vmatpush1.msra.mxu0 %v2013
      %4545 = vmatprep.subr.mxu0 0.0
      %4546 = vmatpush1.msra.mxu0 0.0
      %4547 = vmatprep.subr.mxu0 0.0
      %4548 = vmatpush1.msra.mxu0 0.0
      %4549 = vmatprep.subr.mxu0 0.0
      %4550 = vmatpush1.msra.mxu0 0.0
      %4551 = vmatprep.subr.mxu0 0.0
      %4552 = vmatpush1.msra.mxu0 0.0
      %4553 = vmatprep.subr.mxu0 0.0
      %4554 = vmatpush1.msra.mxu0 0.0
      %4555 = vmatprep.subr.mxu0 0.0
      %4556 = vmatpush1.msra.mxu0 0.0
      %4557 = vmatprep.subr.mxu0 0.0
      %4558 = vmatpush1.msra.mxu0 0.0
      %4559 = vmatprep.subr.mxu0 0.0
      %4560 = vmatpush1.msra.mxu0 0.0
      %4561 = vmatprep.subr.mxu0 0.0
      %4562 = vmatpush1.msra.mxu0 0.0
      %4563 = vmatprep.subr.mxu0 0.0
      %4564 = vmatpush1.msra.mxu0 0.0
      %4565 = vmatprep.subr.mxu0 0.0
      %4566 = vmatpush1.msra.mxu0 0.0
      %4567 = vmatprep.subr.mxu0 0.0
      %4568 = vmatpush1.msra.mxu0 0.0
      %4569 = vmatprep.subr.mxu0 0.0
      %4570 = vmatpush1.msra.mxu0 0.0
      %4571 = vmatprep.subr.mxu0 0.0
      %4572 = vmatpush1.msra.mxu0 0.0
      %4573 = vmatprep.subr.mxu0 0.0
      %4574 = vmatpush1.msra.mxu0 0.0
      %4575 = vmatprep.subr.mxu0 0.0
      %4576 = vmatpush1.msra.mxu0 0.0
      %4577 = vmatprep.subr.mxu0 0.0
      %4578 = vmatpush1.msra.mxu0 0.0
      %4579 = vmatprep.subr.mxu0 0.0
      %4580 = vmatpush1.msra.mxu0 0.0
      %4581 = vmatprep.subr.mxu0 0.0
      %4582 = vmatpush1.msra.mxu0 0.0
      %4583 = vmatprep.subr.mxu0 0.0
      %4584 = vmatpush1.msra.mxu0 0.0
      %4585 = vmatprep.subr.mxu0 0.0
      %4586 = vmatpush1.msra.mxu0 0.0
      %4587 = vmatprep.subr.mxu0 0.0
      %4588 = vmatpush1.msra.mxu0 0.0
      %4589 = vmatprep.subr.mxu0 0.0
      %4590 = vmatpush1.msra.mxu0 0.0
      %4591 = vmatprep.subr.mxu0 0.0
      %4592 = vmatpush1.msra.mxu0 0.0
      %4593 = vmatprep.subr.mxu0 0.0
      %4594 = vmatpush1.msra.mxu0 0.0
      %4595 = vmatprep.subr.mxu0 0.0
      %4596 = vmatpush1.msra.mxu0 0.0
      %4597 = vmatprep.subr.mxu0 0.0
      %4598 = vmatpush1.msra.mxu0 0.0
      %4599 = vmatprep.subr.mxu0 0.0
      %4600 = vmatpush1.msra.mxu0 0.0
      %4601 = vmatprep.mubr.f32.mxu0 0.0
      %4602 = vmatmul.mubr.f32.gmra.mrb[0].mxu0 %v4535
      %v4603 = vpop.f32.mrb[0].mxu0
      %v4604 = vadd.f32 0.0, %v4603
      %v4605 = vpop.f32.mrb[0].mxu0
      %4606 = vdwg.mxu0
      %v4607 = vld [vmem:[%s1491] sm:$0x7f]
      %v4608 = vld [vmem:[%s1491 + $0x8] sm:$0x7f]
      %v4609 = vld [vmem:[%s1491 + $0x10] sm:$0x7f]
      %v4610 = vld [vmem:[%s1491 + $0x18] sm:$0x7f]
      %v4611 = vld [vmem:[%s1491 + $0x20] sm:$0x7f]
      %v4612 = vld [vmem:[%s1491 + $0x28] sm:$0x7f]
      %v4613 = vld [vmem:[%s1491 + $0x30] sm:$0x7f]
      %v4615 = vsel %vm225, %v4607, 0
      %4617 = vmatprep.subr.mxu0 %v2008
      %4618 = vmatpush1.msra.mxu0 %v2007
      %4619 = vmatprep.subr.mxu0 %v2010
      %4620 = vmatpush1.msra.mxu0 %v2009
      %4621 = vmatprep.subr.mxu0 %v2012
      %4622 = vmatpush1.msra.mxu0 %v2011
      %4623 = vmatprep.subr.mxu0 %v2014
      %4624 = vmatpush1.msra.mxu0 %v2013
      %4625 = vmatprep.subr.mxu0 0.0
      %4626 = vmatpush1.msra.mxu0 0.0
      %4627 = vmatprep.subr.mxu0 0.0
      %4628 = vmatpush1.msra.mxu0 0.0
      %4629 = vmatprep.subr.mxu0 0.0
      %4630 = vmatpush1.msra.mxu0 0.0
      %4631 = vmatprep.subr.mxu0 0.0
      %4632 = vmatpush1.msra.mxu0 0.0
      %4633 = vmatprep.subr.mxu0 0.0
      %4634 = vmatpush1.msra.mxu0 0.0
      %4635 = vmatprep.subr.mxu0 0.0
      %4636 = vmatpush1.msra.mxu0 0.0
      %4637 = vmatprep.subr.mxu0 0.0
      %4638 = vmatpush1.msra.mxu0 0.0
      %4639 = vmatprep.subr.mxu0 0.0
      %4640 = vmatpush1.msra.mxu0 0.0
      %4641 = vmatprep.subr.mxu0 0.0
      %4642 = vmatpush1.msra.mxu0 0.0
      %4643 = vmatprep.subr.mxu0 0.0
      %4644 = vmatpush1.msra.mxu0 0.0
      %4645 = vmatprep.subr.mxu0 0.0
      %4646 = vmatpush1.msra.mxu0 0.0
      %4647 = vmatprep.subr.mxu0 0.0
      %4648 = vmatpush1.msra.mxu0 0.0
      %4649 = vmatprep.subr.mxu0 0.0
      %4650 = vmatpush1.msra.mxu0 0.0
      %4651 = vmatprep.subr.mxu0 0.0
      %4652 = vmatpush1.msra.mxu0 0.0
      %4653 = vmatprep.subr.mxu0 0.0
      %4654 = vmatpush1.msra.mxu0 0.0
      %4655 = vmatprep.subr.mxu0 0.0
      %4656 = vmatpush1.msra.mxu0 0.0
      %4657 = vmatprep.subr.mxu0 0.0
      %4658 = vmatpush1.msra.mxu0 0.0
      %4659 = vmatprep.subr.mxu0 0.0
      %4660 = vmatpush1.msra.mxu0 0.0
      %4661 = vmatprep.subr.mxu0 0.0
      %4662 = vmatpush1.msra.mxu0 0.0
      %4663 = vmatprep.subr.mxu0 0.0
      %4664 = vmatpush1.msra.mxu0 0.0
      %4665 = vmatprep.subr.mxu0 0.0
      %4666 = vmatpush1.msra.mxu0 0.0
      %4667 = vmatprep.subr.mxu0 0.0
      %4668 = vmatpush1.msra.mxu0 0.0
      %4669 = vmatprep.subr.mxu0 0.0
      %4670 = vmatpush1.msra.mxu0 0.0
      %4671 = vmatprep.subr.mxu0 0.0
      %4672 = vmatpush1.msra.mxu0 0.0
      %4673 = vmatprep.subr.mxu0 0.0
      %4674 = vmatpush1.msra.mxu0 0.0
      %4675 = vmatprep.subr.mxu0 0.0
      %4676 = vmatpush1.msra.mxu0 0.0
      %4677 = vmatprep.subr.mxu0 0.0
      %4678 = vmatpush1.msra.mxu0 0.0
      %4679 = vmatprep.subr.mxu0 0.0
      %4680 = vmatpush1.msra.mxu0 0.0
      %4681 = vmatprep.mubr.f32.mxu0 0.0
      %4682 = vmatmul.mubr.f32.gmra.mrb[0].mxu0 %v4615
      %v4683 = vpop.f32.mrb[0].mxu0
      %v4684 = vadd.f32 0.0, %v4683
      %v4685 = vpop.f32.mrb[0].mxu0
      %4686 = vdwg.mxu0
      %v4688 = vsel %vm225, %v4608, 0
      %4690 = vmatprep.subr.mxu0 %v2008
      %4691 = vmatpush1.msra.mxu0 %v2007
      %4692 = vmatprep.subr.mxu0 %v2010
      %4693 = vmatpush1.msra.mxu0 %v2009
      %4694 = vmatprep.subr.mxu0 %v2012
      %4695 = vmatpush1.msra.mxu0 %v2011
      %4696 = vmatprep.subr.mxu0 %v2014
      %4697 = vmatpush1.msra.mxu0 %v2013
      %4698 = vmatprep.subr.mxu0 0.0
      %4699 = vmatpush1.msra.mxu0 0.0
      %4700 = vmatprep.subr.mxu0 0.0
      %4701 = vmatpush1.msra.mxu0 0.0
      %4702 = vmatprep.subr.mxu0 0.0
      %4703 = vmatpush1.msra.mxu0 0.0
      %4704 = vmatprep.subr.mxu0 0.0
      %4705 = vmatpush1.msra.mxu0 0.0
      %4706 = vmatprep.subr.mxu0 0.0
      %4707 = vmatpush1.msra.mxu0 0.0
      %4708 = vmatprep.subr.mxu0 0.0
      %4709 = vmatpush1.msra.mxu0 0.0
      %4710 = vmatprep.subr.mxu0 0.0
      %4711 = vmatpush1.msra.mxu0 0.0
      %4712 = vmatprep.subr.mxu0 0.0
      %4713 = vmatpush1.msra.mxu0 0.0
      %4714 = vmatprep.subr.mxu0 0.0
      %4715 = vmatpush1.msra.mxu0 0.0
      %4716 = vmatprep.subr.mxu0 0.0
      %4717 = vmatpush1.msra.mxu0 0.0
      %4718 = vmatprep.subr.mxu0 0.0
      %4719 = vmatpush1.msra.mxu0 0.0
      %4720 = vmatprep.subr.mxu0 0.0
      %4721 = vmatpush1.msra.mxu0 0.0
      %4722 = vmatprep.subr.mxu0 0.0
      %4723 = vmatpush1.msra.mxu0 0.0
      %4724 = vmatprep.subr.mxu0 0.0
      %4725 = vmatpush1.msra.mxu0 0.0
      %4726 = vmatprep.subr.mxu0 0.0
      %4727 = vmatpush1.msra.mxu0 0.0
      %4728 = vmatprep.subr.mxu0 0.0
      %4729 = vmatpush1.msra.mxu0 0.0
      %4730 = vmatprep.subr.mxu0 0.0
      %4731 = vmatpush1.msra.mxu0 0.0
      %4732 = vmatprep.subr.mxu0 0.0
      %4733 = vmatpush1.msra.mxu0 0.0
      %4734 = vmatprep.subr.mxu0 0.0
      %4735 = vmatpush1.msra.mxu0 0.0
      %4736 = vmatprep.subr.mxu0 0.0
      %4737 = vmatpush1.msra.mxu0 0.0
      %4738 = vmatprep.subr.mxu0 0.0
      %4739 = vmatpush1.msra.mxu0 0.0
      %4740 = vmatprep.subr.mxu0 0.0
      %4741 = vmatpush1.msra.mxu0 0.0
      %4742 = vmatprep.subr.mxu0 0.0
      %4743 = vmatpush1.msra.mxu0 0.0
      %4744 = vmatprep.subr.mxu0 0.0
      %4745 = vmatpush1.msra.mxu0 0.0
      %4746 = vmatprep.subr.mxu0 0.0
      %4747 = vmatpush1.msra.mxu0 0.0
      %4748 = vmatprep.subr.mxu0 0.0
      %4749 = vmatpush1.msra.mxu0 0.0
      %4750 = vmatprep.subr.mxu0 0.0
      %4751 = vmatpush1.msra.mxu0 0.0
      %4752 = vmatprep.subr.mxu0 0.0
      %4753 = vmatpush1.msra.mxu0 0.0
      %4754 = vmatprep.mubr.f32.mxu0 0.0
      %4755 = vmatmul.mubr.f32.gmra.mrb[0].mxu0 %v4688
      %v4756 = vpop.f32.mrb[0].mxu0
      %v4757 = vadd.f32 0.0, %v4756
      %v4758 = vpop.f32.mrb[0].mxu0
      %4759 = vdwg.mxu0
      %v4761 = vsel %vm225, %v4609, 0
      %4763 = vmatprep.subr.mxu0 %v2008
      %4764 = vmatpush1.msra.mxu0 %v2007
      %4765 = vmatprep.subr.mxu0 %v2010
      %4766 = vmatpush1.msra.mxu0 %v2009
      %4767 = vmatprep.subr.mxu0 %v2012
      %4768 = vmatpush1.msra.mxu0 %v2011
      %4769 = vmatprep.subr.mxu0 %v2014
      %4770 = vmatpush1.msra.mxu0 %v2013
      %4771 = vmatprep.subr.mxu0 0.0
      %4772 = vmatpush1.msra.mxu0 0.0
      %4773 = vmatprep.subr.mxu0 0.0
      %4774 = vmatpush1.msra.mxu0 0.0
      %4775 = vmatprep.subr.mxu0 0.0
      %4776 = vmatpush1.msra.mxu0 0.0
      %4777 = vmatprep.subr.mxu0 0.0
      %4778 = vmatpush1.msra.mxu0 0.0
      %4779 = vmatprep.subr.mxu0 0.0
      %4780 = vmatpush1.msra.mxu0 0.0
      %4781 = vmatprep.subr.mxu0 0.0
      %4782 = vmatpush1.msra.mxu0 0.0
      %4783 = vmatprep.subr.mxu0 0.0
      %4784 = vmatpush1.msra.mxu0 0.0
      %4785 = vmatprep.subr.mxu0 0.0
      %4786 = vmatpush1.msra.mxu0 0.0
      %4787 = vmatprep.subr.mxu0 0.0
      %4788 = vmatpush1.msra.mxu0 0.0
      %4789 = vmatprep.subr.mxu0 0.0
      %4790 = vmatpush1.msra.mxu0 0.0
      %4791 = vmatprep.subr.mxu0 0.0
      %4792 = vmatpush1.msra.mxu0 0.0
      %4793 = vmatprep.subr.mxu0 0.0
      %4794 = vmatpush1.msra.mxu0 0.0
      %4795 = vmatprep.subr.mxu0 0.0
      %4796 = vmatpush1.msra.mxu0 0.0
      %4797 = vmatprep.subr.mxu0 0.0
      %4798 = vmatpush1.msra.mxu0 0.0
      %4799 = vmatprep.subr.mxu0 0.0
      %4800 = vmatpush1.msra.mxu0 0.0
      %4801 = vmatprep.subr.mxu0 0.0
      %4802 = vmatpush1.msra.mxu0 0.0
      %4803 = vmatprep.subr.mxu0 0.0
      %4804 = vmatpush1.msra.mxu0 0.0
      %4805 = vmatprep.subr.mxu0 0.0
      %4806 = vmatpush1.msra.mxu0 0.0
      %4807 = vmatprep.subr.mxu0 0.0
      %4808 = vmatpush1.msra.mxu0 0.0
      %4809 = vmatprep.subr.mxu0 0.0
      %4810 = vmatpush1.msra.mxu0 0.0
      %4811 = vmatprep.subr.mxu0 0.0
      %4812 = vmatpush1.msra.mxu0 0.0
      %4813 = vmatprep.subr.mxu0 0.0
      %4814 = vmatpush1.msra.mxu0 0.0
      %4815 = vmatprep.subr.mxu0 0.0
      %4816 = vmatpush1.msra.mxu0 0.0
      %4817 = vmatprep.subr.mxu0 0.0
      %4818 = vmatpush1.msra.mxu0 0.0
      %4819 = vmatprep.subr.mxu0 0.0
      %4820 = vmatpush1.msra.mxu0 0.0
      %4821 = vmatprep.subr.mxu0 0.0
      %4822 = vmatpush1.msra.mxu0 0.0
      %4823 = vmatprep.subr.mxu0 0.0
      %4824 = vmatpush1.msra.mxu0 0.0
      %4825 = vmatprep.subr.mxu0 0.0
      %4826 = vmatpush1.msra.mxu0 0.0
      %4827 = vmatprep.mubr.f32.mxu0 0.0
      %4828 = vmatmul.mubr.f32.gmra.mrb[0].mxu0 %v4761
      %v4829 = vpop.f32.mrb[0].mxu0
      %v4830 = vadd.f32 0.0, %v4829
      %v4831 = vpop.f32.mrb[0].mxu0
      %4832 = vdwg.mxu0
      %v4834 = vsel %vm225, %v4610, 0
      %4836 = vmatprep.subr.mxu0 %v2008
      %4837 = vmatpush1.msra.mxu0 %v2007
      %4838 = vmatprep.subr.mxu0 %v2010
      %4839 = vmatpush1.msra.mxu0 %v2009
      %4840 = vmatprep.subr.mxu0 %v2012
      %4841 = vmatpush1.msra.mxu0 %v2011
      %4842 = vmatprep.subr.mxu0 %v2014
      %4843 = vmatpush1.msra.mxu0 %v2013
      %4844 = vmatprep.subr.mxu0 0.0
      %4845 = vmatpush1.msra.mxu0 0.0
      %4846 = vmatprep.subr.mxu0 0.0
      %4847 = vmatpush1.msra.mxu0 0.0
      %4848 = vmatprep.subr.mxu0 0.0
      %4849 = vmatpush1.msra.mxu0 0.0
      %4850 = vmatprep.subr.mxu0 0.0
      %4851 = vmatpush1.msra.mxu0 0.0
      %4852 = vmatprep.subr.mxu0 0.0
      %4853 = vmatpush1.msra.mxu0 0.0
      %4854 = vmatprep.subr.mxu0 0.0
      %4855 = vmatpush1.msra.mxu0 0.0
      %4856 = vmatprep.subr.mxu0 0.0
      %4857 = vmatpush1.msra.mxu0 0.0
      %4858 = vmatprep.subr.mxu0 0.0
      %4859 = vmatpush1.msra.mxu0 0.0
      %4860 = vmatprep.subr.mxu0 0.0
      %4861 = vmatpush1.msra.mxu0 0.0
      %4862 = vmatprep.subr.mxu0 0.0
      %4863 = vmatpush1.msra.mxu0 0.0
      %4864 = vmatprep.subr.mxu0 0.0
      %4865 = vmatpush1.msra.mxu0 0.0
      %4866 = vmatprep.subr.mxu0 0.0
      %4867 = vmatpush1.msra.mxu0 0.0
      %4868 = vmatprep.subr.mxu0 0.0
      %4869 = vmatpush1.msra.mxu0 0.0
      %4870 = vmatprep.subr.mxu0 0.0
      %4871 = vmatpush1.msra.mxu0 0.0
      %4872 = vmatprep.subr.mxu0 0.0
      %4873 = vmatpush1.msra.mxu0 0.0
      %4874 = vmatprep.subr.mxu0 0.0
      %4875 = vmatpush1.msra.mxu0 0.0
      %4876 = vmatprep.subr.mxu0 0.0
      %4877 = vmatpush1.msra.mxu0 0.0
      %4878 = vmatprep.subr.mxu0 0.0
      %4879 = vmatpush1.msra.mxu0 0.0
      %4880 = vmatprep.subr.mxu0 0.0
      %4881 = vmatpush1.msra.mxu0 0.0
      %4882 = vmatprep.subr.mxu0 0.0
      %4883 = vmatpush1.msra.mxu0 0.0
      %4884 = vmatprep.subr.mxu0 0.0
      %4885 = vmatpush1.msra.mxu0 0.0
      %4886 = vmatprep.subr.mxu0 0.0
      %4887 = vmatpush1.msra.mxu0 0.0
      %4888 = vmatprep.subr.mxu0 0.0
      %4889 = vmatpush1.msra.mxu0 0.0
      %4890 = vmatprep.subr.mxu0 0.0
      %4891 = vmatpush1.msra.mxu0 0.0
      %4892 = vmatprep.subr.mxu0 0.0
      %4893 = vmatpush1.msra.mxu0 0.0
      %4894 = vmatprep.subr.mxu0 0.0
      %4895 = vmatpush1.msra.mxu0 0.0
      %4896 = vmatprep.subr.mxu0 0.0
      %4897 = vmatpush1.msra.mxu0 0.0
      %4898 = vmatprep.subr.mxu0 0.0
      %4899 = vmatpush1.msra.mxu0 0.0
      %4900 = vmatprep.mubr.f32.mxu0 0.0
      %4901 = vmatmul.mubr.f32.gmra.mrb[0].mxu0 %v4834
      %v4902 = vpop.f32.mrb[0].mxu0
      %v4903 = vadd.f32 0.0, %v4902
      %v4904 = vpop.f32.mrb[0].mxu0
      %4905 = vdwg.mxu0
      %v4907 = vsel %vm225, %v4611, 0
      %4909 = vmatprep.subr.mxu0 %v2008
      %4910 = vmatpush1.msra.mxu0 %v2007
      %4911 = vmatprep.subr.mxu0 %v2010
      %4912 = vmatpush1.msra.mxu0 %v2009
      %4913 = vmatprep.subr.mxu0 %v2012
      %4914 = vmatpush1.msra.mxu0 %v2011
      %4915 = vmatprep.subr.mxu0 %v2014
      %4916 = vmatpush1.msra.mxu0 %v2013
      %4917 = vmatprep.subr.mxu0 0.0
      %4918 = vmatpush1.msra.mxu0 0.0
      %4919 = vmatprep.subr.mxu0 0.0
      %4920 = vmatpush1.msra.mxu0 0.0
      %4921 = vmatprep.subr.mxu0 0.0
      %4922 = vmatpush1.msra.mxu0 0.0
      %4923 = vmatprep.subr.mxu0 0.0
      %4924 = vmatpush1.msra.mxu0 0.0
      %4925 = vmatprep.subr.mxu0 0.0
      %4926 = vmatpush1.msra.mxu0 0.0
      %4927 = vmatprep.subr.mxu0 0.0
      %4928 = vmatpush1.msra.mxu0 0.0
      %4929 = vmatprep.subr.mxu0 0.0
      %4930 = vmatpush1.msra.mxu0 0.0
      %4931 = vmatprep.subr.mxu0 0.0
      %4932 = vmatpush1.msra.mxu0 0.0
      %4933 = vmatprep.subr.mxu0 0.0
      %4934 = vmatpush1.msra.mxu0 0.0
      %4935 = vmatprep.subr.mxu0 0.0
      %4936 = vmatpush1.msra.mxu0 0.0
      %4937 = vmatprep.subr.mxu0 0.0
      %4938 = vmatpush1.msra.mxu0 0.0
      %4939 = vmatprep.subr.mxu0 0.0
      %4940 = vmatpush1.msra.mxu0 0.0
      %4941 = vmatprep.subr.mxu0 0.0
      %4942 = vmatpush1.msra.mxu0 0.0
      %4943 = vmatprep.subr.mxu0 0.0
      %4944 = vmatpush1.msra.mxu0 0.0
      %4945 = vmatprep.subr.mxu0 0.0
      %4946 = vmatpush1.msra.mxu0 0.0
      %4947 = vmatprep.subr.mxu0 0.0
      %4948 = vmatpush1.msra.mxu0 0.0
      %4949 = vmatprep.subr.mxu0 0.0
      %4950 = vmatpush1.msra.mxu0 0.0
      %4951 = vmatprep.subr.mxu0 0.0
      %4952 = vmatpush1.msra.mxu0 0.0
      %4953 = vmatprep.subr.mxu0 0.0
      %4954 = vmatpush1.msra.mxu0 0.0
      %4955 = vmatprep.subr.mxu0 0.0
      %4956 = vmatpush1.msra.mxu0 0.0
      %4957 = vmatprep.subr.mxu0 0.0
      %4958 = vmatpush1.msra.mxu0 0.0
      %4959 = vmatprep.subr.mxu0 0.0
      %4960 = vmatpush1.msra.mxu0 0.0
      %4961 = vmatprep.subr.mxu0 0.0
      %4962 = vmatpush1.msra.mxu0 0.0
      %4963 = vmatprep.subr.mxu0 0.0
      %4964 = vmatpush1.msra.mxu0 0.0
      %4965 = vmatprep.subr.mxu0 0.0
      %4966 = vmatpush1.msra.mxu0 0.0
      %4967 = vmatprep.subr.mxu0 0.0
      %4968 = vmatpush1.msra.mxu0 0.0
      %4969 = vmatprep.subr.mxu0 0.0
      %4970 = vmatpush1.msra.mxu0 0.0
      %4971 = vmatprep.subr.mxu0 0.0
      %4972 = vmatpush1.msra.mxu0 0.0
      %4973 = vmatprep.mubr.f32.mxu0 0.0
      %4974 = vmatmul.mubr.f32.gmra.mrb[0].mxu0 %v4907
      %v4975 = vpop.f32.mrb[0].mxu0
      %v4976 = vadd.f32 0.0, %v4975
      %v4977 = vpop.f32.mrb[0].mxu0
      %4978 = vdwg.mxu0
      %v4980 = vsel %vm225, %v4612, 0
      %4982 = vmatprep.subr.mxu0 %v2008
      %4983 = vmatpush1.msra.mxu0 %v2007
      %4984 = vmatprep.subr.mxu0 %v2010
      %4985 = vmatpush1.msra.mxu0 %v2009
      %4986 = vmatprep.subr.mxu0 %v2012
      %4987 = vmatpush1.msra.mxu0 %v2011
      %4988 = vmatprep.subr.mxu0 %v2014
      %4989 = vmatpush1.msra.mxu0 %v2013
      %4990 = vmatprep.subr.mxu0 0.0
      %4991 = vmatpush1.msra.mxu0 0.0
      %4992 = vmatprep.subr.mxu0 0.0
      %4993 = vmatpush1.msra.mxu0 0.0
      %4994 = vmatprep.subr.mxu0 0.0
      %4995 = vmatpush1.msra.mxu0 0.0
      %4996 = vmatprep.subr.mxu0 0.0
      %4997 = vmatpush1.msra.mxu0 0.0
      %4998 = vmatprep.subr.mxu0 0.0
      %4999 = vmatpush1.msra.mxu0 0.0
      %5000 = vmatprep.subr.mxu0 0.0
      %5001 = vmatpush1.msra.mxu0 0.0
      %5002 = vmatprep.subr.mxu0 0.0
      %5003 = vmatpush1.msra.mxu0 0.0
      %5004 = vmatprep.subr.mxu0 0.0
      %5005 = vmatpush1.msra.mxu0 0.0
      %5006 = vmatprep.subr.mxu0 0.0
      %5007 = vmatpush1.msra.mxu0 0.0
      %5008 = vmatprep.subr.mxu0 0.0
      %5009 = vmatpush1.msra.mxu0 0.0
      %5010 = vmatprep.subr.mxu0 0.0
      %5011 = vmatpush1.msra.mxu0 0.0
      %5012 = vmatprep.subr.mxu0 0.0
      %5013 = vmatpush1.msra.mxu0 0.0
      %5014 = vmatprep.subr.mxu0 0.0
      %5015 = vmatpush1.msra.mxu0 0.0
      %5016 = vmatprep.subr.mxu0 0.0
      %5017 = vmatpush1.msra.mxu0 0.0
      %5018 = vmatprep.subr.mxu0 0.0
      %5019 = vmatpush1.msra.mxu0 0.0
      %5020 = vmatprep.subr.mxu0 0.0
      %5021 = vmatpush1.msra.mxu0 0.0
      %5022 = vmatprep.subr.mxu0 0.0
      %5023 = vmatpush1.msra.mxu0 0.0
      %5024 = vmatprep.subr.mxu0 0.0
      %5025 = vmatpush1.msra.mxu0 0.0
      %5026 = vmatprep.subr.mxu0 0.0
      %5027 = vmatpush1.msra.mxu0 0.0
      %5028 = vmatprep.subr.mxu0 0.0
      %5029 = vmatpush1.msra.mxu0 0.0
      %5030 = vmatprep.subr.mxu0 0.0
      %5031 = vmatpush1.msra.mxu0 0.0
      %5032 = vmatprep.subr.mxu0 0.0
      %5033 = vmatpush1.msra.mxu0 0.0
      %5034 = vmatprep.subr.mxu0 0.0
      %5035 = vmatpush1.msra.mxu0 0.0
      %5036 = vmatprep.subr.mxu0 0.0
      %5037 = vmatpush1.msra.mxu0 0.0
      %5038 = vmatprep.subr.mxu0 0.0
      %5039 = vmatpush1.msra.mxu0 0.0
      %5040 = vmatprep.subr.mxu0 0.0
      %5041 = vmatpush1.msra.mxu0 0.0
      %5042 = vmatprep.subr.mxu0 0.0
      %5043 = vmatpush1.msra.mxu0 0.0
      %5044 = vmatprep.subr.mxu0 0.0
      %5045 = vmatpush1.msra.mxu0 0.0
      %5046 = vmatprep.mubr.f32.mxu0 0.0
      %5047 = vmatmul.mubr.f32.gmra.mrb[0].mxu0 %v4980
      %v5048 = vpop.f32.mrb[0].mxu0
      %v5049 = vadd.f32 0.0, %v5048
      %v5050 = vpop.f32.mrb[0].mxu0
      %5051 = vdwg.mxu0
      %v5053 = vsel %vm225, %v4613, 0
      %5055 = vmatprep.subr.mxu0 %v2008
      %5056 = vmatpush1.msra.mxu0 %v2007
      %5057 = vmatprep.subr.mxu0 %v2010
      %5058 = vmatpush1.msra.mxu0 %v2009
      %5059 = vmatprep.subr.mxu0 %v2012
      %5060 = vmatpush1.msra.mxu0 %v2011
      %5061 = vmatprep.subr.mxu0 %v2014
      %5062 = vmatpush1.msra.mxu0 %v2013
      %5063 = vmatprep.subr.mxu0 0.0
      %5064 = vmatpush1.msra.mxu0 0.0
      %5065 = vmatprep.subr.mxu0 0.0
      %5066 = vmatpush1.msra.mxu0 0.0
      %5067 = vmatprep.subr.mxu0 0.0
      %5068 = vmatpush1.msra.mxu0 0.0
      %5069 = vmatprep.subr.mxu0 0.0
      %5070 = vmatpush1.msra.mxu0 0.0
      %5071 = vmatprep.subr.mxu0 0.0
      %5072 = vmatpush1.msra.mxu0 0.0
      %5073 = vmatprep.subr.mxu0 0.0
      %5074 = vmatpush1.msra.mxu0 0.0
      %5075 = vmatprep.subr.mxu0 0.0
      %5076 = vmatpush1.msra.mxu0 0.0
      %5077 = vmatprep.subr.mxu0 0.0
      %5078 = vmatpush1.msra.mxu0 0.0
      %5079 = vmatprep.subr.mxu0 0.0
      %5080 = vmatpush1.msra.mxu0 0.0
      %5081 = vmatprep.subr.mxu0 0.0
      %5082 = vmatpush1.msra.mxu0 0.0
      %5083 = vmatprep.subr.mxu0 0.0
      %5084 = vmatpush1.msra.mxu0 0.0
      %5085 = vmatprep.subr.mxu0 0.0
      %5086 = vmatpush1.msra.mxu0 0.0
      %5087 = vmatprep.subr.mxu0 0.0
      %5088 = vmatpush1.msra.mxu0 0.0
      %5089 = vmatprep.subr.mxu0 0.0
      %5090 = vmatpush1.msra.mxu0 0.0
      %5091 = vmatprep.subr.mxu0 0.0
      %5092 = vmatpush1.msra.mxu0 0.0
      %5093 = vmatprep.subr.mxu0 0.0
      %5094 = vmatpush1.msra.mxu0 0.0
      %5095 = vmatprep.subr.mxu0 0.0
      %5096 = vmatpush1.msra.mxu0 0.0
      %5097 = vmatprep.subr.mxu0 0.0
      %5098 = vmatpush1.msra.mxu0 0.0
      %5099 = vmatprep.subr.mxu0 0.0
      %5100 = vmatpush1.msra.mxu0 0.0
      %5101 = vmatprep.subr.mxu0 0.0
      %5102 = vmatpush1.msra.mxu0 0.0
      %5103 = vmatprep.subr.mxu0 0.0
      %5104 = vmatpush1.msra.mxu0 0.0
      %5105 = vmatprep.subr.mxu0 0.0
      %5106 = vmatpush1.msra.mxu0 0.0
      %5107 = vmatprep.subr.mxu0 0.0
      %5108 = vmatpush1.msra.mxu0 0.0
      %5109 = vmatprep.subr.mxu0 0.0
      %5110 = vmatpush1.msra.mxu0 0.0
      %5111 = vmatprep.subr.mxu0 0.0
      %5112 = vmatpush1.msra.mxu0 0.0
      %5113 = vmatprep.subr.mxu0 0.0
      %5114 = vmatpush1.msra.mxu0 0.0
      %5115 = vmatprep.subr.mxu0 0.0
      %5116 = vmatpush1.msra.mxu0 0.0
      %5117 = vmatprep.subr.mxu0 0.0
      %5118 = vmatpush1.msra.mxu0 0.0
      %5119 = vmatprep.mubr.f32.mxu0 0.0
      %5120 = vmatmul.mubr.f32.gmra.mrb[0].mxu0 %v5053
      %v5121 = vpop.f32.mrb[0].mxu0
      %v5122 = vadd.f32 0.0, %v5121
      %v5123 = vpop.f32.mrb[0].mxu0
      %5124 = vdwg.mxu0
      %v5125 = vld [vmem:[%s1661 + $0x1] sm:$0x7f]
      %v5126 = vld [vmem:[%s1661 + $0x9] sm:$0x7f]
      %v5127 = vld [vmem:[%s1661 + $0x11] sm:$0x7f]
      %v5128 = vld [vmem:[%s1661 + $0x19] sm:$0x7f]
      %v5129 = vld [vmem:[%s1661 + $0x21] sm:$0x7f]
      %v5130 = vld [vmem:[%s1661 + $0x29] sm:$0x7f]
      %v5131 = vld [vmem:[%s1661 + $0x31] sm:$0x7f]
      %v5133 = vsel %vm225, %v5125, 0
      %5135 = vmatprep.subr.mxu0 %v2008
      %5136 = vmatpush1.msra.mxu0 %v2007
      %5137 = vmatprep.subr.mxu0 %v2010
      %5138 = vmatpush1.msra.mxu0 %v2009
      %5139 = vmatprep.subr.mxu0 %v2012
      %5140 = vmatpush1.msra.mxu0 %v2011
      %5141 = vmatprep.subr.mxu0 %v2014
      %5142 = vmatpush1.msra.mxu0 %v2013
      %5143 = vmatprep.subr.mxu0 0.0
      %5144 = vmatpush1.msra.mxu0 0.0
      %5145 = vmatprep.subr.mxu0 0.0
      %5146 = vmatpush1.msra.mxu0 0.0
      %5147 = vmatprep.subr.mxu0 0.0
      %5148 = vmatpush1.msra.mxu0 0.0
      %5149 = vmatprep.subr.mxu0 0.0
      %5150 = vmatpush1.msra.mxu0 0.0
      %5151 = vmatprep.subr.mxu0 0.0
      %5152 = vmatpush1.msra.mxu0 0.0
      %5153 = vmatprep.subr.mxu0 0.0
      %5154 = vmatpush1.msra.mxu0 0.0
      %5155 = vmatprep.subr.mxu0 0.0
      %5156 = vmatpush1.msra.mxu0 0.0
      %5157 = vmatprep.subr.mxu0 0.0
      %5158 = vmatpush1.msra.mxu0 0.0
      %5159 = vmatprep.subr.mxu0 0.0
      %5160 = vmatpush1.msra.mxu0 0.0
      %5161 = vmatprep.subr.mxu0 0.0
      %5162 = vmatpush1.msra.mxu0 0.0
      %5163 = vmatprep.subr.mxu0 0.0
      %5164 = vmatpush1.msra.mxu0 0.0
      %5165 = vmatprep.subr.mxu0 0.0
      %5166 = vmatpush1.msra.mxu0 0.0
      %5167 = vmatprep.subr.mxu0 0.0
      %5168 = vmatpush1.msra.mxu0 0.0
      %5169 = vmatprep.subr.mxu0 0.0
      %5170 = vmatpush1.msra.mxu0 0.0
      %5171 = vmatprep.subr.mxu0 0.0
      %5172 = vmatpush1.msra.mxu0 0.0
      %5173 = vmatprep.subr.mxu0 0.0
      %5174 = vmatpush1.msra.mxu0 0.0
      %5175 = vmatprep.subr.mxu0 0.0
      %5176 = vmatpush1.msra.mxu0 0.0
      %5177 = vmatprep.subr.mxu0 0.0
      %5178 = vmatpush1.msra.mxu0 0.0
      %5179 = vmatprep.subr.mxu0 0.0
      %5180 = vmatpush1.msra.mxu0 0.0
      %5181 = vmatprep.subr.mxu0 0.0
      %5182 = vmatpush1.msra.mxu0 0.0
      %5183 = vmatprep.subr.mxu0 0.0
      %5184 = vmatpush1.msra.mxu0 0.0
      %5185 = vmatprep.subr.mxu0 0.0
      %5186 = vmatpush1.msra.mxu0 0.0
      %5187 = vmatprep.subr.mxu0 0.0
      %5188 = vmatpush1.msra.mxu0 0.0
      %5189 = vmatprep.subr.mxu0 0.0
      %5190 = vmatpush1.msra.mxu0 0.0
      %5191 = vmatprep.subr.mxu0 0.0
      %5192 = vmatpush1.msra.mxu0 0.0
      %5193 = vmatprep.subr.mxu0 0.0
      %5194 = vmatpush1.msra.mxu0 0.0
      %5195 = vmatprep.subr.mxu0 0.0
      %5196 = vmatpush1.msra.mxu0 0.0
      %5197 = vmatprep.subr.mxu0 0.0
      %5198 = vmatpush1.msra.mxu0 0.0
      %5199 = vmatprep.mubr.f32.mxu0 0.0
      %5200 = vmatmul.mubr.f32.gmra.mrb[0].mxu0 %v5133
      %v5201 = vpop.f32.mrb[0].mxu0
      %v5202 = vadd.f32 0.0, %v5201
      %v5203 = vpop.f32.mrb[0].mxu0
      %5204 = vdwg.mxu0
      %v5206 = vsel %vm225, %v5126, 0
      %5208 = vmatprep.subr.mxu0 %v2008
      %5209 = vmatpush1.msra.mxu0 %v2007
      %5210 = vmatprep.subr.mxu0 %v2010
      %5211 = vmatpush1.msra.mxu0 %v2009
      %5212 = vmatprep.subr.mxu0 %v2012
      %5213 = vmatpush1.msra.mxu0 %v2011
      %5214 = vmatprep.subr.mxu0 %v2014
      %5215 = vmatpush1.msra.mxu0 %v2013
      %5216 = vmatprep.subr.mxu0 0.0
      %5217 = vmatpush1.msra.mxu0 0.0
      %5218 = vmatprep.subr.mxu0 0.0
      %5219 = vmatpush1.msra.mxu0 0.0
      %5220 = vmatprep.subr.mxu0 0.0
      %5221 = vmatpush1.msra.mxu0 0.0
      %5222 = vmatprep.subr.mxu0 0.0
      %5223 = vmatpush1.msra.mxu0 0.0
      %5224 = vmatprep.subr.mxu0 0.0
      %5225 = vmatpush1.msra.mxu0 0.0
      %5226 = vmatprep.subr.mxu0 0.0
      %5227 = vmatpush1.msra.mxu0 0.0
      %5228 = vmatprep.subr.mxu0 0.0
      %5229 = vmatpush1.msra.mxu0 0.0
      %5230 = vmatprep.subr.mxu0 0.0
      %5231 = vmatpush1.msra.mxu0 0.0
      %5232 = vmatprep.subr.mxu0 0.0
      %5233 = vmatpush1.msra.mxu0 0.0
      %5234 = vmatprep.subr.mxu0 0.0
      %5235 = vmatpush1.msra.mxu0 0.0
      %5236 = vmatprep.subr.mxu0 0.0
      %5237 = vmatpush1.msra.mxu0 0.0
      %5238 = vmatprep.subr.mxu0 0.0
      %5239 = vmatpush1.msra.mxu0 0.0
      %5240 = vmatprep.subr.mxu0 0.0
      %5241 = vmatpush1.msra.mxu0 0.0
      %5242 = vmatprep.subr.mxu0 0.0
      %5243 = vmatpush1.msra.mxu0 0.0
      %5244 = vmatprep.subr.mxu0 0.0
      %5245 = vmatpush1.msra.mxu0 0.0
      %5246 = vmatprep.subr.mxu0 0.0
      %5247 = vmatpush1.msra.mxu0 0.0
      %5248 = vmatprep.subr.mxu0 0.0
      %5249 = vmatpush1.msra.mxu0 0.0
      %5250 = vmatprep.subr.mxu0 0.0
      %5251 = vmatpush1.msra.mxu0 0.0
      %5252 = vmatprep.subr.mxu0 0.0
      %5253 = vmatpush1.msra.mxu0 0.0
      %5254 = vmatprep.subr.mxu0 0.0
      %5255 = vmatpush1.msra.mxu0 0.0
      %5256 = vmatprep.subr.mxu0 0.0
      %5257 = vmatpush1.msra.mxu0 0.0
      %5258 = vmatprep.subr.mxu0 0.0
      %5259 = vmatpush1.msra.mxu0 0.0
      %5260 = vmatprep.subr.mxu0 0.0
      %5261 = vmatpush1.msra.mxu0 0.0
      %5262 = vmatprep.subr.mxu0 0.0
      %5263 = vmatpush1.msra.mxu0 0.0
      %5264 = vmatprep.subr.mxu0 0.0
      %5265 = vmatpush1.msra.mxu0 0.0
      %5266 = vmatprep.subr.mxu0 0.0
      %5267 = vmatpush1.msra.mxu0 0.0
      %5268 = vmatprep.subr.mxu0 0.0
      %5269 = vmatpush1.msra.mxu0 0.0
      %5270 = vmatprep.subr.mxu0 0.0
      %5271 = vmatpush1.msra.mxu0 0.0
      %5272 = vmatprep.mubr.f32.mxu0 0.0
      %5273 = vmatmul.mubr.f32.gmra.mrb[0].mxu0 %v5206
      %v5274 = vpop.f32.mrb[0].mxu0
      %v5275 = vadd.f32 0.0, %v5274
      %v5276 = vpop.f32.mrb[0].mxu0
      %5277 = vdwg.mxu0
      %v5279 = vsel %vm225, %v5127, 0
      %5281 = vmatprep.subr.mxu0 %v2008
      %5282 = vmatpush1.msra.mxu0 %v2007
      %5283 = vmatprep.subr.mxu0 %v2010
      %5284 = vmatpush1.msra.mxu0 %v2009
      %5285 = vmatprep.subr.mxu0 %v2012
      %5286 = vmatpush1.msra.mxu0 %v2011
      %5287 = vmatprep.subr.mxu0 %v2014
      %5288 = vmatpush1.msra.mxu0 %v2013
      %5289 = vmatprep.subr.mxu0 0.0
      %5290 = vmatpush1.msra.mxu0 0.0
      %5291 = vmatprep.subr.mxu0 0.0
      %5292 = vmatpush1.msra.mxu0 0.0
      %5293 = vmatprep.subr.mxu0 0.0
      %5294 = vmatpush1.msra.mxu0 0.0
      %5295 = vmatprep.subr.mxu0 0.0
      %5296 = vmatpush1.msra.mxu0 0.0
      %5297 = vmatprep.subr.mxu0 0.0
      %5298 = vmatpush1.msra.mxu0 0.0
      %5299 = vmatprep.subr.mxu0 0.0
      %5300 = vmatpush1.msra.mxu0 0.0
      %5301 = vmatprep.subr.mxu0 0.0
      %5302 = vmatpush1.msra.mxu0 0.0
      %5303 = vmatprep.subr.mxu0 0.0
      %5304 = vmatpush1.msra.mxu0 0.0
      %5305 = vmatprep.subr.mxu0 0.0
      %5306 = vmatpush1.msra.mxu0 0.0
      %5307 = vmatprep.subr.mxu0 0.0
      %5308 = vmatpush1.msra.mxu0 0.0
      %5309 = vmatprep.subr.mxu0 0.0
      %5310 = vmatpush1.msra.mxu0 0.0
      %5311 = vmatprep.subr.mxu0 0.0
      %5312 = vmatpush1.msra.mxu0 0.0
      %5313 = vmatprep.subr.mxu0 0.0
      %5314 = vmatpush1.msra.mxu0 0.0
      %5315 = vmatprep.subr.mxu0 0.0
      %5316 = vmatpush1.msra.mxu0 0.0
      %5317 = vmatprep.subr.mxu0 0.0
      %5318 = vmatpush1.msra.mxu0 0.0
      %5319 = vmatprep.subr.mxu0 0.0
      %5320 = vmatpush1.msra.mxu0 0.0
      %5321 = vmatprep.subr.mxu0 0.0
      %5322 = vmatpush1.msra.mxu0 0.0
      %5323 = vmatprep.subr.mxu0 0.0
      %5324 = vmatpush1.msra.mxu0 0.0
      %5325 = vmatprep.subr.mxu0 0.0
      %5326 = vmatpush1.msra.mxu0 0.0
      %5327 = vmatprep.subr.mxu0 0.0
      %5328 = vmatpush1.msra.mxu0 0.0
      %5329 = vmatprep.subr.mxu0 0.0
      %5330 = vmatpush1.msra.mxu0 0.0
      %5331 = vmatprep.subr.mxu0 0.0
      %5332 = vmatpush1.msra.mxu0 0.0
      %5333 = vmatprep.subr.mxu0 0.0
      %5334 = vmatpush1.msra.mxu0 0.0
      %5335 = vmatprep.subr.mxu0 0.0
      %5336 = vmatpush1.msra.mxu0 0.0
      %5337 = vmatprep.subr.mxu0 0.0
      %5338 = vmatpush1.msra.mxu0 0.0
      %5339 = vmatprep.subr.mxu0 0.0
      %5340 = vmatpush1.msra.mxu0 0.0
      %5341 = vmatprep.subr.mxu0 0.0
      %5342 = vmatpush1.msra.mxu0 0.0
      %5343 = vmatprep.subr.mxu0 0.0
      %5344 = vmatpush1.msra.mxu0 0.0
      %5345 = vmatprep.mubr.f32.mxu0 0.0
      %5346 = vmatmul.mubr.f32.gmra.mrb[0].mxu0 %v5279
      %v5347 = vpop.f32.mrb[0].mxu0
      %v5348 = vadd.f32 0.0, %v5347
      %v5349 = vpop.f32.mrb[0].mxu0
      %5350 = vdwg.mxu0
      %v5352 = vsel %vm225, %v5128, 0
      %5354 = vmatprep.subr.mxu0 %v2008
      %5355 = vmatpush1.msra.mxu0 %v2007
      %5356 = vmatprep.subr.mxu0 %v2010
      %5357 = vmatpush1.msra.mxu0 %v2009
      %5358 = vmatprep.subr.mxu0 %v2012
      %5359 = vmatpush1.msra.mxu0 %v2011
      %5360 = vmatprep.subr.mxu0 %v2014
      %5361 = vmatpush1.msra.mxu0 %v2013
      %5362 = vmatprep.subr.mxu0 0.0
      %5363 = vmatpush1.msra.mxu0 0.0
      %5364 = vmatprep.subr.mxu0 0.0
      %5365 = vmatpush1.msra.mxu0 0.0
      %5366 = vmatprep.subr.mxu0 0.0
      %5367 = vmatpush1.msra.mxu0 0.0
      %5368 = vmatprep.subr.mxu0 0.0
      %5369 = vmatpush1.msra.mxu0 0.0
      %5370 = vmatprep.subr.mxu0 0.0
      %5371 = vmatpush1.msra.mxu0 0.0
      %5372 = vmatprep.subr.mxu0 0.0
      %5373 = vmatpush1.msra.mxu0 0.0
      %5374 = vmatprep.subr.mxu0 0.0
      %5375 = vmatpush1.msra.mxu0 0.0
      %5376 = vmatprep.subr.mxu0 0.0
      %5377 = vmatpush1.msra.mxu0 0.0
      %5378 = vmatprep.subr.mxu0 0.0
      %5379 = vmatpush1.msra.mxu0 0.0
      %5380 = vmatprep.subr.mxu0 0.0
      %5381 = vmatpush1.msra.mxu0 0.0
      %5382 = vmatprep.subr.mxu0 0.0
      %5383 = vmatpush1.msra.mxu0 0.0
      %5384 = vmatprep.subr.mxu0 0.0
      %5385 = vmatpush1.msra.mxu0 0.0
      %5386 = vmatprep.subr.mxu0 0.0
      %5387 = vmatpush1.msra.mxu0 0.0
      %5388 = vmatprep.subr.mxu0 0.0
      %5389 = vmatpush1.msra.mxu0 0.0
      %5390 = vmatprep.subr.mxu0 0.0
      %5391 = vmatpush1.msra.mxu0 0.0
      %5392 = vmatprep.subr.mxu0 0.0
      %5393 = vmatpush1.msra.mxu0 0.0
      %5394 = vmatprep.subr.mxu0 0.0
      %5395 = vmatpush1.msra.mxu0 0.0
      %5396 = vmatprep.subr.mxu0 0.0
      %5397 = vmatpush1.msra.mxu0 0.0
      %5398 = vmatprep.subr.mxu0 0.0
      %5399 = vmatpush1.msra.mxu0 0.0
      %5400 = vmatprep.subr.mxu0 0.0
      %5401 = vmatpush1.msra.mxu0 0.0
      %5402 = vmatprep.subr.mxu0 0.0
      %5403 = vmatpush1.msra.mxu0 0.0
      %5404 = vmatprep.subr.mxu0 0.0
      %5405 = vmatpush1.msra.mxu0 0.0
      %5406 = vmatprep.subr.mxu0 0.0
      %5407 = vmatpush1.msra.mxu0 0.0
      %5408 = vmatprep.subr.mxu0 0.0
      %5409 = vmatpush1.msra.mxu0 0.0
      %5410 = vmatprep.subr.mxu0 0.0
      %5411 = vmatpush1.msra.mxu0 0.0
      %5412 = vmatprep.subr.mxu0 0.0
      %5413 = vmatpush1.msra.mxu0 0.0
      %5414 = vmatprep.subr.mxu0 0.0
      %5415 = vmatpush1.msra.mxu0 0.0
      %5416 = vmatprep.subr.mxu0 0.0
      %5417 = vmatpush1.msra.mxu0 0.0
      %5418 = vmatprep.mubr.f32.mxu0 0.0
      %5419 = vmatmul.mubr.f32.gmra.mrb[0].mxu0 %v5352
      %v5420 = vpop.f32.mrb[0].mxu0
      %v5421 = vadd.f32 0.0, %v5420
      %v5422 = vpop.f32.mrb[0].mxu0
      %5423 = vdwg.mxu0
      %v5425 = vsel %vm225, %v5129, 0
      %5427 = vmatprep.subr.mxu0 %v2008
      %5428 = vmatpush1.msra.mxu0 %v2007
      %5429 = vmatprep.subr.mxu0 %v2010
      %5430 = vmatpush1.msra.mxu0 %v2009
      %5431 = vmatprep.subr.mxu0 %v2012
      %5432 = vmatpush1.msra.mxu0 %v2011
      %5433 = vmatprep.subr.mxu0 %v2014
      %5434 = vmatpush1.msra.mxu0 %v2013
      %5435 = vmatprep.subr.mxu0 0.0
      %5436 = vmatpush1.msra.mxu0 0.0
      %5437 = vmatprep.subr.mxu0 0.0
      %5438 = vmatpush1.msra.mxu0 0.0
      %5439 = vmatprep.subr.mxu0 0.0
      %5440 = vmatpush1.msra.mxu0 0.0
      %5441 = vmatprep.subr.mxu0 0.0
      %5442 = vmatpush1.msra.mxu0 0.0
      %5443 = vmatprep.subr.mxu0 0.0
      %5444 = vmatpush1.msra.mxu0 0.0
      %5445 = vmatprep.subr.mxu0 0.0
      %5446 = vmatpush1.msra.mxu0 0.0
      %5447 = vmatprep.subr.mxu0 0.0
      %5448 = vmatpush1.msra.mxu0 0.0
      %5449 = vmatprep.subr.mxu0 0.0
      %5450 = vmatpush1.msra.mxu0 0.0
      %5451 = vmatprep.subr.mxu0 0.0
      %5452 = vmatpush1.msra.mxu0 0.0
      %5453 = vmatprep.subr.mxu0 0.0
      %5454 = vmatpush1.msra.mxu0 0.0
      %5455 = vmatprep.subr.mxu0 0.0
      %5456 = vmatpush1.msra.mxu0 0.0
      %5457 = vmatprep.subr.mxu0 0.0
      %5458 = vmatpush1.msra.mxu0 0.0
      %5459 = vmatprep.subr.mxu0 0.0
      %5460 = vmatpush1.msra.mxu0 0.0
      %5461 = vmatprep.subr.mxu0 0.0
      %5462 = vmatpush1.msra.mxu0 0.0
      %5463 = vmatprep.subr.mxu0 0.0
      %5464 = vmatpush1.msra.mxu0 0.0
      %5465 = vmatprep.subr.mxu0 0.0
      %5466 = vmatpush1.msra.mxu0 0.0
      %5467 = vmatprep.subr.mxu0 0.0
      %5468 = vmatpush1.msra.mxu0 0.0
      %5469 = vmatprep.subr.mxu0 0.0
      %5470 = vmatpush1.msra.mxu0 0.0
      %5471 = vmatprep.subr.mxu0 0.0
      %5472 = vmatpush1.msra.mxu0 0.0
      %5473 = vmatprep.subr.mxu0 0.0
      %5474 = vmatpush1.msra.mxu0 0.0
      %5475 = vmatprep.subr.mxu0 0.0
      %5476 = vmatpush1.msra.mxu0 0.0
      %5477 = vmatprep.subr.mxu0 0.0
      %5478 = vmatpush1.msra.mxu0 0.0
      %5479 = vmatprep.subr.mxu0 0.0
      %5480 = vmatpush1.msra.mxu0 0.0
      %5481 = vmatprep.subr.mxu0 0.0
      %5482 = vmatpush1.msra.mxu0 0.0
      %5483 = vmatprep.subr.mxu0 0.0
      %5484 = vmatpush1.msra.mxu0 0.0
      %5485 = vmatprep.subr.mxu0 0.0
      %5486 = vmatpush1.msra.mxu0 0.0
      %5487 = vmatprep.subr.mxu0 0.0
      %5488 = vmatpush1.msra.mxu0 0.0
      %5489 = vmatprep.subr.mxu0 0.0
      %5490 = vmatpush1.msra.mxu0 0.0
      %5491 = vmatprep.mubr.f32.mxu0 0.0
      %5492 = vmatmul.mubr.f32.gmra.mrb[0].mxu0 %v5425
      %v5493 = vpop.f32.mrb[0].mxu0
      %v5494 = vadd.f32 0.0, %v5493
      %v5495 = vpop.f32.mrb[0].mxu0
      %5496 = vdwg.mxu0
      %v5498 = vsel %vm225, %v5130, 0
      %5500 = vmatprep.subr.mxu0 %v2008
      %5501 = vmatpush1.msra.mxu0 %v2007
      %5502 = vmatprep.subr.mxu0 %v2010
      %5503 = vmatpush1.msra.mxu0 %v2009
      %5504 = vmatprep.subr.mxu0 %v2012
      %5505 = vmatpush1.msra.mxu0 %v2011
      %5506 = vmatprep.subr.mxu0 %v2014
      %5507 = vmatpush1.msra.mxu0 %v2013
      %5508 = vmatprep.subr.mxu0 0.0
      %5509 = vmatpush1.msra.mxu0 0.0
      %5510 = vmatprep.subr.mxu0 0.0
      %5511 = vmatpush1.msra.mxu0 0.0
      %5512 = vmatprep.subr.mxu0 0.0
      %5513 = vmatpush1.msra.mxu0 0.0
      %5514 = vmatprep.subr.mxu0 0.0
      %5515 = vmatpush1.msra.mxu0 0.0
      %5516 = vmatprep.subr.mxu0 0.0
      %5517 = vmatpush1.msra.mxu0 0.0
      %5518 = vmatprep.subr.mxu0 0.0
      %5519 = vmatpush1.msra.mxu0 0.0
      %5520 = vmatprep.subr.mxu0 0.0
      %5521 = vmatpush1.msra.mxu0 0.0
      %5522 = vmatprep.subr.mxu0 0.0
      %5523 = vmatpush1.msra.mxu0 0.0
      %5524 = vmatprep.subr.mxu0 0.0
      %5525 = vmatpush1.msra.mxu0 0.0
      %5526 = vmatprep.subr.mxu0 0.0
      %5527 = vmatpush1.msra.mxu0 0.0
      %5528 = vmatprep.subr.mxu0 0.0
      %5529 = vmatpush1.msra.mxu0 0.0
      %5530 = vmatprep.subr.mxu0 0.0
      %5531 = vmatpush1.msra.mxu0 0.0
      %5532 = vmatprep.subr.mxu0 0.0
      %5533 = vmatpush1.msra.mxu0 0.0
      %5534 = vmatprep.subr.mxu0 0.0
      %5535 = vmatpush1.msra.mxu0 0.0
      %5536 = vmatprep.subr.mxu0 0.0
      %5537 = vmatpush1.msra.mxu0 0.0
      %5538 = vmatprep.subr.mxu0 0.0
      %5539 = vmatpush1.msra.mxu0 0.0
      %5540 = vmatprep.subr.mxu0 0.0
      %5541 = vmatpush1.msra.mxu0 0.0
      %5542 = vmatprep.subr.mxu0 0.0
      %5543 = vmatpush1.msra.mxu0 0.0
      %5544 = vmatprep.subr.mxu0 0.0
      %5545 = vmatpush1.msra.mxu0 0.0
      %5546 = vmatprep.subr.mxu0 0.0
      %5547 = vmatpush1.msra.mxu0 0.0
      %5548 = vmatprep.subr.mxu0 0.0
      %5549 = vmatpush1.msra.mxu0 0.0
      %5550 = vmatprep.subr.mxu0 0.0
      %5551 = vmatpush1.msra.mxu0 0.0
      %5552 = vmatprep.subr.mxu0 0.0
      %5553 = vmatpush1.msra.mxu0 0.0
      %5554 = vmatprep.subr.mxu0 0.0
      %5555 = vmatpush1.msra.mxu0 0.0
      %5556 = vmatprep.subr.mxu0 0.0
      %5557 = vmatpush1.msra.mxu0 0.0
      %5558 = vmatprep.subr.mxu0 0.0
      %5559 = vmatpush1.msra.mxu0 0.0
      %5560 = vmatprep.subr.mxu0 0.0
      %5561 = vmatpush1.msra.mxu0 0.0
      %5562 = vmatprep.subr.mxu0 0.0
      %5563 = vmatpush1.msra.mxu0 0.0
      %5564 = vmatprep.mubr.f32.mxu0 0.0
      %5565 = vmatmul.mubr.f32.gmra.mrb[0].mxu0 %v5498
      %v5566 = vpop.f32.mrb[0].mxu0
      %v5567 = vadd.f32 0.0, %v5566
      %v5568 = vpop.f32.mrb[0].mxu0
      %5569 = vdwg.mxu0
      %v5571 = vsel %vm225, %v5131, 0
      %5573 = vmatprep.subr.mxu0 %v2008
      %5574 = vmatpush1.msra.mxu0 %v2007
      %5575 = vmatprep.subr.mxu0 %v2010
      %5576 = vmatpush1.msra.mxu0 %v2009
      %5577 = vmatprep.subr.mxu0 %v2012
      %5578 = vmatpush1.msra.mxu0 %v2011
      %5579 = vmatprep.subr.mxu0 %v2014
      %5580 = vmatpush1.msra.mxu0 %v2013
      %5581 = vmatprep.subr.mxu0 0.0
      %5582 = vmatpush1.msra.mxu0 0.0
      %5583 = vmatprep.subr.mxu0 0.0
      %5584 = vmatpush1.msra.mxu0 0.0
      %5585 = vmatprep.subr.mxu0 0.0
      %5586 = vmatpush1.msra.mxu0 0.0
      %5587 = vmatprep.subr.mxu0 0.0
      %5588 = vmatpush1.msra.mxu0 0.0
      %5589 = vmatprep.subr.mxu0 0.0
      %5590 = vmatpush1.msra.mxu0 0.0
      %5591 = vmatprep.subr.mxu0 0.0
      %5592 = vmatpush1.msra.mxu0 0.0
      %5593 = vmatprep.subr.mxu0 0.0
      %5594 = vmatpush1.msra.mxu0 0.0
      %5595 = vmatprep.subr.mxu0 0.0
      %5596 = vmatpush1.msra.mxu0 0.0
      %5597 = vmatprep.subr.mxu0 0.0
      %5598 = vmatpush1.msra.mxu0 0.0
      %5599 = vmatprep.subr.mxu0 0.0
      %5600 = vmatpush1.msra.mxu0 0.0
      %5601 = vmatprep.subr.mxu0 0.0
      %5602 = vmatpush1.msra.mxu0 0.0
      %5603 = vmatprep.subr.mxu0 0.0
      %5604 = vmatpush1.msra.mxu0 0.0
      %5605 = vmatprep.subr.mxu0 0.0
      %5606 = vmatpush1.msra.mxu0 0.0
      %5607 = vmatprep.subr.mxu0 0.0
      %5608 = vmatpush1.msra.mxu0 0.0
      %5609 = vmatprep.subr.mxu0 0.0
      %5610 = vmatpush1.msra.mxu0 0.0
      %5611 = vmatprep.subr.mxu0 0.0
      %5612 = vmatpush1.msra.mxu0 0.0
      %5613 = vmatprep.subr.mxu0 0.0
      %5614 = vmatpush1.msra.mxu0 0.0
      %5615 = vmatprep.subr.mxu0 0.0
      %5616 = vmatpush1.msra.mxu0 0.0
      %5617 = vmatprep.subr.mxu0 0.0
      %5618 = vmatpush1.msra.mxu0 0.0
      %5619 = vmatprep.subr.mxu0 0.0
      %5620 = vmatpush1.msra.mxu0 0.0
      %5621 = vmatprep.subr.mxu0 0.0
      %5622 = vmatpush1.msra.mxu0 0.0
      %5623 = vmatprep.subr.mxu0 0.0
      %5624 = vmatpush1.msra.mxu0 0.0
      %5625 = vmatprep.subr.mxu0 0.0
      %5626 = vmatpush1.msra.mxu0 0.0
      %5627 = vmatprep.subr.mxu0 0.0
      %5628 = vmatpush1.msra.mxu0 0.0
      %5629 = vmatprep.subr.mxu0 0.0
      %5630 = vmatpush1.msra.mxu0 0.0
      %5631 = vmatprep.subr.mxu0 0.0
      %5632 = vmatpush1.msra.mxu0 0.0
      %5633 = vmatprep.subr.mxu0 0.0
      %5634 = vmatpush1.msra.mxu0 0.0
      %5635 = vmatprep.subr.mxu0 0.0
      %5636 = vmatpush1.msra.mxu0 0.0
      %5637 = vmatprep.mubr.f32.mxu0 0.0
      %5638 = vmatmul.mubr.f32.gmra.mrb[0].mxu0 %v5571
      %v5639 = vpop.f32.mrb[0].mxu0
      %v5640 = vadd.f32 0.0, %v5639
      %v5641 = vpop.f32.mrb[0].mxu0
      %5642 = vdwg.mxu0
      %v5643 = vld [vmem:[%s1491 + $0x1] sm:$0x7f]
      %v5644 = vld [vmem:[%s1491 + $0x9] sm:$0x7f]
      %v5645 = vld [vmem:[%s1491 + $0x11] sm:$0x7f]
      %v5646 = vld [vmem:[%s1491 + $0x19] sm:$0x7f]
      %v5647 = vld [vmem:[%s1491 + $0x21] sm:$0x7f]
      %v5648 = vld [vmem:[%s1491 + $0x29] sm:$0x7f]
      %v5649 = vld [vmem:[%s1491 + $0x31] sm:$0x7f]
      %v5651 = vsel %vm225, %v5643, 0
      %5653 = vmatprep.subr.mxu0 %v2008
      %5654 = vmatpush1.msra.mxu0 %v2007
      %5655 = vmatprep.subr.mxu0 %v2010
      %5656 = vmatpush1.msra.mxu0 %v2009
      %5657 = vmatprep.subr.mxu0 %v2012
      %5658 = vmatpush1.msra.mxu0 %v2011
      %5659 = vmatprep.subr.mxu0 %v2014
      %5660 = vmatpush1.msra.mxu0 %v2013
      %5661 = vmatprep.subr.mxu0 0.0
      %5662 = vmatpush1.msra.mxu0 0.0
      %5663 = vmatprep.subr.mxu0 0.0
      %5664 = vmatpush1.msra.mxu0 0.0
      %5665 = vmatprep.subr.mxu0 0.0
      %5666 = vmatpush1.msra.mxu0 0.0
      %5667 = vmatprep.subr.mxu0 0.0
      %5668 = vmatpush1.msra.mxu0 0.0
      %5669 = vmatprep.subr.mxu0 0.0
      %5670 = vmatpush1.msra.mxu0 0.0
      %5671 = vmatprep.subr.mxu0 0.0
      %5672 = vmatpush1.msra.mxu0 0.0
      %5673 = vmatprep.subr.mxu0 0.0
      %5674 = vmatpush1.msra.mxu0 0.0
      %5675 = vmatprep.subr.mxu0 0.0
      %5676 = vmatpush1.msra.mxu0 0.0
      %5677 = vmatprep.subr.mxu0 0.0
      %5678 = vmatpush1.msra.mxu0 0.0
      %5679 = vmatprep.subr.mxu0 0.0
      %5680 = vmatpush1.msra.mxu0 0.0
      %5681 = vmatprep.subr.mxu0 0.0
      %5682 = vmatpush1.msra.mxu0 0.0
      %5683 = vmatprep.subr.mxu0 0.0
      %5684 = vmatpush1.msra.mxu0 0.0
      %5685 = vmatprep.subr.mxu0 0.0
      %5686 = vmatpush1.msra.mxu0 0.0
      %5687 = vmatprep.subr.mxu0 0.0
      %5688 = vmatpush1.msra.mxu0 0.0
      %5689 = vmatprep.subr.mxu0 0.0
      %5690 = vmatpush1.msra.mxu0 0.0
      %5691 = vmatprep.subr.mxu0 0.0
      %5692 = vmatpush1.msra.mxu0 0.0
      %5693 = vmatprep.subr.mxu0 0.0
      %5694 = vmatpush1.msra.mxu0 0.0
      %5695 = vmatprep.subr.mxu0 0.0
      %5696 = vmatpush1.msra.mxu0 0.0
      %5697 = vmatprep.subr.mxu0 0.0
      %5698 = vmatpush1.msra.mxu0 0.0
      %5699 = vmatprep.subr.mxu0 0.0
      %5700 = vmatpush1.msra.mxu0 0.0
      %5701 = vmatprep.subr.mxu0 0.0
      %5702 = vmatpush1.msra.mxu0 0.0
      %5703 = vmatprep.subr.mxu0 0.0
      %5704 = vmatpush1.msra.mxu0 0.0
      %5705 = vmatprep.subr.mxu0 0.0
      %5706 = vmatpush1.msra.mxu0 0.0
      %5707 = vmatprep.subr.mxu0 0.0
      %5708 = vmatpush1.msra.mxu0 0.0
      %5709 = vmatprep.subr.mxu0 0.0
      %5710 = vmatpush1.msra.mxu0 0.0
      %5711 = vmatprep.subr.mxu0 0.0
      %5712 = vmatpush1.msra.mxu0 0.0
      %5713 = vmatprep.subr.mxu0 0.0
      %5714 = vmatpush1.msra.mxu0 0.0
      %5715 = vmatprep.subr.mxu0 0.0
      %5716 = vmatpush1.msra.mxu0 0.0
      %5717 = vmatprep.mubr.f32.mxu0 0.0
      %5718 = vmatmul.mubr.f32.gmra.mrb[0].mxu0 %v5651
      %v5719 = vpop.f32.mrb[0].mxu0
      %v5720 = vadd.f32 0.0, %v5719
      %v5721 = vpop.f32.mrb[0].mxu0
      %5722 = vdwg.mxu0
      %v5724 = vsel %vm225, %v5644, 0
      %5726 = vmatprep.subr.mxu0 %v2008
      %5727 = vmatpush1.msra.mxu0 %v2007
      %5728 = vmatprep.subr.mxu0 %v2010
      %5729 = vmatpush1.msra.mxu0 %v2009
      %5730 = vmatprep.subr.mxu0 %v2012
      %5731 = vmatpush1.msra.mxu0 %v2011
      %5732 = vmatprep.subr.mxu0 %v2014
      %5733 = vmatpush1.msra.mxu0 %v2013
      %5734 = vmatprep.subr.mxu0 0.0
      %5735 = vmatpush1.msra.mxu0 0.0
      %5736 = vmatprep.subr.mxu0 0.0
      %5737 = vmatpush1.msra.mxu0 0.0
      %5738 = vmatprep.subr.mxu0 0.0
      %5739 = vmatpush1.msra.mxu0 0.0
      %5740 = vmatprep.subr.mxu0 0.0
      %5741 = vmatpush1.msra.mxu0 0.0
      %5742 = vmatprep.subr.mxu0 0.0
      %5743 = vmatpush1.msra.mxu0 0.0
      %5744 = vmatprep.subr.mxu0 0.0
      %5745 = vmatpush1.msra.mxu0 0.0
      %5746 = vmatprep.subr.mxu0 0.0
      %5747 = vmatpush1.msra.mxu0 0.0
      %5748 = vmatprep.subr.mxu0 0.0
      %5749 = vmatpush1.msra.mxu0 0.0
      %5750 = vmatprep.subr.mxu0 0.0
      %5751 = vmatpush1.msra.mxu0 0.0
      %5752 = vmatprep.subr.mxu0 0.0
      %5753 = vmatpush1.msra.mxu0 0.0
      %5754 = vmatprep.subr.mxu0 0.0
      %5755 = vmatpush1.msra.mxu0 0.0
      %5756 = vmatprep.subr.mxu0 0.0
      %5757 = vmatpush1.msra.mxu0 0.0
      %5758 = vmatprep.subr.mxu0 0.0
      %5759 = vmatpush1.msra.mxu0 0.0
      %5760 = vmatprep.subr.mxu0 0.0
      %5761 = vmatpush1.msra.mxu0 0.0
      %5762 = vmatprep.subr.mxu0 0.0
      %5763 = vmatpush1.msra.mxu0 0.0
      %5764 = vmatprep.subr.mxu0 0.0
      %5765 = vmatpush1.msra.mxu0 0.0
      %5766 = vmatprep.subr.mxu0 0.0
      %5767 = vmatpush1.msra.mxu0 0.0
      %5768 = vmatprep.subr.mxu0 0.0
      %5769 = vmatpush1.msra.mxu0 0.0
      %5770 = vmatprep.subr.mxu0 0.0
      %5771 = vmatpush1.msra.mxu0 0.0
      %5772 = vmatprep.subr.mxu0 0.0
      %5773 = vmatpush1.msra.mxu0 0.0
      %5774 = vmatprep.subr.mxu0 0.0
      %5775 = vmatpush1.msra.mxu0 0.0
      %5776 = vmatprep.subr.mxu0 0.0
      %5777 = vmatpush1.msra.mxu0 0.0
      %5778 = vmatprep.subr.mxu0 0.0
      %5779 = vmatpush1.msra.mxu0 0.0
      %5780 = vmatprep.subr.mxu0 0.0
      %5781 = vmatpush1.msra.mxu0 0.0
      %5782 = vmatprep.subr.mxu0 0.0
      %5783 = vmatpush1.msra.mxu0 0.0
      %5784 = vmatprep.subr.mxu0 0.0
      %5785 = vmatpush1.msra.mxu0 0.0
      %5786 = vmatprep.subr.mxu0 0.0
      %5787 = vmatpush1.msra.mxu0 0.0
      %5788 = vmatprep.subr.mxu0 0.0
      %5789 = vmatpush1.msra.mxu0 0.0
      %5790 = vmatprep.mubr.f32.mxu0 0.0
      %5791 = vmatmul.mubr.f32.gmra.mrb[0].mxu0 %v5724
      %v5792 = vpop.f32.mrb[0].mxu0
      %v5793 = vadd.f32 0.0, %v5792
      %v5794 = vpop.f32.mrb[0].mxu0
      %5795 = vdwg.mxu0
      %v5797 = vsel %vm225, %v5645, 0
      %5799 = vmatprep.subr.mxu0 %v2008
      %5800 = vmatpush1.msra.mxu0 %v2007
      %5801 = vmatprep.subr.mxu0 %v2010
      %5802 = vmatpush1.msra.mxu0 %v2009
      %5803 = vmatprep.subr.mxu0 %v2012
      %5804 = vmatpush1.msra.mxu0 %v2011
      %5805 = vmatprep.subr.mxu0 %v2014
      %5806 = vmatpush1.msra.mxu0 %v2013
      %5807 = vmatprep.subr.mxu0 0.0
      %5808 = vmatpush1.msra.mxu0 0.0
      %5809 = vmatprep.subr.mxu0 0.0
      %5810 = vmatpush1.msra.mxu0 0.0
      %5811 = vmatprep.subr.mxu0 0.0
      %5812 = vmatpush1.msra.mxu0 0.0
      %5813 = vmatprep.subr.mxu0 0.0
      %5814 = vmatpush1.msra.mxu0 0.0
      %5815 = vmatprep.subr.mxu0 0.0
      %5816 = vmatpush1.msra.mxu0 0.0
      %5817 = vmatprep.subr.mxu0 0.0
      %5818 = vmatpush1.msra.mxu0 0.0
      %5819 = vmatprep.subr.mxu0 0.0
      %5820 = vmatpush1.msra.mxu0 0.0
      %5821 = vmatprep.subr.mxu0 0.0
      %5822 = vmatpush1.msra.mxu0 0.0
      %5823 = vmatprep.subr.mxu0 0.0
      %5824 = vmatpush1.msra.mxu0 0.0
      %5825 = vmatprep.subr.mxu0 0.0
      %5826 = vmatpush1.msra.mxu0 0.0
      %5827 = vmatprep.subr.mxu0 0.0
      %5828 = vmatpush1.msra.mxu0 0.0
      %5829 = vmatprep.subr.mxu0 0.0
      %5830 = vmatpush1.msra.mxu0 0.0
      %5831 = vmatprep.subr.mxu0 0.0
      %5832 = vmatpush1.msra.mxu0 0.0
      %5833 = vmatprep.subr.mxu0 0.0
      %5834 = vmatpush1.msra.mxu0 0.0
      %5835 = vmatprep.subr.mxu0 0.0
      %5836 = vmatpush1.msra.mxu0 0.0
      %5837 = vmatprep.subr.mxu0 0.0
      %5838 = vmatpush1.msra.mxu0 0.0
      %5839 = vmatprep.subr.mxu0 0.0
      %5840 = vmatpush1.msra.mxu0 0.0
      %5841 = vmatprep.subr.mxu0 0.0
      %5842 = vmatpush1.msra.mxu0 0.0
      %5843 = vmatprep.subr.mxu0 0.0
      %5844 = vmatpush1.msra.mxu0 0.0
      %5845 = vmatprep.subr.mxu0 0.0
      %5846 = vmatpush1.msra.mxu0 0.0
      %5847 = vmatprep.subr.mxu0 0.0
      %5848 = vmatpush1.msra.mxu0 0.0
      %5849 = vmatprep.subr.mxu0 0.0
      %5850 = vmatpush1.msra.mxu0 0.0
      %5851 = vmatprep.subr.mxu0 0.0
      %5852 = vmatpush1.msra.mxu0 0.0
      %5853 = vmatprep.subr.mxu0 0.0
      %5854 = vmatpush1.msra.mxu0 0.0
      %5855 = vmatprep.subr.mxu0 0.0
      %5856 = vmatpush1.msra.mxu0 0.0
      %5857 = vmatprep.subr.mxu0 0.0
      %5858 = vmatpush1.msra.mxu0 0.0
      %5859 = vmatprep.subr.mxu0 0.0
      %5860 = vmatpush1.msra.mxu0 0.0
      %5861 = vmatprep.subr.mxu0 0.0
      %5862 = vmatpush1.msra.mxu0 0.0
      %5863 = vmatprep.mubr.f32.mxu0 0.0
      %5864 = vmatmul.mubr.f32.gmra.mrb[0].mxu0 %v5797
      %v5865 = vpop.f32.mrb[0].mxu0
      %v5866 = vadd.f32 0.0, %v5865
      %v5867 = vpop.f32.mrb[0].mxu0
      %5868 = vdwg.mxu0
      %v5870 = vsel %vm225, %v5646, 0
      %5872 = vmatprep.subr.mxu0 %v2008
      %5873 = vmatpush1.msra.mxu0 %v2007
      %5874 = vmatprep.subr.mxu0 %v2010
      %5875 = vmatpush1.msra.mxu0 %v2009
      %5876 = vmatprep.subr.mxu0 %v2012
      %5877 = vmatpush1.msra.mxu0 %v2011
      %5878 = vmatprep.subr.mxu0 %v2014
      %5879 = vmatpush1.msra.mxu0 %v2013
      %5880 = vmatprep.subr.mxu0 0.0
      %5881 = vmatpush1.msra.mxu0 0.0
      %5882 = vmatprep.subr.mxu0 0.0
      %5883 = vmatpush1.msra.mxu0 0.0
      %5884 = vmatprep.subr.mxu0 0.0
      %5885 = vmatpush1.msra.mxu0 0.0
      %5886 = vmatprep.subr.mxu0 0.0
      %5887 = vmatpush1.msra.mxu0 0.0
      %5888 = vmatprep.subr.mxu0 0.0
      %5889 = vmatpush1.msra.mxu0 0.0
      %5890 = vmatprep.subr.mxu0 0.0
      %5891 = vmatpush1.msra.mxu0 0.0
      %5892 = vmatprep.subr.mxu0 0.0
      %5893 = vmatpush1.msra.mxu0 0.0
      %5894 = vmatprep.subr.mxu0 0.0
      %5895 = vmatpush1.msra.mxu0 0.0
      %5896 = vmatprep.subr.mxu0 0.0
      %5897 = vmatpush1.msra.mxu0 0.0
      %5898 = vmatprep.subr.mxu0 0.0
      %5899 = vmatpush1.msra.mxu0 0.0
      %5900 = vmatprep.subr.mxu0 0.0
      %5901 = vmatpush1.msra.mxu0 0.0
      %5902 = vmatprep.subr.mxu0 0.0
      %5903 = vmatpush1.msra.mxu0 0.0
      %5904 = vmatprep.subr.mxu0 0.0
      %5905 = vmatpush1.msra.mxu0 0.0
      %5906 = vmatprep.subr.mxu0 0.0
      %5907 = vmatpush1.msra.mxu0 0.0
      %5908 = vmatprep.subr.mxu0 0.0
      %5909 = vmatpush1.msra.mxu0 0.0
      %5910 = vmatprep.subr.mxu0 0.0
      %5911 = vmatpush1.msra.mxu0 0.0
      %5912 = vmatprep.subr.mxu0 0.0
      %5913 = vmatpush1.msra.mxu0 0.0
      %5914 = vmatprep.subr.mxu0 0.0
      %5915 = vmatpush1.msra.mxu0 0.0
      %5916 = vmatprep.subr.mxu0 0.0
      %5917 = vmatpush1.msra.mxu0 0.0
      %5918 = vmatprep.subr.mxu0 0.0
      %5919 = vmatpush1.msra.mxu0 0.0
      %5920 = vmatprep.subr.mxu0 0.0
      %5921 = vmatpush1.msra.mxu0 0.0
      %5922 = vmatprep.subr.mxu0 0.0
      %5923 = vmatpush1.msra.mxu0 0.0
      %5924 = vmatprep.subr.mxu0 0.0
      %5925 = vmatpush1.msra.mxu0 0.0
      %5926 = vmatprep.subr.mxu0 0.0
      %5927 = vmatpush1.msra.mxu0 0.0
      %5928 = vmatprep.subr.mxu0 0.0
      %5929 = vmatpush1.msra.mxu0 0.0
      %5930 = vmatprep.subr.mxu0 0.0
      %5931 = vmatpush1.msra.mxu0 0.0
      %5932 = vmatprep.subr.mxu0 0.0
      %5933 = vmatpush1.msra.mxu0 0.0
      %5934 = vmatprep.subr.mxu0 0.0
      %5935 = vmatpush1.msra.mxu0 0.0
      %5936 = vmatprep.mubr.f32.mxu0 0.0
      %5937 = vmatmul.mubr.f32.gmra.mrb[0].mxu0 %v5870
      %v5938 = vpop.f32.mrb[0].mxu0
      %v5939 = vadd.f32 0.0, %v5938
      %v5940 = vpop.f32.mrb[0].mxu0
      %5941 = vdwg.mxu0
      %v5943 = vsel %vm225, %v5647, 0
      %5945 = vmatprep.subr.mxu0 %v2008
      %5946 = vmatpush1.msra.mxu0 %v2007
      %5947 = vmatprep.subr.mxu0 %v2010
      %5948 = vmatpush1.msra.mxu0 %v2009
      %5949 = vmatprep.subr.mxu0 %v2012
      %5950 = vmatpush1.msra.mxu0 %v2011
      %5951 = vmatprep.subr.mxu0 %v2014
      %5952 = vmatpush1.msra.mxu0 %v2013
      %5953 = vmatprep.subr.mxu0 0.0
      %5954 = vmatpush1.msra.mxu0 0.0
      %5955 = vmatprep.subr.mxu0 0.0
      %5956 = vmatpush1.msra.mxu0 0.0
      %5957 = vmatprep.subr.mxu0 0.0
      %5958 = vmatpush1.msra.mxu0 0.0
      %5959 = vmatprep.subr.mxu0 0.0
      %5960 = vmatpush1.msra.mxu0 0.0
      %5961 = vmatprep.subr.mxu0 0.0
      %5962 = vmatpush1.msra.mxu0 0.0
      %5963 = vmatprep.subr.mxu0 0.0
      %5964 = vmatpush1.msra.mxu0 0.0
      %5965 = vmatprep.subr.mxu0 0.0
      %5966 = vmatpush1.msra.mxu0 0.0
      %5967 = vmatprep.subr.mxu0 0.0
      %5968 = vmatpush1.msra.mxu0 0.0
      %5969 = vmatprep.subr.mxu0 0.0
      %5970 = vmatpush1.msra.mxu0 0.0
      %5971 = vmatprep.subr.mxu0 0.0
      %5972 = vmatpush1.msra.mxu0 0.0
      %5973 = vmatprep.subr.mxu0 0.0
      %5974 = vmatpush1.msra.mxu0 0.0
      %5975 = vmatprep.subr.mxu0 0.0
      %5976 = vmatpush1.msra.mxu0 0.0
      %5977 = vmatprep.subr.mxu0 0.0
      %5978 = vmatpush1.msra.mxu0 0.0
      %5979 = vmatprep.subr.mxu0 0.0
      %5980 = vmatpush1.msra.mxu0 0.0
      %5981 = vmatprep.subr.mxu0 0.0
      %5982 = vmatpush1.msra.mxu0 0.0
      %5983 = vmatprep.subr.mxu0 0.0
      %5984 = vmatpush1.msra.mxu0 0.0
      %5985 = vmatprep.subr.mxu0 0.0
      %5986 = vmatpush1.msra.mxu0 0.0
      %5987 = vmatprep.subr.mxu0 0.0
      %5988 = vmatpush1.msra.mxu0 0.0
      %5989 = vmatprep.subr.mxu0 0.0
      %5990 = vmatpush1.msra.mxu0 0.0
      %5991 = vmatprep.subr.mxu0 0.0
      %5992 = vmatpush1.msra.mxu0 0.0
      %5993 = vmatprep.subr.mxu0 0.0
      %5994 = vmatpush1.msra.mxu0 0.0
      %5995 = vmatprep.subr.mxu0 0.0
      %5996 = vmatpush1.msra.mxu0 0.0
      %5997 = vmatprep.subr.mxu0 0.0
      %5998 = vmatpush1.msra.mxu0 0.0
      %5999 = vmatprep.subr.mxu0 0.0
      %6000 = vmatpush1.msra.mxu0 0.0
      %6001 = vmatprep.subr.mxu0 0.0
      %6002 = vmatpush1.msra.mxu0 0.0
      %6003 = vmatprep.subr.mxu0 0.0
      %6004 = vmatpush1.msra.mxu0 0.0
      %6005 = vmatprep.subr.mxu0 0.0
      %6006 = vmatpush1.msra.mxu0 0.0
      %6007 = vmatprep.subr.mxu0 0.0
      %6008 = vmatpush1.msra.mxu0 0.0
      %6009 = vmatprep.mubr.f32.mxu0 0.0
      %6010 = vmatmul.mubr.f32.gmra.mrb[0].mxu0 %v5943
      %v6011 = vpop.f32.mrb[0].mxu0
      %v6012 = vadd.f32 0.0, %v6011
      %v6013 = vpop.f32.mrb[0].mxu0
      %6014 = vdwg.mxu0
      %v6016 = vsel %vm225, %v5648, 0
      %6018 = vmatprep.subr.mxu0 %v2008
      %6019 = vmatpush1.msra.mxu0 %v2007
      %6020 = vmatprep.subr.mxu0 %v2010
      %6021 = vmatpush1.msra.mxu0 %v2009
      %6022 = vmatprep.subr.mxu0 %v2012
      %6023 = vmatpush1.msra.mxu0 %v2011
      %6024 = vmatprep.subr.mxu0 %v2014
      %6025 = vmatpush1.msra.mxu0 %v2013
      %6026 = vmatprep.subr.mxu0 0.0
      %6027 = vmatpush1.msra.mxu0 0.0
      %6028 = vmatprep.subr.mxu0 0.0
      %6029 = vmatpush1.msra.mxu0 0.0
      %6030 = vmatprep.subr.mxu0 0.0
      %6031 = vmatpush1.msra.mxu0 0.0
      %6032 = vmatprep.subr.mxu0 0.0
      %6033 = vmatpush1.msra.mxu0 0.0
      %6034 = vmatprep.subr.mxu0 0.0
      %6035 = vmatpush1.msra.mxu0 0.0
      %6036 = vmatprep.subr.mxu0 0.0
      %6037 = vmatpush1.msra.mxu0 0.0
      %6038 = vmatprep.subr.mxu0 0.0
      %6039 = vmatpush1.msra.mxu0 0.0
      %6040 = vmatprep.subr.mxu0 0.0
      %6041 = vmatpush1.msra.mxu0 0.0
      %6042 = vmatprep.subr.mxu0 0.0
      %6043 = vmatpush1.msra.mxu0 0.0
      %6044 = vmatprep.subr.mxu0 0.0
      %6045 = vmatpush1.msra.mxu0 0.0
      %6046 = vmatprep.subr.mxu0 0.0
      %6047 = vmatpush1.msra.mxu0 0.0
      %6048 = vmatprep.subr.mxu0 0.0
      %6049 = vmatpush1.msra.mxu0 0.0
      %6050 = vmatprep.subr.mxu0 0.0
      %6051 = vmatpush1.msra.mxu0 0.0
      %6052 = vmatprep.subr.mxu0 0.0
      %6053 = vmatpush1.msra.mxu0 0.0
      %6054 = vmatprep.subr.mxu0 0.0
      %6055 = vmatpush1.msra.mxu0 0.0
      %6056 = vmatprep.subr.mxu0 0.0
      %6057 = vmatpush1.msra.mxu0 0.0
      %6058 = vmatprep.subr.mxu0 0.0
      %6059 = vmatpush1.msra.mxu0 0.0
      %6060 = vmatprep.subr.mxu0 0.0
      %6061 = vmatpush1.msra.mxu0 0.0
      %6062 = vmatprep.subr.mxu0 0.0
      %6063 = vmatpush1.msra.mxu0 0.0
      %6064 = vmatprep.subr.mxu0 0.0
      %6065 = vmatpush1.msra.mxu0 0.0
      %6066 = vmatprep.subr.mxu0 0.0
      %6067 = vmatpush1.msra.mxu0 0.0
      %6068 = vmatprep.subr.mxu0 0.0
      %6069 = vmatpush1.msra.mxu0 0.0
      %6070 = vmatprep.subr.mxu0 0.0
      %6071 = vmatpush1.msra.mxu0 0.0
      %6072 = vmatprep.subr.mxu0 0.0
      %6073 = vmatpush1.msra.mxu0 0.0
      %6074 = vmatprep.subr.mxu0 0.0
      %6075 = vmatpush1.msra.mxu0 0.0
      %6076 = vmatprep.subr.mxu0 0.0
      %6077 = vmatpush1.msra.mxu0 0.0
      %6078 = vmatprep.subr.mxu0 0.0
      %6079 = vmatpush1.msra.mxu0 0.0
      %6080 = vmatprep.subr.mxu0 0.0
      %6081 = vmatpush1.msra.mxu0 0.0
      %6082 = vmatprep.mubr.f32.mxu0 0.0
      %6083 = vmatmul.mubr.f32.gmra.mrb[0].mxu0 %v6016
      %v6084 = vpop.f32.mrb[0].mxu0
      %v6085 = vadd.f32 0.0, %v6084
      %v6086 = vpop.f32.mrb[0].mxu0
      %6087 = vdwg.mxu0
      %v6089 = vsel %vm225, %v5649, 0
      %6091 = vmatprep.subr.mxu0 %v2008
      %6092 = vmatpush1.msra.mxu0 %v2007
      %6093 = vmatprep.subr.mxu0 %v2010
      %6094 = vmatpush1.msra.mxu0 %v2009
      %6095 = vmatprep.subr.mxu0 %v2012
      %6096 = vmatpush1.msra.mxu0 %v2011
      %6097 = vmatprep.subr.mxu0 %v2014
      %6098 = vmatpush1.msra.mxu0 %v2013
      %6099 = vmatprep.subr.mxu0 0.0
      %6100 = vmatpush1.msra.mxu0 0.0
      %6101 = vmatprep.subr.mxu0 0.0
      %6102 = vmatpush1.msra.mxu0 0.0
      %6103 = vmatprep.subr.mxu0 0.0
      %6104 = vmatpush1.msra.mxu0 0.0
      %6105 = vmatprep.subr.mxu0 0.0
      %6106 = vmatpush1.msra.mxu0 0.0
      %6107 = vmatprep.subr.mxu0 0.0
      %6108 = vmatpush1.msra.mxu0 0.0
      %6109 = vmatprep.subr.mxu0 0.0
      %6110 = vmatpush1.msra.mxu0 0.0
      %6111 = vmatprep.subr.mxu0 0.0
      %6112 = vmatpush1.msra.mxu0 0.0
      %6113 = vmatprep.subr.mxu0 0.0
      %6114 = vmatpush1.msra.mxu0 0.0
      %6115 = vmatprep.subr.mxu0 0.0
      %6116 = vmatpush1.msra.mxu0 0.0
      %6117 = vmatprep.subr.mxu0 0.0
      %6118 = vmatpush1.msra.mxu0 0.0
      %6119 = vmatprep.subr.mxu0 0.0
      %6120 = vmatpush1.msra.mxu0 0.0
      %6121 = vmatprep.subr.mxu0 0.0
      %6122 = vmatpush1.msra.mxu0 0.0
      %6123 = vmatprep.subr.mxu0 0.0
      %6124 = vmatpush1.msra.mxu0 0.0
      %6125 = vmatprep.subr.mxu0 0.0
      %6126 = vmatpush1.msra.mxu0 0.0
      %6127 = vmatprep.subr.mxu0 0.0
      %6128 = vmatpush1.msra.mxu0 0.0
      %6129 = vmatprep.subr.mxu0 0.0
      %6130 = vmatpush1.msra.mxu0 0.0
      %6131 = vmatprep.subr.mxu0 0.0
      %6132 = vmatpush1.msra.mxu0 0.0
      %6133 = vmatprep.subr.mxu0 0.0
      %6134 = vmatpush1.msra.mxu0 0.0
      %6135 = vmatprep.subr.mxu0 0.0
      %6136 = vmatpush1.msra.mxu0 0.0
      %6137 = vmatprep.subr.mxu0 0.0
      %6138 = vmatpush1.msra.mxu0 0.0
      %6139 = vmatprep.subr.mxu0 0.0
      %6140 = vmatpush1.msra.mxu0 0.0
      %6141 = vmatprep.subr.mxu0 0.0
      %6142 = vmatpush1.msra.mxu0 0.0
      %6143 = vmatprep.subr.mxu0 0.0
      %6144 = vmatpush1.msra.mxu0 0.0
      %6145 = vmatprep.subr.mxu0 0.0
      %6146 = vmatpush1.msra.mxu0 0.0
      %6147 = vmatprep.subr.mxu0 0.0
      %6148 = vmatpush1.msra.mxu0 0.0
      %6149 = vmatprep.subr.mxu0 0.0
      %6150 = vmatpush1.msra.mxu0 0.0
      %6151 = vmatprep.subr.mxu0 0.0
      %6152 = vmatpush1.msra.mxu0 0.0
      %6153 = vmatprep.subr.mxu0 0.0
      %6154 = vmatpush1.msra.mxu0 0.0
      %6155 = vmatprep.mubr.f32.mxu0 0.0
      %6156 = vmatmul.mubr.f32.gmra.mrb[0].mxu0 %v6089
      %v6157 = vpop.f32.mrb[0].mxu0
      %v6158 = vadd.f32 0.0, %v6157
      %v6159 = vpop.f32.mrb[0].mxu0
      %6160 = vdwg.mxu0
      %v6161 = vld [vmem:[%s1999] sm:$0x7f]
      %v6162 = vld [vmem:[%s1999 + $0x8] sm:$0x7f]
      %v6163 = vld [vmem:[%s1999 + $0x10] sm:$0x7f]
      %v6164 = vld [vmem:[%s1999 + $0x18] sm:$0x7f]
      %v6165 = vld [vmem:[%s1999 + $0x20] sm:$0x7f]
      %v6166 = vld [vmem:[%s1999 + $0x28] sm:$0x7f]
      %v6167 = vld [vmem:[%s1999 + $0x30] sm:$0x7f]
      %v6169 = vsel %vm225, %v6161, 0
      %6171 = vmatprep.subr.mxu0 %v2008
      %6172 = vmatpush1.msra.mxu0 %v2007
      %6173 = vmatprep.subr.mxu0 %v2010
      %6174 = vmatpush1.msra.mxu0 %v2009
      %6175 = vmatprep.subr.mxu0 %v2012
      %6176 = vmatpush1.msra.mxu0 %v2011
      %6177 = vmatprep.subr.mxu0 %v2014
      %6178 = vmatpush1.msra.mxu0 %v2013
      %6179 = vmatprep.subr.mxu0 0.0
      %6180 = vmatpush1.msra.mxu0 0.0
      %6181 = vmatprep.subr.mxu0 0.0
      %6182 = vmatpush1.msra.mxu0 0.0
      %6183 = vmatprep.subr.mxu0 0.0
      %6184 = vmatpush1.msra.mxu0 0.0
      %6185 = vmatprep.subr.mxu0 0.0
      %6186 = vmatpush1.msra.mxu0 0.0
      %6187 = vmatprep.subr.mxu0 0.0
      %6188 = vmatpush1.msra.mxu0 0.0
      %6189 = vmatprep.subr.mxu0 0.0
      %6190 = vmatpush1.msra.mxu0 0.0
      %6191 = vmatprep.subr.mxu0 0.0
      %6192 = vmatpush1.msra.mxu0 0.0
      %6193 = vmatprep.subr.mxu0 0.0
      %6194 = vmatpush1.msra.mxu0 0.0
      %6195 = vmatprep.subr.mxu0 0.0
      %6196 = vmatpush1.msra.mxu0 0.0
      %6197 = vmatprep.subr.mxu0 0.0
      %6198 = vmatpush1.msra.mxu0 0.0
      %6199 = vmatprep.subr.mxu0 0.0
      %6200 = vmatpush1.msra.mxu0 0.0
      %6201 = vmatprep.subr.mxu0 0.0
      %6202 = vmatpush1.msra.mxu0 0.0
      %6203 = vmatprep.subr.mxu0 0.0
      %6204 = vmatpush1.msra.mxu0 0.0
      %6205 = vmatprep.subr.mxu0 0.0
      %6206 = vmatpush1.msra.mxu0 0.0
      %6207 = vmatprep.subr.mxu0 0.0
      %6208 = vmatpush1.msra.mxu0 0.0
      %6209 = vmatprep.subr.mxu0 0.0
      %6210 = vmatpush1.msra.mxu0 0.0
      %6211 = vmatprep.subr.mxu0 0.0
      %6212 = vmatpush1.msra.mxu0 0.0
      %6213 = vmatprep.subr.mxu0 0.0
      %6214 = vmatpush1.msra.mxu0 0.0
      %6215 = vmatprep.subr.mxu0 0.0
      %6216 = vmatpush1.msra.mxu0 0.0
      %6217 = vmatprep.subr.mxu0 0.0
      %6218 = vmatpush1.msra.mxu0 0.0
      %6219 = vmatprep.subr.mxu0 0.0
      %6220 = vmatpush1.msra.mxu0 0.0
      %6221 = vmatprep.subr.mxu0 0.0
      %6222 = vmatpush1.msra.mxu0 0.0
      %6223 = vmatprep.subr.mxu0 0.0
      %6224 = vmatpush1.msra.mxu0 0.0
      %6225 = vmatprep.subr.mxu0 0.0
      %6226 = vmatpush1.msra.mxu0 0.0
      %6227 = vmatprep.subr.mxu0 0.0
      %6228 = vmatpush1.msra.mxu0 0.0
      %6229 = vmatprep.subr.mxu0 0.0
      %6230 = vmatpush1.msra.mxu0 0.0
      %6231 = vmatprep.subr.mxu0 0.0
      %6232 = vmatpush1.msra.mxu0 0.0
      %6233 = vmatprep.subr.mxu0 0.0
      %6234 = vmatpush1.msra.mxu0 0.0
      %6235 = vmatprep.mubr.f32.mxu0 0.0
      %6236 = vmatmul.mubr.f32.gmra.mrb[0].mxu0 %v6169
      %v6237 = vpop.f32.mrb[0].mxu0
      %v6238 = vadd.f32 0.0, %v6237
      %v6239 = vpop.f32.mrb[0].mxu0
      %6240 = vdwg.mxu0
      %v6242 = vsel %vm225, %v6162, 0
      %6244 = vmatprep.subr.mxu0 %v2008
      %6245 = vmatpush1.msra.mxu0 %v2007
      %6246 = vmatprep.subr.mxu0 %v2010
      %6247 = vmatpush1.msra.mxu0 %v2009
      %6248 = vmatprep.subr.mxu0 %v2012
      %6249 = vmatpush1.msra.mxu0 %v2011
      %6250 = vmatprep.subr.mxu0 %v2014
      %6251 = vmatpush1.msra.mxu0 %v2013
      %6252 = vmatprep.subr.mxu0 0.0
      %6253 = vmatpush1.msra.mxu0 0.0
      %6254 = vmatprep.subr.mxu0 0.0
      %6255 = vmatpush1.msra.mxu0 0.0
      %6256 = vmatprep.subr.mxu0 0.0
      %6257 = vmatpush1.msra.mxu0 0.0
      %6258 = vmatprep.subr.mxu0 0.0
      %6259 = vmatpush1.msra.mxu0 0.0
      %6260 = vmatprep.subr.mxu0 0.0
      %6261 = vmatpush1.msra.mxu0 0.0
      %6262 = vmatprep.subr.mxu0 0.0
      %6263 = vmatpush1.msra.mxu0 0.0
      %6264 = vmatprep.subr.mxu0 0.0
      %6265 = vmatpush1.msra.mxu0 0.0
      %6266 = vmatprep.subr.mxu0 0.0
      %6267 = vmatpush1.msra.mxu0 0.0
      %6268 = vmatprep.subr.mxu0 0.0
      %6269 = vmatpush1.msra.mxu0 0.0
      %6270 = vmatprep.subr.mxu0 0.0
      %6271 = vmatpush1.msra.mxu0 0.0
      %6272 = vmatprep.subr.mxu0 0.0
      %6273 = vmatpush1.msra.mxu0 0.0
      %6274 = vmatprep.subr.mxu0 0.0
      %6275 = vmatpush1.msra.mxu0 0.0
      %6276 = vmatprep.subr.mxu0 0.0
      %6277 = vmatpush1.msra.mxu0 0.0
      %6278 = vmatprep.subr.mxu0 0.0
      %6279 = vmatpush1.msra.mxu0 0.0
      %6280 = vmatprep.subr.mxu0 0.0
      %6281 = vmatpush1.msra.mxu0 0.0
      %6282 = vmatprep.subr.mxu0 0.0
      %6283 = vmatpush1.msra.mxu0 0.0
      %6284 = vmatprep.subr.mxu0 0.0
      %6285 = vmatpush1.msra.mxu0 0.0
      %6286 = vmatprep.subr.mxu0 0.0
      %6287 = vmatpush1.msra.mxu0 0.0
      %6288 = vmatprep.subr.mxu0 0.0
      %6289 = vmatpush1.msra.mxu0 0.0
      %6290 = vmatprep.subr.mxu0 0.0
      %6291 = vmatpush1.msra.mxu0 0.0
      %6292 = vmatprep.subr.mxu0 0.0
      %6293 = vmatpush1.msra.mxu0 0.0
      %6294 = vmatprep.subr.mxu0 0.0
      %6295 = vmatpush1.msra.mxu0 0.0
      %6296 = vmatprep.subr.mxu0 0.0
      %6297 = vmatpush1.msra.mxu0 0.0
      %6298 = vmatprep.subr.mxu0 0.0
      %6299 = vmatpush1.msra.mxu0 0.0
      %6300 = vmatprep.subr.mxu0 0.0
      %6301 = vmatpush1.msra.mxu0 0.0
      %6302 = vmatprep.subr.mxu0 0.0
      %6303 = vmatpush1.msra.mxu0 0.0
      %6304 = vmatprep.subr.mxu0 0.0
      %6305 = vmatpush1.msra.mxu0 0.0
      %6306 = vmatprep.subr.mxu0 0.0
      %6307 = vmatpush1.msra.mxu0 0.0
      %6308 = vmatprep.mubr.f32.mxu0 0.0
      %6309 = vmatmul.mubr.f32.gmra.mrb[0].mxu0 %v6242
      %v6310 = vpop.f32.mrb[0].mxu0
      %v6311 = vadd.f32 0.0, %v6310
      %v6312 = vpop.f32.mrb[0].mxu0
      %6313 = vdwg.mxu0
      %v6315 = vsel %vm225, %v6163, 0
      %6317 = vmatprep.subr.mxu0 %v2008
      %6318 = vmatpush1.msra.mxu0 %v2007
      %6319 = vmatprep.subr.mxu0 %v2010
      %6320 = vmatpush1.msra.mxu0 %v2009
      %6321 = vmatprep.subr.mxu0 %v2012
      %6322 = vmatpush1.msra.mxu0 %v2011
      %6323 = vmatprep.subr.mxu0 %v2014
      %6324 = vmatpush1.msra.mxu0 %v2013
      %6325 = vmatprep.subr.mxu0 0.0
      %6326 = vmatpush1.msra.mxu0 0.0
      %6327 = vmatprep.subr.mxu0 0.0
      %6328 = vmatpush1.msra.mxu0 0.0
      %6329 = vmatprep.subr.mxu0 0.0
      %6330 = vmatpush1.msra.mxu0 0.0
      %6331 = vmatprep.subr.mxu0 0.0
      %6332 = vmatpush1.msra.mxu0 0.0
      %6333 = vmatprep.subr.mxu0 0.0
      %6334 = vmatpush1.msra.mxu0 0.0
      %6335 = vmatprep.subr.mxu0 0.0
      %6336 = vmatpush1.msra.mxu0 0.0
      %6337 = vmatprep.subr.mxu0 0.0
      %6338 = vmatpush1.msra.mxu0 0.0
      %6339 = vmatprep.subr.mxu0 0.0
      %6340 = vmatpush1.msra.mxu0 0.0
      %6341 = vmatprep.subr.mxu0 0.0
      %6342 = vmatpush1.msra.mxu0 0.0
      %6343 = vmatprep.subr.mxu0 0.0
      %6344 = vmatpush1.msra.mxu0 0.0
      %6345 = vmatprep.subr.mxu0 0.0
      %6346 = vmatpush1.msra.mxu0 0.0
      %6347 = vmatprep.subr.mxu0 0.0
      %6348 = vmatpush1.msra.mxu0 0.0
      %6349 = vmatprep.subr.mxu0 0.0
      %6350 = vmatpush1.msra.mxu0 0.0
      %6351 = vmatprep.subr.mxu0 0.0
      %6352 = vmatpush1.msra.mxu0 0.0
      %6353 = vmatprep.subr.mxu0 0.0
      %6354 = vmatpush1.msra.mxu0 0.0
      %6355 = vmatprep.subr.mxu0 0.0
      %6356 = vmatpush1.msra.mxu0 0.0
      %6357 = vmatprep.subr.mxu0 0.0
      %6358 = vmatpush1.msra.mxu0 0.0
      %6359 = vmatprep.subr.mxu0 0.0
      %6360 = vmatpush1.msra.mxu0 0.0
      %6361 = vmatprep.subr.mxu0 0.0
      %6362 = vmatpush1.msra.mxu0 0.0
      %6363 = vmatprep.subr.mxu0 0.0
      %6364 = vmatpush1.msra.mxu0 0.0
      %6365 = vmatprep.subr.mxu0 0.0
      %6366 = vmatpush1.msra.mxu0 0.0
      %6367 = vmatprep.subr.mxu0 0.0
      %6368 = vmatpush1.msra.mxu0 0.0
      %6369 = vmatprep.subr.mxu0 0.0
      %6370 = vmatpush1.msra.mxu0 0.0
      %6371 = vmatprep.subr.mxu0 0.0
      %6372 = vmatpush1.msra.mxu0 0.0
      %6373 = vmatprep.subr.mxu0 0.0
      %6374 = vmatpush1.msra.mxu0 0.0
      %6375 = vmatprep.subr.mxu0 0.0
      %6376 = vmatpush1.msra.mxu0 0.0
      %6377 = vmatprep.subr.mxu0 0.0
      %6378 = vmatpush1.msra.mxu0 0.0
      %6379 = vmatprep.subr.mxu0 0.0
      %6380 = vmatpush1.msra.mxu0 0.0
      %6381 = vmatprep.mubr.f32.mxu0 0.0
      %6382 = vmatmul.mubr.f32.gmra.mrb[0].mxu0 %v6315
      %v6383 = vpop.f32.mrb[0].mxu0
      %v6384 = vadd.f32 0.0, %v6383
      %v6385 = vpop.f32.mrb[0].mxu0
      %6386 = vdwg.mxu0
      %v6388 = vsel %vm225, %v6164, 0
      %6390 = vmatprep.subr.mxu0 %v2008
      %6391 = vmatpush1.msra.mxu0 %v2007
      %6392 = vmatprep.subr.mxu0 %v2010
      %6393 = vmatpush1.msra.mxu0 %v2009
      %6394 = vmatprep.subr.mxu0 %v2012
      %6395 = vmatpush1.msra.mxu0 %v2011
      %6396 = vmatprep.subr.mxu0 %v2014
      %6397 = vmatpush1.msra.mxu0 %v2013
      %6398 = vmatprep.subr.mxu0 0.0
      %6399 = vmatpush1.msra.mxu0 0.0
      %6400 = vmatprep.subr.mxu0 0.0
      %6401 = vmatpush1.msra.mxu0 0.0
      %6402 = vmatprep.subr.mxu0 0.0
      %6403 = vmatpush1.msra.mxu0 0.0
      %6404 = vmatprep.subr.mxu0 0.0
      %6405 = vmatpush1.msra.mxu0 0.0
      %6406 = vmatprep.subr.mxu0 0.0
      %6407 = vmatpush1.msra.mxu0 0.0
      %6408 = vmatprep.subr.mxu0 0.0
      %6409 = vmatpush1.msra.mxu0 0.0
      %6410 = vmatprep.subr.mxu0 0.0
      %6411 = vmatpush1.msra.mxu0 0.0
      %6412 = vmatprep.subr.mxu0 0.0
      %6413 = vmatpush1.msra.mxu0 0.0
      %6414 = vmatprep.subr.mxu0 0.0
      %6415 = vmatpush1.msra.mxu0 0.0
      %6416 = vmatprep.subr.mxu0 0.0
      %6417 = vmatpush1.msra.mxu0 0.0
      %6418 = vmatprep.subr.mxu0 0.0
      %6419 = vmatpush1.msra.mxu0 0.0
      %6420 = vmatprep.subr.mxu0 0.0
      %6421 = vmatpush1.msra.mxu0 0.0
      %6422 = vmatprep.subr.mxu0 0.0
      %6423 = vmatpush1.msra.mxu0 0.0
      %6424 = vmatprep.subr.mxu0 0.0
      %6425 = vmatpush1.msra.mxu0 0.0
      %6426 = vmatprep.subr.mxu0 0.0
      %6427 = vmatpush1.msra.mxu0 0.0
      %6428 = vmatprep.subr.mxu0 0.0
      %6429 = vmatpush1.msra.mxu0 0.0
      %6430 = vmatprep.subr.mxu0 0.0
      %6431 = vmatpush1.msra.mxu0 0.0
      %6432 = vmatprep.subr.mxu0 0.0
      %6433 = vmatpush1.msra.mxu0 0.0
      %6434 = vmatprep.subr.mxu0 0.0
      %6435 = vmatpush1.msra.mxu0 0.0
      %6436 = vmatprep.subr.mxu0 0.0
      %6437 = vmatpush1.msra.mxu0 0.0
      %6438 = vmatprep.subr.mxu0 0.0
      %6439 = vmatpush1.msra.mxu0 0.0
      %6440 = vmatprep.subr.mxu0 0.0
      %6441 = vmatpush1.msra.mxu0 0.0
      %6442 = vmatprep.subr.mxu0 0.0
      %6443 = vmatpush1.msra.mxu0 0.0
      %6444 = vmatprep.subr.mxu0 0.0
      %6445 = vmatpush1.msra.mxu0 0.0
      %6446 = vmatprep.subr.mxu0 0.0
      %6447 = vmatpush1.msra.mxu0 0.0
      %6448 = vmatprep.subr.mxu0 0.0
      %6449 = vmatpush1.msra.mxu0 0.0
      %6450 = vmatprep.subr.mxu0 0.0
      %6451 = vmatpush1.msra.mxu0 0.0
      %6452 = vmatprep.subr.mxu0 0.0
      %6453 = vmatpush1.msra.mxu0 0.0
      %6454 = vmatprep.mubr.f32.mxu0 0.0
      %6455 = vmatmul.mubr.f32.gmra.mrb[0].mxu0 %v6388
      %v6456 = vpop.f32.mrb[0].mxu0
      %v6457 = vadd.f32 0.0, %v6456
      %v6458 = vpop.f32.mrb[0].mxu0
      %6459 = vdwg.mxu0
      %v6461 = vsel %vm225, %v6165, 0
      %6463 = vmatprep.subr.mxu0 %v2008
      %6464 = vmatpush1.msra.mxu0 %v2007
      %6465 = vmatprep.subr.mxu0 %v2010
      %6466 = vmatpush1.msra.mxu0 %v2009
      %6467 = vmatprep.subr.mxu0 %v2012
      %6468 = vmatpush1.msra.mxu0 %v2011
      %6469 = vmatprep.subr.mxu0 %v2014
      %6470 = vmatpush1.msra.mxu0 %v2013
      %6471 = vmatprep.subr.mxu0 0.0
      %6472 = vmatpush1.msra.mxu0 0.0
      %6473 = vmatprep.subr.mxu0 0.0
      %6474 = vmatpush1.msra.mxu0 0.0
      %6475 = vmatprep.subr.mxu0 0.0
      %6476 = vmatpush1.msra.mxu0 0.0
      %6477 = vmatprep.subr.mxu0 0.0
      %6478 = vmatpush1.msra.mxu0 0.0
      %6479 = vmatprep.subr.mxu0 0.0
      %6480 = vmatpush1.msra.mxu0 0.0
      %6481 = vmatprep.subr.mxu0 0.0
      %6482 = vmatpush1.msra.mxu0 0.0
      %6483 = vmatprep.subr.mxu0 0.0
      %6484 = vmatpush1.msra.mxu0 0.0
      %6485 = vmatprep.subr.mxu0 0.0
      %6486 = vmatpush1.msra.mxu0 0.0
      %6487 = vmatprep.subr.mxu0 0.0
      %6488 = vmatpush1.msra.mxu0 0.0
      %6489 = vmatprep.subr.mxu0 0.0
      %6490 = vmatpush1.msra.mxu0 0.0
      %6491 = vmatprep.subr.mxu0 0.0
      %6492 = vmatpush1.msra.mxu0 0.0
      %6493 = vmatprep.subr.mxu0 0.0
      %6494 = vmatpush1.msra.mxu0 0.0
      %6495 = vmatprep.subr.mxu0 0.0
      %6496 = vmatpush1.msra.mxu0 0.0
      %6497 = vmatprep.subr.mxu0 0.0
      %6498 = vmatpush1.msra.mxu0 0.0
      %6499 = vmatprep.subr.mxu0 0.0
      %6500 = vmatpush1.msra.mxu0 0.0
      %6501 = vmatprep.subr.mxu0 0.0
      %6502 = vmatpush1.msra.mxu0 0.0
      %6503 = vmatprep.subr.mxu0 0.0
      %6504 = vmatpush1.msra.mxu0 0.0
      %6505 = vmatprep.subr.mxu0 0.0
      %6506 = vmatpush1.msra.mxu0 0.0
      %6507 = vmatprep.subr.mxu0 0.0
      %6508 = vmatpush1.msra.mxu0 0.0
      %6509 = vmatprep.subr.mxu0 0.0
      %6510 = vmatpush1.msra.mxu0 0.0
      %6511 = vmatprep.subr.mxu0 0.0
      %6512 = vmatpush1.msra.mxu0 0.0
      %6513 = vmatprep.subr.mxu0 0.0
      %6514 = vmatpush1.msra.mxu0 0.0
      %6515 = vmatprep.subr.mxu0 0.0
      %6516 = vmatpush1.msra.mxu0 0.0
      %6517 = vmatprep.subr.mxu0 0.0
      %6518 = vmatpush1.msra.mxu0 0.0
      %6519 = vmatprep.subr.mxu0 0.0
      %6520 = vmatpush1.msra.mxu0 0.0
      %6521 = vmatprep.subr.mxu0 0.0
      %6522 = vmatpush1.msra.mxu0 0.0
      %6523 = vmatprep.subr.mxu0 0.0
      %6524 = vmatpush1.msra.mxu0 0.0
      %6525 = vmatprep.subr.mxu0 0.0
      %6526 = vmatpush1.msra.mxu0 0.0
      %6527 = vmatprep.mubr.f32.mxu0 0.0
      %6528 = vmatmul.mubr.f32.gmra.mrb[0].mxu0 %v6461
      %v6529 = vpop.f32.mrb[0].mxu0
      %v6530 = vadd.f32 0.0, %v6529
      %v6531 = vpop.f32.mrb[0].mxu0
      %6532 = vdwg.mxu0
      %v6534 = vsel %vm225, %v6166, 0
      %6536 = vmatprep.subr.mxu0 %v2008
      %6537 = vmatpush1.msra.mxu0 %v2007
      %6538 = vmatprep.subr.mxu0 %v2010
      %6539 = vmatpush1.msra.mxu0 %v2009
      %6540 = vmatprep.subr.mxu0 %v2012
      %6541 = vmatpush1.msra.mxu0 %v2011
      %6542 = vmatprep.subr.mxu0 %v2014
      %6543 = vmatpush1.msra.mxu0 %v2013
      %6544 = vmatprep.subr.mxu0 0.0
      %6545 = vmatpush1.msra.mxu0 0.0
      %6546 = vmatprep.subr.mxu0 0.0
      %6547 = vmatpush1.msra.mxu0 0.0
      %6548 = vmatprep.subr.mxu0 0.0
      %6549 = vmatpush1.msra.mxu0 0.0
      %6550 = vmatprep.subr.mxu0 0.0
      %6551 = vmatpush1.msra.mxu0 0.0
      %6552 = vmatprep.subr.mxu0 0.0
      %6553 = vmatpush1.msra.mxu0 0.0
      %6554 = vmatprep.subr.mxu0 0.0
      %6555 = vmatpush1.msra.mxu0 0.0
      %6556 = vmatprep.subr.mxu0 0.0
      %6557 = vmatpush1.msra.mxu0 0.0
      %6558 = vmatprep.subr.mxu0 0.0
      %6559 = vmatpush1.msra.mxu0 0.0
      %6560 = vmatprep.subr.mxu0 0.0
      %6561 = vmatpush1.msra.mxu0 0.0
      %6562 = vmatprep.subr.mxu0 0.0
      %6563 = vmatpush1.msra.mxu0 0.0
      %6564 = vmatprep.subr.mxu0 0.0
      %6565 = vmatpush1.msra.mxu0 0.0
      %6566 = vmatprep.subr.mxu0 0.0
      %6567 = vmatpush1.msra.mxu0 0.0
      %6568 = vmatprep.subr.mxu0 0.0
      %6569 = vmatpush1.msra.mxu0 0.0
      %6570 = vmatprep.subr.mxu0 0.0
      %6571 = vmatpush1.msra.mxu0 0.0
      %6572 = vmatprep.subr.mxu0 0.0
      %6573 = vmatpush1.msra.mxu0 0.0
      %6574 = vmatprep.subr.mxu0 0.0
      %6575 = vmatpush1.msra.mxu0 0.0
      %6576 = vmatprep.subr.mxu0 0.0
      %6577 = vmatpush1.msra.mxu0 0.0
      %6578 = vmatprep.subr.mxu0 0.0
      %6579 = vmatpush1.msra.mxu0 0.0
      %6580 = vmatprep.subr.mxu0 0.0
      %6581 = vmatpush1.msra.mxu0 0.0
      %6582 = vmatprep.subr.mxu0 0.0
      %6583 = vmatpush1.msra.mxu0 0.0
      %6584 = vmatprep.subr.mxu0 0.0
      %6585 = vmatpush1.msra.mxu0 0.0
      %6586 = vmatprep.subr.mxu0 0.0
      %6587 = vmatpush1.msra.mxu0 0.0
      %6588 = vmatprep.subr.mxu0 0.0
      %6589 = vmatpush1.msra.mxu0 0.0
      %6590 = vmatprep.subr.mxu0 0.0
      %6591 = vmatpush1.msra.mxu0 0.0
      %6592 = vmatprep.subr.mxu0 0.0
      %6593 = vmatpush1.msra.mxu0 0.0
      %6594 = vmatprep.subr.mxu0 0.0
      %6595 = vmatpush1.msra.mxu0 0.0
      %6596 = vmatprep.subr.mxu0 0.0
      %6597 = vmatpush1.msra.mxu0 0.0
      %6598 = vmatprep.subr.mxu0 0.0
      %6599 = vmatpush1.msra.mxu0 0.0
      %6600 = vmatprep.mubr.f32.mxu0 0.0
      %6601 = vmatmul.mubr.f32.gmra.mrb[0].mxu0 %v6534
      %v6602 = vpop.f32.mrb[0].mxu0
      %v6603 = vadd.f32 0.0, %v6602
      %v6604 = vpop.f32.mrb[0].mxu0
      %6605 = vdwg.mxu0
      %v6607 = vsel %vm225, %v6167, 0
      %6609 = vmatprep.subr.mxu0 %v2008
      %6610 = vmatpush1.msra.mxu0 %v2007
      %6611 = vmatprep.subr.mxu0 %v2010
      %6612 = vmatpush1.msra.mxu0 %v2009
      %6613 = vmatprep.subr.mxu0 %v2012
      %6614 = vmatpush1.msra.mxu0 %v2011
      %6615 = vmatprep.subr.mxu0 %v2014
      %6616 = vmatpush1.msra.mxu0 %v2013
      %6617 = vmatprep.subr.mxu0 0.0
      %6618 = vmatpush1.msra.mxu0 0.0
      %6619 = vmatprep.subr.mxu0 0.0
      %6620 = vmatpush1.msra.mxu0 0.0
      %6621 = vmatprep.subr.mxu0 0.0
      %6622 = vmatpush1.msra.mxu0 0.0
      %6623 = vmatprep.subr.mxu0 0.0
      %6624 = vmatpush1.msra.mxu0 0.0
      %6625 = vmatprep.subr.mxu0 0.0
      %6626 = vmatpush1.msra.mxu0 0.0
      %6627 = vmatprep.subr.mxu0 0.0
      %6628 = vmatpush1.msra.mxu0 0.0
      %6629 = vmatprep.subr.mxu0 0.0
      %6630 = vmatpush1.msra.mxu0 0.0
      %6631 = vmatprep.subr.mxu0 0.0
      %6632 = vmatpush1.msra.mxu0 0.0
      %6633 = vmatprep.subr.mxu0 0.0
      %6634 = vmatpush1.msra.mxu0 0.0
      %6635 = vmatprep.subr.mxu0 0.0
      %6636 = vmatpush1.msra.mxu0 0.0
      %6637 = vmatprep.subr.mxu0 0.0
      %6638 = vmatpush1.msra.mxu0 0.0
      %6639 = vmatprep.subr.mxu0 0.0
      %6640 = vmatpush1.msra.mxu0 0.0
      %6641 = vmatprep.subr.mxu0 0.0
      %6642 = vmatpush1.msra.mxu0 0.0
      %6643 = vmatprep.subr.mxu0 0.0
      %6644 = vmatpush1.msra.mxu0 0.0
      %6645 = vmatprep.subr.mxu0 0.0
      %6646 = vmatpush1.msra.mxu0 0.0
      %6647 = vmatprep.subr.mxu0 0.0
      %6648 = vmatpush1.msra.mxu0 0.0
      %6649 = vmatprep.subr.mxu0 0.0
      %6650 = vmatpush1.msra.mxu0 0.0
      %6651 = vmatprep.subr.mxu0 0.0
      %6652 = vmatpush1.msra.mxu0 0.0
      %6653 = vmatprep.subr.mxu0 0.0
      %6654 = vmatpush1.msra.mxu0 0.0
      %6655 = vmatprep.subr.mxu0 0.0
      %6656 = vmatpush1.msra.mxu0 0.0
      %6657 = vmatprep.subr.mxu0 0.0
      %6658 = vmatpush1.msra.mxu0 0.0
      %6659 = vmatprep.subr.mxu0 0.0
      %6660 = vmatpush1.msra.mxu0 0.0
      %6661 = vmatprep.subr.mxu0 0.0
      %6662 = vmatpush1.msra.mxu0 0.0
      %6663 = vmatprep.subr.mxu0 0.0
      %6664 = vmatpush1.msra.mxu0 0.0
      %6665 = vmatprep.subr.mxu0 0.0
      %6666 = vmatpush1.msra.mxu0 0.0
      %6667 = vmatprep.subr.mxu0 0.0
      %6668 = vmatpush1.msra.mxu0 0.0
      %6669 = vmatprep.subr.mxu0 0.0
      %6670 = vmatpush1.msra.mxu0 0.0
      %6671 = vmatprep.subr.mxu0 0.0
      %6672 = vmatpush1.msra.mxu0 0.0
      %6673 = vmatprep.mubr.f32.mxu0 0.0
      %6674 = vmatmul.mubr.f32.gmra.mrb[0].mxu0 %v6607
      %v6675 = vpop.f32.mrb[0].mxu0
      %v6676 = vadd.f32 0.0, %v6675
      %v6677 = vpop.f32.mrb[0].mxu0
      %6678 = vdwg.mxu0
      %v6679 = vld [vmem:[%s1830] sm:$0x7f]
      %v6680 = vld [vmem:[%s1830 + $0x8] sm:$0x7f]
      %v6681 = vld [vmem:[%s1830 + $0x10] sm:$0x7f]
      %v6682 = vld [vmem:[%s1830 + $0x18] sm:$0x7f]
      %v6683 = vld [vmem:[%s1830 + $0x20] sm:$0x7f]
      %v6684 = vld [vmem:[%s1830 + $0x28] sm:$0x7f]
      %v6685 = vld [vmem:[%s1830 + $0x30] sm:$0x7f]
      %v6687 = vsel %vm225, %v6679, 0
      %6689 = vmatprep.subr.mxu0 %v2008
      %6690 = vmatpush1.msra.mxu0 %v2007
      %6691 = vmatprep.subr.mxu0 %v2010
      %6692 = vmatpush1.msra.mxu0 %v2009
      %6693 = vmatprep.subr.mxu0 %v2012
      %6694 = vmatpush1.msra.mxu0 %v2011
      %6695 = vmatprep.subr.mxu0 %v2014
      %6696 = vmatpush1.msra.mxu0 %v2013
      %6697 = vmatprep.subr.mxu0 0.0
      %6698 = vmatpush1.msra.mxu0 0.0
      %6699 = vmatprep.subr.mxu0 0.0
      %6700 = vmatpush1.msra.mxu0 0.0
      %6701 = vmatprep.subr.mxu0 0.0
      %6702 = vmatpush1.msra.mxu0 0.0
      %6703 = vmatprep.subr.mxu0 0.0
      %6704 = vmatpush1.msra.mxu0 0.0
      %6705 = vmatprep.subr.mxu0 0.0
      %6706 = vmatpush1.msra.mxu0 0.0
      %6707 = vmatprep.subr.mxu0 0.0
      %6708 = vmatpush1.msra.mxu0 0.0
      %6709 = vmatprep.subr.mxu0 0.0
      %6710 = vmatpush1.msra.mxu0 0.0
      %6711 = vmatprep.subr.mxu0 0.0
      %6712 = vmatpush1.msra.mxu0 0.0
      %6713 = vmatprep.subr.mxu0 0.0
      %6714 = vmatpush1.msra.mxu0 0.0
      %6715 = vmatprep.subr.mxu0 0.0
      %6716 = vmatpush1.msra.mxu0 0.0
      %6717 = vmatprep.subr.mxu0 0.0
      %6718 = vmatpush1.msra.mxu0 0.0
      %6719 = vmatprep.subr.mxu0 0.0
      %6720 = vmatpush1.msra.mxu0 0.0
      %6721 = vmatprep.subr.mxu0 0.0
      %6722 = vmatpush1.msra.mxu0 0.0
      %6723 = vmatprep.subr.mxu0 0.0
      %6724 = vmatpush1.msra.mxu0 0.0
      %6725 = vmatprep.subr.mxu0 0.0
      %6726 = vmatpush1.msra.mxu0 0.0
      %6727 = vmatprep.subr.mxu0 0.0
      %6728 = vmatpush1.msra.mxu0 0.0
      %6729 = vmatprep.subr.mxu0 0.0
      %6730 = vmatpush1.msra.mxu0 0.0
      %6731 = vmatprep.subr.mxu0 0.0
      %6732 = vmatpush1.msra.mxu0 0.0
      %6733 = vmatprep.subr.mxu0 0.0
      %6734 = vmatpush1.msra.mxu0 0.0
      %6735 = vmatprep.subr.mxu0 0.0
      %6736 = vmatpush1.msra.mxu0 0.0
      %6737 = vmatprep.subr.mxu0 0.0
      %6738 = vmatpush1.msra.mxu0 0.0
      %6739 = vmatprep.subr.mxu0 0.0
      %6740 = vmatpush1.msra.mxu0 0.0
      %6741 = vmatprep.subr.mxu0 0.0
      %6742 = vmatpush1.msra.mxu0 0.0
      %6743 = vmatprep.subr.mxu0 0.0
      %6744 = vmatpush1.msra.mxu0 0.0
      %6745 = vmatprep.subr.mxu0 0.0
      %6746 = vmatpush1.msra.mxu0 0.0
      %6747 = vmatprep.subr.mxu0 0.0
      %6748 = vmatpush1.msra.mxu0 0.0
      %6749 = vmatprep.subr.mxu0 0.0
      %6750 = vmatpush1.msra.mxu0 0.0
      %6751 = vmatprep.subr.mxu0 0.0
      %6752 = vmatpush1.msra.mxu0 0.0
      %6753 = vmatprep.mubr.f32.mxu0 0.0
      %6754 = vmatmul.mubr.f32.gmra.mrb[0].mxu0 %v6687
      %v6755 = vpop.f32.mrb[0].mxu0
      %v6756 = vadd.f32 0.0, %v6755
      %v6757 = vpop.f32.mrb[0].mxu0
      %6758 = vdwg.mxu0
      %v6760 = vsel %vm225, %v6680, 0
      %6762 = vmatprep.subr.mxu0 %v2008
      %6763 = vmatpush1.msra.mxu0 %v2007
      %6764 = vmatprep.subr.mxu0 %v2010
      %6765 = vmatpush1.msra.mxu0 %v2009
      %6766 = vmatprep.subr.mxu0 %v2012
      %6767 = vmatpush1.msra.mxu0 %v2011
      %6768 = vmatprep.subr.mxu0 %v2014
      %6769 = vmatpush1.msra.mxu0 %v2013
      %6770 = vmatprep.subr.mxu0 0.0
      %6771 = vmatpush1.msra.mxu0 0.0
      %6772 = vmatprep.subr.mxu0 0.0
      %6773 = vmatpush1.msra.mxu0 0.0
      %6774 = vmatprep.subr.mxu0 0.0
      %6775 = vmatpush1.msra.mxu0 0.0
      %6776 = vmatprep.subr.mxu0 0.0
      %6777 = vmatpush1.msra.mxu0 0.0
      %6778 = vmatprep.subr.mxu0 0.0
      %6779 = vmatpush1.msra.mxu0 0.0
      %6780 = vmatprep.subr.mxu0 0.0
      %6781 = vmatpush1.msra.mxu0 0.0
      %6782 = vmatprep.subr.mxu0 0.0
      %6783 = vmatpush1.msra.mxu0 0.0
      %6784 = vmatprep.subr.mxu0 0.0
      %6785 = vmatpush1.msra.mxu0 0.0
      %6786 = vmatprep.subr.mxu0 0.0
      %6787 = vmatpush1.msra.mxu0 0.0
      %6788 = vmatprep.subr.mxu0 0.0
      %6789 = vmatpush1.msra.mxu0 0.0
      %6790 = vmatprep.subr.mxu0 0.0
      %6791 = vmatpush1.msra.mxu0 0.0
      %6792 = vmatprep.subr.mxu0 0.0
      %6793 = vmatpush1.msra.mxu0 0.0
      %6794 = vmatprep.subr.mxu0 0.0
      %6795 = vmatpush1.msra.mxu0 0.0
      %6796 = vmatprep.subr.mxu0 0.0
      %6797 = vmatpush1.msra.mxu0 0.0
      %6798 = vmatprep.subr.mxu0 0.0
      %6799 = vmatpush1.msra.mxu0 0.0
      %6800 = vmatprep.subr.mxu0 0.0
      %6801 = vmatpush1.msra.mxu0 0.0
      %6802 = vmatprep.subr.mxu0 0.0
      %6803 = vmatpush1.msra.mxu0 0.0
      %6804 = vmatprep.subr.mxu0 0.0
      %6805 = vmatpush1.msra.mxu0 0.0
      %6806 = vmatprep.subr.mxu0 0.0
      %6807 = vmatpush1.msra.mxu0 0.0
      %6808 = vmatprep.subr.mxu0 0.0
      %6809 = vmatpush1.msra.mxu0 0.0
      %6810 = vmatprep.subr.mxu0 0.0
      %6811 = vmatpush1.msra.mxu0 0.0
      %6812 = vmatprep.subr.mxu0 0.0
      %6813 = vmatpush1.msra.mxu0 0.0
      %6814 = vmatprep.subr.mxu0 0.0
      %6815 = vmatpush1.msra.mxu0 0.0
      %6816 = vmatprep.subr.mxu0 0.0
      %6817 = vmatpush1.msra.mxu0 0.0
      %6818 = vmatprep.subr.mxu0 0.0
      %6819 = vmatpush1.msra.mxu0 0.0
      %6820 = vmatprep.subr.mxu0 0.0
      %6821 = vmatpush1.msra.mxu0 0.0
      %6822 = vmatprep.subr.mxu0 0.0
      %6823 = vmatpush1.msra.mxu0 0.0
      %6824 = vmatprep.subr.mxu0 0.0
      %6825 = vmatpush1.msra.mxu0 0.0
      %6826 = vmatprep.mubr.f32.mxu0 0.0
      %6827 = vmatmul.mubr.f32.gmra.mrb[0].mxu0 %v6760
      %v6828 = vpop.f32.mrb[0].mxu0
      %v6829 = vadd.f32 0.0, %v6828
      %v6830 = vpop.f32.mrb[0].mxu0
      %6831 = vdwg.mxu0
      %v6833 = vsel %vm225, %v6681, 0
      %6835 = vmatprep.subr.mxu0 %v2008
      %6836 = vmatpush1.msra.mxu0 %v2007
      %6837 = vmatprep.subr.mxu0 %v2010
      %6838 = vmatpush1.msra.mxu0 %v2009
      %6839 = vmatprep.subr.mxu0 %v2012
      %6840 = vmatpush1.msra.mxu0 %v2011
      %6841 = vmatprep.subr.mxu0 %v2014
      %6842 = vmatpush1.msra.mxu0 %v2013
      %6843 = vmatprep.subr.mxu0 0.0
      %6844 = vmatpush1.msra.mxu0 0.0
      %6845 = vmatprep.subr.mxu0 0.0
      %6846 = vmatpush1.msra.mxu0 0.0
      %6847 = vmatprep.subr.mxu0 0.0
      %6848 = vmatpush1.msra.mxu0 0.0
      %6849 = vmatprep.subr.mxu0 0.0
      %6850 = vmatpush1.msra.mxu0 0.0
      %6851 = vmatprep.subr.mxu0 0.0
      %6852 = vmatpush1.msra.mxu0 0.0
      %6853 = vmatprep.subr.mxu0 0.0
      %6854 = vmatpush1.msra.mxu0 0.0
      %6855 = vmatprep.subr.mxu0 0.0
      %6856 = vmatpush1.msra.mxu0 0.0
      %6857 = vmatprep.subr.mxu0 0.0
      %6858 = vmatpush1.msra.mxu0 0.0
      %6859 = vmatprep.subr.mxu0 0.0
      %6860 = vmatpush1.msra.mxu0 0.0
      %6861 = vmatprep.subr.mxu0 0.0
      %6862 = vmatpush1.msra.mxu0 0.0
      %6863 = vmatprep.subr.mxu0 0.0
      %6864 = vmatpush1.msra.mxu0 0.0
      %6865 = vmatprep.subr.mxu0 0.0
      %6866 = vmatpush1.msra.mxu0 0.0
      %6867 = vmatprep.subr.mxu0 0.0
      %6868 = vmatpush1.msra.mxu0 0.0
      %6869 = vmatprep.subr.mxu0 0.0
      %6870 = vmatpush1.msra.mxu0 0.0
      %6871 = vmatprep.subr.mxu0 0.0
      %6872 = vmatpush1.msra.mxu0 0.0
      %6873 = vmatprep.subr.mxu0 0.0
      %6874 = vmatpush1.msra.mxu0 0.0
      %6875 = vmatprep.subr.mxu0 0.0
      %6876 = vmatpush1.msra.mxu0 0.0
      %6877 = vmatprep.subr.mxu0 0.0
      %6878 = vmatpush1.msra.mxu0 0.0
      %6879 = vmatprep.subr.mxu0 0.0
      %6880 = vmatpush1.msra.mxu0 0.0
      %6881 = vmatprep.subr.mxu0 0.0
      %6882 = vmatpush1.msra.mxu0 0.0
      %6883 = vmatprep.subr.mxu0 0.0
      %6884 = vmatpush1.msra.mxu0 0.0
      %6885 = vmatprep.subr.mxu0 0.0
      %6886 = vmatpush1.msra.mxu0 0.0
      %6887 = vmatprep.subr.mxu0 0.0
      %6888 = vmatpush1.msra.mxu0 0.0
      %6889 = vmatprep.subr.mxu0 0.0
      %6890 = vmatpush1.msra.mxu0 0.0
      %6891 = vmatprep.subr.mxu0 0.0
      %6892 = vmatpush1.msra.mxu0 0.0
      %6893 = vmatprep.subr.mxu0 0.0
      %6894 = vmatpush1.msra.mxu0 0.0
      %6895 = vmatprep.subr.mxu0 0.0
      %6896 = vmatpush1.msra.mxu0 0.0
      %6897 = vmatprep.subr.mxu0 0.0
      %6898 = vmatpush1.msra.mxu0 0.0
      %6899 = vmatprep.mubr.f32.mxu0 0.0
      %6900 = vmatmul.mubr.f32.gmra.mrb[0].mxu0 %v6833
      %v6901 = vpop.f32.mrb[0].mxu0
      %v6902 = vadd.f32 0.0, %v6901
      %v6903 = vpop.f32.mrb[0].mxu0
      %6904 = vdwg.mxu0
      %v6906 = vsel %vm225, %v6682, 0
      %6908 = vmatprep.subr.mxu0 %v2008
      %6909 = vmatpush1.msra.mxu0 %v2007
      %6910 = vmatprep.subr.mxu0 %v2010
      %6911 = vmatpush1.msra.mxu0 %v2009
      %6912 = vmatprep.subr.mxu0 %v2012
      %6913 = vmatpush1.msra.mxu0 %v2011
      %6914 = vmatprep.subr.mxu0 %v2014
      %6915 = vmatpush1.msra.mxu0 %v2013
      %6916 = vmatprep.subr.mxu0 0.0
      %6917 = vmatpush1.msra.mxu0 0.0
      %6918 = vmatprep.subr.mxu0 0.0
      %6919 = vmatpush1.msra.mxu0 0.0
      %6920 = vmatprep.subr.mxu0 0.0
      %6921 = vmatpush1.msra.mxu0 0.0
      %6922 = vmatprep.subr.mxu0 0.0
      %6923 = vmatpush1.msra.mxu0 0.0
      %6924 = vmatprep.subr.mxu0 0.0
      %6925 = vmatpush1.msra.mxu0 0.0
      %6926 = vmatprep.subr.mxu0 0.0
      %6927 = vmatpush1.msra.mxu0 0.0
      %6928 = vmatprep.subr.mxu0 0.0
      %6929 = vmatpush1.msra.mxu0 0.0
      %6930 = vmatprep.subr.mxu0 0.0
      %6931 = vmatpush1.msra.mxu0 0.0
      %6932 = vmatprep.subr.mxu0 0.0
      %6933 = vmatpush1.msra.mxu0 0.0
      %6934 = vmatprep.subr.mxu0 0.0
      %6935 = vmatpush1.msra.mxu0 0.0
      %6936 = vmatprep.subr.mxu0 0.0
      %6937 = vmatpush1.msra.mxu0 0.0
      %6938 = vmatprep.subr.mxu0 0.0
      %6939 = vmatpush1.msra.mxu0 0.0
      %6940 = vmatprep.subr.mxu0 0.0
      %6941 = vmatpush1.msra.mxu0 0.0
      %6942 = vmatprep.subr.mxu0 0.0
      %6943 = vmatpush1.msra.mxu0 0.0
      %6944 = vmatprep.subr.mxu0 0.0
      %6945 = vmatpush1.msra.mxu0 0.0
      %6946 = vmatprep.subr.mxu0 0.0
      %6947 = vmatpush1.msra.mxu0 0.0
      %6948 = vmatprep.subr.mxu0 0.0
      %6949 = vmatpush1.msra.mxu0 0.0
      %6950 = vmatprep.subr.mxu0 0.0
      %6951 = vmatpush1.msra.mxu0 0.0
      %6952 = vmatprep.subr.mxu0 0.0
      %6953 = vmatpush1.msra.mxu0 0.0
      %6954 = vmatprep.subr.mxu0 0.0
      %6955 = vmatpush1.msra.mxu0 0.0
      %6956 = vmatprep.subr.mxu0 0.0
      %6957 = vmatpush1.msra.mxu0 0.0
      %6958 = vmatprep.subr.mxu0 0.0
      %6959 = vmatpush1.msra.mxu0 0.0
      %6960 = vmatprep.subr.mxu0 0.0
      %6961 = vmatpush1.msra.mxu0 0.0
      %6962 = vmatprep.subr.mxu0 0.0
      %6963 = vmatpush1.msra.mxu0 0.0
      %6964 = vmatprep.subr.mxu0 0.0
      %6965 = vmatpush1.msra.mxu0 0.0
      %6966 = vmatprep.subr.mxu0 0.0
      %6967 = vmatpush1.msra.mxu0 0.0
      %6968 = vmatprep.subr.mxu0 0.0
      %6969 = vmatpush1.msra.mxu0 0.0
      %6970 = vmatprep.subr.mxu0 0.0
      %6971 = vmatpush1.msra.mxu0 0.0
      %6972 = vmatprep.mubr.f32.mxu0 0.0
      %6973 = vmatmul.mubr.f32.gmra.mrb[0].mxu0 %v6906
      %v6974 = vpop.f32.mrb[0].mxu0
      %v6975 = vadd.f32 0.0, %v6974
      %v6976 = vpop.f32.mrb[0].mxu0
      %6977 = vdwg.mxu0
      %v6979 = vsel %vm225, %v6683, 0
      %6981 = vmatprep.subr.mxu0 %v2008
      %6982 = vmatpush1.msra.mxu0 %v2007
      %6983 = vmatprep.subr.mxu0 %v2010
      %6984 = vmatpush1.msra.mxu0 %v2009
      %6985 = vmatprep.subr.mxu0 %v2012
      %6986 = vmatpush1.msra.mxu0 %v2011
      %6987 = vmatprep.subr.mxu0 %v2014
      %6988 = vmatpush1.msra.mxu0 %v2013
      %6989 = vmatprep.subr.mxu0 0.0
      %6990 = vmatpush1.msra.mxu0 0.0
      %6991 = vmatprep.subr.mxu0 0.0
      %6992 = vmatpush1.msra.mxu0 0.0
      %6993 = vmatprep.subr.mxu0 0.0
      %6994 = vmatpush1.msra.mxu0 0.0
      %6995 = vmatprep.subr.mxu0 0.0
      %6996 = vmatpush1.msra.mxu0 0.0
      %6997 = vmatprep.subr.mxu0 0.0
      %6998 = vmatpush1.msra.mxu0 0.0
      %6999 = vmatprep.subr.mxu0 0.0
      %7000 = vmatpush1.msra.mxu0 0.0
      %7001 = vmatprep.subr.mxu0 0.0
      %7002 = vmatpush1.msra.mxu0 0.0
      %7003 = vmatprep.subr.mxu0 0.0
      %7004 = vmatpush1.msra.mxu0 0.0
      %7005 = vmatprep.subr.mxu0 0.0
      %7006 = vmatpush1.msra.mxu0 0.0
      %7007 = vmatprep.subr.mxu0 0.0
      %7008 = vmatpush1.msra.mxu0 0.0
      %7009 = vmatprep.subr.mxu0 0.0
      %7010 = vmatpush1.msra.mxu0 0.0
      %7011 = vmatprep.subr.mxu0 0.0
      %7012 = vmatpush1.msra.mxu0 0.0
      %7013 = vmatprep.subr.mxu0 0.0
      %7014 = vmatpush1.msra.mxu0 0.0
      %7015 = vmatprep.subr.mxu0 0.0
      %7016 = vmatpush1.msra.mxu0 0.0
      %7017 = vmatprep.subr.mxu0 0.0
      %7018 = vmatpush1.msra.mxu0 0.0
      %7019 = vmatprep.subr.mxu0 0.0
      %7020 = vmatpush1.msra.mxu0 0.0
      %7021 = vmatprep.subr.mxu0 0.0
      %7022 = vmatpush1.msra.mxu0 0.0
      %7023 = vmatprep.subr.mxu0 0.0
      %7024 = vmatpush1.msra.mxu0 0.0
      %7025 = vmatprep.subr.mxu0 0.0
      %7026 = vmatpush1.msra.mxu0 0.0
      %7027 = vmatprep.subr.mxu0 0.0
      %7028 = vmatpush1.msra.mxu0 0.0
      %7029 = vmatprep.subr.mxu0 0.0
      %7030 = vmatpush1.msra.mxu0 0.0
      %7031 = vmatprep.subr.mxu0 0.0
      %7032 = vmatpush1.msra.mxu0 0.0
      %7033 = vmatprep.subr.mxu0 0.0
      %7034 = vmatpush1.msra.mxu0 0.0
      %7035 = vmatprep.subr.mxu0 0.0
      %7036 = vmatpush1.msra.mxu0 0.0
      %7037 = vmatprep.subr.mxu0 0.0
      %7038 = vmatpush1.msra.mxu0 0.0
      %7039 = vmatprep.subr.mxu0 0.0
      %7040 = vmatpush1.msra.mxu0 0.0
      %7041 = vmatprep.subr.mxu0 0.0
      %7042 = vmatpush1.msra.mxu0 0.0
      %7043 = vmatprep.subr.mxu0 0.0
      %7044 = vmatpush1.msra.mxu0 0.0
      %7045 = vmatprep.mubr.f32.mxu0 0.0
      %7046 = vmatmul.mubr.f32.gmra.mrb[0].mxu0 %v6979
      %v7047 = vpop.f32.mrb[0].mxu0
      %v7048 = vadd.f32 0.0, %v7047
      %v7049 = vpop.f32.mrb[0].mxu0
      %7050 = vdwg.mxu0
      %v7052 = vsel %vm225, %v6684, 0
      %7054 = vmatprep.subr.mxu0 %v2008
      %7055 = vmatpush1.msra.mxu0 %v2007
      %7056 = vmatprep.subr.mxu0 %v2010
      %7057 = vmatpush1.msra.mxu0 %v2009
      %7058 = vmatprep.subr.mxu0 %v2012
      %7059 = vmatpush1.msra.mxu0 %v2011
      %7060 = vmatprep.subr.mxu0 %v2014
      %7061 = vmatpush1.msra.mxu0 %v2013
      %7062 = vmatprep.subr.mxu0 0.0
      %7063 = vmatpush1.msra.mxu0 0.0
      %7064 = vmatprep.subr.mxu0 0.0
      %7065 = vmatpush1.msra.mxu0 0.0
      %7066 = vmatprep.subr.mxu0 0.0
      %7067 = vmatpush1.msra.mxu0 0.0
      %7068 = vmatprep.subr.mxu0 0.0
      %7069 = vmatpush1.msra.mxu0 0.0
      %7070 = vmatprep.subr.mxu0 0.0
      %7071 = vmatpush1.msra.mxu0 0.0
      %7072 = vmatprep.subr.mxu0 0.0
      %7073 = vmatpush1.msra.mxu0 0.0
      %7074 = vmatprep.subr.mxu0 0.0
      %7075 = vmatpush1.msra.mxu0 0.0
      %7076 = vmatprep.subr.mxu0 0.0
      %7077 = vmatpush1.msra.mxu0 0.0
      %7078 = vmatprep.subr.mxu0 0.0
      %7079 = vmatpush1.msra.mxu0 0.0
      %7080 = vmatprep.subr.mxu0 0.0
      %7081 = vmatpush1.msra.mxu0 0.0
      %7082 = vmatprep.subr.mxu0 0.0
      %7083 = vmatpush1.msra.mxu0 0.0
      %7084 = vmatprep.subr.mxu0 0.0
      %7085 = vmatpush1.msra.mxu0 0.0
      %7086 = vmatprep.subr.mxu0 0.0
      %7087 = vmatpush1.msra.mxu0 0.0
      %7088 = vmatprep.subr.mxu0 0.0
      %7089 = vmatpush1.msra.mxu0 0.0
      %7090 = vmatprep.subr.mxu0 0.0
      %7091 = vmatpush1.msra.mxu0 0.0
      %7092 = vmatprep.subr.mxu0 0.0
      %7093 = vmatpush1.msra.mxu0 0.0
      %7094 = vmatprep.subr.mxu0 0.0
      %7095 = vmatpush1.msra.mxu0 0.0
      %7096 = vmatprep.subr.mxu0 0.0
      %7097 = vmatpush1.msra.mxu0 0.0
      %7098 = vmatprep.subr.mxu0 0.0
      %7099 = vmatpush1.msra.mxu0 0.0
      %7100 = vmatprep.subr.mxu0 0.0
      %7101 = vmatpush1.msra.mxu0 0.0
      %7102 = vmatprep.subr.mxu0 0.0
      %7103 = vmatpush1.msra.mxu0 0.0
      %7104 = vmatprep.subr.mxu0 0.0
      %7105 = vmatpush1.msra.mxu0 0.0
      %7106 = vmatprep.subr.mxu0 0.0
      %7107 = vmatpush1.msra.mxu0 0.0
      %7108 = vmatprep.subr.mxu0 0.0
      %7109 = vmatpush1.msra.mxu0 0.0
      %7110 = vmatprep.subr.mxu0 0.0
      %7111 = vmatpush1.msra.mxu0 0.0
      %7112 = vmatprep.subr.mxu0 0.0
      %7113 = vmatpush1.msra.mxu0 0.0
      %7114 = vmatprep.subr.mxu0 0.0
      %7115 = vmatpush1.msra.mxu0 0.0
      %7116 = vmatprep.subr.mxu0 0.0
      %7117 = vmatpush1.msra.mxu0 0.0
      %7118 = vmatprep.mubr.f32.mxu0 0.0
      %7119 = vmatmul.mubr.f32.gmra.mrb[0].mxu0 %v7052
      %v7120 = vpop.f32.mrb[0].mxu0
      %v7121 = vadd.f32 0.0, %v7120
      %v7122 = vpop.f32.mrb[0].mxu0
      %7123 = vdwg.mxu0
      %v7125 = vsel %vm225, %v6685, 0
      %7127 = vmatprep.subr.mxu0 %v2008
      %7128 = vmatpush1.msra.mxu0 %v2007
      %7129 = vmatprep.subr.mxu0 %v2010
      %7130 = vmatpush1.msra.mxu0 %v2009
      %7131 = vmatprep.subr.mxu0 %v2012
      %7132 = vmatpush1.msra.mxu0 %v2011
      %7133 = vmatprep.subr.mxu0 %v2014
      %7134 = vmatpush1.msra.mxu0 %v2013
      %7135 = vmatprep.subr.mxu0 0.0
      %7136 = vmatpush1.msra.mxu0 0.0
      %7137 = vmatprep.subr.mxu0 0.0
      %7138 = vmatpush1.msra.mxu0 0.0
      %7139 = vmatprep.subr.mxu0 0.0
      %7140 = vmatpush1.msra.mxu0 0.0
      %7141 = vmatprep.subr.mxu0 0.0
      %7142 = vmatpush1.msra.mxu0 0.0
      %7143 = vmatprep.subr.mxu0 0.0
      %7144 = vmatpush1.msra.mxu0 0.0
      %7145 = vmatprep.subr.mxu0 0.0
      %7146 = vmatpush1.msra.mxu0 0.0
      %7147 = vmatprep.subr.mxu0 0.0
      %7148 = vmatpush1.msra.mxu0 0.0
      %7149 = vmatprep.subr.mxu0 0.0
      %7150 = vmatpush1.msra.mxu0 0.0
      %7151 = vmatprep.subr.mxu0 0.0
      %7152 = vmatpush1.msra.mxu0 0.0
      %7153 = vmatprep.subr.mxu0 0.0
      %7154 = vmatpush1.msra.mxu0 0.0
      %7155 = vmatprep.subr.mxu0 0.0
      %7156 = vmatpush1.msra.mxu0 0.0
      %7157 = vmatprep.subr.mxu0 0.0
      %7158 = vmatpush1.msra.mxu0 0.0
      %7159 = vmatprep.subr.mxu0 0.0
      %7160 = vmatpush1.msra.mxu0 0.0
      %7161 = vmatprep.subr.mxu0 0.0
      %7162 = vmatpush1.msra.mxu0 0.0
      %7163 = vmatprep.subr.mxu0 0.0
      %7164 = vmatpush1.msra.mxu0 0.0
      %7165 = vmatprep.subr.mxu0 0.0
      %7166 = vmatpush1.msra.mxu0 0.0
      %7167 = vmatprep.subr.mxu0 0.0
      %7168 = vmatpush1.msra.mxu0 0.0
      %7169 = vmatprep.subr.mxu0 0.0
      %7170 = vmatpush1.msra.mxu0 0.0
      %7171 = vmatprep.subr.mxu0 0.0
      %7172 = vmatpush1.msra.mxu0 0.0
      %7173 = vmatprep.subr.mxu0 0.0
      %7174 = vmatpush1.msra.mxu0 0.0
      %7175 = vmatprep.subr.mxu0 0.0
      %7176 = vmatpush1.msra.mxu0 0.0
      %7177 = vmatprep.subr.mxu0 0.0
      %7178 = vmatpush1.msra.mxu0 0.0
      %7179 = vmatprep.subr.mxu0 0.0
      %7180 = vmatpush1.msra.mxu0 0.0
      %7181 = vmatprep.subr.mxu0 0.0
      %7182 = vmatpush1.msra.mxu0 0.0
      %7183 = vmatprep.subr.mxu0 0.0
      %7184 = vmatpush1.msra.mxu0 0.0
      %7185 = vmatprep.subr.mxu0 0.0
      %7186 = vmatpush1.msra.mxu0 0.0
      %7187 = vmatprep.subr.mxu0 0.0
      %7188 = vmatpush1.msra.mxu0 0.0
      %7189 = vmatprep.subr.mxu0 0.0
      %7190 = vmatpush1.msra.mxu0 0.0
      %7191 = vmatprep.mubr.f32.mxu0 0.0
      %7192 = vmatmul.mubr.f32.gmra.mrb[0].mxu0 %v7125
      %v7193 = vpop.f32.mrb[0].mxu0
      %v7194 = vadd.f32 0.0, %v7193
      %v7195 = vpop.f32.mrb[0].mxu0
      %7196 = vdwg.mxu0
      %v7197 = vld [vmem:[%s1999 + $0x1] sm:$0x7f]
      %v7198 = vld [vmem:[%s1999 + $0x9] sm:$0x7f]
      %v7199 = vld [vmem:[%s1999 + $0x11] sm:$0x7f]
      %v7200 = vld [vmem:[%s1999 + $0x19] sm:$0x7f]
      %v7201 = vld [vmem:[%s1999 + $0x21] sm:$0x7f]
      %v7202 = vld [vmem:[%s1999 + $0x29] sm:$0x7f]
      %v7203 = vld [vmem:[%s1999 + $0x31] sm:$0x7f]
      %v7205 = vsel %vm225, %v7197, 0
      %7207 = vmatprep.subr.mxu0 %v2008
      %7208 = vmatpush1.msra.mxu0 %v2007
      %7209 = vmatprep.subr.mxu0 %v2010
      %7210 = vmatpush1.msra.mxu0 %v2009
      %7211 = vmatprep.subr.mxu0 %v2012
      %7212 = vmatpush1.msra.mxu0 %v2011
      %7213 = vmatprep.subr.mxu0 %v2014
      %7214 = vmatpush1.msra.mxu0 %v2013
      %7215 = vmatprep.subr.mxu0 0.0
      %7216 = vmatpush1.msra.mxu0 0.0
      %7217 = vmatprep.subr.mxu0 0.0
      %7218 = vmatpush1.msra.mxu0 0.0
      %7219 = vmatprep.subr.mxu0 0.0
      %7220 = vmatpush1.msra.mxu0 0.0
      %7221 = vmatprep.subr.mxu0 0.0
      %7222 = vmatpush1.msra.mxu0 0.0
      %7223 = vmatprep.subr.mxu0 0.0
      %7224 = vmatpush1.msra.mxu0 0.0
      %7225 = vmatprep.subr.mxu0 0.0
      %7226 = vmatpush1.msra.mxu0 0.0
      %7227 = vmatprep.subr.mxu0 0.0
      %7228 = vmatpush1.msra.mxu0 0.0
      %7229 = vmatprep.subr.mxu0 0.0
      %7230 = vmatpush1.msra.mxu0 0.0
      %7231 = vmatprep.subr.mxu0 0.0
      %7232 = vmatpush1.msra.mxu0 0.0
      %7233 = vmatprep.subr.mxu0 0.0
      %7234 = vmatpush1.msra.mxu0 0.0
      %7235 = vmatprep.subr.mxu0 0.0
      %7236 = vmatpush1.msra.mxu0 0.0
      %7237 = vmatprep.subr.mxu0 0.0
      %7238 = vmatpush1.msra.mxu0 0.0
      %7239 = vmatprep.subr.mxu0 0.0
      %7240 = vmatpush1.msra.mxu0 0.0
      %7241 = vmatprep.subr.mxu0 0.0
      %7242 = vmatpush1.msra.mxu0 0.0
      %7243 = vmatprep.subr.mxu0 0.0
      %7244 = vmatpush1.msra.mxu0 0.0
      %7245 = vmatprep.subr.mxu0 0.0
      %7246 = vmatpush1.msra.mxu0 0.0
      %7247 = vmatprep.subr.mxu0 0.0
      %7248 = vmatpush1.msra.mxu0 0.0
      %7249 = vmatprep.subr.mxu0 0.0
      %7250 = vmatpush1.msra.mxu0 0.0
      %7251 = vmatprep.subr.mxu0 0.0
      %7252 = vmatpush1.msra.mxu0 0.0
      %7253 = vmatprep.subr.mxu0 0.0
      %7254 = vmatpush1.msra.mxu0 0.0
      %7255 = vmatprep.subr.mxu0 0.0
      %7256 = vmatpush1.msra.mxu0 0.0
      %7257 = vmatprep.subr.mxu0 0.0
      %7258 = vmatpush1.msra.mxu0 0.0
      %7259 = vmatprep.subr.mxu0 0.0
      %7260 = vmatpush1.msra.mxu0 0.0
      %7261 = vmatprep.subr.mxu0 0.0
      %7262 = vmatpush1.msra.mxu0 0.0
      %7263 = vmatprep.subr.mxu0 0.0
      %7264 = vmatpush1.msra.mxu0 0.0
      %7265 = vmatprep.subr.mxu0 0.0
      %7266 = vmatpush1.msra.mxu0 0.0
      %7267 = vmatprep.subr.mxu0 0.0
      %7268 = vmatpush1.msra.mxu0 0.0
      %7269 = vmatprep.subr.mxu0 0.0
      %7270 = vmatpush1.msra.mxu0 0.0
      %7271 = vmatprep.mubr.f32.mxu0 0.0
      %7272 = vmatmul.mubr.f32.gmra.mrb[0].mxu0 %v7205
      %v7273 = vpop.f32.mrb[0].mxu0
      %v7274 = vadd.f32 0.0, %v7273
      %v7275 = vpop.f32.mrb[0].mxu0
      %v7276 = vadd.f32 0.0, %v7275
      %7277 = vdwg.mxu0
      %v7279 = vsel %vm225, %v7198, 0
      %7281 = vmatprep.subr.mxu0 %v2008
      %7282 = vmatpush1.msra.mxu0 %v2007
      %7283 = vmatprep.subr.mxu0 %v2010
      %7284 = vmatpush1.msra.mxu0 %v2009
      %7285 = vmatprep.subr.mxu0 %v2012
      %7286 = vmatpush1.msra.mxu0 %v2011
      %7287 = vmatprep.subr.mxu0 %v2014
      %7288 = vmatpush1.msra.mxu0 %v2013
      %7289 = vmatprep.subr.mxu0 0.0
      %7290 = vmatpush1.msra.mxu0 0.0
      %7291 = vmatprep.subr.mxu0 0.0
      %7292 = vmatpush1.msra.mxu0 0.0
      %7293 = vmatprep.subr.mxu0 0.0
      %7294 = vmatpush1.msra.mxu0 0.0
      %7295 = vmatprep.subr.mxu0 0.0
      %7296 = vmatpush1.msra.mxu0 0.0
      %7297 = vmatprep.subr.mxu0 0.0
      %7298 = vmatpush1.msra.mxu0 0.0
      %7299 = vmatprep.subr.mxu0 0.0
      %7300 = vmatpush1.msra.mxu0 0.0
      %7301 = vmatprep.subr.mxu0 0.0
      %7302 = vmatpush1.msra.mxu0 0.0
      %7303 = vmatprep.subr.mxu0 0.0
      %7304 = vmatpush1.msra.mxu0 0.0
      %7305 = vmatprep.subr.mxu0 0.0
      %7306 = vmatpush1.msra.mxu0 0.0
      %7307 = vmatprep.subr.mxu0 0.0
      %7308 = vmatpush1.msra.mxu0 0.0
      %7309 = vmatprep.subr.mxu0 0.0
      %7310 = vmatpush1.msra.mxu0 0.0
      %7311 = vmatprep.subr.mxu0 0.0
      %7312 = vmatpush1.msra.mxu0 0.0
      %7313 = vmatprep.subr.mxu0 0.0
      %7314 = vmatpush1.msra.mxu0 0.0
      %7315 = vmatprep.subr.mxu0 0.0
      %7316 = vmatpush1.msra.mxu0 0.0
      %7317 = vmatprep.subr.mxu0 0.0
      %7318 = vmatpush1.msra.mxu0 0.0
      %7319 = vmatprep.subr.mxu0 0.0
      %7320 = vmatpush1.msra.mxu0 0.0
      %7321 = vmatprep.subr.mxu0 0.0
      %7322 = vmatpush1.msra.mxu0 0.0
      %7323 = vmatprep.subr.mxu0 0.0
      %7324 = vmatpush1.msra.mxu0 0.0
      %7325 = vmatprep.subr.mxu0 0.0
      %7326 = vmatpush1.msra.mxu0 0.0
      %7327 = vmatprep.subr.mxu0 0.0
      %7328 = vmatpush1.msra.mxu0 0.0
      %7329 = vmatprep.subr.mxu0 0.0
      %7330 = vmatpush1.msra.mxu0 0.0
      %7331 = vmatprep.subr.mxu0 0.0
      %7332 = vmatpush1.msra.mxu0 0.0
      %7333 = vmatprep.subr.mxu0 0.0
      %7334 = vmatpush1.msra.mxu0 0.0
      %7335 = vmatprep.subr.mxu0 0.0
      %7336 = vmatpush1.msra.mxu0 0.0
      %7337 = vmatprep.subr.mxu0 0.0
      %7338 = vmatpush1.msra.mxu0 0.0
      %7339 = vmatprep.subr.mxu0 0.0
      %7340 = vmatpush1.msra.mxu0 0.0
      %7341 = vmatprep.subr.mxu0 0.0
      %7342 = vmatpush1.msra.mxu0 0.0
      %7343 = vmatprep.subr.mxu0 0.0
      %7344 = vmatpush1.msra.mxu0 0.0
      %7345 = vmatprep.mubr.f32.mxu0 0.0
      %7346 = vmatmul.mubr.f32.gmra.mrb[0].mxu0 %v7279
      %v7347 = vpop.f32.mrb[0].mxu0
      %v7348 = vadd.f32 0.0, %v7347
      %v7349 = vpop.f32.mrb[0].mxu0
      %v7350 = vadd.f32 0.0, %v7349
      %7351 = vdwg.mxu0
      %v7353 = vsel %vm225, %v7199, 0
      %7355 = vmatprep.subr.mxu0 %v2008
      %7356 = vmatpush1.msra.mxu0 %v2007
      %7357 = vmatprep.subr.mxu0 %v2010
      %7358 = vmatpush1.msra.mxu0 %v2009
      %7359 = vmatprep.subr.mxu0 %v2012
      %7360 = vmatpush1.msra.mxu0 %v2011
      %7361 = vmatprep.subr.mxu0 %v2014
      %7362 = vmatpush1.msra.mxu0 %v2013
      %7363 = vmatprep.subr.mxu0 0.0
      %7364 = vmatpush1.msra.mxu0 0.0
      %7365 = vmatprep.subr.mxu0 0.0
      %7366 = vmatpush1.msra.mxu0 0.0
      %7367 = vmatprep.subr.mxu0 0.0
      %7368 = vmatpush1.msra.mxu0 0.0
      %7369 = vmatprep.subr.mxu0 0.0
      %7370 = vmatpush1.msra.mxu0 0.0
      %7371 = vmatprep.subr.mxu0 0.0
      %7372 = vmatpush1.msra.mxu0 0.0
      %7373 = vmatprep.subr.mxu0 0.0
      %7374 = vmatpush1.msra.mxu0 0.0
      %7375 = vmatprep.subr.mxu0 0.0
      %7376 = vmatpush1.msra.mxu0 0.0
      %7377 = vmatprep.subr.mxu0 0.0
      %7378 = vmatpush1.msra.mxu0 0.0
      %7379 = vmatprep.subr.mxu0 0.0
      %7380 = vmatpush1.msra.mxu0 0.0
      %7381 = vmatprep.subr.mxu0 0.0
      %7382 = vmatpush1.msra.mxu0 0.0
      %7383 = vmatprep.subr.mxu0 0.0
      %7384 = vmatpush1.msra.mxu0 0.0
      %7385 = vmatprep.subr.mxu0 0.0
      %7386 = vmatpush1.msra.mxu0 0.0
      %7387 = vmatprep.subr.mxu0 0.0
      %7388 = vmatpush1.msra.mxu0 0.0
      %7389 = vmatprep.subr.mxu0 0.0
      %7390 = vmatpush1.msra.mxu0 0.0
      %7391 = vmatprep.subr.mxu0 0.0
      %7392 = vmatpush1.msra.mxu0 0.0
      %7393 = vmatprep.subr.mxu0 0.0
      %7394 = vmatpush1.msra.mxu0 0.0
      %7395 = vmatprep.subr.mxu0 0.0
      %7396 = vmatpush1.msra.mxu0 0.0
      %7397 = vmatprep.subr.mxu0 0.0
      %7398 = vmatpush1.msra.mxu0 0.0
      %7399 = vmatprep.subr.mxu0 0.0
      %7400 = vmatpush1.msra.mxu0 0.0
      %7401 = vmatprep.subr.mxu0 0.0
      %7402 = vmatpush1.msra.mxu0 0.0
      %7403 = vmatprep.subr.mxu0 0.0
      %7404 = vmatpush1.msra.mxu0 0.0
      %7405 = vmatprep.subr.mxu0 0.0
      %7406 = vmatpush1.msra.mxu0 0.0
      %7407 = vmatprep.subr.mxu0 0.0
      %7408 = vmatpush1.msra.mxu0 0.0
      %7409 = vmatprep.subr.mxu0 0.0
      %7410 = vmatpush1.msra.mxu0 0.0
      %7411 = vmatprep.subr.mxu0 0.0
      %7412 = vmatpush1.msra.mxu0 0.0
      %7413 = vmatprep.subr.mxu0 0.0
      %7414 = vmatpush1.msra.mxu0 0.0
      %7415 = vmatprep.subr.mxu0 0.0
      %7416 = vmatpush1.msra.mxu0 0.0
      %7417 = vmatprep.subr.mxu0 0.0
      %7418 = vmatpush1.msra.mxu0 0.0
      %7419 = vmatprep.mubr.f32.mxu0 0.0
      %7420 = vmatmul.mubr.f32.gmra.mrb[0].mxu0 %v7353
      %v7421 = vpop.f32.mrb[0].mxu0
      %v7422 = vadd.f32 0.0, %v7421
      %v7423 = vpop.f32.mrb[0].mxu0
      %v7424 = vadd.f32 0.0, %v7423
      %7425 = vdwg.mxu0
      %v7427 = vsel %vm225, %v7200, 0
      %7429 = vmatprep.subr.mxu0 %v2008
      %7430 = vmatpush1.msra.mxu0 %v2007
      %7431 = vmatprep.subr.mxu0 %v2010
      %7432 = vmatpush1.msra.mxu0 %v2009
      %7433 = vmatprep.subr.mxu0 %v2012
      %7434 = vmatpush1.msra.mxu0 %v2011
      %7435 = vmatprep.subr.mxu0 %v2014
      %7436 = vmatpush1.msra.mxu0 %v2013
      %7437 = vmatprep.subr.mxu0 0.0
      %7438 = vmatpush1.msra.mxu0 0.0
      %7439 = vmatprep.subr.mxu0 0.0
      %7440 = vmatpush1.msra.mxu0 0.0
      %7441 = vmatprep.subr.mxu0 0.0
      %7442 = vmatpush1.msra.mxu0 0.0
      %7443 = vmatprep.subr.mxu0 0.0
      %7444 = vmatpush1.msra.mxu0 0.0
      %7445 = vmatprep.subr.mxu0 0.0
      %7446 = vmatpush1.msra.mxu0 0.0
      %7447 = vmatprep.subr.mxu0 0.0
      %7448 = vmatpush1.msra.mxu0 0.0
      %7449 = vmatprep.subr.mxu0 0.0
      %7450 = vmatpush1.msra.mxu0 0.0
      %7451 = vmatprep.subr.mxu0 0.0
      %7452 = vmatpush1.msra.mxu0 0.0
      %7453 = vmatprep.subr.mxu0 0.0
      %7454 = vmatpush1.msra.mxu0 0.0
      %7455 = vmatprep.subr.mxu0 0.0
      %7456 = vmatpush1.msra.mxu0 0.0
      %7457 = vmatprep.subr.mxu0 0.0
      %7458 = vmatpush1.msra.mxu0 0.0
      %7459 = vmatprep.subr.mxu0 0.0
      %7460 = vmatpush1.msra.mxu0 0.0
      %7461 = vmatprep.subr.mxu0 0.0
      %7462 = vmatpush1.msra.mxu0 0.0
      %7463 = vmatprep.subr.mxu0 0.0
      %7464 = vmatpush1.msra.mxu0 0.0
      %7465 = vmatprep.subr.mxu0 0.0
      %7466 = vmatpush1.msra.mxu0 0.0
      %7467 = vmatprep.subr.mxu0 0.0
      %7468 = vmatpush1.msra.mxu0 0.0
      %7469 = vmatprep.subr.mxu0 0.0
      %7470 = vmatpush1.msra.mxu0 0.0
      %7471 = vmatprep.subr.mxu0 0.0
      %7472 = vmatpush1.msra.mxu0 0.0
      %7473 = vmatprep.subr.mxu0 0.0
      %7474 = vmatpush1.msra.mxu0 0.0
      %7475 = vmatprep.subr.mxu0 0.0
      %7476 = vmatpush1.msra.mxu0 0.0
      %7477 = vmatprep.subr.mxu0 0.0
      %7478 = vmatpush1.msra.mxu0 0.0
      %7479 = vmatprep.subr.mxu0 0.0
      %7480 = vmatpush1.msra.mxu0 0.0
      %7481 = vmatprep.subr.mxu0 0.0
      %7482 = vmatpush1.msra.mxu0 0.0
      %7483 = vmatprep.subr.mxu0 0.0
      %7484 = vmatpush1.msra.mxu0 0.0
      %7485 = vmatprep.subr.mxu0 0.0
      %7486 = vmatpush1.msra.mxu0 0.0
      %7487 = vmatprep.subr.mxu0 0.0
      %7488 = vmatpush1.msra.mxu0 0.0
      %7489 = vmatprep.subr.mxu0 0.0
      %7490 = vmatpush1.msra.mxu0 0.0
      %7491 = vmatprep.subr.mxu0 0.0
      %7492 = vmatpush1.msra.mxu0 0.0
      %7493 = vmatprep.mubr.f32.mxu0 0.0
      %7494 = vmatmul.mubr.f32.gmra.mrb[0].mxu0 %v7427
      %v7495 = vpop.f32.mrb[0].mxu0
      %v7496 = vadd.f32 0.0, %v7495
      %v7497 = vpop.f32.mrb[0].mxu0
      %v7498 = vadd.f32 0.0, %v7497
      %7499 = vdwg.mxu0
      %v7501 = vsel %vm225, %v7201, 0
      %7503 = vmatprep.subr.mxu0 %v2008
      %7504 = vmatpush1.msra.mxu0 %v2007
      %7505 = vmatprep.subr.mxu0 %v2010
      %7506 = vmatpush1.msra.mxu0 %v2009
      %7507 = vmatprep.subr.mxu0 %v2012
      %7508 = vmatpush1.msra.mxu0 %v2011
      %7509 = vmatprep.subr.mxu0 %v2014
      %7510 = vmatpush1.msra.mxu0 %v2013
      %7511 = vmatprep.subr.mxu0 0.0
      %7512 = vmatpush1.msra.mxu0 0.0
      %7513 = vmatprep.subr.mxu0 0.0
      %7514 = vmatpush1.msra.mxu0 0.0
      %7515 = vmatprep.subr.mxu0 0.0
      %7516 = vmatpush1.msra.mxu0 0.0
      %7517 = vmatprep.subr.mxu0 0.0
      %7518 = vmatpush1.msra.mxu0 0.0
      %7519 = vmatprep.subr.mxu0 0.0
      %7520 = vmatpush1.msra.mxu0 0.0
      %7521 = vmatprep.subr.mxu0 0.0
      %7522 = vmatpush1.msra.mxu0 0.0
      %7523 = vmatprep.subr.mxu0 0.0
      %7524 = vmatpush1.msra.mxu0 0.0
      %7525 = vmatprep.subr.mxu0 0.0
      %7526 = vmatpush1.msra.mxu0 0.0
      %7527 = vmatprep.subr.mxu0 0.0
      %7528 = vmatpush1.msra.mxu0 0.0
      %7529 = vmatprep.subr.mxu0 0.0
      %7530 = vmatpush1.msra.mxu0 0.0
      %7531 = vmatprep.subr.mxu0 0.0
      %7532 = vmatpush1.msra.mxu0 0.0
      %7533 = vmatprep.subr.mxu0 0.0
      %7534 = vmatpush1.msra.mxu0 0.0
      %7535 = vmatprep.subr.mxu0 0.0
      %7536 = vmatpush1.msra.mxu0 0.0
      %7537 = vmatprep.subr.mxu0 0.0
      %7538 = vmatpush1.msra.mxu0 0.0
      %7539 = vmatprep.subr.mxu0 0.0
      %7540 = vmatpush1.msra.mxu0 0.0
      %7541 = vmatprep.subr.mxu0 0.0
      %7542 = vmatpush1.msra.mxu0 0.0
      %7543 = vmatprep.subr.mxu0 0.0
      %7544 = vmatpush1.msra.mxu0 0.0
      %7545 = vmatprep.subr.mxu0 0.0
      %7546 = vmatpush1.msra.mxu0 0.0
      %7547 = vmatprep.subr.mxu0 0.0
      %7548 = vmatpush1.msra.mxu0 0.0
      %7549 = vmatprep.subr.mxu0 0.0
      %7550 = vmatpush1.msra.mxu0 0.0
      %7551 = vmatprep.subr.mxu0 0.0
      %7552 = vmatpush1.msra.mxu0 0.0
      %7553 = vmatprep.subr.mxu0 0.0
      %7554 = vmatpush1.msra.mxu0 0.0
      %7555 = vmatprep.subr.mxu0 0.0
      %7556 = vmatpush1.msra.mxu0 0.0
      %7557 = vmatprep.subr.mxu0 0.0
      %7558 = vmatpush1.msra.mxu0 0.0
      %7559 = vmatprep.subr.mxu0 0.0
      %7560 = vmatpush1.msra.mxu0 0.0
      %7561 = vmatprep.subr.mxu0 0.0
      %7562 = vmatpush1.msra.mxu0 0.0
      %7563 = vmatprep.subr.mxu0 0.0
      %7564 = vmatpush1.msra.mxu0 0.0
      %7565 = vmatprep.subr.mxu0 0.0
      %7566 = vmatpush1.msra.mxu0 0.0
      %7567 = vmatprep.mubr.f32.mxu0 0.0
      %7568 = vmatmul.mubr.f32.gmra.mrb[0].mxu0 %v7501
      %v7569 = vpop.f32.mrb[0].mxu0
      %v7570 = vadd.f32 0.0, %v7569
      %v7571 = vpop.f32.mrb[0].mxu0
      %v7572 = vadd.f32 0.0, %v7571
      %7573 = vdwg.mxu0
      %v7575 = vsel %vm225, %v7202, 0
      %7577 = vmatprep.subr.mxu0 %v2008
      %7578 = vmatpush1.msra.mxu0 %v2007
      %7579 = vmatprep.subr.mxu0 %v2010
      %7580 = vmatpush1.msra.mxu0 %v2009
      %7581 = vmatprep.subr.mxu0 %v2012
      %7582 = vmatpush1.msra.mxu0 %v2011
      %7583 = vmatprep.subr.mxu0 %v2014
      %7584 = vmatpush1.msra.mxu0 %v2013
      %7585 = vmatprep.subr.mxu0 0.0
      %7586 = vmatpush1.msra.mxu0 0.0
      %7587 = vmatprep.subr.mxu0 0.0
      %7588 = vmatpush1.msra.mxu0 0.0
      %7589 = vmatprep.subr.mxu0 0.0
      %7590 = vmatpush1.msra.mxu0 0.0
      %7591 = vmatprep.subr.mxu0 0.0
      %7592 = vmatpush1.msra.mxu0 0.0
      %7593 = vmatprep.subr.mxu0 0.0
      %7594 = vmatpush1.msra.mxu0 0.0
      %7595 = vmatprep.subr.mxu0 0.0
      %7596 = vmatpush1.msra.mxu0 0.0
      %7597 = vmatprep.subr.mxu0 0.0
      %7598 = vmatpush1.msra.mxu0 0.0
      %7599 = vmatprep.subr.mxu0 0.0
      %7600 = vmatpush1.msra.mxu0 0.0
      %7601 = vmatprep.subr.mxu0 0.0
      %7602 = vmatpush1.msra.mxu0 0.0
      %7603 = vmatprep.subr.mxu0 0.0
      %7604 = vmatpush1.msra.mxu0 0.0
      %7605 = vmatprep.subr.mxu0 0.0
      %7606 = vmatpush1.msra.mxu0 0.0
      %7607 = vmatprep.subr.mxu0 0.0
      %7608 = vmatpush1.msra.mxu0 0.0
      %7609 = vmatprep.subr.mxu0 0.0
      %7610 = vmatpush1.msra.mxu0 0.0
      %7611 = vmatprep.subr.mxu0 0.0
      %7612 = vmatpush1.msra.mxu0 0.0
      %7613 = vmatprep.subr.mxu0 0.0
      %7614 = vmatpush1.msra.mxu0 0.0
      %7615 = vmatprep.subr.mxu0 0.0
      %7616 = vmatpush1.msra.mxu0 0.0
      %7617 = vmatprep.subr.mxu0 0.0
      %7618 = vmatpush1.msra.mxu0 0.0
      %7619 = vmatprep.subr.mxu0 0.0
      %7620 = vmatpush1.msra.mxu0 0.0
      %7621 = vmatprep.subr.mxu0 0.0
      %7622 = vmatpush1.msra.mxu0 0.0
      %7623 = vmatprep.subr.mxu0 0.0
      %7624 = vmatpush1.msra.mxu0 0.0
      %7625 = vmatprep.subr.mxu0 0.0
      %7626 = vmatpush1.msra.mxu0 0.0
      %7627 = vmatprep.subr.mxu0 0.0
      %7628 = vmatpush1.msra.mxu0 0.0
      %7629 = vmatprep.subr.mxu0 0.0
      %7630 = vmatpush1.msra.mxu0 0.0
      %7631 = vmatprep.subr.mxu0 0.0
      %7632 = vmatpush1.msra.mxu0 0.0
      %7633 = vmatprep.subr.mxu0 0.0
      %7634 = vmatpush1.msra.mxu0 0.0
      %7635 = vmatprep.subr.mxu0 0.0
      %7636 = vmatpush1.msra.mxu0 0.0
      %7637 = vmatprep.subr.mxu0 0.0
      %7638 = vmatpush1.msra.mxu0 0.0
      %7639 = vmatprep.subr.mxu0 0.0
      %7640 = vmatpush1.msra.mxu0 0.0
      %7641 = vmatprep.mubr.f32.mxu0 0.0
      %7642 = vmatmul.mubr.f32.gmra.mrb[0].mxu0 %v7575
      %v7643 = vpop.f32.mrb[0].mxu0
      %v7644 = vadd.f32 0.0, %v7643
      %v7645 = vpop.f32.mrb[0].mxu0
      %v7646 = vadd.f32 0.0, %v7645
      %7647 = vdwg.mxu0
      %v7649 = vsel %vm225, %v7203, 0
      %7651 = vmatprep.subr.mxu0 %v2008
      %7652 = vmatpush1.msra.mxu0 %v2007
      %7653 = vmatprep.subr.mxu0 %v2010
      %7654 = vmatpush1.msra.mxu0 %v2009
      %7655 = vmatprep.subr.mxu0 %v2012
      %7656 = vmatpush1.msra.mxu0 %v2011
      %7657 = vmatprep.subr.mxu0 %v2014
      %7658 = vmatpush1.msra.mxu0 %v2013
      %7659 = vmatprep.subr.mxu0 0.0
      %7660 = vmatpush1.msra.mxu0 0.0
      %7661 = vmatprep.subr.mxu0 0.0
      %7662 = vmatpush1.msra.mxu0 0.0
      %7663 = vmatprep.subr.mxu0 0.0
      %7664 = vmatpush1.msra.mxu0 0.0
      %7665 = vmatprep.subr.mxu0 0.0
      %7666 = vmatpush1.msra.mxu0 0.0
      %7667 = vmatprep.subr.mxu0 0.0
      %7668 = vmatpush1.msra.mxu0 0.0
      %7669 = vmatprep.subr.mxu0 0.0
      %7670 = vmatpush1.msra.mxu0 0.0
      %7671 = vmatprep.subr.mxu0 0.0
      %7672 = vmatpush1.msra.mxu0 0.0
      %7673 = vmatprep.subr.mxu0 0.0
      %7674 = vmatpush1.msra.mxu0 0.0
      %7675 = vmatprep.subr.mxu0 0.0
      %7676 = vmatpush1.msra.mxu0 0.0
      %7677 = vmatprep.subr.mxu0 0.0
      %7678 = vmatpush1.msra.mxu0 0.0
      %7679 = vmatprep.subr.mxu0 0.0
      %7680 = vmatpush1.msra.mxu0 0.0
      %7681 = vmatprep.subr.mxu0 0.0
      %7682 = vmatpush1.msra.mxu0 0.0
      %7683 = vmatprep.subr.mxu0 0.0
      %7684 = vmatpush1.msra.mxu0 0.0
      %7685 = vmatprep.subr.mxu0 0.0
      %7686 = vmatpush1.msra.mxu0 0.0
      %7687 = vmatprep.subr.mxu0 0.0
      %7688 = vmatpush1.msra.mxu0 0.0
      %7689 = vmatprep.subr.mxu0 0.0
      %7690 = vmatpush1.msra.mxu0 0.0
      %7691 = vmatprep.subr.mxu0 0.0
      %7692 = vmatpush1.msra.mxu0 0.0
      %7693 = vmatprep.subr.mxu0 0.0
      %7694 = vmatpush1.msra.mxu0 0.0
      %7695 = vmatprep.subr.mxu0 0.0
      %7696 = vmatpush1.msra.mxu0 0.0
      %7697 = vmatprep.subr.mxu0 0.0
      %7698 = vmatpush1.msra.mxu0 0.0
      %7699 = vmatprep.subr.mxu0 0.0
      %7700 = vmatpush1.msra.mxu0 0.0
      %7701 = vmatprep.subr.mxu0 0.0
      %7702 = vmatpush1.msra.mxu0 0.0
      %7703 = vmatprep.subr.mxu0 0.0
      %7704 = vmatpush1.msra.mxu0 0.0
      %7705 = vmatprep.subr.mxu0 0.0
      %7706 = vmatpush1.msra.mxu0 0.0
      %7707 = vmatprep.subr.mxu0 0.0
      %7708 = vmatpush1.msra.mxu0 0.0
      %7709 = vmatprep.subr.mxu0 0.0
      %7710 = vmatpush1.msra.mxu0 0.0
      %7711 = vmatprep.subr.mxu0 0.0
      %7712 = vmatpush1.msra.mxu0 0.0
      %7713 = vmatprep.subr.mxu0 0.0
      %7714 = vmatpush1.msra.mxu0 0.0
      %7715 = vmatprep.mubr.f32.mxu0 0.0
      %7716 = vmatmul.mubr.f32.gmra.mrb[0].mxu0 %v7649
      %v7717 = vpop.f32.mrb[0].mxu0
      %v7718 = vadd.f32 0.0, %v7717
      %v7719 = vpop.f32.mrb[0].mxu0
      %v7720 = vadd.f32 0.0, %v7719
      %7721 = vdwg.mxu0
      %v7722 = vld [vmem:[%s1830 + $0x1] sm:$0x7f]
      %v7723 = vld [vmem:[%s1830 + $0x9] sm:$0x7f]
      %v7724 = vld [vmem:[%s1830 + $0x11] sm:$0x7f]
      %v7725 = vld [vmem:[%s1830 + $0x19] sm:$0x7f]
      %v7726 = vld [vmem:[%s1830 + $0x21] sm:$0x7f]
      %v7727 = vld [vmem:[%s1830 + $0x29] sm:$0x7f]
      %v7728 = vld [vmem:[%s1830 + $0x31] sm:$0x7f]
      %v7730 = vsel %vm225, %v7722, 0
      %7732 = vmatprep.subr.mxu0 %v2008
      %7733 = vmatpush1.msra.mxu0 %v2007
      %7734 = vmatprep.subr.mxu0 %v2010
      %7735 = vmatpush1.msra.mxu0 %v2009
      %7736 = vmatprep.subr.mxu0 %v2012
      %7737 = vmatpush1.msra.mxu0 %v2011
      %7738 = vmatprep.subr.mxu0 %v2014
      %7739 = vmatpush1.msra.mxu0 %v2013
      %7740 = vmatprep.subr.mxu0 0.0
      %7741 = vmatpush1.msra.mxu0 0.0
      %7742 = vmatprep.subr.mxu0 0.0
      %7743 = vmatpush1.msra.mxu0 0.0
      %7744 = vmatprep.subr.mxu0 0.0
      %7745 = vmatpush1.msra.mxu0 0.0
      %7746 = vmatprep.subr.mxu0 0.0
      %7747 = vmatpush1.msra.mxu0 0.0
      %7748 = vmatprep.subr.mxu0 0.0
      %7749 = vmatpush1.msra.mxu0 0.0
      %7750 = vmatprep.subr.mxu0 0.0
      %7751 = vmatpush1.msra.mxu0 0.0
      %7752 = vmatprep.subr.mxu0 0.0
      %7753 = vmatpush1.msra.mxu0 0.0
      %7754 = vmatprep.subr.mxu0 0.0
      %7755 = vmatpush1.msra.mxu0 0.0
      %7756 = vmatprep.subr.mxu0 0.0
      %7757 = vmatpush1.msra.mxu0 0.0
      %7758 = vmatprep.subr.mxu0 0.0
      %7759 = vmatpush1.msra.mxu0 0.0
      %7760 = vmatprep.subr.mxu0 0.0
      %7761 = vmatpush1.msra.mxu0 0.0
      %7762 = vmatprep.subr.mxu0 0.0
      %7763 = vmatpush1.msra.mxu0 0.0
      %7764 = vmatprep.subr.mxu0 0.0
      %7765 = vmatpush1.msra.mxu0 0.0
      %7766 = vmatprep.subr.mxu0 0.0
      %7767 = vmatpush1.msra.mxu0 0.0
      %7768 = vmatprep.subr.mxu0 0.0
      %7769 = vmatpush1.msra.mxu0 0.0
      %7770 = vmatprep.subr.mxu0 0.0
      %7771 = vmatpush1.msra.mxu0 0.0
      %7772 = vmatprep.subr.mxu0 0.0
      %7773 = vmatpush1.msra.mxu0 0.0
      %7774 = vmatprep.subr.mxu0 0.0
      %7775 = vmatpush1.msra.mxu0 0.0
      %7776 = vmatprep.subr.mxu0 0.0
      %7777 = vmatpush1.msra.mxu0 0.0
      %7778 = vmatprep.subr.mxu0 0.0
      %7779 = vmatpush1.msra.mxu0 0.0
      %7780 = vmatprep.subr.mxu0 0.0
      %7781 = vmatpush1.msra.mxu0 0.0
      %7782 = vmatprep.subr.mxu0 0.0
      %7783 = vmatpush1.msra.mxu0 0.0
      %7784 = vmatprep.subr.mxu0 0.0
      %7785 = vmatpush1.msra.mxu0 0.0
      %7786 = vmatprep.subr.mxu0 0.0
      %7787 = vmatpush1.msra.mxu0 0.0
      %7788 = vmatprep.subr.mxu0 0.0
      %7789 = vmatpush1.msra.mxu0 0.0
      %7790 = vmatprep.subr.mxu0 0.0
      %7791 = vmatpush1.msra.mxu0 0.0
      %7792 = vmatprep.subr.mxu0 0.0
      %7793 = vmatpush1.msra.mxu0 0.0
      %7794 = vmatprep.subr.mxu0 0.0
      %7795 = vmatpush1.msra.mxu0 0.0
      %7796 = vmatprep.mubr.f32.mxu0 0.0
      %7797 = vmatmul.mubr.f32.gmra.mrb[0].mxu0 %v7730
      %v7798 = vpop.f32.mrb[0].mxu0
      %v7799 = vadd.f32 0.0, %v7798
      %v7800 = vpop.f32.mrb[0].mxu0
      %v7801 = vadd.f32 0.0, %v7800
      %7802 = vdwg.mxu0
      %v7804 = vsel %vm225, %v7723, 0
      %7806 = vmatprep.subr.mxu0 %v2008
      %7807 = vmatpush1.msra.mxu0 %v2007
      %7808 = vmatprep.subr.mxu0 %v2010
      %7809 = vmatpush1.msra.mxu0 %v2009
      %7810 = vmatprep.subr.mxu0 %v2012
      %7811 = vmatpush1.msra.mxu0 %v2011
      %7812 = vmatprep.subr.mxu0 %v2014
      %7813 = vmatpush1.msra.mxu0 %v2013
      %7814 = vmatprep.subr.mxu0 0.0
      %7815 = vmatpush1.msra.mxu0 0.0
      %7816 = vmatprep.subr.mxu0 0.0
      %7817 = vmatpush1.msra.mxu0 0.0
      %7818 = vmatprep.subr.mxu0 0.0
      %7819 = vmatpush1.msra.mxu0 0.0
      %7820 = vmatprep.subr.mxu0 0.0
      %7821 = vmatpush1.msra.mxu0 0.0
      %7822 = vmatprep.subr.mxu0 0.0
      %7823 = vmatpush1.msra.mxu0 0.0
      %7824 = vmatprep.subr.mxu0 0.0
      %7825 = vmatpush1.msra.mxu0 0.0
      %7826 = vmatprep.subr.mxu0 0.0
      %7827 = vmatpush1.msra.mxu0 0.0
      %7828 = vmatprep.subr.mxu0 0.0
      %7829 = vmatpush1.msra.mxu0 0.0
      %7830 = vmatprep.subr.mxu0 0.0
      %7831 = vmatpush1.msra.mxu0 0.0
      %7832 = vmatprep.subr.mxu0 0.0
      %7833 = vmatpush1.msra.mxu0 0.0
      %7834 = vmatprep.subr.mxu0 0.0
      %7835 = vmatpush1.msra.mxu0 0.0
      %7836 = vmatprep.subr.mxu0 0.0
      %7837 = vmatpush1.msra.mxu0 0.0
      %7838 = vmatprep.subr.mxu0 0.0
      %7839 = vmatpush1.msra.mxu0 0.0
      %7840 = vmatprep.subr.mxu0 0.0
      %7841 = vmatpush1.msra.mxu0 0.0
      %7842 = vmatprep.subr.mxu0 0.0
      %7843 = vmatpush1.msra.mxu0 0.0
      %7844 = vmatprep.subr.mxu0 0.0
      %7845 = vmatpush1.msra.mxu0 0.0
      %7846 = vmatprep.subr.mxu0 0.0
      %7847 = vmatpush1.msra.mxu0 0.0
      %7848 = vmatprep.subr.mxu0 0.0
      %7849 = vmatpush1.msra.mxu0 0.0
      %7850 = vmatprep.subr.mxu0 0.0
      %7851 = vmatpush1.msra.mxu0 0.0
      %7852 = vmatprep.subr.mxu0 0.0
      %7853 = vmatpush1.msra.mxu0 0.0
      %7854 = vmatprep.subr.mxu0 0.0
      %7855 = vmatpush1.msra.mxu0 0.0
      %7856 = vmatprep.subr.mxu0 0.0
      %7857 = vmatpush1.msra.mxu0 0.0
      %7858 = vmatprep.subr.mxu0 0.0
      %7859 = vmatpush1.msra.mxu0 0.0
      %7860 = vmatprep.subr.mxu0 0.0
      %7861 = vmatpush1.msra.mxu0 0.0
      %7862 = vmatprep.subr.mxu0 0.0
      %7863 = vmatpush1.msra.mxu0 0.0
      %7864 = vmatprep.subr.mxu0 0.0
      %7865 = vmatpush1.msra.mxu0 0.0
      %7866 = vmatprep.subr.mxu0 0.0
      %7867 = vmatpush1.msra.mxu0 0.0
      %7868 = vmatprep.subr.mxu0 0.0
      %7869 = vmatpush1.msra.mxu0 0.0
      %7870 = vmatprep.mubr.f32.mxu0 0.0
      %7871 = vmatmul.mubr.f32.gmra.mrb[0].mxu0 %v7804
      %v7872 = vpop.f32.mrb[0].mxu0
      %v7873 = vadd.f32 0.0, %v7872
      %v7874 = vpop.f32.mrb[0].mxu0
      %v7875 = vadd.f32 0.0, %v7874
      %7876 = vdwg.mxu0
      %v7878 = vsel %vm225, %v7724, 0
      %7880 = vmatprep.subr.mxu0 %v2008
      %7881 = vmatpush1.msra.mxu0 %v2007
      %7882 = vmatprep.subr.mxu0 %v2010
      %7883 = vmatpush1.msra.mxu0 %v2009
      %7884 = vmatprep.subr.mxu0 %v2012
      %7885 = vmatpush1.msra.mxu0 %v2011
      %7886 = vmatprep.subr.mxu0 %v2014
      %7887 = vmatpush1.msra.mxu0 %v2013
      %7888 = vmatprep.subr.mxu0 0.0
      %7889 = vmatpush1.msra.mxu0 0.0
      %7890 = vmatprep.subr.mxu0 0.0
      %7891 = vmatpush1.msra.mxu0 0.0
      %7892 = vmatprep.subr.mxu0 0.0
      %7893 = vmatpush1.msra.mxu0 0.0
      %7894 = vmatprep.subr.mxu0 0.0
      %7895 = vmatpush1.msra.mxu0 0.0
      %7896 = vmatprep.subr.mxu0 0.0
      %7897 = vmatpush1.msra.mxu0 0.0
      %7898 = vmatprep.subr.mxu0 0.0
      %7899 = vmatpush1.msra.mxu0 0.0
      %7900 = vmatprep.subr.mxu0 0.0
      %7901 = vmatpush1.msra.mxu0 0.0
      %7902 = vmatprep.subr.mxu0 0.0
      %7903 = vmatpush1.msra.mxu0 0.0
      %7904 = vmatprep.subr.mxu0 0.0
      %7905 = vmatpush1.msra.mxu0 0.0
      %7906 = vmatprep.subr.mxu0 0.0
      %7907 = vmatpush1.msra.mxu0 0.0
      %7908 = vmatprep.subr.mxu0 0.0
      %7909 = vmatpush1.msra.mxu0 0.0
      %7910 = vmatprep.subr.mxu0 0.0
      %7911 = vmatpush1.msra.mxu0 0.0
      %7912 = vmatprep.subr.mxu0 0.0
      %7913 = vmatpush1.msra.mxu0 0.0
      %7914 = vmatprep.subr.mxu0 0.0
      %7915 = vmatpush1.msra.mxu0 0.0
      %7916 = vmatprep.subr.mxu0 0.0
      %7917 = vmatpush1.msra.mxu0 0.0
      %7918 = vmatprep.subr.mxu0 0.0
      %7919 = vmatpush1.msra.mxu0 0.0
      %7920 = vmatprep.subr.mxu0 0.0
      %7921 = vmatpush1.msra.mxu0 0.0
      %7922 = vmatprep.subr.mxu0 0.0
      %7923 = vmatpush1.msra.mxu0 0.0
      %7924 = vmatprep.subr.mxu0 0.0
      %7925 = vmatpush1.msra.mxu0 0.0
      %7926 = vmatprep.subr.mxu0 0.0
      %7927 = vmatpush1.msra.mxu0 0.0
      %7928 = vmatprep.subr.mxu0 0.0
      %7929 = vmatpush1.msra.mxu0 0.0
      %7930 = vmatprep.subr.mxu0 0.0
      %7931 = vmatpush1.msra.mxu0 0.0
      %7932 = vmatprep.subr.mxu0 0.0
      %7933 = vmatpush1.msra.mxu0 0.0
      %7934 = vmatprep.subr.mxu0 0.0
      %7935 = vmatpush1.msra.mxu0 0.0
      %7936 = vmatprep.subr.mxu0 0.0
      %7937 = vmatpush1.msra.mxu0 0.0
      %7938 = vmatprep.subr.mxu0 0.0
      %7939 = vmatpush1.msra.mxu0 0.0
      %7940 = vmatprep.subr.mxu0 0.0
      %7941 = vmatpush1.msra.mxu0 0.0
      %7942 = vmatprep.subr.mxu0 0.0
      %7943 = vmatpush1.msra.mxu0 0.0
      %7944 = vmatprep.mubr.f32.mxu0 0.0
      %7945 = vmatmul.mubr.f32.gmra.mrb[0].mxu0 %v7878
      %v7946 = vpop.f32.mrb[0].mxu0
      %v7947 = vadd.f32 0.0, %v7946
      %v7948 = vpop.f32.mrb[0].mxu0
      %v7949 = vadd.f32 0.0, %v7948
      %7950 = vdwg.mxu0
      %v7952 = vsel %vm225, %v7725, 0
      %7954 = vmatprep.subr.mxu0 %v2008
      %7955 = vmatpush1.msra.mxu0 %v2007
      %7956 = vmatprep.subr.mxu0 %v2010
      %7957 = vmatpush1.msra.mxu0 %v2009
      %7958 = vmatprep.subr.mxu0 %v2012
      %7959 = vmatpush1.msra.mxu0 %v2011
      %7960 = vmatprep.subr.mxu0 %v2014
      %7961 = vmatpush1.msra.mxu0 %v2013
      %7962 = vmatprep.subr.mxu0 0.0
      %7963 = vmatpush1.msra.mxu0 0.0
      %7964 = vmatprep.subr.mxu0 0.0
      %7965 = vmatpush1.msra.mxu0 0.0
      %7966 = vmatprep.subr.mxu0 0.0
      %7967 = vmatpush1.msra.mxu0 0.0
      %7968 = vmatprep.subr.mxu0 0.0
      %7969 = vmatpush1.msra.mxu0 0.0
      %7970 = vmatprep.subr.mxu0 0.0
      %7971 = vmatpush1.msra.mxu0 0.0
      %7972 = vmatprep.subr.mxu0 0.0
      %7973 = vmatpush1.msra.mxu0 0.0
      %7974 = vmatprep.subr.mxu0 0.0
      %7975 = vmatpush1.msra.mxu0 0.0
      %7976 = vmatprep.subr.mxu0 0.0
      %7977 = vmatpush1.msra.mxu0 0.0
      %7978 = vmatprep.subr.mxu0 0.0
      %7979 = vmatpush1.msra.mxu0 0.0
      %7980 = vmatprep.subr.mxu0 0.0
      %7981 = vmatpush1.msra.mxu0 0.0
      %7982 = vmatprep.subr.mxu0 0.0
      %7983 = vmatpush1.msra.mxu0 0.0
      %7984 = vmatprep.subr.mxu0 0.0
      %7985 = vmatpush1.msra.mxu0 0.0
      %7986 = vmatprep.subr.mxu0 0.0
      %7987 = vmatpush1.msra.mxu0 0.0
      %7988 = vmatprep.subr.mxu0 0.0
      %7989 = vmatpush1.msra.mxu0 0.0
      %7990 = vmatprep.subr.mxu0 0.0
      %7991 = vmatpush1.msra.mxu0 0.0
      %7992 = vmatprep.subr.mxu0 0.0
      %7993 = vmatpush1.msra.mxu0 0.0
      %7994 = vmatprep.subr.mxu0 0.0
      %7995 = vmatpush1.msra.mxu0 0.0
      %7996 = vmatprep.subr.mxu0 0.0
      %7997 = vmatpush1.msra.mxu0 0.0
      %7998 = vmatprep.subr.mxu0 0.0
      %7999 = vmatpush1.msra.mxu0 0.0
      %8000 = vmatprep.subr.mxu0 0.0
      %8001 = vmatpush1.msra.mxu0 0.0
      %8002 = vmatprep.subr.mxu0 0.0
      %8003 = vmatpush1.msra.mxu0 0.0
      %8004 = vmatprep.subr.mxu0 0.0
      %8005 = vmatpush1.msra.mxu0 0.0
      %8006 = vmatprep.subr.mxu0 0.0
      %8007 = vmatpush1.msra.mxu0 0.0
      %8008 = vmatprep.subr.mxu0 0.0
      %8009 = vmatpush1.msra.mxu0 0.0
      %8010 = vmatprep.subr.mxu0 0.0
      %8011 = vmatpush1.msra.mxu0 0.0
      %8012 = vmatprep.subr.mxu0 0.0
      %8013 = vmatpush1.msra.mxu0 0.0
      %8014 = vmatprep.subr.mxu0 0.0
      %8015 = vmatpush1.msra.mxu0 0.0
      %8016 = vmatprep.subr.mxu0 0.0
      %8017 = vmatpush1.msra.mxu0 0.0
      %8018 = vmatprep.mubr.f32.mxu0 0.0
      %8019 = vmatmul.mubr.f32.gmra.mrb[0].mxu0 %v7952
      %v8020 = vpop.f32.mrb[0].mxu0
      %v8021 = vadd.f32 0.0, %v8020
      %v8022 = vpop.f32.mrb[0].mxu0
      %v8023 = vadd.f32 0.0, %v8022
      %8024 = vdwg.mxu0
      %v8026 = vsel %vm225, %v7726, 0
      %8028 = vmatprep.subr.mxu0 %v2008
      %8029 = vmatpush1.msra.mxu0 %v2007
      %8030 = vmatprep.subr.mxu0 %v2010
      %8031 = vmatpush1.msra.mxu0 %v2009
      %8032 = vmatprep.subr.mxu0 %v2012
      %8033 = vmatpush1.msra.mxu0 %v2011
      %8034 = vmatprep.subr.mxu0 %v2014
      %8035 = vmatpush1.msra.mxu0 %v2013
      %8036 = vmatprep.subr.mxu0 0.0
      %8037 = vmatpush1.msra.mxu0 0.0
      %8038 = vmatprep.subr.mxu0 0.0
      %8039 = vmatpush1.msra.mxu0 0.0
      %8040 = vmatprep.subr.mxu0 0.0
      %8041 = vmatpush1.msra.mxu0 0.0
      %8042 = vmatprep.subr.mxu0 0.0
      %8043 = vmatpush1.msra.mxu0 0.0
      %8044 = vmatprep.subr.mxu0 0.0
      %8045 = vmatpush1.msra.mxu0 0.0
      %8046 = vmatprep.subr.mxu0 0.0
      %8047 = vmatpush1.msra.mxu0 0.0
      %8048 = vmatprep.subr.mxu0 0.0
      %8049 = vmatpush1.msra.mxu0 0.0
      %8050 = vmatprep.subr.mxu0 0.0
      %8051 = vmatpush1.msra.mxu0 0.0
      %8052 = vmatprep.subr.mxu0 0.0
      %8053 = vmatpush1.msra.mxu0 0.0
      %8054 = vmatprep.subr.mxu0 0.0
      %8055 = vmatpush1.msra.mxu0 0.0
      %8056 = vmatprep.subr.mxu0 0.0
      %8057 = vmatpush1.msra.mxu0 0.0
      %8058 = vmatprep.subr.mxu0 0.0
      %8059 = vmatpush1.msra.mxu0 0.0
      %8060 = vmatprep.subr.mxu0 0.0
      %8061 = vmatpush1.msra.mxu0 0.0
      %8062 = vmatprep.subr.mxu0 0.0
      %8063 = vmatpush1.msra.mxu0 0.0
      %8064 = vmatprep.subr.mxu0 0.0
      %8065 = vmatpush1.msra.mxu0 0.0
      %8066 = vmatprep.subr.mxu0 0.0
      %8067 = vmatpush1.msra.mxu0 0.0
      %8068 = vmatprep.subr.mxu0 0.0
      %8069 = vmatpush1.msra.mxu0 0.0
      %8070 = vmatprep.subr.mxu0 0.0
      %8071 = vmatpush1.msra.mxu0 0.0
      %8072 = vmatprep.subr.mxu0 0.0
      %8073 = vmatpush1.msra.mxu0 0.0
      %8074 = vmatprep.subr.mxu0 0.0
      %8075 = vmatpush1.msra.mxu0 0.0
      %8076 = vmatprep.subr.mxu0 0.0
      %8077 = vmatpush1.msra.mxu0 0.0
      %8078 = vmatprep.subr.mxu0 0.0
      %8079 = vmatpush1.msra.mxu0 0.0
      %8080 = vmatprep.subr.mxu0 0.0
      %8081 = vmatpush1.msra.mxu0 0.0
      %8082 = vmatprep.subr.mxu0 0.0
      %8083 = vmatpush1.msra.mxu0 0.0
      %8084 = vmatprep.subr.mxu0 0.0
      %8085 = vmatpush1.msra.mxu0 0.0
      %8086 = vmatprep.subr.mxu0 0.0
      %8087 = vmatpush1.msra.mxu0 0.0
      %8088 = vmatprep.subr.mxu0 0.0
      %8089 = vmatpush1.msra.mxu0 0.0
      %8090 = vmatprep.subr.mxu0 0.0
      %8091 = vmatpush1.msra.mxu0 0.0
      %8092 = vmatprep.mubr.f32.mxu0 0.0
      %8093 = vmatmul.mubr.f32.gmra.mrb[0].mxu0 %v8026
      %v8094 = vpop.f32.mrb[0].mxu0
      %v8095 = vadd.f32 0.0, %v8094
      %v8096 = vpop.f32.mrb[0].mxu0
      %v8097 = vadd.f32 0.0, %v8096
      %8098 = vdwg.mxu0
      %v8100 = vsel %vm225, %v7727, 0
      %8102 = vmatprep.subr.mxu0 %v2008
      %8103 = vmatpush1.msra.mxu0 %v2007
      %8104 = vmatprep.subr.mxu0 %v2010
      %8105 = vmatpush1.msra.mxu0 %v2009
      %8106 = vmatprep.subr.mxu0 %v2012
      %8107 = vmatpush1.msra.mxu0 %v2011
      %8108 = vmatprep.subr.mxu0 %v2014
      %8109 = vmatpush1.msra.mxu0 %v2013
      %8110 = vmatprep.subr.mxu0 0.0
      %8111 = vmatpush1.msra.mxu0 0.0
      %8112 = vmatprep.subr.mxu0 0.0
      %8113 = vmatpush1.msra.mxu0 0.0
      %8114 = vmatprep.subr.mxu0 0.0
      %8115 = vmatpush1.msra.mxu0 0.0
      %8116 = vmatprep.subr.mxu0 0.0
      %8117 = vmatpush1.msra.mxu0 0.0
      %8118 = vmatprep.subr.mxu0 0.0
      %8119 = vmatpush1.msra.mxu0 0.0
      %8120 = vmatprep.subr.mxu0 0.0
      %8121 = vmatpush1.msra.mxu0 0.0
      %8122 = vmatprep.subr.mxu0 0.0
      %8123 = vmatpush1.msra.mxu0 0.0
      %8124 = vmatprep.subr.mxu0 0.0
      %8125 = vmatpush1.msra.mxu0 0.0
      %8126 = vmatprep.subr.mxu0 0.0
      %8127 = vmatpush1.msra.mxu0 0.0
      %8128 = vmatprep.subr.mxu0 0.0
      %8129 = vmatpush1.msra.mxu0 0.0
      %8130 = vmatprep.subr.mxu0 0.0
      %8131 = vmatpush1.msra.mxu0 0.0
      %8132 = vmatprep.subr.mxu0 0.0
      %8133 = vmatpush1.msra.mxu0 0.0
      %8134 = vmatprep.subr.mxu0 0.0
      %8135 = vmatpush1.msra.mxu0 0.0
      %8136 = vmatprep.subr.mxu0 0.0
      %8137 = vmatpush1.msra.mxu0 0.0
      %8138 = vmatprep.subr.mxu0 0.0
      %8139 = vmatpush1.msra.mxu0 0.0
      %8140 = vmatprep.subr.mxu0 0.0
      %8141 = vmatpush1.msra.mxu0 0.0
      %8142 = vmatprep.subr.mxu0 0.0
      %8143 = vmatpush1.msra.mxu0 0.0
      %8144 = vmatprep.subr.mxu0 0.0
      %8145 = vmatpush1.msra.mxu0 0.0
      %8146 = vmatprep.subr.mxu0 0.0
      %8147 = vmatpush1.msra.mxu0 0.0
      %8148 = vmatprep.subr.mxu0 0.0
      %8149 = vmatpush1.msra.mxu0 0.0
      %8150 = vmatprep.subr.mxu0 0.0
      %8151 = vmatpush1.msra.mxu0 0.0
      %8152 = vmatprep.subr.mxu0 0.0
      %8153 = vmatpush1.msra.mxu0 0.0
      %8154 = vmatprep.subr.mxu0 0.0
      %8155 = vmatpush1.msra.mxu0 0.0
      %8156 = vmatprep.subr.mxu0 0.0
      %8157 = vmatpush1.msra.mxu0 0.0
      %8158 = vmatprep.subr.mxu0 0.0
      %8159 = vmatpush1.msra.mxu0 0.0
      %8160 = vmatprep.subr.mxu0 0.0
      %8161 = vmatpush1.msra.mxu0 0.0
      %8162 = vmatprep.subr.mxu0 0.0
      %8163 = vmatpush1.msra.mxu0 0.0
      %8164 = vmatprep.subr.mxu0 0.0
      %8165 = vmatpush1.msra.mxu0 0.0
      %8166 = vmatprep.mubr.f32.mxu0 0.0
      %8167 = vmatmul.mubr.f32.gmra.mrb[0].mxu0 %v8100
      %v8168 = vpop.f32.mrb[0].mxu0
      %v8169 = vadd.f32 0.0, %v8168
      %v8170 = vpop.f32.mrb[0].mxu0
      %v8171 = vadd.f32 0.0, %v8170
      %8172 = vdwg.mxu0
      %v8174 = vsel %vm225, %v7728, 0
      %8176 = vmatprep.subr.mxu0 %v2008
      %8177 = vmatpush1.msra.mxu0 %v2007
      %8178 = vmatprep.subr.mxu0 %v2010
      %8179 = vmatpush1.msra.mxu0 %v2009
      %8180 = vmatprep.subr.mxu0 %v2012
      %8181 = vmatpush1.msra.mxu0 %v2011
      %8182 = vmatprep.subr.mxu0 %v2014
      %8183 = vmatpush1.msra.mxu0 %v2013
      %8184 = vmatprep.subr.mxu0 0.0
      %8185 = vmatpush1.msra.mxu0 0.0
      %8186 = vmatprep.subr.mxu0 0.0
      %8187 = vmatpush1.msra.mxu0 0.0
      %8188 = vmatprep.subr.mxu0 0.0
      %8189 = vmatpush1.msra.mxu0 0.0
      %8190 = vmatprep.subr.mxu0 0.0
      %8191 = vmatpush1.msra.mxu0 0.0
      %8192 = vmatprep.subr.mxu0 0.0
      %8193 = vmatpush1.msra.mxu0 0.0
      %8194 = vmatprep.subr.mxu0 0.0
      %8195 = vmatpush1.msra.mxu0 0.0
      %8196 = vmatprep.subr.mxu0 0.0
      %8197 = vmatpush1.msra.mxu0 0.0
      %8198 = vmatprep.subr.mxu0 0.0
      %8199 = vmatpush1.msra.mxu0 0.0
      %8200 = vmatprep.subr.mxu0 0.0
      %8201 = vmatpush1.msra.mxu0 0.0
      %8202 = vmatprep.subr.mxu0 0.0
      %8203 = vmatpush1.msra.mxu0 0.0
      %8204 = vmatprep.subr.mxu0 0.0
      %8205 = vmatpush1.msra.mxu0 0.0
      %8206 = vmatprep.subr.mxu0 0.0
      %8207 = vmatpush1.msra.mxu0 0.0
      %8208 = vmatprep.subr.mxu0 0.0
      %8209 = vmatpush1.msra.mxu0 0.0
      %8210 = vmatprep.subr.mxu0 0.0
      %8211 = vmatpush1.msra.mxu0 0.0
      %8212 = vmatprep.subr.mxu0 0.0
      %8213 = vmatpush1.msra.mxu0 0.0
      %8214 = vmatprep.subr.mxu0 0.0
      %8215 = vmatpush1.msra.mxu0 0.0
      %8216 = vmatprep.subr.mxu0 0.0
      %8217 = vmatpush1.msra.mxu0 0.0
      %8218 = vmatprep.subr.mxu0 0.0
      %8219 = vmatpush1.msra.mxu0 0.0
      %8220 = vmatprep.subr.mxu0 0.0
      %8221 = vmatpush1.msra.mxu0 0.0
      %8222 = vmatprep.subr.mxu0 0.0
      %8223 = vmatpush1.msra.mxu0 0.0
      %8224 = vmatprep.subr.mxu0 0.0
      %8225 = vmatpush1.msra.mxu0 0.0
      %8226 = vmatprep.subr.mxu0 0.0
      %8227 = vmatpush1.msra.mxu0 0.0
      %8228 = vmatprep.subr.mxu0 0.0
      %8229 = vmatpush1.msra.mxu0 0.0
      %8230 = vmatprep.subr.mxu0 0.0
      %8231 = vmatpush1.msra.mxu0 0.0
      %8232 = vmatprep.subr.mxu0 0.0
      %8233 = vmatpush1.msra.mxu0 0.0
      %8234 = vmatprep.subr.mxu0 0.0
      %8235 = vmatpush1.msra.mxu0 0.0
      %8236 = vmatprep.subr.mxu0 0.0
      %8237 = vmatpush1.msra.mxu0 0.0
      %8238 = vmatprep.subr.mxu0 0.0
      %8239 = vmatpush1.msra.mxu0 0.0
      %8240 = vmatprep.mubr.f32.mxu0 0.0
      %8241 = vmatmul.mubr.f32.gmra.mrb[0].mxu0 %v8174
      %v8242 = vpop.f32.mrb[0].mxu0
      %v8243 = vadd.f32 0.0, %v8242
      %v8244 = vpop.f32.mrb[0].mxu0
      %v8245 = vadd.f32 0.0, %v8244
      %8246 = vdwg.mxu0
      %s8247 = scalar_lea.vmem [#allocation2], 136
      %v8248 = vld [vmem:[%s8247] sm:$0x7f]
      %v8249 = vld [vmem:[%s8247 + $0x8] sm:$0x7f]
      %v8250 = vld [vmem:[%s8247 + $0x10] sm:$0x7f]
      %v8251 = vld [vmem:[%s8247 + $0x18] sm:$0x7f]
      %v8252 = vld [vmem:[%s8247 + $0x20] sm:$0x7f]
      %v8253 = vld [vmem:[%s8247 + $0x28] sm:$0x7f]
      %v8254 = vld [vmem:[%s8247 + $0x30] sm:$0x7f]
      %v8256 = vsel %vm225, %v8248, 0
      %8258 = vmatprep.subr.mxu0 %v2008
      %8259 = vmatpush1.msra.mxu0 %v2007
      %8260 = vmatprep.subr.mxu0 %v2010
      %8261 = vmatpush1.msra.mxu0 %v2009
      %8262 = vmatprep.subr.mxu0 %v2012
      %8263 = vmatpush1.msra.mxu0 %v2011
      %8264 = vmatprep.subr.mxu0 %v2014
      %8265 = vmatpush1.msra.mxu0 %v2013
      %8266 = vmatprep.subr.mxu0 0.0
      %8267 = vmatpush1.msra.mxu0 0.0
      %8268 = vmatprep.subr.mxu0 0.0
      %8269 = vmatpush1.msra.mxu0 0.0
      %8270 = vmatprep.subr.mxu0 0.0
      %8271 = vmatpush1.msra.mxu0 0.0
      %8272 = vmatprep.subr.mxu0 0.0
      %8273 = vmatpush1.msra.mxu0 0.0
      %8274 = vmatprep.subr.mxu0 0.0
      %8275 = vmatpush1.msra.mxu0 0.0
      %8276 = vmatprep.subr.mxu0 0.0
      %8277 = vmatpush1.msra.mxu0 0.0
      %8278 = vmatprep.subr.mxu0 0.0
      %8279 = vmatpush1.msra.mxu0 0.0
      %8280 = vmatprep.subr.mxu0 0.0
      %8281 = vmatpush1.msra.mxu0 0.0
      %8282 = vmatprep.subr.mxu0 0.0
      %8283 = vmatpush1.msra.mxu0 0.0
      %8284 = vmatprep.subr.mxu0 0.0
      %8285 = vmatpush1.msra.mxu0 0.0
      %8286 = vmatprep.subr.mxu0 0.0
      %8287 = vmatpush1.msra.mxu0 0.0
      %8288 = vmatprep.subr.mxu0 0.0
      %8289 = vmatpush1.msra.mxu0 0.0
      %8290 = vmatprep.subr.mxu0 0.0
      %8291 = vmatpush1.msra.mxu0 0.0
      %8292 = vmatprep.subr.mxu0 0.0
      %8293 = vmatpush1.msra.mxu0 0.0
      %8294 = vmatprep.subr.mxu0 0.0
      %8295 = vmatpush1.msra.mxu0 0.0
      %8296 = vmatprep.subr.mxu0 0.0
      %8297 = vmatpush1.msra.mxu0 0.0
      %8298 = vmatprep.subr.mxu0 0.0
      %8299 = vmatpush1.msra.mxu0 0.0
      %8300 = vmatprep.subr.mxu0 0.0
      %8301 = vmatpush1.msra.mxu0 0.0
      %8302 = vmatprep.subr.mxu0 0.0
      %8303 = vmatpush1.msra.mxu0 0.0
      %8304 = vmatprep.subr.mxu0 0.0
      %8305 = vmatpush1.msra.mxu0 0.0
      %8306 = vmatprep.subr.mxu0 0.0
      %8307 = vmatpush1.msra.mxu0 0.0
      %8308 = vmatprep.subr.mxu0 0.0
      %8309 = vmatpush1.msra.mxu0 0.0
      %8310 = vmatprep.subr.mxu0 0.0
      %8311 = vmatpush1.msra.mxu0 0.0
      %8312 = vmatprep.subr.mxu0 0.0
      %8313 = vmatpush1.msra.mxu0 0.0
      %8314 = vmatprep.subr.mxu0 0.0
      %8315 = vmatpush1.msra.mxu0 0.0
      %8316 = vmatprep.subr.mxu0 0.0
      %8317 = vmatpush1.msra.mxu0 0.0
      %8318 = vmatprep.subr.mxu0 0.0
      %8319 = vmatpush1.msra.mxu0 0.0
      %8320 = vmatprep.subr.mxu0 0.0
      %8321 = vmatpush1.msra.mxu0 0.0
      %8322 = vmatprep.mubr.f32.mxu0 0.0
      %8323 = vmatmul.mubr.f32.gmra.mrb[0].mxu0 %v8256
      %v8324 = vpop.f32.mrb[0].mxu0
      %v8325 = vadd.f32 0.0, %v8324
      %v8326 = vpop.f32.mrb[0].mxu0
      %8327 = vdwg.mxu0
      %v8329 = vsel %vm225, %v8249, 0
      %8331 = vmatprep.subr.mxu0 %v2008
      %8332 = vmatpush1.msra.mxu0 %v2007
      %8333 = vmatprep.subr.mxu0 %v2010
      %8334 = vmatpush1.msra.mxu0 %v2009
      %8335 = vmatprep.subr.mxu0 %v2012
      %8336 = vmatpush1.msra.mxu0 %v2011
      %8337 = vmatprep.subr.mxu0 %v2014
      %8338 = vmatpush1.msra.mxu0 %v2013
      %8339 = vmatprep.subr.mxu0 0.0
      %8340 = vmatpush1.msra.mxu0 0.0
      %8341 = vmatprep.subr.mxu0 0.0
      %8342 = vmatpush1.msra.mxu0 0.0
      %8343 = vmatprep.subr.mxu0 0.0
      %8344 = vmatpush1.msra.mxu0 0.0
      %8345 = vmatprep.subr.mxu0 0.0
      %8346 = vmatpush1.msra.mxu0 0.0
      %8347 = vmatprep.subr.mxu0 0.0
      %8348 = vmatpush1.msra.mxu0 0.0
      %8349 = vmatprep.subr.mxu0 0.0
      %8350 = vmatpush1.msra.mxu0 0.0
      %8351 = vmatprep.subr.mxu0 0.0
      %8352 = vmatpush1.msra.mxu0 0.0
      %8353 = vmatprep.subr.mxu0 0.0
      %8354 = vmatpush1.msra.mxu0 0.0
      %8355 = vmatprep.subr.mxu0 0.0
      %8356 = vmatpush1.msra.mxu0 0.0
      %8357 = vmatprep.subr.mxu0 0.0
      %8358 = vmatpush1.msra.mxu0 0.0
      %8359 = vmatprep.subr.mxu0 0.0
      %8360 = vmatpush1.msra.mxu0 0.0
      %8361 = vmatprep.subr.mxu0 0.0
      %8362 = vmatpush1.msra.mxu0 0.0
      %8363 = vmatprep.subr.mxu0 0.0
      %8364 = vmatpush1.msra.mxu0 0.0
      %8365 = vmatprep.subr.mxu0 0.0
      %8366 = vmatpush1.msra.mxu0 0.0
      %8367 = vmatprep.subr.mxu0 0.0
      %8368 = vmatpush1.msra.mxu0 0.0
      %8369 = vmatprep.subr.mxu0 0.0
      %8370 = vmatpush1.msra.mxu0 0.0
      %8371 = vmatprep.subr.mxu0 0.0
      %8372 = vmatpush1.msra.mxu0 0.0
      %8373 = vmatprep.subr.mxu0 0.0
      %8374 = vmatpush1.msra.mxu0 0.0
      %8375 = vmatprep.subr.mxu0 0.0
      %8376 = vmatpush1.msra.mxu0 0.0
      %8377 = vmatprep.subr.mxu0 0.0
      %8378 = vmatpush1.msra.mxu0 0.0
      %8379 = vmatprep.subr.mxu0 0.0
      %8380 = vmatpush1.msra.mxu0 0.0
      %8381 = vmatprep.subr.mxu0 0.0
      %8382 = vmatpush1.msra.mxu0 0.0
      %8383 = vmatprep.subr.mxu0 0.0
      %8384 = vmatpush1.msra.mxu0 0.0
      %8385 = vmatprep.subr.mxu0 0.0
      %8386 = vmatpush1.msra.mxu0 0.0
      %8387 = vmatprep.subr.mxu0 0.0
      %8388 = vmatpush1.msra.mxu0 0.0
      %8389 = vmatprep.subr.mxu0 0.0
      %8390 = vmatpush1.msra.mxu0 0.0
      %8391 = vmatprep.subr.mxu0 0.0
      %8392 = vmatpush1.msra.mxu0 0.0
      %8393 = vmatprep.subr.mxu0 0.0
      %8394 = vmatpush1.msra.mxu0 0.0
      %8395 = vmatprep.mubr.f32.mxu0 0.0
      %8396 = vmatmul.mubr.f32.gmra.mrb[0].mxu0 %v8329
      %v8397 = vpop.f32.mrb[0].mxu0
      %v8398 = vadd.f32 0.0, %v8397
      %v8399 = vpop.f32.mrb[0].mxu0
      %8400 = vdwg.mxu0
      %v8402 = vsel %vm225, %v8250, 0
      %8404 = vmatprep.subr.mxu0 %v2008
      %8405 = vmatpush1.msra.mxu0 %v2007
      %8406 = vmatprep.subr.mxu0 %v2010
      %8407 = vmatpush1.msra.mxu0 %v2009
      %8408 = vmatprep.subr.mxu0 %v2012
      %8409 = vmatpush1.msra.mxu0 %v2011
      %8410 = vmatprep.subr.mxu0 %v2014
      %8411 = vmatpush1.msra.mxu0 %v2013
      %8412 = vmatprep.subr.mxu0 0.0
      %8413 = vmatpush1.msra.mxu0 0.0
      %8414 = vmatprep.subr.mxu0 0.0
      %8415 = vmatpush1.msra.mxu0 0.0
      %8416 = vmatprep.subr.mxu0 0.0
      %8417 = vmatpush1.msra.mxu0 0.0
      %8418 = vmatprep.subr.mxu0 0.0
      %8419 = vmatpush1.msra.mxu0 0.0
      %8420 = vmatprep.subr.mxu0 0.0
      %8421 = vmatpush1.msra.mxu0 0.0
      %8422 = vmatprep.subr.mxu0 0.0
      %8423 = vmatpush1.msra.mxu0 0.0
      %8424 = vmatprep.subr.mxu0 0.0
      %8425 = vmatpush1.msra.mxu0 0.0
      %8426 = vmatprep.subr.mxu0 0.0
      %8427 = vmatpush1.msra.mxu0 0.0
      %8428 = vmatprep.subr.mxu0 0.0
      %8429 = vmatpush1.msra.mxu0 0.0
      %8430 = vmatprep.subr.mxu0 0.0
      %8431 = vmatpush1.msra.mxu0 0.0
      %8432 = vmatprep.subr.mxu0 0.0
      %8433 = vmatpush1.msra.mxu0 0.0
      %8434 = vmatprep.subr.mxu0 0.0
      %8435 = vmatpush1.msra.mxu0 0.0
      %8436 = vmatprep.subr.mxu0 0.0
      %8437 = vmatpush1.msra.mxu0 0.0
      %8438 = vmatprep.subr.mxu0 0.0
      %8439 = vmatpush1.msra.mxu0 0.0
      %8440 = vmatprep.subr.mxu0 0.0
      %8441 = vmatpush1.msra.mxu0 0.0
      %8442 = vmatprep.subr.mxu0 0.0
      %8443 = vmatpush1.msra.mxu0 0.0
      %8444 = vmatprep.subr.mxu0 0.0
      %8445 = vmatpush1.msra.mxu0 0.0
      %8446 = vmatprep.subr.mxu0 0.0
      %8447 = vmatpush1.msra.mxu0 0.0
      %8448 = vmatprep.subr.mxu0 0.0
      %8449 = vmatpush1.msra.mxu0 0.0
      %8450 = vmatprep.subr.mxu0 0.0
      %8451 = vmatpush1.msra.mxu0 0.0
      %8452 = vmatprep.subr.mxu0 0.0
      %8453 = vmatpush1.msra.mxu0 0.0
      %8454 = vmatprep.subr.mxu0 0.0
      %8455 = vmatpush1.msra.mxu0 0.0
      %8456 = vmatprep.subr.mxu0 0.0
      %8457 = vmatpush1.msra.mxu0 0.0
      %8458 = vmatprep.subr.mxu0 0.0
      %8459 = vmatpush1.msra.mxu0 0.0
      %8460 = vmatprep.subr.mxu0 0.0
      %8461 = vmatpush1.msra.mxu0 0.0
      %8462 = vmatprep.subr.mxu0 0.0
      %8463 = vmatpush1.msra.mxu0 0.0
      %8464 = vmatprep.subr.mxu0 0.0
      %8465 = vmatpush1.msra.mxu0 0.0
      %8466 = vmatprep.subr.mxu0 0.0
      %8467 = vmatpush1.msra.mxu0 0.0
      %8468 = vmatprep.mubr.f32.mxu0 0.0
      %8469 = vmatmul.mubr.f32.gmra.mrb[0].mxu0 %v8402
      %v8470 = vpop.f32.mrb[0].mxu0
      %v8471 = vadd.f32 0.0, %v8470
      %v8472 = vpop.f32.mrb[0].mxu0
      %8473 = vdwg.mxu0
      %v8475 = vsel %vm225, %v8251, 0
      %8477 = vmatprep.subr.mxu0 %v2008
      %8478 = vmatpush1.msra.mxu0 %v2007
      %8479 = vmatprep.subr.mxu0 %v2010
      %8480 = vmatpush1.msra.mxu0 %v2009
      %8481 = vmatprep.subr.mxu0 %v2012
      %8482 = vmatpush1.msra.mxu0 %v2011
      %8483 = vmatprep.subr.mxu0 %v2014
      %8484 = vmatpush1.msra.mxu0 %v2013
      %8485 = vmatprep.subr.mxu0 0.0
      %8486 = vmatpush1.msra.mxu0 0.0
      %8487 = vmatprep.subr.mxu0 0.0
      %8488 = vmatpush1.msra.mxu0 0.0
      %8489 = vmatprep.subr.mxu0 0.0
      %8490 = vmatpush1.msra.mxu0 0.0
      %8491 = vmatprep.subr.mxu0 0.0
      %8492 = vmatpush1.msra.mxu0 0.0
      %8493 = vmatprep.subr.mxu0 0.0
      %8494 = vmatpush1.msra.mxu0 0.0
      %8495 = vmatprep.subr.mxu0 0.0
      %8496 = vmatpush1.msra.mxu0 0.0
      %8497 = vmatprep.subr.mxu0 0.0
      %8498 = vmatpush1.msra.mxu0 0.0
      %8499 = vmatprep.subr.mxu0 0.0
      %8500 = vmatpush1.msra.mxu0 0.0
      %8501 = vmatprep.subr.mxu0 0.0
      %8502 = vmatpush1.msra.mxu0 0.0
      %8503 = vmatprep.subr.mxu0 0.0
      %8504 = vmatpush1.msra.mxu0 0.0
      %8505 = vmatprep.subr.mxu0 0.0
      %8506 = vmatpush1.msra.mxu0 0.0
      %8507 = vmatprep.subr.mxu0 0.0
      %8508 = vmatpush1.msra.mxu0 0.0
      %8509 = vmatprep.subr.mxu0 0.0
      %8510 = vmatpush1.msra.mxu0 0.0
      %8511 = vmatprep.subr.mxu0 0.0
      %8512 = vmatpush1.msra.mxu0 0.0
      %8513 = vmatprep.subr.mxu0 0.0
      %8514 = vmatpush1.msra.mxu0 0.0
      %8515 = vmatprep.subr.mxu0 0.0
      %8516 = vmatpush1.msra.mxu0 0.0
      %8517 = vmatprep.subr.mxu0 0.0
      %8518 = vmatpush1.msra.mxu0 0.0
      %8519 = vmatprep.subr.mxu0 0.0
      %8520 = vmatpush1.msra.mxu0 0.0
      %8521 = vmatprep.subr.mxu0 0.0
      %8522 = vmatpush1.msra.mxu0 0.0
      %8523 = vmatprep.subr.mxu0 0.0
      %8524 = vmatpush1.msra.mxu0 0.0
      %8525 = vmatprep.subr.mxu0 0.0
      %8526 = vmatpush1.msra.mxu0 0.0
      %8527 = vmatprep.subr.mxu0 0.0
      %8528 = vmatpush1.msra.mxu0 0.0
      %8529 = vmatprep.subr.mxu0 0.0
      %8530 = vmatpush1.msra.mxu0 0.0
      %8531 = vmatprep.subr.mxu0 0.0
      %8532 = vmatpush1.msra.mxu0 0.0
      %8533 = vmatprep.subr.mxu0 0.0
      %8534 = vmatpush1.msra.mxu0 0.0
      %8535 = vmatprep.subr.mxu0 0.0
      %8536 = vmatpush1.msra.mxu0 0.0
      %8537 = vmatprep.subr.mxu0 0.0
      %8538 = vmatpush1.msra.mxu0 0.0
      %8539 = vmatprep.subr.mxu0 0.0
      %8540 = vmatpush1.msra.mxu0 0.0
      %8541 = vmatprep.mubr.f32.mxu0 0.0
      %8542 = vmatmul.mubr.f32.gmra.mrb[0].mxu0 %v8475
      %v8543 = vpop.f32.mrb[0].mxu0
      %v8544 = vadd.f32 0.0, %v8543
      %v8545 = vpop.f32.mrb[0].mxu0
      %8546 = vdwg.mxu0
      %v8548 = vsel %vm225, %v8252, 0
      %8550 = vmatprep.subr.mxu0 %v2008
      %8551 = vmatpush1.msra.mxu0 %v2007
      %8552 = vmatprep.subr.mxu0 %v2010
      %8553 = vmatpush1.msra.mxu0 %v2009
      %8554 = vmatprep.subr.mxu0 %v2012
      %8555 = vmatpush1.msra.mxu0 %v2011
      %8556 = vmatprep.subr.mxu0 %v2014
      %8557 = vmatpush1.msra.mxu0 %v2013
      %8558 = vmatprep.subr.mxu0 0.0
      %8559 = vmatpush1.msra.mxu0 0.0
      %8560 = vmatprep.subr.mxu0 0.0
      %8561 = vmatpush1.msra.mxu0 0.0
      %8562 = vmatprep.subr.mxu0 0.0
      %8563 = vmatpush1.msra.mxu0 0.0
      %8564 = vmatprep.subr.mxu0 0.0
      %8565 = vmatpush1.msra.mxu0 0.0
      %8566 = vmatprep.subr.mxu0 0.0
      %8567 = vmatpush1.msra.mxu0 0.0
      %8568 = vmatprep.subr.mxu0 0.0
      %8569 = vmatpush1.msra.mxu0 0.0
      %8570 = vmatprep.subr.mxu0 0.0
      %8571 = vmatpush1.msra.mxu0 0.0
      %8572 = vmatprep.subr.mxu0 0.0
      %8573 = vmatpush1.msra.mxu0 0.0
      %8574 = vmatprep.subr.mxu0 0.0
      %8575 = vmatpush1.msra.mxu0 0.0
      %8576 = vmatprep.subr.mxu0 0.0
      %8577 = vmatpush1.msra.mxu0 0.0
      %8578 = vmatprep.subr.mxu0 0.0
      %8579 = vmatpush1.msra.mxu0 0.0
      %8580 = vmatprep.subr.mxu0 0.0
      %8581 = vmatpush1.msra.mxu0 0.0
      %8582 = vmatprep.subr.mxu0 0.0
      %8583 = vmatpush1.msra.mxu0 0.0
      %8584 = vmatprep.subr.mxu0 0.0
      %8585 = vmatpush1.msra.mxu0 0.0
      %8586 = vmatprep.subr.mxu0 0.0
      %8587 = vmatpush1.msra.mxu0 0.0
      %8588 = vmatprep.subr.mxu0 0.0
      %8589 = vmatpush1.msra.mxu0 0.0
      %8590 = vmatprep.subr.mxu0 0.0
      %8591 = vmatpush1.msra.mxu0 0.0
      %8592 = vmatprep.subr.mxu0 0.0
      %8593 = vmatpush1.msra.mxu0 0.0
      %8594 = vmatprep.subr.mxu0 0.0
      %8595 = vmatpush1.msra.mxu0 0.0
      %8596 = vmatprep.subr.mxu0 0.0
      %8597 = vmatpush1.msra.mxu0 0.0
      %8598 = vmatprep.subr.mxu0 0.0
      %8599 = vmatpush1.msra.mxu0 0.0
      %8600 = vmatprep.subr.mxu0 0.0
      %8601 = vmatpush1.msra.mxu0 0.0
      %8602 = vmatprep.subr.mxu0 0.0
      %8603 = vmatpush1.msra.mxu0 0.0
      %8604 = vmatprep.subr.mxu0 0.0
      %8605 = vmatpush1.msra.mxu0 0.0
      %8606 = vmatprep.subr.mxu0 0.0
      %8607 = vmatpush1.msra.mxu0 0.0
      %8608 = vmatprep.subr.mxu0 0.0
      %8609 = vmatpush1.msra.mxu0 0.0
      %8610 = vmatprep.subr.mxu0 0.0
      %8611 = vmatpush1.msra.mxu0 0.0
      %8612 = vmatprep.subr.mxu0 0.0
      %8613 = vmatpush1.msra.mxu0 0.0
      %8614 = vmatprep.mubr.f32.mxu0 0.0
      %8615 = vmatmul.mubr.f32.gmra.mrb[0].mxu0 %v8548
      %v8616 = vpop.f32.mrb[0].mxu0
      %v8617 = vadd.f32 0.0, %v8616
      %v8618 = vpop.f32.mrb[0].mxu0
      %8619 = vdwg.mxu0
      %v8621 = vsel %vm225, %v8253, 0
      %8623 = vmatprep.subr.mxu0 %v2008
      %8624 = vmatpush1.msra.mxu0 %v2007
      %8625 = vmatprep.subr.mxu0 %v2010
      %8626 = vmatpush1.msra.mxu0 %v2009
      %8627 = vmatprep.subr.mxu0 %v2012
      %8628 = vmatpush1.msra.mxu0 %v2011
      %8629 = vmatprep.subr.mxu0 %v2014
      %8630 = vmatpush1.msra.mxu0 %v2013
      %8631 = vmatprep.subr.mxu0 0.0
      %8632 = vmatpush1.msra.mxu0 0.0
      %8633 = vmatprep.subr.mxu0 0.0
      %8634 = vmatpush1.msra.mxu0 0.0
      %8635 = vmatprep.subr.mxu0 0.0
      %8636 = vmatpush1.msra.mxu0 0.0
      %8637 = vmatprep.subr.mxu0 0.0
      %8638 = vmatpush1.msra.mxu0 0.0
      %8639 = vmatprep.subr.mxu0 0.0
      %8640 = vmatpush1.msra.mxu0 0.0
      %8641 = vmatprep.subr.mxu0 0.0
      %8642 = vmatpush1.msra.mxu0 0.0
      %8643 = vmatprep.subr.mxu0 0.0
      %8644 = vmatpush1.msra.mxu0 0.0
      %8645 = vmatprep.subr.mxu0 0.0
      %8646 = vmatpush1.msra.mxu0 0.0
      %8647 = vmatprep.subr.mxu0 0.0
      %8648 = vmatpush1.msra.mxu0 0.0
      %8649 = vmatprep.subr.mxu0 0.0
      %8650 = vmatpush1.msra.mxu0 0.0
      %8651 = vmatprep.subr.mxu0 0.0
      %8652 = vmatpush1.msra.mxu0 0.0
      %8653 = vmatprep.subr.mxu0 0.0
      %8654 = vmatpush1.msra.mxu0 0.0
      %8655 = vmatprep.subr.mxu0 0.0
      %8656 = vmatpush1.msra.mxu0 0.0
      %8657 = vmatprep.subr.mxu0 0.0
      %8658 = vmatpush1.msra.mxu0 0.0
      %8659 = vmatprep.subr.mxu0 0.0
      %8660 = vmatpush1.msra.mxu0 0.0
      %8661 = vmatprep.subr.mxu0 0.0
      %8662 = vmatpush1.msra.mxu0 0.0
      %8663 = vmatprep.subr.mxu0 0.0
      %8664 = vmatpush1.msra.mxu0 0.0
      %8665 = vmatprep.subr.mxu0 0.0
      %8666 = vmatpush1.msra.mxu0 0.0
      %8667 = vmatprep.subr.mxu0 0.0
      %8668 = vmatpush1.msra.mxu0 0.0
      %8669 = vmatprep.subr.mxu0 0.0
      %8670 = vmatpush1.msra.mxu0 0.0
      %8671 = vmatprep.subr.mxu0 0.0
      %8672 = vmatpush1.msra.mxu0 0.0
      %8673 = vmatprep.subr.mxu0 0.0
      %8674 = vmatpush1.msra.mxu0 0.0
      %8675 = vmatprep.subr.mxu0 0.0
      %8676 = vmatpush1.msra.mxu0 0.0
      %8677 = vmatprep.subr.mxu0 0.0
      %8678 = vmatpush1.msra.mxu0 0.0
      %8679 = vmatprep.subr.mxu0 0.0
      %8680 = vmatpush1.msra.mxu0 0.0
      %8681 = vmatprep.subr.mxu0 0.0
      %8682 = vmatpush1.msra.mxu0 0.0
      %8683 = vmatprep.subr.mxu0 0.0
      %8684 = vmatpush1.msra.mxu0 0.0
      %8685 = vmatprep.subr.mxu0 0.0
      %8686 = vmatpush1.msra.mxu0 0.0
      %8687 = vmatprep.mubr.f32.mxu0 0.0
      %8688 = vmatmul.mubr.f32.gmra.mrb[0].mxu0 %v8621
      %v8689 = vpop.f32.mrb[0].mxu0
      %v8690 = vadd.f32 0.0, %v8689
      %v8691 = vpop.f32.mrb[0].mxu0
      %8692 = vdwg.mxu0
      %v8694 = vsel %vm225, %v8254, 0
      %8696 = vmatprep.subr.mxu0 %v2008
      %8697 = vmatpush1.msra.mxu0 %v2007
      %8698 = vmatprep.subr.mxu0 %v2010
      %8699 = vmatpush1.msra.mxu0 %v2009
      %8700 = vmatprep.subr.mxu0 %v2012
      %8701 = vmatpush1.msra.mxu0 %v2011
      %8702 = vmatprep.subr.mxu0 %v2014
      %8703 = vmatpush1.msra.mxu0 %v2013
      %8704 = vmatprep.subr.mxu0 0.0
      %8705 = vmatpush1.msra.mxu0 0.0
      %8706 = vmatprep.subr.mxu0 0.0
      %8707 = vmatpush1.msra.mxu0 0.0
      %8708 = vmatprep.subr.mxu0 0.0
      %8709 = vmatpush1.msra.mxu0 0.0
      %8710 = vmatprep.subr.mxu0 0.0
      %8711 = vmatpush1.msra.mxu0 0.0
      %8712 = vmatprep.subr.mxu0 0.0
      %8713 = vmatpush1.msra.mxu0 0.0
      %8714 = vmatprep.subr.mxu0 0.0
      %8715 = vmatpush1.msra.mxu0 0.0
      %8716 = vmatprep.subr.mxu0 0.0
      %8717 = vmatpush1.msra.mxu0 0.0
      %8718 = vmatprep.subr.mxu0 0.0
      %8719 = vmatpush1.msra.mxu0 0.0
      %8720 = vmatprep.subr.mxu0 0.0
      %8721 = vmatpush1.msra.mxu0 0.0
      %8722 = vmatprep.subr.mxu0 0.0
      %8723 = vmatpush1.msra.mxu0 0.0
      %8724 = vmatprep.subr.mxu0 0.0
      %8725 = vmatpush1.msra.mxu0 0.0
      %8726 = vmatprep.subr.mxu0 0.0
      %8727 = vmatpush1.msra.mxu0 0.0
      %8728 = vmatprep.subr.mxu0 0.0
      %8729 = vmatpush1.msra.mxu0 0.0
      %8730 = vmatprep.subr.mxu0 0.0
      %8731 = vmatpush1.msra.mxu0 0.0
      %8732 = vmatprep.subr.mxu0 0.0
      %8733 = vmatpush1.msra.mxu0 0.0
      %8734 = vmatprep.subr.mxu0 0.0
      %8735 = vmatpush1.msra.mxu0 0.0
      %8736 = vmatprep.subr.mxu0 0.0
      %8737 = vmatpush1.msra.mxu0 0.0
      %8738 = vmatprep.subr.mxu0 0.0
      %8739 = vmatpush1.msra.mxu0 0.0
      %8740 = vmatprep.subr.mxu0 0.0
      %8741 = vmatpush1.msra.mxu0 0.0
      %8742 = vmatprep.subr.mxu0 0.0
      %8743 = vmatpush1.msra.mxu0 0.0
      %8744 = vmatprep.subr.mxu0 0.0
      %8745 = vmatpush1.msra.mxu0 0.0
      %8746 = vmatprep.subr.mxu0 0.0
      %8747 = vmatpush1.msra.mxu0 0.0
      %8748 = vmatprep.subr.mxu0 0.0
      %8749 = vmatpush1.msra.mxu0 0.0
      %8750 = vmatprep.subr.mxu0 0.0
      %8751 = vmatpush1.msra.mxu0 0.0
      %8752 = vmatprep.subr.mxu0 0.0
      %8753 = vmatpush1.msra.mxu0 0.0
      %8754 = vmatprep.subr.mxu0 0.0
      %8755 = vmatpush1.msra.mxu0 0.0
      %8756 = vmatprep.subr.mxu0 0.0
      %8757 = vmatpush1.msra.mxu0 0.0
      %8758 = vmatprep.subr.mxu0 0.0
      %8759 = vmatpush1.msra.mxu0 0.0
      %8760 = vmatprep.mubr.f32.mxu0 0.0
      %8761 = vmatmul.mubr.f32.gmra.mrb[0].mxu0 %v8694
      %v8762 = vpop.f32.mrb[0].mxu0
      %v8763 = vadd.f32 0.0, %v8762
      %v8764 = vpop.f32.mrb[0].mxu0
      %8765 = vdwg.mxu0
      %s8766 = scalar_lea.vmem [#allocation2], 200
      %v8767 = vld [vmem:[%s8766] sm:$0x7f]
      %v8768 = vld [vmem:[%s8766 + $0x8] sm:$0x7f]
      %v8769 = vld [vmem:[%s8766 + $0x10] sm:$0x7f]
      %v8770 = vld [vmem:[%s8766 + $0x18] sm:$0x7f]
      %v8771 = vld [vmem:[%s8766 + $0x20] sm:$0x7f]
      %v8772 = vld [vmem:[%s8766 + $0x28] sm:$0x7f]
      %v8773 = vld [vmem:[%s8766 + $0x30] sm:$0x7f]
      %v8775 = vsel %vm225, %v8767, 0
      %8777 = vmatprep.subr.mxu0 %v2008
      %8778 = vmatpush1.msra.mxu0 %v2007
      %8779 = vmatprep.subr.mxu0 %v2010
      %8780 = vmatpush1.msra.mxu0 %v2009
      %8781 = vmatprep.subr.mxu0 %v2012
      %8782 = vmatpush1.msra.mxu0 %v2011
      %8783 = vmatprep.subr.mxu0 %v2014
      %8784 = vmatpush1.msra.mxu0 %v2013
      %8785 = vmatprep.subr.mxu0 0.0
      %8786 = vmatpush1.msra.mxu0 0.0
      %8787 = vmatprep.subr.mxu0 0.0
      %8788 = vmatpush1.msra.mxu0 0.0
      %8789 = vmatprep.subr.mxu0 0.0
      %8790 = vmatpush1.msra.mxu0 0.0
      %8791 = vmatprep.subr.mxu0 0.0
      %8792 = vmatpush1.msra.mxu0 0.0
      %8793 = vmatprep.subr.mxu0 0.0
      %8794 = vmatpush1.msra.mxu0 0.0
      %8795 = vmatprep.subr.mxu0 0.0
      %8796 = vmatpush1.msra.mxu0 0.0
      %8797 = vmatprep.subr.mxu0 0.0
      %8798 = vmatpush1.msra.mxu0 0.0
      %8799 = vmatprep.subr.mxu0 0.0
      %8800 = vmatpush1.msra.mxu0 0.0
      %8801 = vmatprep.subr.mxu0 0.0
      %8802 = vmatpush1.msra.mxu0 0.0
      %8803 = vmatprep.subr.mxu0 0.0
      %8804 = vmatpush1.msra.mxu0 0.0
      %8805 = vmatprep.subr.mxu0 0.0
      %8806 = vmatpush1.msra.mxu0 0.0
      %8807 = vmatprep.subr.mxu0 0.0
      %8808 = vmatpush1.msra.mxu0 0.0
      %8809 = vmatprep.subr.mxu0 0.0
      %8810 = vmatpush1.msra.mxu0 0.0
      %8811 = vmatprep.subr.mxu0 0.0
      %8812 = vmatpush1.msra.mxu0 0.0
      %8813 = vmatprep.subr.mxu0 0.0
      %8814 = vmatpush1.msra.mxu0 0.0
      %8815 = vmatprep.subr.mxu0 0.0
      %8816 = vmatpush1.msra.mxu0 0.0
      %8817 = vmatprep.subr.mxu0 0.0
      %8818 = vmatpush1.msra.mxu0 0.0
      %8819 = vmatprep.subr.mxu0 0.0
      %8820 = vmatpush1.msra.mxu0 0.0
      %8821 = vmatprep.subr.mxu0 0.0
      %8822 = vmatpush1.msra.mxu0 0.0
      %8823 = vmatprep.subr.mxu0 0.0
      %8824 = vmatpush1.msra.mxu0 0.0
      %8825 = vmatprep.subr.mxu0 0.0
      %8826 = vmatpush1.msra.mxu0 0.0
      %8827 = vmatprep.subr.mxu0 0.0
      %8828 = vmatpush1.msra.mxu0 0.0
      %8829 = vmatprep.subr.mxu0 0.0
      %8830 = vmatpush1.msra.mxu0 0.0
      %8831 = vmatprep.subr.mxu0 0.0
      %8832 = vmatpush1.msra.mxu0 0.0
      %8833 = vmatprep.subr.mxu0 0.0
      %8834 = vmatpush1.msra.mxu0 0.0
      %8835 = vmatprep.subr.mxu0 0.0
      %8836 = vmatpush1.msra.mxu0 0.0
      %8837 = vmatprep.subr.mxu0 0.0
      %8838 = vmatpush1.msra.mxu0 0.0
      %8839 = vmatprep.subr.mxu0 0.0
      %8840 = vmatpush1.msra.mxu0 0.0
      %8841 = vmatprep.mubr.f32.mxu0 0.0
      %8842 = vmatmul.mubr.f32.gmra.mrb[0].mxu0 %v8775
      %v8843 = vpop.f32.mrb[0].mxu0
      %v8844 = vadd.f32 0.0, %v8843
      %v8845 = vpop.f32.mrb[0].mxu0
      %8846 = vdwg.mxu0
      %v8848 = vsel %vm225, %v8768, 0
      %8850 = vmatprep.subr.mxu0 %v2008
      %8851 = vmatpush1.msra.mxu0 %v2007
      %8852 = vmatprep.subr.mxu0 %v2010
      %8853 = vmatpush1.msra.mxu0 %v2009
      %8854 = vmatprep.subr.mxu0 %v2012
      %8855 = vmatpush1.msra.mxu0 %v2011
      %8856 = vmatprep.subr.mxu0 %v2014
      %8857 = vmatpush1.msra.mxu0 %v2013
      %8858 = vmatprep.subr.mxu0 0.0
      %8859 = vmatpush1.msra.mxu0 0.0
      %8860 = vmatprep.subr.mxu0 0.0
      %8861 = vmatpush1.msra.mxu0 0.0
      %8862 = vmatprep.subr.mxu0 0.0
      %8863 = vmatpush1.msra.mxu0 0.0
      %8864 = vmatprep.subr.mxu0 0.0
      %8865 = vmatpush1.msra.mxu0 0.0
      %8866 = vmatprep.subr.mxu0 0.0
      %8867 = vmatpush1.msra.mxu0 0.0
      %8868 = vmatprep.subr.mxu0 0.0
      %8869 = vmatpush1.msra.mxu0 0.0
      %8870 = vmatprep.subr.mxu0 0.0
      %8871 = vmatpush1.msra.mxu0 0.0
      %8872 = vmatprep.subr.mxu0 0.0
      %8873 = vmatpush1.msra.mxu0 0.0
      %8874 = vmatprep.subr.mxu0 0.0
      %8875 = vmatpush1.msra.mxu0 0.0
      %8876 = vmatprep.subr.mxu0 0.0
      %8877 = vmatpush1.msra.mxu0 0.0
      %8878 = vmatprep.subr.mxu0 0.0
      %8879 = vmatpush1.msra.mxu0 0.0
      %8880 = vmatprep.subr.mxu0 0.0
      %8881 = vmatpush1.msra.mxu0 0.0
      %8882 = vmatprep.subr.mxu0 0.0
      %8883 = vmatpush1.msra.mxu0 0.0
      %8884 = vmatprep.subr.mxu0 0.0
      %8885 = vmatpush1.msra.mxu0 0.0
      %8886 = vmatprep.subr.mxu0 0.0
      %8887 = vmatpush1.msra.mxu0 0.0
      %8888 = vmatprep.subr.mxu0 0.0
      %8889 = vmatpush1.msra.mxu0 0.0
      %8890 = vmatprep.subr.mxu0 0.0
      %8891 = vmatpush1.msra.mxu0 0.0
      %8892 = vmatprep.subr.mxu0 0.0
      %8893 = vmatpush1.msra.mxu0 0.0
      %8894 = vmatprep.subr.mxu0 0.0
      %8895 = vmatpush1.msra.mxu0 0.0
      %8896 = vmatprep.subr.mxu0 0.0
      %8897 = vmatpush1.msra.mxu0 0.0
      %8898 = vmatprep.subr.mxu0 0.0
      %8899 = vmatpush1.msra.mxu0 0.0
      %8900 = vmatprep.subr.mxu0 0.0
      %8901 = vmatpush1.msra.mxu0 0.0
      %8902 = vmatprep.subr.mxu0 0.0
      %8903 = vmatpush1.msra.mxu0 0.0
      %8904 = vmatprep.subr.mxu0 0.0
      %8905 = vmatpush1.msra.mxu0 0.0
      %8906 = vmatprep.subr.mxu0 0.0
      %8907 = vmatpush1.msra.mxu0 0.0
      %8908 = vmatprep.subr.mxu0 0.0
      %8909 = vmatpush1.msra.mxu0 0.0
      %8910 = vmatprep.subr.mxu0 0.0
      %8911 = vmatpush1.msra.mxu0 0.0
      %8912 = vmatprep.subr.mxu0 0.0
      %8913 = vmatpush1.msra.mxu0 0.0
      %8914 = vmatprep.mubr.f32.mxu0 0.0
      %8915 = vmatmul.mubr.f32.gmra.mrb[0].mxu0 %v8848
      %v8916 = vpop.f32.mrb[0].mxu0
      %v8917 = vadd.f32 0.0, %v8916
      %v8918 = vpop.f32.mrb[0].mxu0
      %8919 = vdwg.mxu0
      %v8921 = vsel %vm225, %v8769, 0
      %8923 = vmatprep.subr.mxu0 %v2008
      %8924 = vmatpush1.msra.mxu0 %v2007
      %8925 = vmatprep.subr.mxu0 %v2010
      %8926 = vmatpush1.msra.mxu0 %v2009
      %8927 = vmatprep.subr.mxu0 %v2012
      %8928 = vmatpush1.msra.mxu0 %v2011
      %8929 = vmatprep.subr.mxu0 %v2014
      %8930 = vmatpush1.msra.mxu0 %v2013
      %8931 = vmatprep.subr.mxu0 0.0
      %8932 = vmatpush1.msra.mxu0 0.0
      %8933 = vmatprep.subr.mxu0 0.0
      %8934 = vmatpush1.msra.mxu0 0.0
      %8935 = vmatprep.subr.mxu0 0.0
      %8936 = vmatpush1.msra.mxu0 0.0
      %8937 = vmatprep.subr.mxu0 0.0
      %8938 = vmatpush1.msra.mxu0 0.0
      %8939 = vmatprep.subr.mxu0 0.0
      %8940 = vmatpush1.msra.mxu0 0.0
      %8941 = vmatprep.subr.mxu0 0.0
      %8942 = vmatpush1.msra.mxu0 0.0
      %8943 = vmatprep.subr.mxu0 0.0
      %8944 = vmatpush1.msra.mxu0 0.0
      %8945 = vmatprep.subr.mxu0 0.0
      %8946 = vmatpush1.msra.mxu0 0.0
      %8947 = vmatprep.subr.mxu0 0.0
      %8948 = vmatpush1.msra.mxu0 0.0
      %8949 = vmatprep.subr.mxu0 0.0
      %8950 = vmatpush1.msra.mxu0 0.0
      %8951 = vmatprep.subr.mxu0 0.0
      %8952 = vmatpush1.msra.mxu0 0.0
      %8953 = vmatprep.subr.mxu0 0.0
      %8954 = vmatpush1.msra.mxu0 0.0
      %8955 = vmatprep.subr.mxu0 0.0
      %8956 = vmatpush1.msra.mxu0 0.0
      %8957 = vmatprep.subr.mxu0 0.0
      %8958 = vmatpush1.msra.mxu0 0.0
      %8959 = vmatprep.subr.mxu0 0.0
      %8960 = vmatpush1.msra.mxu0 0.0
      %8961 = vmatprep.subr.mxu0 0.0
      %8962 = vmatpush1.msra.mxu0 0.0
      %8963 = vmatprep.subr.mxu0 0.0
      %8964 = vmatpush1.msra.mxu0 0.0
      %8965 = vmatprep.subr.mxu0 0.0
      %8966 = vmatpush1.msra.mxu0 0.0
      %8967 = vmatprep.subr.mxu0 0.0
      %8968 = vmatpush1.msra.mxu0 0.0
      %8969 = vmatprep.subr.mxu0 0.0
      %8970 = vmatpush1.msra.mxu0 0.0
      %8971 = vmatprep.subr.mxu0 0.0
      %8972 = vmatpush1.msra.mxu0 0.0
      %8973 = vmatprep.subr.mxu0 0.0
      %8974 = vmatpush1.msra.mxu0 0.0
      %8975 = vmatprep.subr.mxu0 0.0
      %8976 = vmatpush1.msra.mxu0 0.0
      %8977 = vmatprep.subr.mxu0 0.0
      %8978 = vmatpush1.msra.mxu0 0.0
      %8979 = vmatprep.subr.mxu0 0.0
      %8980 = vmatpush1.msra.mxu0 0.0
      %8981 = vmatprep.subr.mxu0 0.0
      %8982 = vmatpush1.msra.mxu0 0.0
      %8983 = vmatprep.subr.mxu0 0.0
      %8984 = vmatpush1.msra.mxu0 0.0
      %8985 = vmatprep.subr.mxu0 0.0
      %8986 = vmatpush1.msra.mxu0 0.0
      %8987 = vmatprep.mubr.f32.mxu0 0.0
      %8988 = vmatmul.mubr.f32.gmra.mrb[0].mxu0 %v8921
      %v8989 = vpop.f32.mrb[0].mxu0
      %v8990 = vadd.f32 0.0, %v8989
      %v8991 = vpop.f32.mrb[0].mxu0
      %8992 = vdwg.mxu0
      %v8994 = vsel %vm225, %v8770, 0
      %8996 = vmatprep.subr.mxu0 %v2008
      %8997 = vmatpush1.msra.mxu0 %v2007
      %8998 = vmatprep.subr.mxu0 %v2010
      %8999 = vmatpush1.msra.mxu0 %v2009
      %9000 = vmatprep.subr.mxu0 %v2012
      %9001 = vmatpush1.msra.mxu0 %v2011
      %9002 = vmatprep.subr.mxu0 %v2014
      %9003 = vmatpush1.msra.mxu0 %v2013
      %9004 = vmatprep.subr.mxu0 0.0
      %9005 = vmatpush1.msra.mxu0 0.0
      %9006 = vmatprep.subr.mxu0 0.0
      %9007 = vmatpush1.msra.mxu0 0.0
      %9008 = vmatprep.subr.mxu0 0.0
      %9009 = vmatpush1.msra.mxu0 0.0
      %9010 = vmatprep.subr.mxu0 0.0
      %9011 = vmatpush1.msra.mxu0 0.0
      %9012 = vmatprep.subr.mxu0 0.0
      %9013 = vmatpush1.msra.mxu0 0.0
      %9014 = vmatprep.subr.mxu0 0.0
      %9015 = vmatpush1.msra.mxu0 0.0
      %9016 = vmatprep.subr.mxu0 0.0
      %9017 = vmatpush1.msra.mxu0 0.0
      %9018 = vmatprep.subr.mxu0 0.0
      %9019 = vmatpush1.msra.mxu0 0.0
      %9020 = vmatprep.subr.mxu0 0.0
      %9021 = vmatpush1.msra.mxu0 0.0
      %9022 = vmatprep.subr.mxu0 0.0
      %9023 = vmatpush1.msra.mxu0 0.0
      %9024 = vmatprep.subr.mxu0 0.0
      %9025 = vmatpush1.msra.mxu0 0.0
      %9026 = vmatprep.subr.mxu0 0.0
      %9027 = vmatpush1.msra.mxu0 0.0
      %9028 = vmatprep.subr.mxu0 0.0
      %9029 = vmatpush1.msra.mxu0 0.0
      %9030 = vmatprep.subr.mxu0 0.0
      %9031 = vmatpush1.msra.mxu0 0.0
      %9032 = vmatprep.subr.mxu0 0.0
      %9033 = vmatpush1.msra.mxu0 0.0
      %9034 = vmatprep.subr.mxu0 0.0
      %9035 = vmatpush1.msra.mxu0 0.0
      %9036 = vmatprep.subr.mxu0 0.0
      %9037 = vmatpush1.msra.mxu0 0.0
      %9038 = vmatprep.subr.mxu0 0.0
      %9039 = vmatpush1.msra.mxu0 0.0
      %9040 = vmatprep.subr.mxu0 0.0
      %9041 = vmatpush1.msra.mxu0 0.0
      %9042 = vmatprep.subr.mxu0 0.0
      %9043 = vmatpush1.msra.mxu0 0.0
      %9044 = vmatprep.subr.mxu0 0.0
      %9045 = vmatpush1.msra.mxu0 0.0
      %9046 = vmatprep.subr.mxu0 0.0
      %9047 = vmatpush1.msra.mxu0 0.0
      %9048 = vmatprep.subr.mxu0 0.0
      %9049 = vmatpush1.msra.mxu0 0.0
      %9050 = vmatprep.subr.mxu0 0.0
      %9051 = vmatpush1.msra.mxu0 0.0
      %9052 = vmatprep.subr.mxu0 0.0
      %9053 = vmatpush1.msra.mxu0 0.0
      %9054 = vmatprep.subr.mxu0 0.0
      %9055 = vmatpush1.msra.mxu0 0.0
      %9056 = vmatprep.subr.mxu0 0.0
      %9057 = vmatpush1.msra.mxu0 0.0
      %9058 = vmatprep.subr.mxu0 0.0
      %9059 = vmatpush1.msra.mxu0 0.0
      %9060 = vmatprep.mubr.f32.mxu0 0.0
      %9061 = vmatmul.mubr.f32.gmra.mrb[0].mxu0 %v8994
      %v9062 = vpop.f32.mrb[0].mxu0
      %v9063 = vadd.f32 0.0, %v9062
      %v9064 = vpop.f32.mrb[0].mxu0
      %9065 = vdwg.mxu0
      %v9067 = vsel %vm225, %v8771, 0
      %9069 = vmatprep.subr.mxu0 %v2008
      %9070 = vmatpush1.msra.mxu0 %v2007
      %9071 = vmatprep.subr.mxu0 %v2010
      %9072 = vmatpush1.msra.mxu0 %v2009
      %9073 = vmatprep.subr.mxu0 %v2012
      %9074 = vmatpush1.msra.mxu0 %v2011
      %9075 = vmatprep.subr.mxu0 %v2014
      %9076 = vmatpush1.msra.mxu0 %v2013
      %9077 = vmatprep.subr.mxu0 0.0
      %9078 = vmatpush1.msra.mxu0 0.0
      %9079 = vmatprep.subr.mxu0 0.0
      %9080 = vmatpush1.msra.mxu0 0.0
      %9081 = vmatprep.subr.mxu0 0.0
      %9082 = vmatpush1.msra.mxu0 0.0
      %9083 = vmatprep.subr.mxu0 0.0
      %9084 = vmatpush1.msra.mxu0 0.0
      %9085 = vmatprep.subr.mxu0 0.0
      %9086 = vmatpush1.msra.mxu0 0.0
      %9087 = vmatprep.subr.mxu0 0.0
      %9088 = vmatpush1.msra.mxu0 0.0
      %9089 = vmatprep.subr.mxu0 0.0
      %9090 = vmatpush1.msra.mxu0 0.0
      %9091 = vmatprep.subr.mxu0 0.0
      %9092 = vmatpush1.msra.mxu0 0.0
      %9093 = vmatprep.subr.mxu0 0.0
      %9094 = vmatpush1.msra.mxu0 0.0
      %9095 = vmatprep.subr.mxu0 0.0
      %9096 = vmatpush1.msra.mxu0 0.0
      %9097 = vmatprep.subr.mxu0 0.0
      %9098 = vmatpush1.msra.mxu0 0.0
      %9099 = vmatprep.subr.mxu0 0.0
      %9100 = vmatpush1.msra.mxu0 0.0
      %9101 = vmatprep.subr.mxu0 0.0
      %9102 = vmatpush1.msra.mxu0 0.0
      %9103 = vmatprep.subr.mxu0 0.0
      %9104 = vmatpush1.msra.mxu0 0.0
      %9105 = vmatprep.subr.mxu0 0.0
      %9106 = vmatpush1.msra.mxu0 0.0
      %9107 = vmatprep.subr.mxu0 0.0
      %9108 = vmatpush1.msra.mxu0 0.0
      %9109 = vmatprep.subr.mxu0 0.0
      %9110 = vmatpush1.msra.mxu0 0.0
      %9111 = vmatprep.subr.mxu0 0.0
      %9112 = vmatpush1.msra.mxu0 0.0
      %9113 = vmatprep.subr.mxu0 0.0
      %9114 = vmatpush1.msra.mxu0 0.0
      %9115 = vmatprep.subr.mxu0 0.0
      %9116 = vmatpush1.msra.mxu0 0.0
      %9117 = vmatprep.subr.mxu0 0.0
      %9118 = vmatpush1.msra.mxu0 0.0
      %9119 = vmatprep.subr.mxu0 0.0
      %9120 = vmatpush1.msra.mxu0 0.0
      %9121 = vmatprep.subr.mxu0 0.0
      %9122 = vmatpush1.msra.mxu0 0.0
      %9123 = vmatprep.subr.mxu0 0.0
      %9124 = vmatpush1.msra.mxu0 0.0
      %9125 = vmatprep.subr.mxu0 0.0
      %9126 = vmatpush1.msra.mxu0 0.0
      %9127 = vmatprep.subr.mxu0 0.0
      %9128 = vmatpush1.msra.mxu0 0.0
      %9129 = vmatprep.subr.mxu0 0.0
      %9130 = vmatpush1.msra.mxu0 0.0
      %9131 = vmatprep.subr.mxu0 0.0
      %9132 = vmatpush1.msra.mxu0 0.0
      %9133 = vmatprep.mubr.f32.mxu0 0.0
      %9134 = vmatmul.mubr.f32.gmra.mrb[0].mxu0 %v9067
      %v9135 = vpop.f32.mrb[0].mxu0
      %v9136 = vadd.f32 0.0, %v9135
      %v9137 = vpop.f32.mrb[0].mxu0
      %9138 = vdwg.mxu0
      %v9140 = vsel %vm225, %v8772, 0
      %9142 = vmatprep.subr.mxu0 %v2008
      %9143 = vmatpush1.msra.mxu0 %v2007
      %9144 = vmatprep.subr.mxu0 %v2010
      %9145 = vmatpush1.msra.mxu0 %v2009
      %9146 = vmatprep.subr.mxu0 %v2012
      %9147 = vmatpush1.msra.mxu0 %v2011
      %9148 = vmatprep.subr.mxu0 %v2014
      %9149 = vmatpush1.msra.mxu0 %v2013
      %9150 = vmatprep.subr.mxu0 0.0
      %9151 = vmatpush1.msra.mxu0 0.0
      %9152 = vmatprep.subr.mxu0 0.0
      %9153 = vmatpush1.msra.mxu0 0.0
      %9154 = vmatprep.subr.mxu0 0.0
      %9155 = vmatpush1.msra.mxu0 0.0
      %9156 = vmatprep.subr.mxu0 0.0
      %9157 = vmatpush1.msra.mxu0 0.0
      %9158 = vmatprep.subr.mxu0 0.0
      %9159 = vmatpush1.msra.mxu0 0.0
      %9160 = vmatprep.subr.mxu0 0.0
      %9161 = vmatpush1.msra.mxu0 0.0
      %9162 = vmatprep.subr.mxu0 0.0
      %9163 = vmatpush1.msra.mxu0 0.0
      %9164 = vmatprep.subr.mxu0 0.0
      %9165 = vmatpush1.msra.mxu0 0.0
      %9166 = vmatprep.subr.mxu0 0.0
      %9167 = vmatpush1.msra.mxu0 0.0
      %9168 = vmatprep.subr.mxu0 0.0
      %9169 = vmatpush1.msra.mxu0 0.0
      %9170 = vmatprep.subr.mxu0 0.0
      %9171 = vmatpush1.msra.mxu0 0.0
      %9172 = vmatprep.subr.mxu0 0.0
      %9173 = vmatpush1.msra.mxu0 0.0
      %9174 = vmatprep.subr.mxu0 0.0
      %9175 = vmatpush1.msra.mxu0 0.0
      %9176 = vmatprep.subr.mxu0 0.0
      %9177 = vmatpush1.msra.mxu0 0.0
      %9178 = vmatprep.subr.mxu0 0.0
      %9179 = vmatpush1.msra.mxu0 0.0
      %9180 = vmatprep.subr.mxu0 0.0
      %9181 = vmatpush1.msra.mxu0 0.0
      %9182 = vmatprep.subr.mxu0 0.0
      %9183 = vmatpush1.msra.mxu0 0.0
      %9184 = vmatprep.subr.mxu0 0.0
      %9185 = vmatpush1.msra.mxu0 0.0
      %9186 = vmatprep.subr.mxu0 0.0
      %9187 = vmatpush1.msra.mxu0 0.0
      %9188 = vmatprep.subr.mxu0 0.0
      %9189 = vmatpush1.msra.mxu0 0.0
      %9190 = vmatprep.subr.mxu0 0.0
      %9191 = vmatpush1.msra.mxu0 0.0
      %9192 = vmatprep.subr.mxu0 0.0
      %9193 = vmatpush1.msra.mxu0 0.0
      %9194 = vmatprep.subr.mxu0 0.0
      %9195 = vmatpush1.msra.mxu0 0.0
      %9196 = vmatprep.subr.mxu0 0.0
      %9197 = vmatpush1.msra.mxu0 0.0
      %9198 = vmatprep.subr.mxu0 0.0
      %9199 = vmatpush1.msra.mxu0 0.0
      %9200 = vmatprep.subr.mxu0 0.0
      %9201 = vmatpush1.msra.mxu0 0.0
      %9202 = vmatprep.subr.mxu0 0.0
      %9203 = vmatpush1.msra.mxu0 0.0
      %9204 = vmatprep.subr.mxu0 0.0
      %9205 = vmatpush1.msra.mxu0 0.0
      %9206 = vmatprep.mubr.f32.mxu0 0.0
      %9207 = vmatmul.mubr.f32.gmra.mrb[0].mxu0 %v9140
      %v9208 = vpop.f32.mrb[0].mxu0
      %v9209 = vadd.f32 0.0, %v9208
      %v9210 = vpop.f32.mrb[0].mxu0
      %9211 = vdwg.mxu0
      %v9213 = vsel %vm225, %v8773, 0
      %9215 = vmatprep.subr.mxu0 %v2008
      %9216 = vmatpush1.msra.mxu0 %v2007
      %9217 = vmatprep.subr.mxu0 %v2010
      %9218 = vmatpush1.msra.mxu0 %v2009
      %9219 = vmatprep.subr.mxu0 %v2012
      %9220 = vmatpush1.msra.mxu0 %v2011
      %9221 = vmatprep.subr.mxu0 %v2014
      %9222 = vmatpush1.msra.mxu0 %v2013
      %9223 = vmatprep.subr.mxu0 0.0
      %9224 = vmatpush1.msra.mxu0 0.0
      %9225 = vmatprep.subr.mxu0 0.0
      %9226 = vmatpush1.msra.mxu0 0.0
      %9227 = vmatprep.subr.mxu0 0.0
      %9228 = vmatpush1.msra.mxu0 0.0
      %9229 = vmatprep.subr.mxu0 0.0
      %9230 = vmatpush1.msra.mxu0 0.0
      %9231 = vmatprep.subr.mxu0 0.0
      %9232 = vmatpush1.msra.mxu0 0.0
      %9233 = vmatprep.subr.mxu0 0.0
      %9234 = vmatpush1.msra.mxu0 0.0
      %9235 = vmatprep.subr.mxu0 0.0
      %9236 = vmatpush1.msra.mxu0 0.0
      %9237 = vmatprep.subr.mxu0 0.0
      %9238 = vmatpush1.msra.mxu0 0.0
      %9239 = vmatprep.subr.mxu0 0.0
      %9240 = vmatpush1.msra.mxu0 0.0
      %9241 = vmatprep.subr.mxu0 0.0
      %9242 = vmatpush1.msra.mxu0 0.0
      %9243 = vmatprep.subr.mxu0 0.0
      %9244 = vmatpush1.msra.mxu0 0.0
      %9245 = vmatprep.subr.mxu0 0.0
      %9246 = vmatpush1.msra.mxu0 0.0
      %9247 = vmatprep.subr.mxu0 0.0
      %9248 = vmatpush1.msra.mxu0 0.0
      %9249 = vmatprep.subr.mxu0 0.0
      %9250 = vmatpush1.msra.mxu0 0.0
      %9251 = vmatprep.subr.mxu0 0.0
      %9252 = vmatpush1.msra.mxu0 0.0
      %9253 = vmatprep.subr.mxu0 0.0
      %9254 = vmatpush1.msra.mxu0 0.0
      %9255 = vmatprep.subr.mxu0 0.0
      %9256 = vmatpush1.msra.mxu0 0.0
      %9257 = vmatprep.subr.mxu0 0.0
      %9258 = vmatpush1.msra.mxu0 0.0
      %9259 = vmatprep.subr.mxu0 0.0
      %9260 = vmatpush1.msra.mxu0 0.0
      %9261 = vmatprep.subr.mxu0 0.0
      %9262 = vmatpush1.msra.mxu0 0.0
      %9263 = vmatprep.subr.mxu0 0.0
      %9264 = vmatpush1.msra.mxu0 0.0
      %9265 = vmatprep.subr.mxu0 0.0
      %9266 = vmatpush1.msra.mxu0 0.0
      %9267 = vmatprep.subr.mxu0 0.0
      %9268 = vmatpush1.msra.mxu0 0.0
      %9269 = vmatprep.subr.mxu0 0.0
      %9270 = vmatpush1.msra.mxu0 0.0
      %9271 = vmatprep.subr.mxu0 0.0
      %9272 = vmatpush1.msra.mxu0 0.0
      %9273 = vmatprep.subr.mxu0 0.0
      %9274 = vmatpush1.msra.mxu0 0.0
      %9275 = vmatprep.subr.mxu0 0.0
      %9276 = vmatpush1.msra.mxu0 0.0
      %9277 = vmatprep.subr.mxu0 0.0
      %9278 = vmatpush1.msra.mxu0 0.0
      %9279 = vmatprep.mubr.f32.mxu0 0.0
      %9280 = vmatmul.mubr.f32.gmra.mrb[0].mxu0 %v9213
      %v9281 = vpop.f32.mrb[0].mxu0
      %v9282 = vadd.f32 0.0, %v9281
      %v9283 = vpop.f32.mrb[0].mxu0
      %9284 = vdwg.mxu0
      %v9285 = vld [vmem:[%s8247 + $0x1] sm:$0x7f]
      %v9286 = vld [vmem:[%s8247 + $0x9] sm:$0x7f]
      %v9287 = vld [vmem:[%s8247 + $0x11] sm:$0x7f]
      %v9288 = vld [vmem:[%s8247 + $0x19] sm:$0x7f]
      %v9289 = vld [vmem:[%s8247 + $0x21] sm:$0x7f]
      %v9290 = vld [vmem:[%s8247 + $0x29] sm:$0x7f]
      %v9291 = vld [vmem:[%s8247 + $0x31] sm:$0x7f]
      %v9293 = vsel %vm225, %v9285, 0
      %9295 = vmatprep.subr.mxu0 %v2008
      %9296 = vmatpush1.msra.mxu0 %v2007
      %9297 = vmatprep.subr.mxu0 %v2010
      %9298 = vmatpush1.msra.mxu0 %v2009
      %9299 = vmatprep.subr.mxu0 %v2012
      %9300 = vmatpush1.msra.mxu0 %v2011
      %9301 = vmatprep.subr.mxu0 %v2014
      %9302 = vmatpush1.msra.mxu0 %v2013
      %9303 = vmatprep.subr.mxu0 0.0
      %9304 = vmatpush1.msra.mxu0 0.0
      %9305 = vmatprep.subr.mxu0 0.0
      %9306 = vmatpush1.msra.mxu0 0.0
      %9307 = vmatprep.subr.mxu0 0.0
      %9308 = vmatpush1.msra.mxu0 0.0
      %9309 = vmatprep.subr.mxu0 0.0
      %9310 = vmatpush1.msra.mxu0 0.0
      %9311 = vmatprep.subr.mxu0 0.0
      %9312 = vmatpush1.msra.mxu0 0.0
      %9313 = vmatprep.subr.mxu0 0.0
      %9314 = vmatpush1.msra.mxu0 0.0
      %9315 = vmatprep.subr.mxu0 0.0
      %9316 = vmatpush1.msra.mxu0 0.0
      %9317 = vmatprep.subr.mxu0 0.0
      %9318 = vmatpush1.msra.mxu0 0.0
      %9319 = vmatprep.subr.mxu0 0.0
      %9320 = vmatpush1.msra.mxu0 0.0
      %9321 = vmatprep.subr.mxu0 0.0
      %9322 = vmatpush1.msra.mxu0 0.0
      %9323 = vmatprep.subr.mxu0 0.0
      %9324 = vmatpush1.msra.mxu0 0.0
      %9325 = vmatprep.subr.mxu0 0.0
      %9326 = vmatpush1.msra.mxu0 0.0
      %9327 = vmatprep.subr.mxu0 0.0
      %9328 = vmatpush1.msra.mxu0 0.0
      %9329 = vmatprep.subr.mxu0 0.0
      %9330 = vmatpush1.msra.mxu0 0.0
      %9331 = vmatprep.subr.mxu0 0.0
      %9332 = vmatpush1.msra.mxu0 0.0
      %9333 = vmatprep.subr.mxu0 0.0
      %9334 = vmatpush1.msra.mxu0 0.0
      %9335 = vmatprep.subr.mxu0 0.0
      %9336 = vmatpush1.msra.mxu0 0.0
      %9337 = vmatprep.subr.mxu0 0.0
      %9338 = vmatpush1.msra.mxu0 0.0
      %9339 = vmatprep.subr.mxu0 0.0
      %9340 = vmatpush1.msra.mxu0 0.0
      %9341 = vmatprep.subr.mxu0 0.0
      %9342 = vmatpush1.msra.mxu0 0.0
      %9343 = vmatprep.subr.mxu0 0.0
      %9344 = vmatpush1.msra.mxu0 0.0
      %9345 = vmatprep.subr.mxu0 0.0
      %9346 = vmatpush1.msra.mxu0 0.0
      %9347 = vmatprep.subr.mxu0 0.0
      %9348 = vmatpush1.msra.mxu0 0.0
      %9349 = vmatprep.subr.mxu0 0.0
      %9350 = vmatpush1.msra.mxu0 0.0
      %9351 = vmatprep.subr.mxu0 0.0
      %9352 = vmatpush1.msra.mxu0 0.0
      %9353 = vmatprep.subr.mxu0 0.0
      %9354 = vmatpush1.msra.mxu0 0.0
      %9355 = vmatprep.subr.mxu0 0.0
      %9356 = vmatpush1.msra.mxu0 0.0
      %9357 = vmatprep.subr.mxu0 0.0
      %9358 = vmatpush1.msra.mxu0 0.0
      %9359 = vmatprep.mubr.f32.mxu0 0.0
      %9360 = vmatmul.mubr.f32.gmra.mrb[0].mxu0 %v9293
      %v9361 = vpop.f32.mrb[0].mxu0
      %v9362 = vadd.f32 0.0, %v9361
      %v9363 = vpop.f32.mrb[0].mxu0
      %v9364 = vadd.f32 0.0, %v9363
      %9365 = vdwg.mxu0
      %v9367 = vsel %vm225, %v9286, 0
      %9369 = vmatprep.subr.mxu0 %v2008
      %9370 = vmatpush1.msra.mxu0 %v2007
      %9371 = vmatprep.subr.mxu0 %v2010
      %9372 = vmatpush1.msra.mxu0 %v2009
      %9373 = vmatprep.subr.mxu0 %v2012
      %9374 = vmatpush1.msra.mxu0 %v2011
      %9375 = vmatprep.subr.mxu0 %v2014
      %9376 = vmatpush1.msra.mxu0 %v2013
      %9377 = vmatprep.subr.mxu0 0.0
      %9378 = vmatpush1.msra.mxu0 0.0
      %9379 = vmatprep.subr.mxu0 0.0
      %9380 = vmatpush1.msra.mxu0 0.0
      %9381 = vmatprep.subr.mxu0 0.0
      %9382 = vmatpush1.msra.mxu0 0.0
      %9383 = vmatprep.subr.mxu0 0.0
      %9384 = vmatpush1.msra.mxu0 0.0
      %9385 = vmatprep.subr.mxu0 0.0
      %9386 = vmatpush1.msra.mxu0 0.0
      %9387 = vmatprep.subr.mxu0 0.0
      %9388 = vmatpush1.msra.mxu0 0.0
      %9389 = vmatprep.subr.mxu0 0.0
      %9390 = vmatpush1.msra.mxu0 0.0
      %9391 = vmatprep.subr.mxu0 0.0
      %9392 = vmatpush1.msra.mxu0 0.0
      %9393 = vmatprep.subr.mxu0 0.0
      %9394 = vmatpush1.msra.mxu0 0.0
      %9395 = vmatprep.subr.mxu0 0.0
      %9396 = vmatpush1.msra.mxu0 0.0
      %9397 = vmatprep.subr.mxu0 0.0
      %9398 = vmatpush1.msra.mxu0 0.0
      %9399 = vmatprep.subr.mxu0 0.0
      %9400 = vmatpush1.msra.mxu0 0.0
      %9401 = vmatprep.subr.mxu0 0.0
      %9402 = vmatpush1.msra.mxu0 0.0
      %9403 = vmatprep.subr.mxu0 0.0
      %9404 = vmatpush1.msra.mxu0 0.0
      %9405 = vmatprep.subr.mxu0 0.0
      %9406 = vmatpush1.msra.mxu0 0.0
      %9407 = vmatprep.subr.mxu0 0.0
      %9408 = vmatpush1.msra.mxu0 0.0
      %9409 = vmatprep.subr.mxu0 0.0
      %9410 = vmatpush1.msra.mxu0 0.0
      %9411 = vmatprep.subr.mxu0 0.0
      %9412 = vmatpush1.msra.mxu0 0.0
      %9413 = vmatprep.subr.mxu0 0.0
      %9414 = vmatpush1.msra.mxu0 0.0
      %9415 = vmatprep.subr.mxu0 0.0
      %9416 = vmatpush1.msra.mxu0 0.0
      %9417 = vmatprep.subr.mxu0 0.0
      %9418 = vmatpush1.msra.mxu0 0.0
      %9419 = vmatprep.subr.mxu0 0.0
      %9420 = vmatpush1.msra.mxu0 0.0
      %9421 = vmatprep.subr.mxu0 0.0
      %9422 = vmatpush1.msra.mxu0 0.0
      %9423 = vmatprep.subr.mxu0 0.0
      %9424 = vmatpush1.msra.mxu0 0.0
      %9425 = vmatprep.subr.mxu0 0.0
      %9426 = vmatpush1.msra.mxu0 0.0
      %9427 = vmatprep.subr.mxu0 0.0
      %9428 = vmatpush1.msra.mxu0 0.0
      %9429 = vmatprep.subr.mxu0 0.0
      %9430 = vmatpush1.msra.mxu0 0.0
      %9431 = vmatprep.subr.mxu0 0.0
      %9432 = vmatpush1.msra.mxu0 0.0
      %9433 = vmatprep.mubr.f32.mxu0 0.0
      %9434 = vmatmul.mubr.f32.gmra.mrb[0].mxu0 %v9367
      %v9435 = vpop.f32.mrb[0].mxu0
      %v9436 = vadd.f32 0.0, %v9435
      %v9437 = vpop.f32.mrb[0].mxu0
      %v9438 = vadd.f32 0.0, %v9437
      %9439 = vdwg.mxu0
      %v9441 = vsel %vm225, %v9287, 0
      %9443 = vmatprep.subr.mxu0 %v2008
      %9444 = vmatpush1.msra.mxu0 %v2007
      %9445 = vmatprep.subr.mxu0 %v2010
      %9446 = vmatpush1.msra.mxu0 %v2009
      %9447 = vmatprep.subr.mxu0 %v2012
      %9448 = vmatpush1.msra.mxu0 %v2011
      %9449 = vmatprep.subr.mxu0 %v2014
      %9450 = vmatpush1.msra.mxu0 %v2013
      %9451 = vmatprep.subr.mxu0 0.0
      %9452 = vmatpush1.msra.mxu0 0.0
      %9453 = vmatprep.subr.mxu0 0.0
      %9454 = vmatpush1.msra.mxu0 0.0
      %9455 = vmatprep.subr.mxu0 0.0
      %9456 = vmatpush1.msra.mxu0 0.0
      %9457 = vmatprep.subr.mxu0 0.0
      %9458 = vmatpush1.msra.mxu0 0.0
      %9459 = vmatprep.subr.mxu0 0.0
      %9460 = vmatpush1.msra.mxu0 0.0
      %9461 = vmatprep.subr.mxu0 0.0
      %9462 = vmatpush1.msra.mxu0 0.0
      %9463 = vmatprep.subr.mxu0 0.0
      %9464 = vmatpush1.msra.mxu0 0.0
      %9465 = vmatprep.subr.mxu0 0.0
      %9466 = vmatpush1.msra.mxu0 0.0
      %9467 = vmatprep.subr.mxu0 0.0
      %9468 = vmatpush1.msra.mxu0 0.0
      %9469 = vmatprep.subr.mxu0 0.0
      %9470 = vmatpush1.msra.mxu0 0.0
      %9471 = vmatprep.subr.mxu0 0.0
      %9472 = vmatpush1.msra.mxu0 0.0
      %9473 = vmatprep.subr.mxu0 0.0
      %9474 = vmatpush1.msra.mxu0 0.0
      %9475 = vmatprep.subr.mxu0 0.0
      %9476 = vmatpush1.msra.mxu0 0.0
      %9477 = vmatprep.subr.mxu0 0.0
      %9478 = vmatpush1.msra.mxu0 0.0
      %9479 = vmatprep.subr.mxu0 0.0
      %9480 = vmatpush1.msra.mxu0 0.0
      %9481 = vmatprep.subr.mxu0 0.0
      %9482 = vmatpush1.msra.mxu0 0.0
      %9483 = vmatprep.subr.mxu0 0.0
      %9484 = vmatpush1.msra.mxu0 0.0
      %9485 = vmatprep.subr.mxu0 0.0
      %9486 = vmatpush1.msra.mxu0 0.0
      %9487 = vmatprep.subr.mxu0 0.0
      %9488 = vmatpush1.msra.mxu0 0.0
      %9489 = vmatprep.subr.mxu0 0.0
      %9490 = vmatpush1.msra.mxu0 0.0
      %9491 = vmatprep.subr.mxu0 0.0
      %9492 = vmatpush1.msra.mxu0 0.0
      %9493 = vmatprep.subr.mxu0 0.0
      %9494 = vmatpush1.msra.mxu0 0.0
      %9495 = vmatprep.subr.mxu0 0.0
      %9496 = vmatpush1.msra.mxu0 0.0
      %9497 = vmatprep.subr.mxu0 0.0
      %9498 = vmatpush1.msra.mxu0 0.0
      %9499 = vmatprep.subr.mxu0 0.0
      %9500 = vmatpush1.msra.mxu0 0.0
      %9501 = vmatprep.subr.mxu0 0.0
      %9502 = vmatpush1.msra.mxu0 0.0
      %9503 = vmatprep.subr.mxu0 0.0
      %9504 = vmatpush1.msra.mxu0 0.0
      %9505 = vmatprep.subr.mxu0 0.0
      %9506 = vmatpush1.msra.mxu0 0.0
      %9507 = vmatprep.mubr.f32.mxu0 0.0
      %9508 = vmatmul.mubr.f32.gmra.mrb[0].mxu0 %v9441
      %v9509 = vpop.f32.mrb[0].mxu0
      %v9510 = vadd.f32 0.0, %v9509
      %v9511 = vpop.f32.mrb[0].mxu0
      %v9512 = vadd.f32 0.0, %v9511
      %9513 = vdwg.mxu0
      %v9515 = vsel %vm225, %v9288, 0
      %9517 = vmatprep.subr.mxu0 %v2008
      %9518 = vmatpush1.msra.mxu0 %v2007
      %9519 = vmatprep.subr.mxu0 %v2010
      %9520 = vmatpush1.msra.mxu0 %v2009
      %9521 = vmatprep.subr.mxu0 %v2012
      %9522 = vmatpush1.msra.mxu0 %v2011
      %9523 = vmatprep.subr.mxu0 %v2014
      %9524 = vmatpush1.msra.mxu0 %v2013
      %9525 = vmatprep.subr.mxu0 0.0
      %9526 = vmatpush1.msra.mxu0 0.0
      %9527 = vmatprep.subr.mxu0 0.0
      %9528 = vmatpush1.msra.mxu0 0.0
      %9529 = vmatprep.subr.mxu0 0.0
      %9530 = vmatpush1.msra.mxu0 0.0
      %9531 = vmatprep.subr.mxu0 0.0
      %9532 = vmatpush1.msra.mxu0 0.0
      %9533 = vmatprep.subr.mxu0 0.0
      %9534 = vmatpush1.msra.mxu0 0.0
      %9535 = vmatprep.subr.mxu0 0.0
      %9536 = vmatpush1.msra.mxu0 0.0
      %9537 = vmatprep.subr.mxu0 0.0
      %9538 = vmatpush1.msra.mxu0 0.0
      %9539 = vmatprep.subr.mxu0 0.0
      %9540 = vmatpush1.msra.mxu0 0.0
      %9541 = vmatprep.subr.mxu0 0.0
      %9542 = vmatpush1.msra.mxu0 0.0
      %9543 = vmatprep.subr.mxu0 0.0
      %9544 = vmatpush1.msra.mxu0 0.0
      %9545 = vmatprep.subr.mxu0 0.0
      %9546 = vmatpush1.msra.mxu0 0.0
      %9547 = vmatprep.subr.mxu0 0.0
      %9548 = vmatpush1.msra.mxu0 0.0
      %9549 = vmatprep.subr.mxu0 0.0
      %9550 = vmatpush1.msra.mxu0 0.0
      %9551 = vmatprep.subr.mxu0 0.0
      %9552 = vmatpush1.msra.mxu0 0.0
      %9553 = vmatprep.subr.mxu0 0.0
      %9554 = vmatpush1.msra.mxu0 0.0
      %9555 = vmatprep.subr.mxu0 0.0
      %9556 = vmatpush1.msra.mxu0 0.0
      %9557 = vmatprep.subr.mxu0 0.0
      %9558 = vmatpush1.msra.mxu0 0.0
      %9559 = vmatprep.subr.mxu0 0.0
      %9560 = vmatpush1.msra.mxu0 0.0
      %9561 = vmatprep.subr.mxu0 0.0
      %9562 = vmatpush1.msra.mxu0 0.0
      %9563 = vmatprep.subr.mxu0 0.0
      %9564 = vmatpush1.msra.mxu0 0.0
      %9565 = vmatprep.subr.mxu0 0.0
      %9566 = vmatpush1.msra.mxu0 0.0
      %9567 = vmatprep.subr.mxu0 0.0
      %9568 = vmatpush1.msra.mxu0 0.0
      %9569 = vmatprep.subr.mxu0 0.0
      %9570 = vmatpush1.msra.mxu0 0.0
      %9571 = vmatprep.subr.mxu0 0.0
      %9572 = vmatpush1.msra.mxu0 0.0
      %9573 = vmatprep.subr.mxu0 0.0
      %9574 = vmatpush1.msra.mxu0 0.0
      %9575 = vmatprep.subr.mxu0 0.0
      %9576 = vmatpush1.msra.mxu0 0.0
      %9577 = vmatprep.subr.mxu0 0.0
      %9578 = vmatpush1.msra.mxu0 0.0
      %9579 = vmatprep.subr.mxu0 0.0
      %9580 = vmatpush1.msra.mxu0 0.0
      %9581 = vmatprep.mubr.f32.mxu0 0.0
      %9582 = vmatmul.mubr.f32.gmra.mrb[0].mxu0 %v9515
      %v9583 = vpop.f32.mrb[0].mxu0
      %v9584 = vadd.f32 0.0, %v9583
      %v9585 = vpop.f32.mrb[0].mxu0
      %v9586 = vadd.f32 0.0, %v9585
      %9587 = vdwg.mxu0
      %v9589 = vsel %vm225, %v9289, 0
      %9591 = vmatprep.subr.mxu0 %v2008
      %9592 = vmatpush1.msra.mxu0 %v2007
      %9593 = vmatprep.subr.mxu0 %v2010
      %9594 = vmatpush1.msra.mxu0 %v2009
      %9595 = vmatprep.subr.mxu0 %v2012
      %9596 = vmatpush1.msra.mxu0 %v2011
      %9597 = vmatprep.subr.mxu0 %v2014
      %9598 = vmatpush1.msra.mxu0 %v2013
      %9599 = vmatprep.subr.mxu0 0.0
      %9600 = vmatpush1.msra.mxu0 0.0
      %9601 = vmatprep.subr.mxu0 0.0
      %9602 = vmatpush1.msra.mxu0 0.0
      %9603 = vmatprep.subr.mxu0 0.0
      %9604 = vmatpush1.msra.mxu0 0.0
      %9605 = vmatprep.subr.mxu0 0.0
      %9606 = vmatpush1.msra.mxu0 0.0
      %9607 = vmatprep.subr.mxu0 0.0
      %9608 = vmatpush1.msra.mxu0 0.0
      %9609 = vmatprep.subr.mxu0 0.0
      %9610 = vmatpush1.msra.mxu0 0.0
      %9611 = vmatprep.subr.mxu0 0.0
      %9612 = vmatpush1.msra.mxu0 0.0
      %9613 = vmatprep.subr.mxu0 0.0
      %9614 = vmatpush1.msra.mxu0 0.0
      %9615 = vmatprep.subr.mxu0 0.0
      %9616 = vmatpush1.msra.mxu0 0.0
      %9617 = vmatprep.subr.mxu0 0.0
      %9618 = vmatpush1.msra.mxu0 0.0
      %9619 = vmatprep.subr.mxu0 0.0
      %9620 = vmatpush1.msra.mxu0 0.0
      %9621 = vmatprep.subr.mxu0 0.0
      %9622 = vmatpush1.msra.mxu0 0.0
      %9623 = vmatprep.subr.mxu0 0.0
      %9624 = vmatpush1.msra.mxu0 0.0
      %9625 = vmatprep.subr.mxu0 0.0
      %9626 = vmatpush1.msra.mxu0 0.0
      %9627 = vmatprep.subr.mxu0 0.0
      %9628 = vmatpush1.msra.mxu0 0.0
      %9629 = vmatprep.subr.mxu0 0.0
      %9630 = vmatpush1.msra.mxu0 0.0
      %9631 = vmatprep.subr.mxu0 0.0
      %9632 = vmatpush1.msra.mxu0 0.0
      %9633 = vmatprep.subr.mxu0 0.0
      %9634 = vmatpush1.msra.mxu0 0.0
      %9635 = vmatprep.subr.mxu0 0.0
      %9636 = vmatpush1.msra.mxu0 0.0
      %9637 = vmatprep.subr.mxu0 0.0
      %9638 = vmatpush1.msra.mxu0 0.0
      %9639 = vmatprep.subr.mxu0 0.0
      %9640 = vmatpush1.msra.mxu0 0.0
      %9641 = vmatprep.subr.mxu0 0.0
      %9642 = vmatpush1.msra.mxu0 0.0
      %9643 = vmatprep.subr.mxu0 0.0
      %9644 = vmatpush1.msra.mxu0 0.0
      %9645 = vmatprep.subr.mxu0 0.0
      %9646 = vmatpush1.msra.mxu0 0.0
      %9647 = vmatprep.subr.mxu0 0.0
      %9648 = vmatpush1.msra.mxu0 0.0
      %9649 = vmatprep.subr.mxu0 0.0
      %9650 = vmatpush1.msra.mxu0 0.0
      %9651 = vmatprep.subr.mxu0 0.0
      %9652 = vmatpush1.msra.mxu0 0.0
      %9653 = vmatprep.subr.mxu0 0.0
      %9654 = vmatpush1.msra.mxu0 0.0
      %9655 = vmatprep.mubr.f32.mxu0 0.0
      %9656 = vmatmul.mubr.f32.gmra.mrb[0].mxu0 %v9589
      %v9657 = vpop.f32.mrb[0].mxu0
      %v9658 = vadd.f32 0.0, %v9657
      %v9659 = vpop.f32.mrb[0].mxu0
      %v9660 = vadd.f32 0.0, %v9659
      %9661 = vdwg.mxu0
      %v9663 = vsel %vm225, %v9290, 0
      %9665 = vmatprep.subr.mxu0 %v2008
      %9666 = vmatpush1.msra.mxu0 %v2007
      %9667 = vmatprep.subr.mxu0 %v2010
      %9668 = vmatpush1.msra.mxu0 %v2009
      %9669 = vmatprep.subr.mxu0 %v2012
      %9670 = vmatpush1.msra.mxu0 %v2011
      %9671 = vmatprep.subr.mxu0 %v2014
      %9672 = vmatpush1.msra.mxu0 %v2013
      %9673 = vmatprep.subr.mxu0 0.0
      %9674 = vmatpush1.msra.mxu0 0.0
      %9675 = vmatprep.subr.mxu0 0.0
      %9676 = vmatpush1.msra.mxu0 0.0
      %9677 = vmatprep.subr.mxu0 0.0
      %9678 = vmatpush1.msra.mxu0 0.0
      %9679 = vmatprep.subr.mxu0 0.0
      %9680 = vmatpush1.msra.mxu0 0.0
      %9681 = vmatprep.subr.mxu0 0.0
      %9682 = vmatpush1.msra.mxu0 0.0
      %9683 = vmatprep.subr.mxu0 0.0
      %9684 = vmatpush1.msra.mxu0 0.0
      %9685 = vmatprep.subr.mxu0 0.0
      %9686 = vmatpush1.msra.mxu0 0.0
      %9687 = vmatprep.subr.mxu0 0.0
      %9688 = vmatpush1.msra.mxu0 0.0
      %9689 = vmatprep.subr.mxu0 0.0
      %9690 = vmatpush1.msra.mxu0 0.0
      %9691 = vmatprep.subr.mxu0 0.0
      %9692 = vmatpush1.msra.mxu0 0.0
      %9693 = vmatprep.subr.mxu0 0.0
      %9694 = vmatpush1.msra.mxu0 0.0
      %9695 = vmatprep.subr.mxu0 0.0
      %9696 = vmatpush1.msra.mxu0 0.0
      %9697 = vmatprep.subr.mxu0 0.0
      %9698 = vmatpush1.msra.mxu0 0.0
      %9699 = vmatprep.subr.mxu0 0.0
      %9700 = vmatpush1.msra.mxu0 0.0
      %9701 = vmatprep.subr.mxu0 0.0
      %9702 = vmatpush1.msra.mxu0 0.0
      %9703 = vmatprep.subr.mxu0 0.0
      %9704 = vmatpush1.msra.mxu0 0.0
      %9705 = vmatprep.subr.mxu0 0.0
      %9706 = vmatpush1.msra.mxu0 0.0
      %9707 = vmatprep.subr.mxu0 0.0
      %9708 = vmatpush1.msra.mxu0 0.0
      %9709 = vmatprep.subr.mxu0 0.0
      %9710 = vmatpush1.msra.mxu0 0.0
      %9711 = vmatprep.subr.mxu0 0.0
      %9712 = vmatpush1.msra.mxu0 0.0
      %9713 = vmatprep.subr.mxu0 0.0
      %9714 = vmatpush1.msra.mxu0 0.0
      %9715 = vmatprep.subr.mxu0 0.0
      %9716 = vmatpush1.msra.mxu0 0.0
      %9717 = vmatprep.subr.mxu0 0.0
      %9718 = vmatpush1.msra.mxu0 0.0
      %9719 = vmatprep.subr.mxu0 0.0
      %9720 = vmatpush1.msra.mxu0 0.0
      %9721 = vmatprep.subr.mxu0 0.0
      %9722 = vmatpush1.msra.mxu0 0.0
      %9723 = vmatprep.subr.mxu0 0.0
      %9724 = vmatpush1.msra.mxu0 0.0
      %9725 = vmatprep.subr.mxu0 0.0
      %9726 = vmatpush1.msra.mxu0 0.0
      %9727 = vmatprep.subr.mxu0 0.0
      %9728 = vmatpush1.msra.mxu0 0.0
      %9729 = vmatprep.mubr.f32.mxu0 0.0
      %9730 = vmatmul.mubr.f32.gmra.mrb[0].mxu0 %v9663
      %v9731 = vpop.f32.mrb[0].mxu0
      %v9732 = vadd.f32 0.0, %v9731
      %v9733 = vpop.f32.mrb[0].mxu0
      %v9734 = vadd.f32 0.0, %v9733
      %9735 = vdwg.mxu0
      %v9737 = vsel %vm225, %v9291, 0
      %9739 = vmatprep.subr.mxu0 %v2008
      %9740 = vmatpush1.msra.mxu0 %v2007
      %9741 = vmatprep.subr.mxu0 %v2010
      %9742 = vmatpush1.msra.mxu0 %v2009
      %9743 = vmatprep.subr.mxu0 %v2012
      %9744 = vmatpush1.msra.mxu0 %v2011
      %9745 = vmatprep.subr.mxu0 %v2014
      %9746 = vmatpush1.msra.mxu0 %v2013
      %9747 = vmatprep.subr.mxu0 0.0
      %9748 = vmatpush1.msra.mxu0 0.0
      %9749 = vmatprep.subr.mxu0 0.0
      %9750 = vmatpush1.msra.mxu0 0.0
      %9751 = vmatprep.subr.mxu0 0.0
      %9752 = vmatpush1.msra.mxu0 0.0
      %9753 = vmatprep.subr.mxu0 0.0
      %9754 = vmatpush1.msra.mxu0 0.0
      %9755 = vmatprep.subr.mxu0 0.0
      %9756 = vmatpush1.msra.mxu0 0.0
      %9757 = vmatprep.subr.mxu0 0.0
      %9758 = vmatpush1.msra.mxu0 0.0
      %9759 = vmatprep.subr.mxu0 0.0
      %9760 = vmatpush1.msra.mxu0 0.0
      %9761 = vmatprep.subr.mxu0 0.0
      %9762 = vmatpush1.msra.mxu0 0.0
      %9763 = vmatprep.subr.mxu0 0.0
      %9764 = vmatpush1.msra.mxu0 0.0
      %9765 = vmatprep.subr.mxu0 0.0
      %9766 = vmatpush1.msra.mxu0 0.0
      %9767 = vmatprep.subr.mxu0 0.0
      %9768 = vmatpush1.msra.mxu0 0.0
      %9769 = vmatprep.subr.mxu0 0.0
      %9770 = vmatpush1.msra.mxu0 0.0
      %9771 = vmatprep.subr.mxu0 0.0
      %9772 = vmatpush1.msra.mxu0 0.0
      %9773 = vmatprep.subr.mxu0 0.0
      %9774 = vmatpush1.msra.mxu0 0.0
      %9775 = vmatprep.subr.mxu0 0.0
      %9776 = vmatpush1.msra.mxu0 0.0
      %9777 = vmatprep.subr.mxu0 0.0
      %9778 = vmatpush1.msra.mxu0 0.0
      %9779 = vmatprep.subr.mxu0 0.0
      %9780 = vmatpush1.msra.mxu0 0.0
      %9781 = vmatprep.subr.mxu0 0.0
      %9782 = vmatpush1.msra.mxu0 0.0
      %9783 = vmatprep.subr.mxu0 0.0
      %9784 = vmatpush1.msra.mxu0 0.0
      %9785 = vmatprep.subr.mxu0 0.0
      %9786 = vmatpush1.msra.mxu0 0.0
      %9787 = vmatprep.subr.mxu0 0.0
      %9788 = vmatpush1.msra.mxu0 0.0
      %9789 = vmatprep.subr.mxu0 0.0
      %9790 = vmatpush1.msra.mxu0 0.0
      %9791 = vmatprep.subr.mxu0 0.0
      %9792 = vmatpush1.msra.mxu0 0.0
      %9793 = vmatprep.subr.mxu0 0.0
      %9794 = vmatpush1.msra.mxu0 0.0
      %9795 = vmatprep.subr.mxu0 0.0
      %9796 = vmatpush1.msra.mxu0 0.0
      %9797 = vmatprep.subr.mxu0 0.0
      %9798 = vmatpush1.msra.mxu0 0.0
      %9799 = vmatprep.subr.mxu0 0.0
      %9800 = vmatpush1.msra.mxu0 0.0
      %9801 = vmatprep.subr.mxu0 0.0
      %9802 = vmatpush1.msra.mxu0 0.0
      %9803 = vmatprep.mubr.f32.mxu0 0.0
      %9804 = vmatmul.mubr.f32.gmra.mrb[0].mxu0 %v9737
      %v9805 = vpop.f32.mrb[0].mxu0
      %v9806 = vadd.f32 0.0, %v9805
      %v9807 = vpop.f32.mrb[0].mxu0
      %v9808 = vadd.f32 0.0, %v9807
      %9809 = vdwg.mxu0
      %v9810 = vld [vmem:[%s8766 + $0x1] sm:$0x7f]
      %v9811 = vld [vmem:[%s8766 + $0x9] sm:$0x7f]
      %v9812 = vld [vmem:[%s8766 + $0x11] sm:$0x7f]
      %v9813 = vld [vmem:[%s8766 + $0x19] sm:$0x7f]
      %v9814 = vld [vmem:[%s8766 + $0x21] sm:$0x7f]
      %v9815 = vld [vmem:[%s8766 + $0x29] sm:$0x7f]
      %v9816 = vld [vmem:[%s8766 + $0x31] sm:$0x7f]
      %v9818 = vsel %vm225, %v9810, 0
      %9820 = vmatprep.subr.mxu0 %v2008
      %9821 = vmatpush1.msra.mxu0 %v2007
      %9822 = vmatprep.subr.mxu0 %v2010
      %9823 = vmatpush1.msra.mxu0 %v2009
      %9824 = vmatprep.subr.mxu0 %v2012
      %9825 = vmatpush1.msra.mxu0 %v2011
      %9826 = vmatprep.subr.mxu0 %v2014
      %9827 = vmatpush1.msra.mxu0 %v2013
      %9828 = vmatprep.subr.mxu0 0.0
      %9829 = vmatpush1.msra.mxu0 0.0
      %9830 = vmatprep.subr.mxu0 0.0
      %9831 = vmatpush1.msra.mxu0 0.0
      %9832 = vmatprep.subr.mxu0 0.0
      %9833 = vmatpush1.msra.mxu0 0.0
      %9834 = vmatprep.subr.mxu0 0.0
      %9835 = vmatpush1.msra.mxu0 0.0
      %9836 = vmatprep.subr.mxu0 0.0
      %9837 = vmatpush1.msra.mxu0 0.0
      %9838 = vmatprep.subr.mxu0 0.0
      %9839 = vmatpush1.msra.mxu0 0.0
      %9840 = vmatprep.subr.mxu0 0.0
      %9841 = vmatpush1.msra.mxu0 0.0
      %9842 = vmatprep.subr.mxu0 0.0
      %9843 = vmatpush1.msra.mxu0 0.0
      %9844 = vmatprep.subr.mxu0 0.0
      %9845 = vmatpush1.msra.mxu0 0.0
      %9846 = vmatprep.subr.mxu0 0.0
      %9847 = vmatpush1.msra.mxu0 0.0
      %9848 = vmatprep.subr.mxu0 0.0
      %9849 = vmatpush1.msra.mxu0 0.0
      %9850 = vmatprep.subr.mxu0 0.0
      %9851 = vmatpush1.msra.mxu0 0.0
      %9852 = vmatprep.subr.mxu0 0.0
      %9853 = vmatpush1.msra.mxu0 0.0
      %9854 = vmatprep.subr.mxu0 0.0
      %9855 = vmatpush1.msra.mxu0 0.0
      %9856 = vmatprep.subr.mxu0 0.0
      %9857 = vmatpush1.msra.mxu0 0.0
      %9858 = vmatprep.subr.mxu0 0.0
      %9859 = vmatpush1.msra.mxu0 0.0
      %9860 = vmatprep.subr.mxu0 0.0
      %9861 = vmatpush1.msra.mxu0 0.0
      %9862 = vmatprep.subr.mxu0 0.0
      %9863 = vmatpush1.msra.mxu0 0.0
      %9864 = vmatprep.subr.mxu0 0.0
      %9865 = vmatpush1.msra.mxu0 0.0
      %9866 = vmatprep.subr.mxu0 0.0
      %9867 = vmatpush1.msra.mxu0 0.0
      %9868 = vmatprep.subr.mxu0 0.0
      %9869 = vmatpush1.msra.mxu0 0.0
      %9870 = vmatprep.subr.mxu0 0.0
      %9871 = vmatpush1.msra.mxu0 0.0
      %9872 = vmatprep.subr.mxu0 0.0
      %9873 = vmatpush1.msra.mxu0 0.0
      %9874 = vmatprep.subr.mxu0 0.0
      %9875 = vmatpush1.msra.mxu0 0.0
      %9876 = vmatprep.subr.mxu0 0.0
      %9877 = vmatpush1.msra.mxu0 0.0
      %9878 = vmatprep.subr.mxu0 0.0
      %9879 = vmatpush1.msra.mxu0 0.0
      %9880 = vmatprep.subr.mxu0 0.0
      %9881 = vmatpush1.msra.mxu0 0.0
      %9882 = vmatprep.subr.mxu0 0.0
      %9883 = vmatpush1.msra.mxu0 0.0
      %9884 = vmatprep.mubr.f32.mxu0 0.0
      %9885 = vmatmul.mubr.f32.gmra.mrb[0].mxu0 %v9818
      %v9886 = vpop.f32.mrb[0].mxu0
      %v9887 = vpop.f32.mrb[0].mxu0
      %v9888 = vadd.f32 0.0, %v9887
      %9889 = vdwg.mxu0
      %v9891 = vsel %vm225, %v9811, 0
      %9893 = vmatprep.subr.mxu0 %v2008
      %9894 = vmatpush1.msra.mxu0 %v2007
      %9895 = vmatprep.subr.mxu0 %v2010
      %9896 = vmatpush1.msra.mxu0 %v2009
      %9897 = vmatprep.subr.mxu0 %v2012
      %9898 = vmatpush1.msra.mxu0 %v2011
      %9899 = vmatprep.subr.mxu0 %v2014
      %9900 = vmatpush1.msra.mxu0 %v2013
      %9901 = vmatprep.subr.mxu0 0.0
      %9902 = vmatpush1.msra.mxu0 0.0
      %9903 = vmatprep.subr.mxu0 0.0
      %9904 = vmatpush1.msra.mxu0 0.0
      %9905 = vmatprep.subr.mxu0 0.0
      %9906 = vmatpush1.msra.mxu0 0.0
      %9907 = vmatprep.subr.mxu0 0.0
      %9908 = vmatpush1.msra.mxu0 0.0
      %9909 = vmatprep.subr.mxu0 0.0
      %9910 = vmatpush1.msra.mxu0 0.0
      %9911 = vmatprep.subr.mxu0 0.0
      %9912 = vmatpush1.msra.mxu0 0.0
      %9913 = vmatprep.subr.mxu0 0.0
      %9914 = vmatpush1.msra.mxu0 0.0
      %9915 = vmatprep.subr.mxu0 0.0
      %9916 = vmatpush1.msra.mxu0 0.0
      %9917 = vmatprep.subr.mxu0 0.0
      %9918 = vmatpush1.msra.mxu0 0.0
      %9919 = vmatprep.subr.mxu0 0.0
      %9920 = vmatpush1.msra.mxu0 0.0
      %9921 = vmatprep.subr.mxu0 0.0
      %9922 = vmatpush1.msra.mxu0 0.0
      %9923 = vmatprep.subr.mxu0 0.0
      %9924 = vmatpush1.msra.mxu0 0.0
      %9925 = vmatprep.subr.mxu0 0.0
      %9926 = vmatpush1.msra.mxu0 0.0
      %9927 = vmatprep.subr.mxu0 0.0
      %9928 = vmatpush1.msra.mxu0 0.0
      %9929 = vmatprep.subr.mxu0 0.0
      %9930 = vmatpush1.msra.mxu0 0.0
      %9931 = vmatprep.subr.mxu0 0.0
      %9932 = vmatpush1.msra.mxu0 0.0
      %9933 = vmatprep.subr.mxu0 0.0
      %9934 = vmatpush1.msra.mxu0 0.0
      %9935 = vmatprep.subr.mxu0 0.0
      %9936 = vmatpush1.msra.mxu0 0.0
      %9937 = vmatprep.subr.mxu0 0.0
      %9938 = vmatpush1.msra.mxu0 0.0
      %9939 = vmatprep.subr.mxu0 0.0
      %9940 = vmatpush1.msra.mxu0 0.0
      %9941 = vmatprep.subr.mxu0 0.0
      %9942 = vmatpush1.msra.mxu0 0.0
      %9943 = vmatprep.subr.mxu0 0.0
      %9944 = vmatpush1.msra.mxu0 0.0
      %9945 = vmatprep.subr.mxu0 0.0
      %9946 = vmatpush1.msra.mxu0 0.0
      %9947 = vmatprep.subr.mxu0 0.0
      %9948 = vmatpush1.msra.mxu0 0.0
      %9949 = vmatprep.subr.mxu0 0.0
      %9950 = vmatpush1.msra.mxu0 0.0
      %9951 = vmatprep.subr.mxu0 0.0
      %9952 = vmatpush1.msra.mxu0 0.0
      %9953 = vmatprep.subr.mxu0 0.0
      %9954 = vmatpush1.msra.mxu0 0.0
      %9955 = vmatprep.subr.mxu0 0.0
      %9956 = vmatpush1.msra.mxu0 0.0
      %9957 = vmatprep.mubr.f32.mxu0 0.0
      %9958 = vmatmul.mubr.f32.gmra.mrb[0].mxu0 %v9891
      %v9959 = vpop.f32.mrb[0].mxu0
      %v9960 = vpop.f32.mrb[0].mxu0
      %v9961 = vadd.f32 0.0, %v9960
      %9962 = vdwg.mxu0
      %v9964 = vsel %vm225, %v9812, 0
      %9966 = vmatprep.subr.mxu0 %v2008
      %9967 = vmatpush1.msra.mxu0 %v2007
      %9968 = vmatprep.subr.mxu0 %v2010
      %9969 = vmatpush1.msra.mxu0 %v2009
      %9970 = vmatprep.subr.mxu0 %v2012
      %9971 = vmatpush1.msra.mxu0 %v2011
      %9972 = vmatprep.subr.mxu0 %v2014
      %9973 = vmatpush1.msra.mxu0 %v2013
      %9974 = vmatprep.subr.mxu0 0.0
      %9975 = vmatpush1.msra.mxu0 0.0
      %9976 = vmatprep.subr.mxu0 0.0
      %9977 = vmatpush1.msra.mxu0 0.0
      %9978 = vmatprep.subr.mxu0 0.0
      %9979 = vmatpush1.msra.mxu0 0.0
      %9980 = vmatprep.subr.mxu0 0.0
      %9981 = vmatpush1.msra.mxu0 0.0
      %9982 = vmatprep.subr.mxu0 0.0
      %9983 = vmatpush1.msra.mxu0 0.0
      %9984 = vmatprep.subr.mxu0 0.0
      %9985 = vmatpush1.msra.mxu0 0.0
      %9986 = vmatprep.subr.mxu0 0.0
      %9987 = vmatpush1.msra.mxu0 0.0
      %9988 = vmatprep.subr.mxu0 0.0
      %9989 = vmatpush1.msra.mxu0 0.0
      %9990 = vmatprep.subr.mxu0 0.0
      %9991 = vmatpush1.msra.mxu0 0.0
      %9992 = vmatprep.subr.mxu0 0.0
      %9993 = vmatpush1.msra.mxu0 0.0
      %9994 = vmatprep.subr.mxu0 0.0
      %9995 = vmatpush1.msra.mxu0 0.0
      %9996 = vmatprep.subr.mxu0 0.0
      %9997 = vmatpush1.msra.mxu0 0.0
      %9998 = vmatprep.subr.mxu0 0.0
      %9999 = vmatpush1.msra.mxu0 0.0
      %10000 = vmatprep.subr.mxu0 0.0
      %10001 = vmatpush1.msra.mxu0 0.0
      %10002 = vmatprep.subr.mxu0 0.0
      %10003 = vmatpush1.msra.mxu0 0.0
      %10004 = vmatprep.subr.mxu0 0.0
      %10005 = vmatpush1.msra.mxu0 0.0
      %10006 = vmatprep.subr.mxu0 0.0
      %10007 = vmatpush1.msra.mxu0 0.0
      %10008 = vmatprep.subr.mxu0 0.0
      %10009 = vmatpush1.msra.mxu0 0.0
      %10010 = vmatprep.subr.mxu0 0.0
      %10011 = vmatpush1.msra.mxu0 0.0
      %10012 = vmatprep.subr.mxu0 0.0
      %10013 = vmatpush1.msra.mxu0 0.0
      %10014 = vmatprep.subr.mxu0 0.0
      %10015 = vmatpush1.msra.mxu0 0.0
      %10016 = vmatprep.subr.mxu0 0.0
      %10017 = vmatpush1.msra.mxu0 0.0
      %10018 = vmatprep.subr.mxu0 0.0
      %10019 = vmatpush1.msra.mxu0 0.0
      %10020 = vmatprep.subr.mxu0 0.0
      %10021 = vmatpush1.msra.mxu0 0.0
      %10022 = vmatprep.subr.mxu0 0.0
      %10023 = vmatpush1.msra.mxu0 0.0
      %10024 = vmatprep.subr.mxu0 0.0
      %10025 = vmatpush1.msra.mxu0 0.0
      %10026 = vmatprep.subr.mxu0 0.0
      %10027 = vmatpush1.msra.mxu0 0.0
      %10028 = vmatprep.subr.mxu0 0.0
      %10029 = vmatpush1.msra.mxu0 0.0
      %10030 = vmatprep.mubr.f32.mxu0 0.0
      %10031 = vmatmul.mubr.f32.gmra.mrb[0].mxu0 %v9964
      %v10032 = vpop.f32.mrb[0].mxu0
      %v10033 = vpop.f32.mrb[0].mxu0
      %v10034 = vadd.f32 0.0, %v10033
      %10035 = vdwg.mxu0
      %v10037 = vsel %vm225, %v9813, 0
      %10039 = vmatprep.subr.mxu0 %v2008
      %10040 = vmatpush1.msra.mxu0 %v2007
      %10041 = vmatprep.subr.mxu0 %v2010
      %10042 = vmatpush1.msra.mxu0 %v2009
      %10043 = vmatprep.subr.mxu0 %v2012
      %10044 = vmatpush1.msra.mxu0 %v2011
      %10045 = vmatprep.subr.mxu0 %v2014
      %10046 = vmatpush1.msra.mxu0 %v2013
      %10047 = vmatprep.subr.mxu0 0.0
      %10048 = vmatpush1.msra.mxu0 0.0
      %10049 = vmatprep.subr.mxu0 0.0
      %10050 = vmatpush1.msra.mxu0 0.0
      %10051 = vmatprep.subr.mxu0 0.0
      %10052 = vmatpush1.msra.mxu0 0.0
      %10053 = vmatprep.subr.mxu0 0.0
      %10054 = vmatpush1.msra.mxu0 0.0
      %10055 = vmatprep.subr.mxu0 0.0
      %10056 = vmatpush1.msra.mxu0 0.0
      %10057 = vmatprep.subr.mxu0 0.0
      %10058 = vmatpush1.msra.mxu0 0.0
      %10059 = vmatprep.subr.mxu0 0.0
      %10060 = vmatpush1.msra.mxu0 0.0
      %10061 = vmatprep.subr.mxu0 0.0
      %10062 = vmatpush1.msra.mxu0 0.0
      %10063 = vmatprep.subr.mxu0 0.0
      %10064 = vmatpush1.msra.mxu0 0.0
      %10065 = vmatprep.subr.mxu0 0.0
      %10066 = vmatpush1.msra.mxu0 0.0
      %10067 = vmatprep.subr.mxu0 0.0
      %10068 = vmatpush1.msra.mxu0 0.0
      %10069 = vmatprep.subr.mxu0 0.0
      %10070 = vmatpush1.msra.mxu0 0.0
      %10071 = vmatprep.subr.mxu0 0.0
      %10072 = vmatpush1.msra.mxu0 0.0
      %10073 = vmatprep.subr.mxu0 0.0
      %10074 = vmatpush1.msra.mxu0 0.0
      %10075 = vmatprep.subr.mxu0 0.0
      %10076 = vmatpush1.msra.mxu0 0.0
      %10077 = vmatprep.subr.mxu0 0.0
      %10078 = vmatpush1.msra.mxu0 0.0
      %10079 = vmatprep.subr.mxu0 0.0
      %10080 = vmatpush1.msra.mxu0 0.0
      %10081 = vmatprep.subr.mxu0 0.0
      %10082 = vmatpush1.msra.mxu0 0.0
      %10083 = vmatprep.subr.mxu0 0.0
      %10084 = vmatpush1.msra.mxu0 0.0
      %10085 = vmatprep.subr.mxu0 0.0
      %10086 = vmatpush1.msra.mxu0 0.0
      %10087 = vmatprep.subr.mxu0 0.0
      %10088 = vmatpush1.msra.mxu0 0.0
      %10089 = vmatprep.subr.mxu0 0.0
      %10090 = vmatpush1.msra.mxu0 0.0
      %10091 = vmatprep.subr.mxu0 0.0
      %10092 = vmatpush1.msra.mxu0 0.0
      %10093 = vmatprep.subr.mxu0 0.0
      %10094 = vmatpush1.msra.mxu0 0.0
      %10095 = vmatprep.subr.mxu0 0.0
      %10096 = vmatpush1.msra.mxu0 0.0
      %10097 = vmatprep.subr.mxu0 0.0
      %10098 = vmatpush1.msra.mxu0 0.0
      %10099 = vmatprep.subr.mxu0 0.0
      %10100 = vmatpush1.msra.mxu0 0.0
      %10101 = vmatprep.subr.mxu0 0.0
      %10102 = vmatpush1.msra.mxu0 0.0
      %10103 = vmatprep.mubr.f32.mxu0 0.0
      %10104 = vmatmul.mubr.f32.gmra.mrb[0].mxu0 %v10037
      %v10105 = vpop.f32.mrb[0].mxu0
      %v10106 = vpop.f32.mrb[0].mxu0
      %v10107 = vadd.f32 0.0, %v10106
      %10108 = vdwg.mxu0
      %v10110 = vsel %vm225, %v9814, 0
      %10112 = vmatprep.subr.mxu0 %v2008
      %10113 = vmatpush1.msra.mxu0 %v2007
      %10114 = vmatprep.subr.mxu0 %v2010
      %10115 = vmatpush1.msra.mxu0 %v2009
      %10116 = vmatprep.subr.mxu0 %v2012
      %10117 = vmatpush1.msra.mxu0 %v2011
      %10118 = vmatprep.subr.mxu0 %v2014
      %10119 = vmatpush1.msra.mxu0 %v2013
      %10120 = vmatprep.subr.mxu0 0.0
      %10121 = vmatpush1.msra.mxu0 0.0
      %10122 = vmatprep.subr.mxu0 0.0
      %10123 = vmatpush1.msra.mxu0 0.0
      %10124 = vmatprep.subr.mxu0 0.0
      %10125 = vmatpush1.msra.mxu0 0.0
      %10126 = vmatprep.subr.mxu0 0.0
      %10127 = vmatpush1.msra.mxu0 0.0
      %10128 = vmatprep.subr.mxu0 0.0
      %10129 = vmatpush1.msra.mxu0 0.0
      %10130 = vmatprep.subr.mxu0 0.0
      %10131 = vmatpush1.msra.mxu0 0.0
      %10132 = vmatprep.subr.mxu0 0.0
      %10133 = vmatpush1.msra.mxu0 0.0
      %10134 = vmatprep.subr.mxu0 0.0
      %10135 = vmatpush1.msra.mxu0 0.0
      %10136 = vmatprep.subr.mxu0 0.0
      %10137 = vmatpush1.msra.mxu0 0.0
      %10138 = vmatprep.subr.mxu0 0.0
      %10139 = vmatpush1.msra.mxu0 0.0
      %10140 = vmatprep.subr.mxu0 0.0
      %10141 = vmatpush1.msra.mxu0 0.0
      %10142 = vmatprep.subr.mxu0 0.0
      %10143 = vmatpush1.msra.mxu0 0.0
      %10144 = vmatprep.subr.mxu0 0.0
      %10145 = vmatpush1.msra.mxu0 0.0
      %10146 = vmatprep.subr.mxu0 0.0
      %10147 = vmatpush1.msra.mxu0 0.0
      %10148 = vmatprep.subr.mxu0 0.0
      %10149 = vmatpush1.msra.mxu0 0.0
      %10150 = vmatprep.subr.mxu0 0.0
      %10151 = vmatpush1.msra.mxu0 0.0
      %10152 = vmatprep.subr.mxu0 0.0
      %10153 = vmatpush1.msra.mxu0 0.0
      %10154 = vmatprep.subr.mxu0 0.0
      %10155 = vmatpush1.msra.mxu0 0.0
      %10156 = vmatprep.subr.mxu0 0.0
      %10157 = vmatpush1.msra.mxu0 0.0
      %10158 = vmatprep.subr.mxu0 0.0
      %10159 = vmatpush1.msra.mxu0 0.0
      %10160 = vmatprep.subr.mxu0 0.0
      %10161 = vmatpush1.msra.mxu0 0.0
      %10162 = vmatprep.subr.mxu0 0.0
      %10163 = vmatpush1.msra.mxu0 0.0
      %10164 = vmatprep.subr.mxu0 0.0
      %10165 = vmatpush1.msra.mxu0 0.0
      %10166 = vmatprep.subr.mxu0 0.0
      %10167 = vmatpush1.msra.mxu0 0.0
      %10168 = vmatprep.subr.mxu0 0.0
      %10169 = vmatpush1.msra.mxu0 0.0
      %10170 = vmatprep.subr.mxu0 0.0
      %10171 = vmatpush1.msra.mxu0 0.0
      %10172 = vmatprep.subr.mxu0 0.0
      %10173 = vmatpush1.msra.mxu0 0.0
      %10174 = vmatprep.subr.mxu0 0.0
      %10175 = vmatpush1.msra.mxu0 0.0
      %10176 = vmatprep.mubr.f32.mxu0 0.0
      %10177 = vmatmul.mubr.f32.gmra.mrb[0].mxu0 %v10110
      %v10178 = vpop.f32.mrb[0].mxu0
      %v10179 = vpop.f32.mrb[0].mxu0
      %v10180 = vadd.f32 0.0, %v10179
      %10181 = vdwg.mxu0
      %v10183 = vsel %vm225, %v9815, 0
      %10185 = vmatprep.subr.mxu0 %v2008
      %10186 = vmatpush1.msra.mxu0 %v2007
      %10187 = vmatprep.subr.mxu0 %v2010
      %10188 = vmatpush1.msra.mxu0 %v2009
      %10189 = vmatprep.subr.mxu0 %v2012
      %10190 = vmatpush1.msra.mxu0 %v2011
      %10191 = vmatprep.subr.mxu0 %v2014
      %10192 = vmatpush1.msra.mxu0 %v2013
      %10193 = vmatprep.subr.mxu0 0.0
      %10194 = vmatpush1.msra.mxu0 0.0
      %10195 = vmatprep.subr.mxu0 0.0
      %10196 = vmatpush1.msra.mxu0 0.0
      %10197 = vmatprep.subr.mxu0 0.0
      %10198 = vmatpush1.msra.mxu0 0.0
      %10199 = vmatprep.subr.mxu0 0.0
      %10200 = vmatpush1.msra.mxu0 0.0
      %10201 = vmatprep.subr.mxu0 0.0
      %10202 = vmatpush1.msra.mxu0 0.0
      %10203 = vmatprep.subr.mxu0 0.0
      %10204 = vmatpush1.msra.mxu0 0.0
      %10205 = vmatprep.subr.mxu0 0.0
      %10206 = vmatpush1.msra.mxu0 0.0
      %10207 = vmatprep.subr.mxu0 0.0
      %10208 = vmatpush1.msra.mxu0 0.0
      %10209 = vmatprep.subr.mxu0 0.0
      %10210 = vmatpush1.msra.mxu0 0.0
      %10211 = vmatprep.subr.mxu0 0.0
      %10212 = vmatpush1.msra.mxu0 0.0
      %10213 = vmatprep.subr.mxu0 0.0
      %10214 = vmatpush1.msra.mxu0 0.0
      %10215 = vmatprep.subr.mxu0 0.0
      %10216 = vmatpush1.msra.mxu0 0.0
      %10217 = vmatprep.subr.mxu0 0.0
      %10218 = vmatpush1.msra.mxu0 0.0
      %10219 = vmatprep.subr.mxu0 0.0
      %10220 = vmatpush1.msra.mxu0 0.0
      %10221 = vmatprep.subr.mxu0 0.0
      %10222 = vmatpush1.msra.mxu0 0.0
      %10223 = vmatprep.subr.mxu0 0.0
      %10224 = vmatpush1.msra.mxu0 0.0
      %10225 = vmatprep.subr.mxu0 0.0
      %10226 = vmatpush1.msra.mxu0 0.0
      %10227 = vmatprep.subr.mxu0 0.0
      %10228 = vmatpush1.msra.mxu0 0.0
      %10229 = vmatprep.subr.mxu0 0.0
      %10230 = vmatpush1.msra.mxu0 0.0
      %10231 = vmatprep.subr.mxu0 0.0
      %10232 = vmatpush1.msra.mxu0 0.0
      %10233 = vmatprep.subr.mxu0 0.0
      %10234 = vmatpush1.msra.mxu0 0.0
      %10235 = vmatprep.subr.mxu0 0.0
      %10236 = vmatpush1.msra.mxu0 0.0
      %10237 = vmatprep.subr.mxu0 0.0
      %10238 = vmatpush1.msra.mxu0 0.0
      %10239 = vmatprep.subr.mxu0 0.0
      %10240 = vmatpush1.msra.mxu0 0.0
      %10241 = vmatprep.subr.mxu0 0.0
      %10242 = vmatpush1.msra.mxu0 0.0
      %10243 = vmatprep.subr.mxu0 0.0
      %10244 = vmatpush1.msra.mxu0 0.0
      %10245 = vmatprep.subr.mxu0 0.0
      %10246 = vmatpush1.msra.mxu0 0.0
      %10247 = vmatprep.subr.mxu0 0.0
      %10248 = vmatpush1.msra.mxu0 0.0
      %10249 = vmatprep.mubr.f32.mxu0 0.0
      %10250 = vmatmul.mubr.f32.gmra.mrb[0].mxu0 %v10183
      %v10251 = vpop.f32.mrb[0].mxu0
      %v10252 = vpop.f32.mrb[0].mxu0
      %v10253 = vadd.f32 0.0, %v10252
      %10254 = vdwg.mxu0
      %v10256 = vsel %vm225, %v9816, 0
      %10258 = vmatprep.subr.mxu0 %v2008
      %10259 = vmatpush1.msra.mxu0 %v2007
      %10260 = vmatprep.subr.mxu0 %v2010
      %10261 = vmatpush1.msra.mxu0 %v2009
      %10262 = vmatprep.subr.mxu0 %v2012
      %10263 = vmatpush1.msra.mxu0 %v2011
      %10264 = vmatprep.subr.mxu0 %v2014
      %10265 = vmatpush1.msra.mxu0 %v2013
      %10266 = vmatprep.subr.mxu0 0.0
      %10267 = vmatpush1.msra.mxu0 0.0
      %10268 = vmatprep.subr.mxu0 0.0
      %10269 = vmatpush1.msra.mxu0 0.0
      %10270 = vmatprep.subr.mxu0 0.0
      %10271 = vmatpush1.msra.mxu0 0.0
      %10272 = vmatprep.subr.mxu0 0.0
      %10273 = vmatpush1.msra.mxu0 0.0
      %10274 = vmatprep.subr.mxu0 0.0
      %10275 = vmatpush1.msra.mxu0 0.0
      %10276 = vmatprep.subr.mxu0 0.0
      %10277 = vmatpush1.msra.mxu0 0.0
      %10278 = vmatprep.subr.mxu0 0.0
      %10279 = vmatpush1.msra.mxu0 0.0
      %10280 = vmatprep.subr.mxu0 0.0
      %10281 = vmatpush1.msra.mxu0 0.0
      %10282 = vmatprep.subr.mxu0 0.0
      %10283 = vmatpush1.msra.mxu0 0.0
      %10284 = vmatprep.subr.mxu0 0.0
      %10285 = vmatpush1.msra.mxu0 0.0
      %10286 = vmatprep.subr.mxu0 0.0
      %10287 = vmatpush1.msra.mxu0 0.0
      %10288 = vmatprep.subr.mxu0 0.0
      %10289 = vmatpush1.msra.mxu0 0.0
      %10290 = vmatprep.subr.mxu0 0.0
      %10291 = vmatpush1.msra.mxu0 0.0
      %10292 = vmatprep.subr.mxu0 0.0
      %10293 = vmatpush1.msra.mxu0 0.0
      %10294 = vmatprep.subr.mxu0 0.0
      %10295 = vmatpush1.msra.mxu0 0.0
      %10296 = vmatprep.subr.mxu0 0.0
      %10297 = vmatpush1.msra.mxu0 0.0
      %10298 = vmatprep.subr.mxu0 0.0
      %10299 = vmatpush1.msra.mxu0 0.0
      %10300 = vmatprep.subr.mxu0 0.0
      %10301 = vmatpush1.msra.mxu0 0.0
      %10302 = vmatprep.subr.mxu0 0.0
      %10303 = vmatpush1.msra.mxu0 0.0
      %10304 = vmatprep.subr.mxu0 0.0
      %10305 = vmatpush1.msra.mxu0 0.0
      %10306 = vmatprep.subr.mxu0 0.0
      %10307 = vmatpush1.msra.mxu0 0.0
      %10308 = vmatprep.subr.mxu0 0.0
      %10309 = vmatpush1.msra.mxu0 0.0
      %10310 = vmatprep.subr.mxu0 0.0
      %10311 = vmatpush1.msra.mxu0 0.0
      %10312 = vmatprep.subr.mxu0 0.0
      %10313 = vmatpush1.msra.mxu0 0.0
      %10314 = vmatprep.subr.mxu0 0.0
      %10315 = vmatpush1.msra.mxu0 0.0
      %10316 = vmatprep.subr.mxu0 0.0
      %10317 = vmatpush1.msra.mxu0 0.0
      %10318 = vmatprep.subr.mxu0 0.0
      %10319 = vmatpush1.msra.mxu0 0.0
      %10320 = vmatprep.subr.mxu0 0.0
      %10321 = vmatpush1.msra.mxu0 0.0
      %10322 = vmatprep.mubr.f32.mxu0 0.0
      %10323 = vmatmul.mubr.f32.gmra.mrb[0].mxu0 %v10256
      %v10324 = vpop.f32.mrb[0].mxu0
      %v10325 = vpop.f32.mrb[0].mxu0
      %v10326 = vadd.f32 0.0, %v10325
      %10327 = vdwg.mxu0
      %v10329 = vlaneseq
      %v10330 = vshrl.u32 %v10329, 7
      %v10331 = vsub.s32 0, %v10330
      %v10332 = vrot.slane %v2015, %v10331
      %v10334 = vadd.f32 %v10332, 0.0
      %v10335 = vadd.f32 %v10334, %v2093
      %v10336 = vadd.f32 %v10334, %v2166
      %v10337 = vadd.f32 %v10334, %v2239
      %v10338 = vadd.f32 %v10334, %v2312
      %v10339 = vadd.f32 %v10334, %v2385
      %v10340 = vadd.f32 %v10334, %v2458
      %v10341 = vadd.f32 %v10334, %v2531
      %10349 = vrot.lane.b32.xlu0 %v2612, 112
      %v10350 = vpop.permute.xlu0 %10349
      %10351 = vrot.lane.b32.xlu0 %v2685, 112
      %v10352 = vpop.permute.xlu0 %10351
      %10353 = vrot.lane.b32.xlu0 %v2758, 112
      %v10354 = vpop.permute.xlu0 %10353
      %10355 = vrot.lane.b32.xlu0 %v2831, 112
      %v10356 = vpop.permute.xlu0 %10355
      %10357 = vrot.lane.b32.xlu0 %v2904, 112
      %v10358 = vpop.permute.xlu0 %10357
      %10359 = vrot.lane.b32.xlu0 %v2977, 112
      %v10360 = vpop.permute.xlu0 %10359
      %10361 = vrot.lane.b32.xlu0 %v3050, 112
      %v10362 = vpop.permute.xlu0 %10361
      %v10370 = vadd.f32 %v10335, %v10350
      %v10371 = vadd.f32 %v10336, %v10352
      %v10372 = vadd.f32 %v10337, %v10354
      %v10373 = vadd.f32 %v10338, %v10356
      %v10374 = vadd.f32 %v10339, %v10358
      %v10375 = vadd.f32 %v10340, %v10360
      %v10376 = vadd.f32 %v10341, %v10362
      %10384 = vrot.lane.b32.xlu0 %v3130, 96
      %v10385 = vpop.permute.xlu0 %10384
      %10386 = vrot.lane.b32.xlu0 %v3203, 96
      %v10387 = vpop.permute.xlu0 %10386
      %10388 = vrot.lane.b32.xlu0 %v3276, 96
      %v10389 = vpop.permute.xlu0 %10388
      %10390 = vrot.lane.b32.xlu0 %v3349, 96
      %v10391 = vpop.permute.xlu0 %10390
      %10392 = vrot.lane.b32.xlu0 %v3422, 96
      %v10393 = vpop.permute.xlu0 %10392
      %10394 = vrot.lane.b32.xlu0 %v3495, 96
      %v10395 = vpop.permute.xlu0 %10394
      %10396 = vrot.lane.b32.xlu0 %v3568, 96
      %v10397 = vpop.permute.xlu0 %10396
      %v10405 = vadd.f32 %v10370, %v10385
      %v10406 = vadd.f32 %v10371, %v10387
      %v10407 = vadd.f32 %v10372, %v10389
      %v10408 = vadd.f32 %v10373, %v10391
      %v10409 = vadd.f32 %v10374, %v10393
      %v10410 = vadd.f32 %v10375, %v10395
      %v10411 = vadd.f32 %v10376, %v10397
      %10419 = vrot.lane.b32.xlu0 %v4166, 80
      %v10420 = vpop.permute.xlu0 %10419
      %10421 = vrot.lane.b32.xlu0 %v4239, 80
      %v10422 = vpop.permute.xlu0 %10421
      %10423 = vrot.lane.b32.xlu0 %v4312, 80
      %v10424 = vpop.permute.xlu0 %10423
      %10425 = vrot.lane.b32.xlu0 %v4385, 80
      %v10426 = vpop.permute.xlu0 %10425
      %10427 = vrot.lane.b32.xlu0 %v4458, 80
      %v10428 = vpop.permute.xlu0 %10427
      %10429 = vrot.lane.b32.xlu0 %v4531, 80
      %v10430 = vpop.permute.xlu0 %10429
      %10431 = vrot.lane.b32.xlu0 %v4604, 80
      %v10432 = vpop.permute.xlu0 %10431
      %v10440 = vadd.f32 %v10405, %v10420
      %v10441 = vadd.f32 %v10406, %v10422
      %v10442 = vadd.f32 %v10407, %v10424
      %v10443 = vadd.f32 %v10408, %v10426
      %v10444 = vadd.f32 %v10409, %v10428
      %v10445 = vadd.f32 %v10410, %v10430
      %v10446 = vadd.f32 %v10411, %v10432
      %10454 = vrot.lane.b32.xlu0 %v4684, 64
      %v10455 = vpop.permute.xlu0 %10454
      %10456 = vrot.lane.b32.xlu0 %v4757, 64
      %v10457 = vpop.permute.xlu0 %10456
      %10458 = vrot.lane.b32.xlu0 %v4830, 64
      %v10459 = vpop.permute.xlu0 %10458
      %10460 = vrot.lane.b32.xlu0 %v4903, 64
      %v10461 = vpop.permute.xlu0 %10460
      %10462 = vrot.lane.b32.xlu0 %v4976, 64
      %v10463 = vpop.permute.xlu0 %10462
      %10464 = vrot.lane.b32.xlu0 %v5049, 64
      %v10465 = vpop.permute.xlu0 %10464
      %10466 = vrot.lane.b32.xlu0 %v5122, 64
      %v10467 = vpop.permute.xlu0 %10466
      %v10475 = vadd.f32 %v10440, %v10455
      %v10476 = vadd.f32 %v10441, %v10457
      %v10477 = vadd.f32 %v10442, %v10459
      %v10478 = vadd.f32 %v10443, %v10461
      %v10479 = vadd.f32 %v10444, %v10463
      %v10480 = vadd.f32 %v10445, %v10465
      %v10481 = vadd.f32 %v10446, %v10467
      %10489 = vrot.lane.b32.xlu0 %v5202, 48
      %v10490 = vpop.permute.xlu0 %10489
      %10491 = vrot.lane.b32.xlu0 %v5275, 48
      %v10492 = vpop.permute.xlu0 %10491
      %10493 = vrot.lane.b32.xlu0 %v5348, 48
      %v10494 = vpop.permute.xlu0 %10493
      %10495 = vrot.lane.b32.xlu0 %v5421, 48
      %v10496 = vpop.permute.xlu0 %10495
      %10497 = vrot.lane.b32.xlu0 %v5494, 48
      %v10498 = vpop.permute.xlu0 %10497
      %10499 = vrot.lane.b32.xlu0 %v5567, 48
      %v10500 = vpop.permute.xlu0 %10499
      %10501 = vrot.lane.b32.xlu0 %v5640, 48
      %v10502 = vpop.permute.xlu0 %10501
      %v10510 = vadd.f32 %v10475, %v10490
      %v10511 = vadd.f32 %v10476, %v10492
      %v10512 = vadd.f32 %v10477, %v10494
      %v10513 = vadd.f32 %v10478, %v10496
      %v10514 = vadd.f32 %v10479, %v10498
      %v10515 = vadd.f32 %v10480, %v10500
      %v10516 = vadd.f32 %v10481, %v10502
      %10524 = vrot.lane.b32.xlu0 %v6238, 32
      %v10525 = vpop.permute.xlu0 %10524
      %10526 = vrot.lane.b32.xlu0 %v6311, 32
      %v10527 = vpop.permute.xlu0 %10526
      %10528 = vrot.lane.b32.xlu0 %v6384, 32
      %v10529 = vpop.permute.xlu0 %10528
      %10530 = vrot.lane.b32.xlu0 %v6457, 32
      %v10531 = vpop.permute.xlu0 %10530
      %10532 = vrot.lane.b32.xlu0 %v6530, 32
      %v10533 = vpop.permute.xlu0 %10532
      %10534 = vrot.lane.b32.xlu0 %v6603, 32
      %v10535 = vpop.permute.xlu0 %10534
      %10536 = vrot.lane.b32.xlu0 %v6676, 32
      %v10537 = vpop.permute.xlu0 %10536
      %v10545 = vadd.f32 %v10510, %v10525
      %v10546 = vadd.f32 %v10511, %v10527
      %v10547 = vadd.f32 %v10512, %v10529
      %v10548 = vadd.f32 %v10513, %v10531
      %v10549 = vadd.f32 %v10514, %v10533
      %v10550 = vadd.f32 %v10515, %v10535
      %v10551 = vadd.f32 %v10516, %v10537
      %10559 = vrot.lane.b32.xlu0 %v6756, 16
      %v10560 = vpop.permute.xlu0 %10559
      %10561 = vrot.lane.b32.xlu0 %v6829, 16
      %v10562 = vpop.permute.xlu0 %10561
      %10563 = vrot.lane.b32.xlu0 %v6902, 16
      %v10564 = vpop.permute.xlu0 %10563
      %10565 = vrot.lane.b32.xlu0 %v6975, 16
      %v10566 = vpop.permute.xlu0 %10565
      %10567 = vrot.lane.b32.xlu0 %v7048, 16
      %v10568 = vpop.permute.xlu0 %10567
      %10569 = vrot.lane.b32.xlu0 %v7121, 16
      %v10570 = vpop.permute.xlu0 %10569
      %10571 = vrot.lane.b32.xlu0 %v7194, 16
      %v10572 = vpop.permute.xlu0 %10571
      %v10580 = vadd.f32 %v10545, %v10560
      %v10581 = vadd.f32 %v10546, %v10562
      %v10582 = vadd.f32 %v10547, %v10564
      %v10583 = vadd.f32 %v10548, %v10566
      %v10584 = vadd.f32 %v10549, %v10568
      %v10585 = vadd.f32 %v10550, %v10570
      %v10586 = vadd.f32 %v10551, %v10572
      %v10587 = vadd.f32 %v10580, %v7276
      %v10588 = vadd.f32 %v10581, %v7350
      %v10589 = vadd.f32 %v10582, %v7424
      %v10590 = vadd.f32 %v10583, %v7498
      %v10591 = vadd.f32 %v10584, %v7572
      %v10592 = vadd.f32 %v10585, %v7646
      %v10593 = vadd.f32 %v10586, %v7720
      %v10594 = vmax.f32 %v10587, 0.0
      %v10595 = vmax.f32 %v10588, 0.0
      %v10596 = vmax.f32 %v10589, 0.0
      %v10597 = vmax.f32 %v10590, 0.0
      %v10598 = vmax.f32 %v10591, 0.0
      %v10599 = vmax.f32 %v10592, 0.0
      %v10600 = vmax.f32 %v10593, 0.0
      %v10601 = vadd.f32 %v10334, %v2612
      %v10602 = vadd.f32 %v10334, %v2685
      %v10603 = vadd.f32 %v10334, %v2758
      %v10604 = vadd.f32 %v10334, %v2831
      %v10605 = vadd.f32 %v10334, %v2904
      %v10606 = vadd.f32 %v10334, %v2977
      %v10607 = vadd.f32 %v10334, %v3050
      %10608 = vrot.lane.b32.xlu0 %v3130, 112
      %v10609 = vpop.permute.xlu0 %10608
      %10610 = vrot.lane.b32.xlu0 %v3203, 112
      %v10611 = vpop.permute.xlu0 %10610
      %10612 = vrot.lane.b32.xlu0 %v3276, 112
      %v10613 = vpop.permute.xlu0 %10612
      %10614 = vrot.lane.b32.xlu0 %v3349, 112
      %v10615 = vpop.permute.xlu0 %10614
      %10616 = vrot.lane.b32.xlu0 %v3422, 112
      %v10617 = vpop.permute.xlu0 %10616
      %10618 = vrot.lane.b32.xlu0 %v3495, 112
      %v10619 = vpop.permute.xlu0 %10618
      %10620 = vrot.lane.b32.xlu0 %v3568, 112
      %v10621 = vpop.permute.xlu0 %10620
      %v10629 = vadd.f32 %v10601, %v10609
      %v10630 = vadd.f32 %v10602, %v10611
      %v10631 = vadd.f32 %v10603, %v10613
      %v10632 = vadd.f32 %v10604, %v10615
      %v10633 = vadd.f32 %v10605, %v10617
      %v10634 = vadd.f32 %v10606, %v10619
      %v10635 = vadd.f32 %v10607, %v10621
      %10643 = vrot.lane.b32.xlu0 %v3648, 96
      %v10644 = vpop.permute.xlu0 %10643
      %10645 = vrot.lane.b32.xlu0 %v3721, 96
      %v10646 = vpop.permute.xlu0 %10645
      %10647 = vrot.lane.b32.xlu0 %v3794, 96
      %v10648 = vpop.permute.xlu0 %10647
      %10649 = vrot.lane.b32.xlu0 %v3867, 96
      %v10650 = vpop.permute.xlu0 %10649
      %10651 = vrot.lane.b32.xlu0 %v3940, 96
      %v10652 = vpop.permute.xlu0 %10651
      %10653 = vrot.lane.b32.xlu0 %v4013, 96
      %v10654 = vpop.permute.xlu0 %10653
      %10655 = vrot.lane.b32.xlu0 %v4086, 96
      %v10656 = vpop.permute.xlu0 %10655
      %v10664 = vadd.f32 %v10629, %v10644
      %v10665 = vadd.f32 %v10630, %v10646
      %v10666 = vadd.f32 %v10631, %v10648
      %v10667 = vadd.f32 %v10632, %v10650
      %v10668 = vadd.f32 %v10633, %v10652
      %v10669 = vadd.f32 %v10634, %v10654
      %v10670 = vadd.f32 %v10635, %v10656
      %10671 = vrot.lane.b32.xlu0 %v4684, 80
      %v10672 = vpop.permute.xlu0 %10671
      %10673 = vrot.lane.b32.xlu0 %v4757, 80
      %v10674 = vpop.permute.xlu0 %10673
      %10675 = vrot.lane.b32.xlu0 %v4830, 80
      %v10676 = vpop.permute.xlu0 %10675
      %10677 = vrot.lane.b32.xlu0 %v4903, 80
      %v10678 = vpop.permute.xlu0 %10677
      %10679 = vrot.lane.b32.xlu0 %v4976, 80
      %v10680 = vpop.permute.xlu0 %10679
      %10681 = vrot.lane.b32.xlu0 %v5049, 80
      %v10682 = vpop.permute.xlu0 %10681
      %10683 = vrot.lane.b32.xlu0 %v5122, 80
      %v10684 = vpop.permute.xlu0 %10683
      %v10692 = vadd.f32 %v10664, %v10672
      %v10693 = vadd.f32 %v10665, %v10674
      %v10694 = vadd.f32 %v10666, %v10676
      %v10695 = vadd.f32 %v10667, %v10678
      %v10696 = vadd.f32 %v10668, %v10680
      %v10697 = vadd.f32 %v10669, %v10682
      %v10698 = vadd.f32 %v10670, %v10684
      %10699 = vrot.lane.b32.xlu0 %v5202, 64
      %v10700 = vpop.permute.xlu0 %10699
      %10701 = vrot.lane.b32.xlu0 %v5275, 64
      %v10702 = vpop.permute.xlu0 %10701
      %10703 = vrot.lane.b32.xlu0 %v5348, 64
      %v10704 = vpop.permute.xlu0 %10703
      %10705 = vrot.lane.b32.xlu0 %v5421, 64
      %v10706 = vpop.permute.xlu0 %10705
      %10707 = vrot.lane.b32.xlu0 %v5494, 64
      %v10708 = vpop.permute.xlu0 %10707
      %10709 = vrot.lane.b32.xlu0 %v5567, 64
      %v10710 = vpop.permute.xlu0 %10709
      %10711 = vrot.lane.b32.xlu0 %v5640, 64
      %v10712 = vpop.permute.xlu0 %10711
      %v10720 = vadd.f32 %v10692, %v10700
      %v10721 = vadd.f32 %v10693, %v10702
      %v10722 = vadd.f32 %v10694, %v10704
      %v10723 = vadd.f32 %v10695, %v10706
      %v10724 = vadd.f32 %v10696, %v10708
      %v10725 = vadd.f32 %v10697, %v10710
      %v10726 = vadd.f32 %v10698, %v10712
      %10734 = vrot.lane.b32.xlu0 %v5720, 48
      %v10735 = vpop.permute.xlu0 %10734
      %10736 = vrot.lane.b32.xlu0 %v5793, 48
      %v10737 = vpop.permute.xlu0 %10736
      %10738 = vrot.lane.b32.xlu0 %v5866, 48
      %v10739 = vpop.permute.xlu0 %10738
      %10740 = vrot.lane.b32.xlu0 %v5939, 48
      %v10741 = vpop.permute.xlu0 %10740
      %10742 = vrot.lane.b32.xlu0 %v6012, 48
      %v10743 = vpop.permute.xlu0 %10742
      %10744 = vrot.lane.b32.xlu0 %v6085, 48
      %v10745 = vpop.permute.xlu0 %10744
      %10746 = vrot.lane.b32.xlu0 %v6158, 48
      %v10747 = vpop.permute.xlu0 %10746
      %v10755 = vadd.f32 %v10720, %v10735
      %v10756 = vadd.f32 %v10721, %v10737
      %v10757 = vadd.f32 %v10722, %v10739
      %v10758 = vadd.f32 %v10723, %v10741
      %v10759 = vadd.f32 %v10724, %v10743
      %v10760 = vadd.f32 %v10725, %v10745
      %v10761 = vadd.f32 %v10726, %v10747
      %10762 = vrot.lane.b32.xlu0 %v6756, 32
      %v10763 = vpop.permute.xlu0 %10762
      %10764 = vrot.lane.b32.xlu0 %v6829, 32
      %v10765 = vpop.permute.xlu0 %10764
      %10766 = vrot.lane.b32.xlu0 %v6902, 32
      %v10767 = vpop.permute.xlu0 %10766
      %10768 = vrot.lane.b32.xlu0 %v6975, 32
      %v10769 = vpop.permute.xlu0 %10768
      %10770 = vrot.lane.b32.xlu0 %v7048, 32
      %v10771 = vpop.permute.xlu0 %10770
      %10772 = vrot.lane.b32.xlu0 %v7121, 32
      %v10773 = vpop.permute.xlu0 %10772
      %10774 = vrot.lane.b32.xlu0 %v7194, 32
      %v10775 = vpop.permute.xlu0 %10774
      %v10783 = vadd.f32 %v10755, %v10763
      %v10784 = vadd.f32 %v10756, %v10765
      %v10785 = vadd.f32 %v10757, %v10767
      %v10786 = vadd.f32 %v10758, %v10769
      %v10787 = vadd.f32 %v10759, %v10771
      %v10788 = vadd.f32 %v10760, %v10773
      %v10789 = vadd.f32 %v10761, %v10775
      %10797 = vrot.lane.b32.xlu0 %v7274, 16
      %v10798 = vpop.permute.xlu0 %10797
      %10799 = vrot.lane.b32.xlu0 %v7348, 16
      %v10800 = vpop.permute.xlu0 %10799
      %10801 = vrot.lane.b32.xlu0 %v7422, 16
      %v10802 = vpop.permute.xlu0 %10801
      %10803 = vrot.lane.b32.xlu0 %v7496, 16
      %v10804 = vpop.permute.xlu0 %10803
      %10805 = vrot.lane.b32.xlu0 %v7570, 16
      %v10806 = vpop.permute.xlu0 %10805
      %10807 = vrot.lane.b32.xlu0 %v7644, 16
      %v10808 = vpop.permute.xlu0 %10807
      %10809 = vrot.lane.b32.xlu0 %v7718, 16
      %v10810 = vpop.permute.xlu0 %10809
      %v10818 = vadd.f32 %v10783, %v10798
      %v10819 = vadd.f32 %v10784, %v10800
      %v10820 = vadd.f32 %v10785, %v10802
      %v10821 = vadd.f32 %v10786, %v10804
      %v10822 = vadd.f32 %v10787, %v10806
      %v10823 = vadd.f32 %v10788, %v10808
      %v10824 = vadd.f32 %v10789, %v10810
      %v10825 = vadd.f32 %v10818, %v7801
      %v10826 = vadd.f32 %v10819, %v7875
      %v10827 = vadd.f32 %v10820, %v7949
      %v10828 = vadd.f32 %v10821, %v8023
      %v10829 = vadd.f32 %v10822, %v8097
      %v10830 = vadd.f32 %v10823, %v8171
      %v10831 = vadd.f32 %v10824, %v8245
      %v10832 = vmax.f32 %v10825, 0.0
      %v10833 = vmax.f32 %v10826, 0.0
      %v10834 = vmax.f32 %v10827, 0.0
      %v10835 = vmax.f32 %v10828, 0.0
      %v10836 = vmax.f32 %v10829, 0.0
      %v10837 = vmax.f32 %v10830, 0.0
      %v10838 = vmax.f32 %v10831, 0.0
      %v10839 = vmax.f32 %v10594, %v10832
      %v10840 = vmax.f32 %v10595, %v10833
      %v10841 = vmax.f32 %v10596, %v10834
      %v10842 = vmax.f32 %v10597, %v10835
      %v10843 = vmax.f32 %v10598, %v10836
      %v10844 = vmax.f32 %v10599, %v10837
      %v10845 = vmax.f32 %v10600, %v10838
      %v10846 = vadd.f32 %v10334, %v4166
      %v10847 = vadd.f32 %v10334, %v4239
      %v10848 = vadd.f32 %v10334, %v4312
      %v10849 = vadd.f32 %v10334, %v4385
      %v10850 = vadd.f32 %v10334, %v4458
      %v10851 = vadd.f32 %v10334, %v4531
      %v10852 = vadd.f32 %v10334, %v4604
      %10853 = vrot.lane.b32.xlu0 %v4684, 112
      %v10854 = vpop.permute.xlu0 %10853
      %10855 = vrot.lane.b32.xlu0 %v4757, 112
      %v10856 = vpop.permute.xlu0 %10855
      %10857 = vrot.lane.b32.xlu0 %v4830, 112
      %v10858 = vpop.permute.xlu0 %10857
      %10859 = vrot.lane.b32.xlu0 %v4903, 112
      %v10860 = vpop.permute.xlu0 %10859
      %10861 = vrot.lane.b32.xlu0 %v4976, 112
      %v10862 = vpop.permute.xlu0 %10861
      %10863 = vrot.lane.b32.xlu0 %v5049, 112
      %v10864 = vpop.permute.xlu0 %10863
      %10865 = vrot.lane.b32.xlu0 %v5122, 112
      %v10866 = vpop.permute.xlu0 %10865
      %v10874 = vadd.f32 %v10846, %v10854
      %v10875 = vadd.f32 %v10847, %v10856
      %v10876 = vadd.f32 %v10848, %v10858
      %v10877 = vadd.f32 %v10849, %v10860
      %v10878 = vadd.f32 %v10850, %v10862
      %v10879 = vadd.f32 %v10851, %v10864
      %v10880 = vadd.f32 %v10852, %v10866
      %10881 = vrot.lane.b32.xlu0 %v5202, 96
      %v10882 = vpop.permute.xlu0 %10881
      %10883 = vrot.lane.b32.xlu0 %v5275, 96
      %v10884 = vpop.permute.xlu0 %10883
      %10885 = vrot.lane.b32.xlu0 %v5348, 96
      %v10886 = vpop.permute.xlu0 %10885
      %10887 = vrot.lane.b32.xlu0 %v5421, 96
      %v10888 = vpop.permute.xlu0 %10887
      %10889 = vrot.lane.b32.xlu0 %v5494, 96
      %v10890 = vpop.permute.xlu0 %10889
      %10891 = vrot.lane.b32.xlu0 %v5567, 96
      %v10892 = vpop.permute.xlu0 %10891
      %10893 = vrot.lane.b32.xlu0 %v5640, 96
      %v10894 = vpop.permute.xlu0 %10893
      %v10902 = vadd.f32 %v10874, %v10882
      %v10903 = vadd.f32 %v10875, %v10884
      %v10904 = vadd.f32 %v10876, %v10886
      %v10905 = vadd.f32 %v10877, %v10888
      %v10906 = vadd.f32 %v10878, %v10890
      %v10907 = vadd.f32 %v10879, %v10892
      %v10908 = vadd.f32 %v10880, %v10894
      %10909 = vrot.lane.b32.xlu0 %v6238, 80
      %v10910 = vpop.permute.xlu0 %10909
      %10911 = vrot.lane.b32.xlu0 %v6311, 80
      %v10912 = vpop.permute.xlu0 %10911
      %10913 = vrot.lane.b32.xlu0 %v6384, 80
      %v10914 = vpop.permute.xlu0 %10913
      %10915 = vrot.lane.b32.xlu0 %v6457, 80
      %v10916 = vpop.permute.xlu0 %10915
      %10917 = vrot.lane.b32.xlu0 %v6530, 80
      %v10918 = vpop.permute.xlu0 %10917
      %10919 = vrot.lane.b32.xlu0 %v6603, 80
      %v10920 = vpop.permute.xlu0 %10919
      %10921 = vrot.lane.b32.xlu0 %v6676, 80
      %v10922 = vpop.permute.xlu0 %10921
      %v10930 = vadd.f32 %v10902, %v10910
      %v10931 = vadd.f32 %v10903, %v10912
      %v10932 = vadd.f32 %v10904, %v10914
      %v10933 = vadd.f32 %v10905, %v10916
      %v10934 = vadd.f32 %v10906, %v10918
      %v10935 = vadd.f32 %v10907, %v10920
      %v10936 = vadd.f32 %v10908, %v10922
      %10937 = vrot.lane.b32.xlu0 %v6756, 64
      %v10938 = vpop.permute.xlu0 %10937
      %10939 = vrot.lane.b32.xlu0 %v6829, 64
      %v10940 = vpop.permute.xlu0 %10939
      %10941 = vrot.lane.b32.xlu0 %v6902, 64
      %v10942 = vpop.permute.xlu0 %10941
      %10943 = vrot.lane.b32.xlu0 %v6975, 64
      %v10944 = vpop.permute.xlu0 %10943
      %10945 = vrot.lane.b32.xlu0 %v7048, 64
      %v10946 = vpop.permute.xlu0 %10945
      %10947 = vrot.lane.b32.xlu0 %v7121, 64
      %v10948 = vpop.permute.xlu0 %10947
      %10949 = vrot.lane.b32.xlu0 %v7194, 64
      %v10950 = vpop.permute.xlu0 %10949
      %v10958 = vadd.f32 %v10930, %v10938
      %v10959 = vadd.f32 %v10931, %v10940
      %v10960 = vadd.f32 %v10932, %v10942
      %v10961 = vadd.f32 %v10933, %v10944
      %v10962 = vadd.f32 %v10934, %v10946
      %v10963 = vadd.f32 %v10935, %v10948
      %v10964 = vadd.f32 %v10936, %v10950
      %10965 = vrot.lane.b32.xlu0 %v7274, 48
      %v10966 = vpop.permute.xlu0 %10965
      %10967 = vrot.lane.b32.xlu0 %v7348, 48
      %v10968 = vpop.permute.xlu0 %10967
      %10969 = vrot.lane.b32.xlu0 %v7422, 48
      %v10970 = vpop.permute.xlu0 %10969
      %10971 = vrot.lane.b32.xlu0 %v7496, 48
      %v10972 = vpop.permute.xlu0 %10971
      %10973 = vrot.lane.b32.xlu0 %v7570, 48
      %v10974 = vpop.permute.xlu0 %10973
      %10975 = vrot.lane.b32.xlu0 %v7644, 48
      %v10976 = vpop.permute.xlu0 %10975
      %10977 = vrot.lane.b32.xlu0 %v7718, 48
      %v10978 = vpop.permute.xlu0 %10977
      %v10986 = vadd.f32 %v10958, %v10966
      %v10987 = vadd.f32 %v10959, %v10968
      %v10988 = vadd.f32 %v10960, %v10970
      %v10989 = vadd.f32 %v10961, %v10972
      %v10990 = vadd.f32 %v10962, %v10974
      %v10991 = vadd.f32 %v10963, %v10976
      %v10992 = vadd.f32 %v10964, %v10978
      %11000 = vrot.lane.b32.xlu0 %v8325, 32
      %v11001 = vpop.permute.xlu0 %11000
      %11002 = vrot.lane.b32.xlu0 %v8398, 32
      %v11003 = vpop.permute.xlu0 %11002
      %11004 = vrot.lane.b32.xlu0 %v8471, 32
      %v11005 = vpop.permute.xlu0 %11004
      %11006 = vrot.lane.b32.xlu0 %v8544, 32
      %v11007 = vpop.permute.xlu0 %11006
      %11008 = vrot.lane.b32.xlu0 %v8617, 32
      %v11009 = vpop.permute.xlu0 %11008
      %11010 = vrot.lane.b32.xlu0 %v8690, 32
      %v11011 = vpop.permute.xlu0 %11010
      %11012 = vrot.lane.b32.xlu0 %v8763, 32
      %v11013 = vpop.permute.xlu0 %11012
      %v11021 = vadd.f32 %v10986, %v11001
      %v11022 = vadd.f32 %v10987, %v11003
      %v11023 = vadd.f32 %v10988, %v11005
      %v11024 = vadd.f32 %v10989, %v11007
      %v11025 = vadd.f32 %v10990, %v11009
      %v11026 = vadd.f32 %v10991, %v11011
      %v11027 = vadd.f32 %v10992, %v11013
      %11035 = vrot.lane.b32.xlu0 %v8844, 16
      %v11036 = vpop.permute.xlu0 %11035
      %11037 = vrot.lane.b32.xlu0 %v8917, 16
      %v11038 = vpop.permute.xlu0 %11037
      %11039 = vrot.lane.b32.xlu0 %v8990, 16
      %v11040 = vpop.permute.xlu0 %11039
      %11041 = vrot.lane.b32.xlu0 %v9063, 16
      %v11042 = vpop.permute.xlu0 %11041
      %11043 = vrot.lane.b32.xlu0 %v9136, 16
      %v11044 = vpop.permute.xlu0 %11043
      %11045 = vrot.lane.b32.xlu0 %v9209, 16
      %v11046 = vpop.permute.xlu0 %11045
      %11047 = vrot.lane.b32.xlu0 %v9282, 16
      %v11048 = vpop.permute.xlu0 %11047
      %v11056 = vadd.f32 %v11021, %v11036
      %v11057 = vadd.f32 %v11022, %v11038
      %v11058 = vadd.f32 %v11023, %v11040
      %v11059 = vadd.f32 %v11024, %v11042
      %v11060 = vadd.f32 %v11025, %v11044
      %v11061 = vadd.f32 %v11026, %v11046
      %v11062 = vadd.f32 %v11027, %v11048
      %v11063 = vadd.f32 %v11056, %v9364
      %v11064 = vadd.f32 %v11057, %v9438
      %v11065 = vadd.f32 %v11058, %v9512
      %v11066 = vadd.f32 %v11059, %v9586
      %v11067 = vadd.f32 %v11060, %v9660
      %v11068 = vadd.f32 %v11061, %v9734
      %v11069 = vadd.f32 %v11062, %v9808
      %v11070 = vmax.f32 %v11063, 0.0
      %v11071 = vmax.f32 %v11064, 0.0
      %v11072 = vmax.f32 %v11065, 0.0
      %v11073 = vmax.f32 %v11066, 0.0
      %v11074 = vmax.f32 %v11067, 0.0
      %v11075 = vmax.f32 %v11068, 0.0
      %v11076 = vmax.f32 %v11069, 0.0
      %v11077 = vmax.f32 %v10839, %v11070
      %v11078 = vmax.f32 %v10840, %v11071
      %v11079 = vmax.f32 %v10841, %v11072
      %v11080 = vmax.f32 %v10842, %v11073
      %v11081 = vmax.f32 %v10843, %v11074
      %v11082 = vmax.f32 %v10844, %v11075
      %v11083 = vmax.f32 %v10845, %v11076
      %v11084 = vadd.f32 %v10334, %v4684
      %v11085 = vadd.f32 %v10334, %v4757
      %v11086 = vadd.f32 %v10334, %v4830
      %v11087 = vadd.f32 %v10334, %v4903
      %v11088 = vadd.f32 %v10334, %v4976
      %v11089 = vadd.f32 %v10334, %v5049
      %v11090 = vadd.f32 %v10334, %v5122
      %11091 = vrot.lane.b32.xlu0 %v5202, 112
      %v11092 = vpop.permute.xlu0 %11091
      %11093 = vrot.lane.b32.xlu0 %v5275, 112
      %v11094 = vpop.permute.xlu0 %11093
      %11095 = vrot.lane.b32.xlu0 %v5348, 112
      %v11096 = vpop.permute.xlu0 %11095
      %11097 = vrot.lane.b32.xlu0 %v5421, 112
      %v11098 = vpop.permute.xlu0 %11097
      %11099 = vrot.lane.b32.xlu0 %v5494, 112
      %v11100 = vpop.permute.xlu0 %11099
      %11101 = vrot.lane.b32.xlu0 %v5567, 112
      %v11102 = vpop.permute.xlu0 %11101
      %11103 = vrot.lane.b32.xlu0 %v5640, 112
      %v11104 = vpop.permute.xlu0 %11103
      %v11112 = vadd.f32 %v11084, %v11092
      %v11113 = vadd.f32 %v11085, %v11094
      %v11114 = vadd.f32 %v11086, %v11096
      %v11115 = vadd.f32 %v11087, %v11098
      %v11116 = vadd.f32 %v11088, %v11100
      %v11117 = vadd.f32 %v11089, %v11102
      %v11118 = vadd.f32 %v11090, %v11104
      %11119 = vrot.lane.b32.xlu0 %v5720, 96
      %v11120 = vpop.permute.xlu0 %11119
      %11121 = vrot.lane.b32.xlu0 %v5793, 96
      %v11122 = vpop.permute.xlu0 %11121
      %11123 = vrot.lane.b32.xlu0 %v5866, 96
      %v11124 = vpop.permute.xlu0 %11123
      %11125 = vrot.lane.b32.xlu0 %v5939, 96
      %v11126 = vpop.permute.xlu0 %11125
      %11127 = vrot.lane.b32.xlu0 %v6012, 96
      %v11128 = vpop.permute.xlu0 %11127
      %11129 = vrot.lane.b32.xlu0 %v6085, 96
      %v11130 = vpop.permute.xlu0 %11129
      %11131 = vrot.lane.b32.xlu0 %v6158, 96
      %v11132 = vpop.permute.xlu0 %11131
      %v11140 = vadd.f32 %v11112, %v11120
      %v11141 = vadd.f32 %v11113, %v11122
      %v11142 = vadd.f32 %v11114, %v11124
      %v11143 = vadd.f32 %v11115, %v11126
      %v11144 = vadd.f32 %v11116, %v11128
      %v11145 = vadd.f32 %v11117, %v11130
      %v11146 = vadd.f32 %v11118, %v11132
      %11147 = vrot.lane.b32.xlu0 %v6756, 80
      %v11148 = vpop.permute.xlu0 %11147
      %11149 = vrot.lane.b32.xlu0 %v6829, 80
      %v11150 = vpop.permute.xlu0 %11149
      %11151 = vrot.lane.b32.xlu0 %v6902, 80
      %v11152 = vpop.permute.xlu0 %11151
      %11153 = vrot.lane.b32.xlu0 %v6975, 80
      %v11154 = vpop.permute.xlu0 %11153
      %11155 = vrot.lane.b32.xlu0 %v7048, 80
      %v11156 = vpop.permute.xlu0 %11155
      %11157 = vrot.lane.b32.xlu0 %v7121, 80
      %v11158 = vpop.permute.xlu0 %11157
      %11159 = vrot.lane.b32.xlu0 %v7194, 80
      %v11160 = vpop.permute.xlu0 %11159
      %v11168 = vadd.f32 %v11140, %v11148
      %v11169 = vadd.f32 %v11141, %v11150
      %v11170 = vadd.f32 %v11142, %v11152
      %v11171 = vadd.f32 %v11143, %v11154
      %v11172 = vadd.f32 %v11144, %v11156
      %v11173 = vadd.f32 %v11145, %v11158
      %v11174 = vadd.f32 %v11146, %v11160
      %11175 = vrot.lane.b32.xlu0 %v7274, 64
      %v11176 = vpop.permute.xlu0 %11175
      %11177 = vrot.lane.b32.xlu0 %v7348, 64
      %v11178 = vpop.permute.xlu0 %11177
      %11179 = vrot.lane.b32.xlu0 %v7422, 64
      %v11180 = vpop.permute.xlu0 %11179
      %11181 = vrot.lane.b32.xlu0 %v7496, 64
      %v11182 = vpop.permute.xlu0 %11181
      %11183 = vrot.lane.b32.xlu0 %v7570, 64
      %v11184 = vpop.permute.xlu0 %11183
      %11185 = vrot.lane.b32.xlu0 %v7644, 64
      %v11186 = vpop.permute.xlu0 %11185
      %11187 = vrot.lane.b32.xlu0 %v7718, 64
      %v11188 = vpop.permute.xlu0 %11187
      %v11196 = vadd.f32 %v11168, %v11176
      %v11197 = vadd.f32 %v11169, %v11178
      %v11198 = vadd.f32 %v11170, %v11180
      %v11199 = vadd.f32 %v11171, %v11182
      %v11200 = vadd.f32 %v11172, %v11184
      %v11201 = vadd.f32 %v11173, %v11186
      %v11202 = vadd.f32 %v11174, %v11188
      %11210 = vrot.lane.b32.xlu0 %v7799, 48
      %v11211 = vpop.permute.xlu0 %11210
      %11212 = vrot.lane.b32.xlu0 %v7873, 48
      %v11213 = vpop.permute.xlu0 %11212
      %11214 = vrot.lane.b32.xlu0 %v7947, 48
      %v11215 = vpop.permute.xlu0 %11214
      %11216 = vrot.lane.b32.xlu0 %v8021, 48
      %v11217 = vpop.permute.xlu0 %11216
      %11218 = vrot.lane.b32.xlu0 %v8095, 48
      %v11219 = vpop.permute.xlu0 %11218
      %11220 = vrot.lane.b32.xlu0 %v8169, 48
      %v11221 = vpop.permute.xlu0 %11220
      %11222 = vrot.lane.b32.xlu0 %v8243, 48
      %v11223 = vpop.permute.xlu0 %11222
      %v11231 = vadd.f32 %v11196, %v11211
      %v11232 = vadd.f32 %v11197, %v11213
      %v11233 = vadd.f32 %v11198, %v11215
      %v11234 = vadd.f32 %v11199, %v11217
      %v11235 = vadd.f32 %v11200, %v11219
      %v11236 = vadd.f32 %v11201, %v11221
      %v11237 = vadd.f32 %v11202, %v11223
      %11238 = vrot.lane.b32.xlu0 %v8844, 32
      %v11239 = vpop.permute.xlu0 %11238
      %11240 = vrot.lane.b32.xlu0 %v8917, 32
      %v11241 = vpop.permute.xlu0 %11240
      %11242 = vrot.lane.b32.xlu0 %v8990, 32
      %v11243 = vpop.permute.xlu0 %11242
      %11244 = vrot.lane.b32.xlu0 %v9063, 32
      %v11245 = vpop.permute.xlu0 %11244
      %11246 = vrot.lane.b32.xlu0 %v9136, 32
      %v11247 = vpop.permute.xlu0 %11246
      %11248 = vrot.lane.b32.xlu0 %v9209, 32
      %v11249 = vpop.permute.xlu0 %11248
      %11250 = vrot.lane.b32.xlu0 %v9282, 32
      %v11251 = vpop.permute.xlu0 %11250
      %v11259 = vadd.f32 %v11231, %v11239
      %v11260 = vadd.f32 %v11232, %v11241
      %v11261 = vadd.f32 %v11233, %v11243
      %v11262 = vadd.f32 %v11234, %v11245
      %v11263 = vadd.f32 %v11235, %v11247
      %v11264 = vadd.f32 %v11236, %v11249
      %v11265 = vadd.f32 %v11237, %v11251
      %11273 = vrot.lane.b32.xlu0 %v9362, 16
      %v11274 = vpop.permute.xlu0 %11273
      %11275 = vrot.lane.b32.xlu0 %v9436, 16
      %v11276 = vpop.permute.xlu0 %11275
      %11277 = vrot.lane.b32.xlu0 %v9510, 16
      %v11278 = vpop.permute.xlu0 %11277
      %11279 = vrot.lane.b32.xlu0 %v9584, 16
      %v11280 = vpop.permute.xlu0 %11279
      %11281 = vrot.lane.b32.xlu0 %v9658, 16
      %v11282 = vpop.permute.xlu0 %11281
      %11283 = vrot.lane.b32.xlu0 %v9732, 16
      %v11284 = vpop.permute.xlu0 %11283
      %11285 = vrot.lane.b32.xlu0 %v9806, 16
      %v11286 = vpop.permute.xlu0 %11285
      %v11294 = vadd.f32 %v11259, %v11274
      %v11295 = vadd.f32 %v11260, %v11276
      %v11296 = vadd.f32 %v11261, %v11278
      %v11297 = vadd.f32 %v11262, %v11280
      %v11298 = vadd.f32 %v11263, %v11282
      %v11299 = vadd.f32 %v11264, %v11284
      %v11300 = vadd.f32 %v11265, %v11286
      %v11301 = vadd.f32 %v11294, %v9888
      %v11302 = vadd.f32 %v11295, %v9961
      %v11303 = vadd.f32 %v11296, %v10034
      %v11304 = vadd.f32 %v11297, %v10107
      %v11305 = vadd.f32 %v11298, %v10180
      %v11306 = vadd.f32 %v11299, %v10253
      %v11307 = vadd.f32 %v11300, %v10326
      %v11308 = vmax.f32 %v11301, 0.0
      %v11309 = vmax.f32 %v11302, 0.0
      %v11310 = vmax.f32 %v11303, 0.0
      %v11311 = vmax.f32 %v11304, 0.0
      %v11312 = vmax.f32 %v11305, 0.0
      %v11313 = vmax.f32 %v11306, 0.0
      %v11314 = vmax.f32 %v11307, 0.0
      %v11315 = vmax.f32 %v11077, %v11308
      %v11316 = vmax.f32 %v11078, %v11309
      %v11317 = vmax.f32 %v11079, %v11310
      %v11318 = vmax.f32 %v11080, %v11311
      %v11319 = vmax.f32 %v11081, %v11312
      %v11320 = vmax.f32 %v11082, %v11313
      %v11321 = vmax.f32 %v11083, %v11314
      %vm11322 = vcmask 129024
      %11323 = vst.msk [vmem:[%s224] sm:$0x7f] %vm11322, %v11315
      %11324 = vst.msk [vmem:[%s224 + $0x8] sm:$0x7f] %vm11322, %v11316
      %11325 = vst.msk [vmem:[%s224 + $0x10] sm:$0x7f] %vm11322, %v11317
      %11326 = vst.msk [vmem:[%s224 + $0x18] sm:$0x7f] %vm11322, %v11318
      %11327 = vst.msk [vmem:[%s224 + $0x20] sm:$0x7f] %vm11322, %v11319
      %11328 = vst.msk [vmem:[%s224 + $0x28] sm:$0x7f] %vm11322, %v11320
      %11329 = vst.msk [vmem:[%s224 + $0x30] sm:$0x7f] %vm11322, %v11321
      %p11330 = scmp.lt.s32.totalorder %s16, 1
      %s11331 = scalar_select %p11330, %s16, 1
      %s11332 = smul.addr %s11331, 7
      %s11333 = smul.addr %s11332, 8
      %s11334 = scalar_lea.vmem %s5, %s11333
      // Predicated region
      $region41: #{net_dropout_forward.2} parent=39 // pred_check
        %p11335 = pneg %p144
      $region42: #{net_dropout_forward.2} parent=39 // pred_check_branch
        %11337 = sbr.rel (%p11335) target = $region44
      $region43: #{net_dropout_forward.2} parent=39 // pred_region
        _
      $region44: #{net_dropout_forward.2} parent=39 // pred_fallthru
        _
    $region40: #{net_dropout_forward.2} parent=5 // pred_fallthru
      _
    %p11338 = scmp.le.s32.totalorder 2, %s11
    // Predicated region
    $region45: #{net_dropout_forward.2} parent=5 // pred_check
      %p11339 = pneg %p11338
    $region46: #{net_dropout_forward.2} parent=5 // pred_check_branch
      %11341 = sbr.rel (%p11339) target = $region48
    $region47: #{net_dropout_forward.2} parent=5 // pred_region
      %s11342 = ssub.s32 %s11, 2
      // Predicated region
      $region49: #{net_dropout_forward.2} parent=47 // pred_check
        %p11343 = pneg %p150
      $region50: #{net_dropout_forward.2} parent=47 // pred_check_branch
        %11345 = sbr.rel (%p11343) target = $region52
      $region51: #{net_dropout_forward.2} parent=47 // pred_region
        %p11346 = scmp.lt.s32.totalorder %s17, 1
        %s11347 = scalar_select %p11346, %s17, 1
        %s11348 = smul.addr %s11347, 7
        %s11349 = smul.addr %s11348, 8
        %s11350 = scalar_lea.vmem %s5, %s11349
      $region52: #{net_dropout_forward.2} parent=47 // pred_fallthru
        _
    $region48: #{net_dropout_forward.2} parent=5 // pred_fallthru
      _
  $region6: #{net_dropout_forward.2} parent=0 // loop_footer
    %s15 = sadd.s32 1, %s11
  $region7: #{net_dropout_forward.2} parent=0 // loop_footer_branch
    %10 = sbr.rel target = $region3
  $region8: #{net_dropout_forward.2} parent=0 // loop_exit
    _

</llo_original>
